<compile_context>
chip_gen: v7x
topology: tpu7x:2x2x1
jax: 0.10.0
libtpu: 0.0.40
codegen_flags: <defaults>
</compile_context>

<pallas_src>
from functools import partial

import jax
import jax.numpy as jnp
from jax.experimental import pallas as pl
from jax.experimental.pallas import tpu as pltpu

_HP = jax.lax.Precision.HIGHEST


# ----------------------------------------------------------------------------
# Kernel: one batch block.  Everything heavy is on the MXU.
# ----------------------------------------------------------------------------
def _minimal_convnet_kernel(x_ref, w1_ref, b1_ref, w2z_ref, w2x_ref, b2_ref,
                            out_ref):
    # x_ref:   (C_in*K, TN)   VMEM  -- flat channel-major, batch block on lanes
    # w1_ref:  (C1*K, C_in*K) VMEM  -- banded-circulant layer-1 weight (resident)
    # b1_ref:  (C1*K, 1)      VMEM
    # w2z_ref: (C2*K, C1*K)   VMEM  -- 1x1 conv on z, position-diagonal
    # w2x_ref: (C2*K, C_in*K) VMEM  -- 1x1 conv passthrough on x
    # b2_ref:  (C2*K, 1)      VMEM
    # out_ref: (C2*K, TN)     VMEM
    x = x_ref[...]

    # layer 1 (periodic conv) as one MXU matmul + lane-broadcast bias
    z = jnp.dot(w1_ref[...], x,
                preferred_element_type=jnp.float32, precision=_HP)
    z = z + b1_ref[...]

    # _pointwise_square (VPU)
    z2 = z * z

    # layer 2 (1x1 conv over cat([z, x])) as two MXU matmuls + bias
    out = jnp.dot(w2z_ref[...], z2,
                  preferred_element_type=jnp.float32, precision=_HP)
    out = out + jnp.dot(w2x_ref[...], x,
                        preferred_element_type=jnp.float32, precision=_HP)
    out = out + b2_ref[...]

    out_ref[...] = out.astype(out_ref.dtype)      # full-width lane-dense store


# ----------------------------------------------------------------------------
# Weight preprocessing (wrapper side, tiny)
# ----------------------------------------------------------------------------
def _build_banded_circulant(w1, K):
    """Conv weight (C1, C_in, ks) + circular pad -> dense (C1*K, C_in*K)."""
    C1, C_in, ks = w1.shape
    pad_l = ks // 2
    k = jnp.arange(K)
    acc = jnp.zeros((C1, K, C_in, K), dtype=jnp.float32)
    for t in range(ks):
        src = (k + t - pad_l) % K                              # (K,)
        onehot = (src[:, None] == jnp.arange(K)[None, :]).astype(jnp.float32)
        acc = acc + jnp.einsum("oc,km->okcm",
                               w1[:, :, t].astype(jnp.float32), onehot)
    return acc.reshape(C1 * K, C_in * K)


def _build_blockdiag_1x1(w, K):
    """1x1 conv weight (C_out, C_in) -> position-diagonal (C_out*K, C_in*K)."""
    C_out, C_in = w.shape
    eye = jnp.eye(K, dtype=jnp.float32)
    return jnp.einsum("oi,km->okim",
                      w.astype(jnp.float32), eye).reshape(C_out * K, C_in * K)


def _pick_batch_block(n):
    # Largest lane-dense block first (amortizes ~0.35us/grid step, long DMA
    # bursts); require n > tn so there are >= 2 grid steps whenever possible
    # (lets v7x split the "parallel" batch axis across both TensorCores).
    for tn in (2048, 1024, 512, 256, 128):
        if n > tn:
            return tn
    return n   # tiny batch: single full block (block == full dim is legal)


# ----------------------------------------------------------------------------
# Entry points
# ----------------------------------------------------------------------------
def minimal_convnet_l96_flat(x_flat, params):
    """Lane-dense entry point: x_flat (C_in*K, N) -> (C_out*K, N).

    Row index is c*K + k (channel-major flatten); N rides on the lane axis.
    """
    w1, b1, w2, b2 = params["w1"], params["b1"], params["w2"], params["b2"]
    C1, C_in, _ = w1.shape
    C2 = w2.shape[0]
    CK_in, N = x_flat.shape
    K = CK_in // C_in

    w1_big = _build_banded_circulant(w1, K)                 # (C1*K, C_in*K)
    w2z_big = _build_blockdiag_1x1(w2[:, :C1, 0], K)        # (C2*K, C1*K)
    w2x_big = _build_blockdiag_1x1(w2[:, C1:, 0], K)        # (C2*K, C_in*K)
    b1_big = jnp.repeat(b1.astype(jnp.float32), K)[:, None]  # (C1*K, 1)
    b2_big = jnp.repeat(b2.astype(jnp.float32), K)[:, None]  # (C2*K, 1)

    tn = _pick_batch_block(N)
    grid = (pl.cdiv(N, tn),)   # partial last block is masked on write-back

    return pl.pallas_call(
        _minimal_convnet_kernel,
        out_shape=jax.ShapeDtypeStruct((C2 * K, N), x_flat.dtype),
        grid=grid,
        in_specs=[
            pl.BlockSpec((CK_in, tn), lambda i: (0, i)),          # x (blocked)
            pl.BlockSpec(w1_big.shape, lambda i: (0, 0)),         # resident
            pl.BlockSpec(b1_big.shape, lambda i: (0, 0)),
            pl.BlockSpec(w2z_big.shape, lambda i: (0, 0)),
            pl.BlockSpec(w2x_big.shape, lambda i: (0, 0)),
            pl.BlockSpec(b2_big.shape, lambda i: (0, 0)),
        ],
        out_specs=pl.BlockSpec((C2 * K, tn), lambda i: (0, i)),
        compiler_params=pltpu.CompilerParams(
            dimension_semantics=("parallel",),      # batch axis -> megacore
            vmem_limit_bytes=32 * 1024 * 1024,      # safe on v5e/v6e/v7x
        ),
    )(x_flat, w1_big, b1_big, w2z_big, w2x_big, b2_big)


def minimal_convnet_l96_ckn(x_ckn, params):
    """Channel-major entry point: x (C_in, K, N) -> (C_out, K, N) (free reshapes)."""
    C_in, K, N = x_ckn.shape
    C2 = params["w2"].shape[0]
    out_flat = minimal_convnet_l96_flat(x_ckn.reshape(C_in * K, N), params)
    return out_flat.reshape(C2, K, N)


def minimal_convnet_l96(x, params):
    """PyTorch-layout entry point: x (N, C_in, K) -> (N, C_out, K).

    Identical semantics to MinimalConvNetL96.forward.  The two transposes are
    pure layout plumbing (each is a full HBM pass); callers that keep data
    channel-major should call minimal_convnet_l96_flat / _ckn directly.
    """
    x_ckn = jnp.transpose(x, (1, 2, 0))                  # (C_in, K, N)
    out_ckn = minimal_convnet_l96_ckn(x_ckn, params)     # (C_out, K, N)
    return jnp.transpose(out_ckn, (2, 0, 1))             # (N, C_out, K)


# ----------------------------------------------------------------------------
# Parameter init + pure-JAX reference (correctness check)
# ----------------------------------------------------------------------------
def init_params(key, J):
    """Deterministic init matching the __init__ shapes (init='rand' semantics)."""
    C_in = J + 1
    ks = 5 if J == 1 else 4
    C1 = 3 * (J + 1)
    C2_in = 4 * (J + 1)
    C2 = J + 1
    k1, k2, k3, k4 = jax.random.split(key, 4)
    bound1 = 1.0 / float(C_in * ks) ** 0.5
    bound2 = 1.0 / float(C2_in) ** 0.5
    return dict(
        w1=jax.random.uniform(k1, (C1, C_in, ks), jnp.float32, -bound1, bound1),
        b1=jax.random.uniform(k2, (C1,), jnp.float32, -bound1, bound1),
        w2=jax.random.uniform(k3, (C2, C2_in, 1), jnp.float32, -bound2, bound2),
        b2=jax.random.uniform(k4, (C2,), jnp.float32, -bound2, bound2),
    )


def reference_forward(x, params):
    """Pure-JAX reference of the PyTorch forward pass."""
    w1, b1, w2, b2 = params["w1"], params["b1"], params["w2"], params["b2"]
    N, C_in, K = x.shape
    ks = w1.shape[2]
    pad_l, pad_r = ks // 2, (ks - 1) // 2
    xpad = jnp.concatenate([x[:, :, K - pad_l:], x, x[:, :, :pad_r]], axis=-1)
    acc = b1[None, :, None]
    for t in range(ks):
        acc = acc + jnp.einsum("oc,nck->nok", w1[:, :, t], xpad[:, :, t:t + K],
                               precision=_HP)
    z = acc ** 2
    cat = jnp.concatenate([z, x], axis=1)
    return jnp.einsum("oc,nck->nok", w2[:, :, 0], cat, precision=_HP) + b2[None, :, None]


if __name__ == "__main__":
    key = jax.random.PRNGKey(0)
    # (J, K, N):
    #   J=1 -> kernel_size 5 (two-level L96), N=600 exercises the partial
    #          (masked) last batch block of the cdiv grid (512 + 88 lanes);
    #   J=2 -> kernel_size 4 (even-kernel asymmetric circular padding);
    #   N=96 exercises the tiny single-block path.
    configs = [(1, 36, 600), (2, 36, 512), (1, 36, 96)]
    for J, K, N in configs:
        key, pkey, xkey = jax.random.split(key, 3)
        params = init_params(pkey, J)
        x = jax.random.normal(xkey, (N, J + 1, K), jnp.float32)

        out = jax.block_until_ready(minimal_convnet_l96(x, params))
        ref = reference_forward(x, params)

        assert out.shape == (N, J + 1, K), out.shape
        max_err = float(jnp.max(jnp.abs(out - ref)))
        assert max_err < 5e-4, f"J={J}, N={N}: mismatch vs reference: {max_err}"
    print("KERNEL_OK")
</pallas_src>

<mosaic_0001>
module attributes {stable_mosaic.version = 11 : i64} {
  func.func @_minimal_convnet_kernel(%arg0: i32, %arg1: memref<72x512xf32, #tpu.memory_space<vmem>>, %arg2: memref<216x72xf32, #tpu.memory_space<vmem>>, %arg3: memref<216x1xf32, #tpu.memory_space<vmem>>, %arg4: memref<72x216xf32, #tpu.memory_space<vmem>>, %arg5: memref<72x72xf32, #tpu.memory_space<vmem>>, %arg6: memref<72x1xf32, #tpu.memory_space<vmem>>, %arg7: memref<72x512xf32, #tpu.memory_space<vmem>>) attributes {dimension_semantics = [#tpu.dimension_semantics<parallel>], iteration_bounds = array<i64: 2>, scalar_prefetch = 0 : i64, scratch_operands = 0 : i64, tpu.core_type = #tpu.core_type<tc>, window_params = [{transform_indices = @transform_0, window_bounds = array<i64: 72, 512>}, {pipeline_mode = #tpu.pipeline_mode<synchronous>, transform_indices = @transform_1, window_bounds = array<i64: 216, 72>}, {pipeline_mode = #tpu.pipeline_mode<synchronous>, transform_indices = @transform_2, window_bounds = array<i64: 216, 1>}, {pipeline_mode = #tpu.pipeline_mode<synchronous>, transform_indices = @transform_3, window_bounds = array<i64: 72, 216>}, {pipeline_mode = #tpu.pipeline_mode<synchronous>, transform_indices = @transform_4, window_bounds = array<i64: 72, 72>}, {pipeline_mode = #tpu.pipeline_mode<synchronous>, transform_indices = @transform_5, window_bounds = array<i64: 72, 1>}, {transform_indices = @transform_6, window_bounds = array<i64: 72, 512>}]} {
    %c0 = arith.constant 0 : index
    %c0_0 = arith.constant 0 : index
    %0 = vector.load %arg1[%c0, %c0_0] : memref<72x512xf32, #tpu.memory_space<vmem>>, vector<72x512xf32>
    %c0_1 = arith.constant 0 : index
    %c0_2 = arith.constant 0 : index
    %1 = vector.load %arg2[%c0_1, %c0_2] : memref<216x72xf32, #tpu.memory_space<vmem>>, vector<216x72xf32>
    %cst = arith.constant dense<0.000000e+00> : vector<216x512xf32>
    %2 = tpu.matmul %1, %0, %cst {dimension_numbers = #tpu.dot_dimension_numbers<[1], [0], [0], [1], [0, 0, 1, 1], [], []>, precision = #tpu.contract_precision<fp32>} : vector<216x72xf32>, vector<72x512xf32>, vector<216x512xf32> -> vector<216x512xf32>
    %c0_3 = arith.constant 0 : index
    %c0_4 = arith.constant 0 : index
    %3 = vector.load %arg3[%c0_3, %c0_4] : memref<216x1xf32, #tpu.memory_space<vmem>>, vector<216x1xf32>
    %4 = vector.broadcast %3 : vector<216x1xf32> to vector<216x512xf32>
    %5 = arith.addf %2, %4 : vector<216x512xf32>
    %6 = arith.mulf %5, %5 : vector<216x512xf32>
    %c0_5 = arith.constant 0 : index
    %c0_6 = arith.constant 0 : index
    %7 = vector.load %arg4[%c0_5, %c0_6] : memref<72x216xf32, #tpu.memory_space<vmem>>, vector<72x216xf32>
    %cst_7 = arith.constant dense<0.000000e+00> : vector<72x512xf32>
    %8 = tpu.matmul %7, %6, %cst_7 {dimension_numbers = #tpu.dot_dimension_numbers<[1], [0], [0], [1], [0, 0, 1, 1], [], []>, precision = #tpu.contract_precision<fp32>} : vector<72x216xf32>, vector<216x512xf32>, vector<72x512xf32> -> vector<72x512xf32>
    %c0_8 = arith.constant 0 : index
    %c0_9 = arith.constant 0 : index
    %9 = vector.load %arg5[%c0_8, %c0_9] : memref<72x72xf32, #tpu.memory_space<vmem>>, vector<72x72xf32>
    %cst_10 = arith.constant dense<0.000000e+00> : vector<72x512xf32>
    %10 = tpu.matmul %9, %0, %cst_10 {dimension_numbers = #tpu.dot_dimension_numbers<[1], [0], [0], [1], [0, 0, 1, 1], [], []>, precision = #tpu.contract_precision<fp32>} : vector<72x72xf32>, vector<72x512xf32>, vector<72x512xf32> -> vector<72x512xf32>
    %11 = arith.addf %8, %10 : vector<72x512xf32>
    %c0_11 = arith.constant 0 : index
    %c0_12 = arith.constant 0 : index
    %12 = vector.load %arg6[%c0_11, %c0_12] : memref<72x1xf32, #tpu.memory_space<vmem>>, vector<72x1xf32>
    %13 = vector.broadcast %12 : vector<72x1xf32> to vector<72x512xf32>
    %14 = arith.addf %11, %13 : vector<72x512xf32>
    %c0_13 = arith.constant 0 : index
    %c0_14 = arith.constant 0 : index
    %15 = vector.load %arg7[%c0_13, %c0_14] : memref<72x512xf32, #tpu.memory_space<vmem>>, vector<72x512xf32>
    tpu.vector_store %arg7[%c0_13, %c0_14], %14 {strides = array<i32>} : memref<72x512xf32, #tpu.memory_space<vmem>>, vector<72x512xf32>,
    return
  }
  func.func @transform_0(%arg0: i32) -> (i32, i32) {
    %c0_i32 = arith.constant 0 : i32
    %c0_i32_0 = arith.constant 0 : i32
    return %c0_i32, %arg0 : i32, i32
  }
  func.func @transform_1(%arg0: i32) -> (i32, i32) {
    %c0_i32 = arith.constant 0 : i32
    %c0_i32_0 = arith.constant 0 : i32
    %c0_i32_1 = arith.constant 0 : i32
    return %c0_i32, %c0_i32_0 : i32, i32
  }
  func.func @transform_2(%arg0: i32) -> (i32, i32) {
    %c0_i32 = arith.constant 0 : i32
    %c0_i32_0 = arith.constant 0 : i32
    %c0_i32_1 = arith.constant 0 : i32
    return %c0_i32, %c0_i32_0 : i32, i32
  }
  func.func @transform_3(%arg0: i32) -> (i32, i32) {
    %c0_i32 = arith.constant 0 : i32
    %c0_i32_0 = arith.constant 0 : i32
    %c0_i32_1 = arith.constant 0 : i32
    return %c0_i32, %c0_i32_0 : i32, i32
  }
  func.func @transform_4(%arg0: i32) -> (i32, i32) {
    %c0_i32 = arith.constant 0 : i32
    %c0_i32_0 = arith.constant 0 : i32
    %c0_i32_1 = arith.constant 0 : i32
    return %c0_i32, %c0_i32_0 : i32, i32
  }
  func.func @transform_5(%arg0: i32) -> (i32, i32) {
    %c0_i32 = arith.constant 0 : i32
    %c0_i32_0 = arith.constant 0 : i32
    %c0_i32_1 = arith.constant 0 : i32
    return %c0_i32, %c0_i32_0 : i32, i32
  }
  func.func @transform_6(%arg0: i32) -> (i32, i32) {
    %c0_i32 = arith.constant 0 : i32
    %c0_i32_0 = arith.constant 0 : i32
    return %c0_i32, %arg0 : i32, i32
  }
}

</mosaic_0001>

<llo_original>
// kernel: tpu_custom_call.1
$region0: #{tpu_custom_call.1}
  #allocation0 [shape = 'u32[]', space=smem, size = 0x4, offset = 0x4, fixed_abs, tag = 'smem constant byte address 0x4 - core index']
  #allocation1 [shape = 'u32[144,128]{1,0:T(1,128)}', space=vmem, size = 0x12000, scoped, tag = 'internal scratch']
  %s0 = inlined_call_operand.vmem [shape: f32[72,600], index: 0, kind: input, shape index: {}]
  %s1 = inlined_call_operand.vmem [shape: f32[216,72], index: 1, kind: input, shape index: {}]
  %s2 = inlined_call_operand.vmem [shape: f32[216,1], index: 2, kind: input, shape index: {}]
  %s3 = inlined_call_operand.vmem [shape: f32[72,216], index: 3, kind: input, shape index: {}]
  %s4 = inlined_call_operand.vmem [shape: f32[72,72], index: 4, kind: input, shape index: {}]
  %s5 = inlined_call_operand.vmem [shape: f32[72,1], index: 5, kind: input, shape index: {}]
  %s6 = inlined_call_operand.hbm [shape: f32[72,600], index: 6, kind: output, shape index: {}]
  %s7 = sld [smem:[#allocation0]]
  $region123: #{tpu_custom_call.1} parent=0
    _
  %s9 = ssub.s32 1, %s7
  %s10 = scalar_select 0, %s9, %s7
  $region1: #{tpu_custom_call.1} parent=0
    #allocation2 [shape = 'u8[294912]{0}', space=vmem, size = 0x48000, scoped, tag = 'input window, operand 0']
    #allocation3 [shape = 'u8[294912]{0}', space=vmem, size = 0x48000, scoped, tag = 'output window, operand 0']
    #allocation4 [shape = 's32[2]{0}', space=sflag, size = 0x8, scoped, tag = 'scoped memory for tpu_custom_call.1']
    %11 = vsyncpa [#allocation4], 0
    %s12 = scalar_lea.sflag [#allocation4], 1
    %13 = vsyncpa %s12, 0
    loop: start=0, step=1, limit=4
    $region2: #{tpu_custom_call.1} parent=1 // loop_pre_header
      _
    $region3: #{tpu_custom_call.1} parent=1 // loop_header
      %s15 = sphi 0, %s19
      %p16 = scmp.ge.s32.totalorder %s15, 4
      %s25 = sphi 0, %s27
      %s28 = sphi 0, %s25
      %s29 = sphi 0, %s28
      %s45 = sphi 0, %s29
      %s49 = sphi 0, %s49
      %s51 = sphi 0, %s49
      %s52 = sphi 0, %s51
      %s66 = sphi 0, %s52
      %s70 = sphi 0, %s70
      %s72 = sphi 0, %s70
      %s73 = sphi 0, %s72
      %s87 = sphi 0, %s73
      %s91 = sphi 0, %s91
      %s93 = sphi 0, %s91
      %s94 = sphi 0, %s93
      %s108 = sphi 0, %s94
      %s112 = sphi 0, %s112
      %s114 = sphi 0, %s112
      %s115 = sphi 0, %s114
      %s129 = sphi 0, %s115
      %s133 = sphi 0, %s133
      %s135 = sphi 0, %s133
      %s136 = sphi 0, %s135
      %s150 = sphi 0, %s136
      %s156 = sphi 0, %s158
      %s159 = sphi 0, %s156
      %s160 = sphi 0, %s159
      %s176 = sphi 0, %s160
    $region4: #{tpu_custom_call.1} parent=1 // loop_header_branch
      %18 = sbr.rel (%p16) target = $region8
    $region5: #{tpu_custom_call.1} parent=1 // loop_body
      %s20 = ssub.s32 %s15, 1
      %s21 = ssub.s32 %s15, 2
      %s22 = sadd.s32 %s15, 1
      %s23 = ssub.s32 %s15, %s22
      %p24 = scmp.eq.s32.totalorder %s23, 0
      %s26 = sadd.s32 %s25, 1
      %s27 = scalar_select %p24, %s25, %s26
      %p30 = pneg %p24
      %p31 = scmp.eq.s32.totalorder %s15, 1
      %p32 = por %p30, %p31
      %p33 = scmp.ne.s32.totalorder %s25, %s28
      %p34 = scmp.eq.s32.totalorder %s15, 0
      %p35 = por %p33, %p34
      %p36 = scmp.ne.s32.totalorder %s25, %s28
      %p37 = scmp.eq.s32.totalorder %s20, 1
      %p38 = por %p36, %p37
      %p39 = scmp.ne.s32.totalorder %s28, %s29
      %p40 = scmp.eq.s32.totalorder %s20, 0
      %p41 = por %p39, %p40
      %p42 = scmp.ne.s32.totalorder %s28, %s29
      %p43 = scmp.eq.s32.totalorder %s21, 1
      %p44 = por %p42, %p43
      %p46 = scmp.ne.s32.totalorder %s29, %s45
      %p47 = scmp.eq.s32.totalorder %s21, 0
      %p48 = por %p46, %p47
      %s50 = sadd.s32 %s49, 1
      %p53 = scmp.eq.s32.totalorder %s15, 1
      %p54 = scmp.ne.s32.totalorder %s49, %s51
      %p55 = scmp.eq.s32.totalorder %s15, 0
      %p56 = por %p54, %p55
      %p57 = scmp.ne.s32.totalorder %s49, %s51
      %p58 = scmp.eq.s32.totalorder %s20, 1
      %p59 = por %p57, %p58
      %p60 = scmp.ne.s32.totalorder %s51, %s52
      %p61 = scmp.eq.s32.totalorder %s20, 0
      %p62 = por %p60, %p61
      %p63 = scmp.ne.s32.totalorder %s51, %s52
      %p64 = scmp.eq.s32.totalorder %s21, 1
      %p65 = por %p63, %p64
      %p67 = scmp.ne.s32.totalorder %s52, %s66
      %p68 = scmp.eq.s32.totalorder %s21, 0
      %p69 = por %p67, %p68
      %s71 = sadd.s32 %s70, 1
      %p74 = scmp.eq.s32.totalorder %s15, 1
      %p75 = scmp.ne.s32.totalorder %s70, %s72
      %p76 = scmp.eq.s32.totalorder %s15, 0
      %p77 = por %p75, %p76
      %p78 = scmp.ne.s32.totalorder %s70, %s72
      %p79 = scmp.eq.s32.totalorder %s20, 1
      %p80 = por %p78, %p79
      %p81 = scmp.ne.s32.totalorder %s72, %s73
      %p82 = scmp.eq.s32.totalorder %s20, 0
      %p83 = por %p81, %p82
      %p84 = scmp.ne.s32.totalorder %s72, %s73
      %p85 = scmp.eq.s32.totalorder %s21, 1
      %p86 = por %p84, %p85
      %p88 = scmp.ne.s32.totalorder %s73, %s87
      %p89 = scmp.eq.s32.totalorder %s21, 0
      %p90 = por %p88, %p89
      %s92 = sadd.s32 %s91, 1
      %p95 = scmp.eq.s32.totalorder %s15, 1
      %p96 = scmp.ne.s32.totalorder %s91, %s93
      %p97 = scmp.eq.s32.totalorder %s15, 0
      %p98 = por %p96, %p97
      %p99 = scmp.ne.s32.totalorder %s91, %s93
      %p100 = scmp.eq.s32.totalorder %s20, 1
      %p101 = por %p99, %p100
      %p102 = scmp.ne.s32.totalorder %s93, %s94
      %p103 = scmp.eq.s32.totalorder %s20, 0
      %p104 = por %p102, %p103
      %p105 = scmp.ne.s32.totalorder %s93, %s94
      %p106 = scmp.eq.s32.totalorder %s21, 1
      %p107 = por %p105, %p106
      %p109 = scmp.ne.s32.totalorder %s94, %s108
      %p110 = scmp.eq.s32.totalorder %s21, 0
      %p111 = por %p109, %p110
      %s113 = sadd.s32 %s112, 1
      %p116 = scmp.eq.s32.totalorder %s15, 1
      %p117 = scmp.ne.s32.totalorder %s112, %s114
      %p118 = scmp.eq.s32.totalorder %s15, 0
      %p119 = por %p117, %p118
      %p120 = scmp.ne.s32.totalorder %s112, %s114
      %p121 = scmp.eq.s32.totalorder %s20, 1
      %p122 = por %p120, %p121
      %p123 = scmp.ne.s32.totalorder %s114, %s115
      %p124 = scmp.eq.s32.totalorder %s20, 0
      %p125 = por %p123, %p124
      %p126 = scmp.ne.s32.totalorder %s114, %s115
      %p127 = scmp.eq.s32.totalorder %s21, 1
      %p128 = por %p126, %p127
      %p130 = scmp.ne.s32.totalorder %s115, %s129
      %p131 = scmp.eq.s32.totalorder %s21, 0
      %p132 = por %p130, %p131
      %s134 = sadd.s32 %s133, 1
      %p137 = scmp.eq.s32.totalorder %s15, 1
      %p138 = scmp.ne.s32.totalorder %s133, %s135
      %p139 = scmp.eq.s32.totalorder %s15, 0
      %p140 = por %p138, %p139
      %p141 = scmp.ne.s32.totalorder %s133, %s135
      %p142 = scmp.eq.s32.totalorder %s20, 1
      %p143 = por %p141, %p142
      %p144 = scmp.ne.s32.totalorder %s135, %s136
      %p145 = scmp.eq.s32.totalorder %s20, 0
      %p146 = por %p144, %p145
      %p147 = scmp.ne.s32.totalorder %s135, %s136
      %p148 = scmp.eq.s32.totalorder %s21, 1
      %p149 = por %p147, %p148
      %p151 = scmp.ne.s32.totalorder %s136, %s150
      %p152 = scmp.eq.s32.totalorder %s21, 0
      %p153 = por %p151, %p152
      %s154 = ssub.s32 %s15, %s22
      %p155 = scmp.eq.s32.totalorder %s154, 0
      %s157 = sadd.s32 %s156, 1
      %s158 = scalar_select %p155, %s156, %s157
      %p161 = pneg %p155
      %p162 = scmp.eq.s32.totalorder %s15, 1
      %p163 = por %p161, %p162
      %p164 = scmp.ne.s32.totalorder %s156, %s159
      %p165 = scmp.eq.s32.totalorder %s15, 0
      %p166 = por %p164, %p165
      %p167 = scmp.ne.s32.totalorder %s156, %s159
      %p168 = scmp.eq.s32.totalorder %s20, 1
      %p169 = por %p167, %p168
      %p170 = scmp.ne.s32.totalorder %s159, %s160
      %p171 = scmp.eq.s32.totalorder %s20, 0
      %p172 = por %p170, %p171
      %p173 = scmp.ne.s32.totalorder %s159, %s160
      %p174 = scmp.eq.s32.totalorder %s21, 1
      %p175 = por %p173, %p174
      %p177 = scmp.ne.s32.totalorder %s160, %s176
      %p178 = scmp.eq.s32.totalorder %s21, 0
      %p179 = por %p177, %p178
      %p180 = scmp.le.s32.totalorder 1, %s15
      %p181 = scmp.lt.s32.totalorder %s15, 3
      %p182 = pnand %p180, %p181
      %p183 = pneg %p182
      // Predicated region
      $region9: #{tpu_custom_call.1} parent=5 // pred_check
        _
      $region10: #{tpu_custom_call.1} parent=5 // pred_check_branch
        %185 = sbr.rel (%p182) target = $region12
      $region11: #{tpu_custom_call.1} parent=5 // pred_region
        %s186 = ssub.s32 %s15, 1
        // Predicated region
        $region13: #{tpu_custom_call.1} parent=11 // pred_check
          %p187 = pneg %p62
        $region14: #{tpu_custom_call.1} parent=11 // pred_check_branch
          %189 = sbr.rel (%p187) target = $region16
        $region15: #{tpu_custom_call.1} parent=11 // pred_region
          _
        $region16: #{tpu_custom_call.1} parent=11 // pred_fallthru
          _
        // Predicated region
        $region17: #{tpu_custom_call.1} parent=11 // pred_check
          %p190 = pneg %p83
        $region18: #{tpu_custom_call.1} parent=11 // pred_check_branch
          %192 = sbr.rel (%p190) target = $region20
        $region19: #{tpu_custom_call.1} parent=11 // pred_region
          _
        $region20: #{tpu_custom_call.1} parent=11 // pred_fallthru
          _
        // Predicated region
        $region21: #{tpu_custom_call.1} parent=11 // pred_check
          %p193 = pneg %p104
        $region22: #{tpu_custom_call.1} parent=11 // pred_check_branch
          %195 = sbr.rel (%p193) target = $region24
        $region23: #{tpu_custom_call.1} parent=11 // pred_region
          _
        $region24: #{tpu_custom_call.1} parent=11 // pred_fallthru
          _
        // Predicated region
        $region25: #{tpu_custom_call.1} parent=11 // pred_check
          %p196 = pneg %p125
        $region26: #{tpu_custom_call.1} parent=11 // pred_check_branch
          %198 = sbr.rel (%p196) target = $region28
        $region27: #{tpu_custom_call.1} parent=11 // pred_region
          _
        $region28: #{tpu_custom_call.1} parent=11 // pred_fallthru
          _
        // Predicated region
        $region29: #{tpu_custom_call.1} parent=11 // pred_check
          %p199 = pneg %p146
        $region30: #{tpu_custom_call.1} parent=11 // pred_check_branch
          %201 = sbr.rel (%p199) target = $region32
        $region31: #{tpu_custom_call.1} parent=11 // pred_region
          _
        $region32: #{tpu_custom_call.1} parent=11 // pred_fallthru
          _
      $region12: #{tpu_custom_call.1} parent=5 // pred_fallthru
        _
      %p202 = scmp.lt.s32.totalorder %s15, 2
      // Predicated region
      $region33: #{tpu_custom_call.1} parent=5 // pred_check
        %p203 = pneg %p202
      $region34: #{tpu_custom_call.1} parent=5 // pred_check_branch
        %205 = sbr.rel (%p203) target = $region36
      $region35: #{tpu_custom_call.1} parent=5 // pred_region
        // Predicated region
        $region37: #{tpu_custom_call.1} parent=35 // pred_check
          %p206 = pneg %p35
        $region38: #{tpu_custom_call.1} parent=35 // pred_check_branch
          %208 = sbr.rel (%p206) target = $region40
        $region39: #{tpu_custom_call.1} parent=35 // pred_region
          %s209 = sand.u32 %s25, 1
          %s210 = sand.u32 %s25, 1
          %s211 = smul.addr %s210, 288
          %s212 = scalar_lea.vmem [#allocation2], %s211
          %s213 = smul.u32 4, %s15
          %s214 = ssub.s32 5, %s213
          %p215 = scmp.lt.s32.totalorder %s214, 4
          %s216 = scalar_select %p215, %s214, 4
          %s217 = smul.u32 1152, %s216
          %p218 = scmp.ne.s32.totalorder 0, %s217
          %s219 = smul.addr %s213, 8
          %s220 = scalar_lea.vmem %s0, %s219
          %s221 = smul.u32 %s216, 8
          // Predicated region
          $region41: #{tpu_custom_call.1} parent=39 // pred_check
            %p222 = pneg %p218
          $region42: #{tpu_custom_call.1} parent=39 // pred_check_branch
            %224 = sbr.rel (%p222) target = $region44
          $region43: #{tpu_custom_call.1} parent=39 // pred_region
            %p225 = scmp.lt.u32.totalorder %s221, 8
            %p226 = pneg %p225
            // Predicated region
            $region45: #{tpu_custom_call.1} parent=43 // pred_check
              _
            $region46: #{tpu_custom_call.1} parent=43 // pred_check_branch
              %228 = sbr.rel (%p225) target = $region48
            $region47: #{tpu_custom_call.1} parent=43 // pred_region
              %s259 = sand.u32 %s221, 7
              %p260 = scmp.eq.s32.totalorder %s259, 0
              // Predicated region
              $region60: #{tpu_custom_call.1} parent=47 // pred_check
                %p261 = pneg %p260
              $region61: #{tpu_custom_call.1} parent=47 // pred_check_branch
                %263 = sbr.rel (%p261) target = $region63
              $region62: #{tpu_custom_call.1} parent=47 // pred_region
                %s264 = sshrl.u32 %s221, 3
                %s265 = sshrl.u32 %s264, 3
                // While loop
                $region64: #{tpu_custom_call.1} parent=62 // loop_pre_header
                  _
                $region65: #{tpu_custom_call.1} parent=62 // loop_header
                  %s269 = sphi 0, %s271
                  %p270 = scmp.ge.s32.totalorder %s269, %s265
                  %s274 = sphi 0, %s423
                  %s275 = sphi %s220, %s426
                  %s276 = sphi %s212, %s427
                $region66: #{tpu_custom_call.1} parent=62 // loop_header_branch
                  %273 = sbr.rel (%p270) target = $region70
                $region67: #{tpu_custom_call.1} parent=62 // loop_body
                  %v277 = vld [vmem:[%s275] sm:$0xff]
                  %278 = vst [vmem:[%s276] sm:$0xff] %v277
                  %v279 = vld [vmem:[%s275 + $0x8] sm:$0xff]
                  %280 = vst [vmem:[%s276 + $0x8] sm:$0xff] %v279
                  %v281 = vld [vmem:[%s275 + $0x10] sm:$0xff]
                  %282 = vst [vmem:[%s276 + $0x10] sm:$0xff] %v281
                  %v283 = vld [vmem:[%s275 + $0x18] sm:$0xff]
                  %284 = vst [vmem:[%s276 + $0x18] sm:$0xff] %v283
                  %v285 = vld [vmem:[%s275 + $0x20] sm:$0xff]
                  %286 = vst [vmem:[%s276 + $0x20] sm:$0xff] %v285
                  %v287 = vld [vmem:[%s275 + $0x28] sm:$0xff]
                  %288 = vst [vmem:[%s276 + $0x28] sm:$0xff] %v287
                  %v289 = vld [vmem:[%s275 + $0x30] sm:$0xff]
                  %290 = vst [vmem:[%s276 + $0x30] sm:$0xff] %v289
                  %v291 = vld [vmem:[%s275 + $0x38] sm:$0xff]
                  %292 = vst [vmem:[%s276 + $0x38] sm:$0xff] %v291
                  %v293 = vld [vmem:[%s275 + $0x28] sm:$0xff]
                  %294 = vst [vmem:[%s276 + $0x20] sm:$0xff] %v293
                  %v295 = vld [vmem:[%s275 + $0x30] sm:$0xff]
                  %296 = vst [vmem:[%s276 + $0x28] sm:$0xff] %v295
                  %v297 = vld [vmem:[%s275 + $0x38] sm:$0xff]
                  %298 = vst [vmem:[%s276 + $0x30] sm:$0xff] %v297
                  %v299 = vld [vmem:[%s275 + $0x40] sm:$0xff]
                  %300 = vst [vmem:[%s276 + $0x38] sm:$0xff] %v299
                  %v301 = vld [vmem:[%s275 + $0x48] sm:$0xff]
                  %302 = vst [vmem:[%s276 + $0x40] sm:$0xff] %v301
                  %v303 = vld [vmem:[%s275 + $0x50] sm:$0xff]
                  %304 = vst [vmem:[%s276 + $0x48] sm:$0xff] %v303
                  %v305 = vld [vmem:[%s275 + $0x58] sm:$0xff]
                  %306 = vst [vmem:[%s276 + $0x50] sm:$0xff] %v305
                  %v307 = vld [vmem:[%s275 + $0x60] sm:$0xff]
                  %308 = vst [vmem:[%s276 + $0x58] sm:$0xff] %v307
                  %v309 = vld [vmem:[%s275 + $0x50] sm:$0xff]
                  %310 = vst [vmem:[%s276 + $0x40] sm:$0xff] %v309
                  %v311 = vld [vmem:[%s275 + $0x58] sm:$0xff]
                  %312 = vst [vmem:[%s276 + $0x48] sm:$0xff] %v311
                  %v313 = vld [vmem:[%s275 + $0x60] sm:$0xff]
                  %314 = vst [vmem:[%s276 + $0x50] sm:$0xff] %v313
                  %v315 = vld [vmem:[%s275 + $0x68] sm:$0xff]
                  %316 = vst [vmem:[%s276 + $0x58] sm:$0xff] %v315
                  %v317 = vld [vmem:[%s275 + $0x70] sm:$0xff]
                  %318 = vst [vmem:[%s276 + $0x60] sm:$0xff] %v317
                  %v319 = vld [vmem:[%s275 + $0x78] sm:$0xff]
                  %320 = vst [vmem:[%s276 + $0x68] sm:$0xff] %v319
                  %v321 = vld [vmem:[%s275 + $0x80] sm:$0xff]
                  %322 = vst [vmem:[%s276 + $0x70] sm:$0xff] %v321
                  %v323 = vld [vmem:[%s275 + $0x88] sm:$0xff]
                  %324 = vst [vmem:[%s276 + $0x78] sm:$0xff] %v323
                  %v325 = vld [vmem:[%s275 + $0x78] sm:$0xff]
                  %326 = vst [vmem:[%s276 + $0x60] sm:$0xff] %v325
                  %v327 = vld [vmem:[%s275 + $0x80] sm:$0xff]
                  %328 = vst [vmem:[%s276 + $0x68] sm:$0xff] %v327
                  %v329 = vld [vmem:[%s275 + $0x88] sm:$0xff]
                  %330 = vst [vmem:[%s276 + $0x70] sm:$0xff] %v329
                  %v331 = vld [vmem:[%s275 + $0x90] sm:$0xff]
                  %332 = vst [vmem:[%s276 + $0x78] sm:$0xff] %v331
                  %v333 = vld [vmem:[%s275 + $0x98] sm:$0xff]
                  %334 = vst [vmem:[%s276 + $0x80] sm:$0xff] %v333
                  %v335 = vld [vmem:[%s275 + $0xa0] sm:$0xff]
                  %336 = vst [vmem:[%s276 + $0x88] sm:$0xff] %v335
                  %v337 = vld [vmem:[%s275 + $0xa8] sm:$0xff]
                  %338 = vst [vmem:[%s276 + $0x90] sm:$0xff] %v337
                  %v339 = vld [vmem:[%s275 + $0xb0] sm:$0xff]
                  %340 = vst [vmem:[%s276 + $0x98] sm:$0xff] %v339
                  %v341 = vld [vmem:[%s275 + $0xa0] sm:$0xff]
                  %342 = vst [vmem:[%s276 + $0x80] sm:$0xff] %v341
                  %v343 = vld [vmem:[%s275 + $0xa8] sm:$0xff]
                  %344 = vst [vmem:[%s276 + $0x88] sm:$0xff] %v343
                  %v345 = vld [vmem:[%s275 + $0xb0] sm:$0xff]
                  %346 = vst [vmem:[%s276 + $0x90] sm:$0xff] %v345
                  %v347 = vld [vmem:[%s275 + $0xb8] sm:$0xff]
                  %348 = vst [vmem:[%s276 + $0x98] sm:$0xff] %v347
                  %v349 = vld [vmem:[%s275 + $0xc0] sm:$0xff]
                  %350 = vst [vmem:[%s276 + $0xa0] sm:$0xff] %v349
                  %v351 = vld [vmem:[%s275 + $0xc8] sm:$0xff]
                  %352 = vst [vmem:[%s276 + $0xa8] sm:$0xff] %v351
                  %v353 = vld [vmem:[%s275 + $0xd0] sm:$0xff]
                  %354 = vst [vmem:[%s276 + $0xb0] sm:$0xff] %v353
                  %v355 = vld [vmem:[%s275 + $0xd8] sm:$0xff]
                  %356 = vst [vmem:[%s276 + $0xb8] sm:$0xff] %v355
                  %v357 = vld [vmem:[%s275 + $0xc8] sm:$0xff]
                  %358 = vst [vmem:[%s276 + $0xa0] sm:$0xff] %v357
                  %v359 = vld [vmem:[%s275 + $0xd0] sm:$0xff]
                  %360 = vst [vmem:[%s276 + $0xa8] sm:$0xff] %v359
                  %v361 = vld [vmem:[%s275 + $0xd8] sm:$0xff]
                  %362 = vst [vmem:[%s276 + $0xb0] sm:$0xff] %v361
                  %v363 = vld [vmem:[%s275 + $0xe0] sm:$0xff]
                  %364 = vst [vmem:[%s276 + $0xb8] sm:$0xff] %v363
                  %v365 = vld [vmem:[%s275 + $0xe8] sm:$0xff]
                  %366 = vst [vmem:[%s276 + $0xc0] sm:$0xff] %v365
                  %v367 = vld [vmem:[%s275 + $0xf0] sm:$0xff]
                  %368 = vst [vmem:[%s276 + $0xc8] sm:$0xff] %v367
                  %v369 = vld [vmem:[%s275 + $0xf8] sm:$0xff]
                  %370 = vst [vmem:[%s276 + $0xd0] sm:$0xff] %v369
                  %v371 = vld [vmem:[%s275 + $0x100] sm:$0xff]
                  %372 = vst [vmem:[%s276 + $0xd8] sm:$0xff] %v371
                  %v373 = vld [vmem:[%s275 + $0xf0] sm:$0xff]
                  %374 = vst [vmem:[%s276 + $0xc0] sm:$0xff] %v373
                  %v375 = vld [vmem:[%s275 + $0xf8] sm:$0xff]
                  %376 = vst [vmem:[%s276 + $0xc8] sm:$0xff] %v375
                  %v377 = vld [vmem:[%s275 + $0x100] sm:$0xff]
                  %378 = vst [vmem:[%s276 + $0xd0] sm:$0xff] %v377
                  %v379 = vld [vmem:[%s275 + $0x108] sm:$0xff]
                  %380 = vst [vmem:[%s276 + $0xd8] sm:$0xff] %v379
                  %v381 = vld [vmem:[%s275 + $0x110] sm:$0xff]
                  %382 = vst [vmem:[%s276 + $0xe0] sm:$0xff] %v381
                  %v383 = vld [vmem:[%s275 + $0x118] sm:$0xff]
                  %384 = vst [vmem:[%s276 + $0xe8] sm:$0xff] %v383
                  %v385 = vld [vmem:[%s275 + $0x120] sm:$0xff]
                  %386 = vst [vmem:[%s276 + $0xf0] sm:$0xff] %v385
                  %v387 = vld [vmem:[%s275 + $0x128] sm:$0xff]
                  %388 = vst [vmem:[%s276 + $0xf8] sm:$0xff] %v387
                  %v389 = vld [vmem:[%s275 + $0x118] sm:$0xff]
                  %390 = vst [vmem:[%s276 + $0xe0] sm:$0xff] %v389
                  %v391 = vld [vmem:[%s275 + $0x120] sm:$0xff]
                  %392 = vst [vmem:[%s276 + $0xe8] sm:$0xff] %v391
                  %v393 = vld [vmem:[%s275 + $0x128] sm:$0xff]
                  %394 = vst [vmem:[%s276 + $0xf0] sm:$0xff] %v393
                  %v395 = vld [vmem:[%s275 + $0x130] sm:$0xff]
                  %396 = vst [vmem:[%s276 + $0xf8] sm:$0xff] %v395
                  %v397 = vld [vmem:[%s275 + $0x138] sm:$0xff]
                  %398 = vst [vmem:[%s276 + $0x100] sm:$0xff] %v397
                  %v399 = vld [vmem:[%s275 + $0x140] sm:$0xff]
                  %400 = vst [vmem:[%s276 + $0x108] sm:$0xff] %v399
                  %v401 = vld [vmem:[%s275 + $0x148] sm:$0xff]
                  %402 = vst [vmem:[%s276 + $0x110] sm:$0xff] %v401
                  %v403 = vld [vmem:[%s275 + $0x150] sm:$0xff]
                  %404 = vst [vmem:[%s276 + $0x118] sm:$0xff] %v403
                  %v405 = vld [vmem:[%s275 + $0x140] sm:$0xff]
                  %406 = vst [vmem:[%s276 + $0x100] sm:$0xff] %v405
                  %v407 = vld [vmem:[%s275 + $0x148] sm:$0xff]
                  %408 = vst [vmem:[%s276 + $0x108] sm:$0xff] %v407
                  %v409 = vld [vmem:[%s275 + $0x150] sm:$0xff]
                  %410 = vst [vmem:[%s276 + $0x110] sm:$0xff] %v409
                  %v411 = vld [vmem:[%s275 + $0x158] sm:$0xff]
                  %412 = vst [vmem:[%s276 + $0x118] sm:$0xff] %v411
                  %v413 = vld [vmem:[%s275 + $0x160] sm:$0xff]
                  %414 = vst [vmem:[%s276 + $0x120] sm:$0xff] %v413
                  %v415 = vld [vmem:[%s275 + $0x168] sm:$0xff]
                  %416 = vst [vmem:[%s276 + $0x128] sm:$0xff] %v415
                  %v417 = vld [vmem:[%s275 + $0x170] sm:$0xff]
                  %418 = vst [vmem:[%s276 + $0x130] sm:$0xff] %v417
                  %v419 = vld [vmem:[%s275 + $0x178] sm:$0xff]
                  %420 = vst [vmem:[%s276 + $0x138] sm:$0xff] %v419
                  %s421 = sadd.s32 1, %s274
                  %p422 = scmp.ge.s32.totalorder %s421, %s265
                  %s423 = scalar_select %p422, 0, %s421
                  %s424 = smul.u32 %s423, 64
                  %s425 = smul.u32 %s423, 64
                  %s426 = scalar_lea.vmem %s220, %s424
                  %s427 = scalar_lea.vmem %s212, %s425 [#allocation2]
                $region68: #{tpu_custom_call.1} parent=62 // loop_footer
                  %s271 = sadd.s32 %s269, 1
                $region69: #{tpu_custom_call.1} parent=62 // loop_footer_branch
                  %268 = sbr.rel target = $region65
                $region70: #{tpu_custom_call.1} parent=62 // loop_exit
                  _
                %s428 = sshrl.u32 %s264, 3
                %s429 = sand.u32 %s264, 7
                %s430 = smul.u32 %s428, 8
                %s431 = smul.u32 128, %s430
                %s432 = sshra.s32 %s431, 4
                %s433 = scalar_lea.vmem %s220, %s432
                %s434 = smul.u32 128, %s430
                %s435 = sshra.s32 %s434, 4
                %s436 = scalar_lea.vmem %s212, %s435 [#allocation2]
                // While loop
                $region71: #{tpu_custom_call.1} parent=62 // loop_pre_header
                  _
                $region72: #{tpu_custom_call.1} parent=62 // loop_header
                  %s440 = sphi 0, %s442
                  %p441 = scmp.ge.s32.totalorder %s440, %s429
                  %s445 = sphi 0, %s468
                  %s446 = sphi %s433, %s471
                  %s447 = sphi %s436, %s472
                $region73: #{tpu_custom_call.1} parent=62 // loop_header_branch
                  %444 = sbr.rel (%p441) target = $region77
                $region74: #{tpu_custom_call.1} parent=62 // loop_body
                  %v448 = vld [vmem:[%s446] sm:$0xff]
                  %449 = vst [vmem:[%s447] sm:$0xff] %v448
                  %v450 = vld [vmem:[%s446 + $0x28] sm:$0xff]
                  %451 = vst [vmem:[%s447 + $0x20] sm:$0xff] %v450
                  %v452 = vld [vmem:[%s446 + $0x50] sm:$0xff]
                  %453 = vst [vmem:[%s447 + $0x40] sm:$0xff] %v452
                  %v454 = vld [vmem:[%s446 + $0x78] sm:$0xff]
                  %455 = vst [vmem:[%s447 + $0x60] sm:$0xff] %v454
                  %v456 = vld [vmem:[%s446 + $0xa0] sm:$0xff]
                  %457 = vst [vmem:[%s447 + $0x80] sm:$0xff] %v456
                  %v458 = vld [vmem:[%s446 + $0xc8] sm:$0xff]
                  %459 = vst [vmem:[%s447 + $0xa0] sm:$0xff] %v458
                  %v460 = vld [vmem:[%s446 + $0xf0] sm:$0xff]
                  %461 = vst [vmem:[%s447 + $0xc0] sm:$0xff] %v460
                  %v462 = vld [vmem:[%s446 + $0x118] sm:$0xff]
                  %463 = vst [vmem:[%s447 + $0xe0] sm:$0xff] %v462
                  %v464 = vld [vmem:[%s446 + $0x140] sm:$0xff]
                  %465 = vst [vmem:[%s447 + $0x100] sm:$0xff] %v464
                  %s466 = sadd.s32 1, %s445
                  %p467 = scmp.ge.s32.totalorder %s466, %s429
                  %s468 = scalar_select %p467, 0, %s466
                  %s469 = smul.u32 %s468, 8
                  %s470 = smul.u32 %s468, 8
                  %s471 = scalar_lea.vmem %s433, %s469
                  %s472 = scalar_lea.vmem %s436, %s470 [#allocation2]
                $region75: #{tpu_custom_call.1} parent=62 // loop_footer
                  %s442 = sadd.s32 %s440, 1
                $region76: #{tpu_custom_call.1} parent=62 // loop_footer_branch
                  %439 = sbr.rel target = $region72
                $region77: #{tpu_custom_call.1} parent=62 // loop_exit
                  _
              $region63: #{tpu_custom_call.1} parent=47 // pred_fallthru
                _
              %p473 = pneg %p260
              // Predicated region
              $region78: #{tpu_custom_call.1} parent=47 // pred_check
                _
              $region79: #{tpu_custom_call.1} parent=47 // pred_check_branch
                %475 = sbr.rel (%p260) target = $region81
              $region80: #{tpu_custom_call.1} parent=47 // pred_region
                %s476 = sand.u32 %s221, 7
                %s477 = ssub.s32 %s221, %s476
                %s478 = scalar_lea.vmem %s220, %s477
                %s479 = ssub.s32 %s221, %s476
                %s480 = scalar_lea.vmem %s212, %s479 [#allocation2]
                %s481 = sshrl.u32 %s221, 3
                %s482 = sshrl.u32 %s481, 3
                // While loop
                $region82: #{tpu_custom_call.1} parent=80 // loop_pre_header
                  _
                $region83: #{tpu_custom_call.1} parent=80 // loop_header
                  %s486 = sphi 0, %s488
                  %p487 = scmp.ge.s32.totalorder %s486, %s482
                  %s491 = sphi 0, %s640
                  %s492 = sphi %s220, %s643
                  %s493 = sphi %s212, %s644
                $region84: #{tpu_custom_call.1} parent=80 // loop_header_branch
                  %490 = sbr.rel (%p487) target = $region88
                $region85: #{tpu_custom_call.1} parent=80 // loop_body
                  %v494 = vld [vmem:[%s492] sm:$0xff]
                  %495 = vst [vmem:[%s493] sm:$0xff] %v494
                  %v496 = vld [vmem:[%s492 + $0x8] sm:$0xff]
                  %497 = vst [vmem:[%s493 + $0x8] sm:$0xff] %v496
                  %v498 = vld [vmem:[%s492 + $0x10] sm:$0xff]
                  %499 = vst [vmem:[%s493 + $0x10] sm:$0xff] %v498
                  %v500 = vld [vmem:[%s492 + $0x18] sm:$0xff]
                  %501 = vst [vmem:[%s493 + $0x18] sm:$0xff] %v500
                  %v502 = vld [vmem:[%s492 + $0x20] sm:$0xff]
                  %503 = vst [vmem:[%s493 + $0x20] sm:$0xff] %v502
                  %v504 = vld [vmem:[%s492 + $0x28] sm:$0xff]
                  %505 = vst [vmem:[%s493 + $0x28] sm:$0xff] %v504
                  %v506 = vld [vmem:[%s492 + $0x30] sm:$0xff]
                  %507 = vst [vmem:[%s493 + $0x30] sm:$0xff] %v506
                  %v508 = vld [vmem:[%s492 + $0x38] sm:$0xff]
                  %509 = vst [vmem:[%s493 + $0x38] sm:$0xff] %v508
                  %v510 = vld [vmem:[%s492 + $0x28] sm:$0xff]
                  %511 = vst [vmem:[%s493 + $0x20] sm:$0xff] %v510
                  %v512 = vld [vmem:[%s492 + $0x30] sm:$0xff]
                  %513 = vst [vmem:[%s493 + $0x28] sm:$0xff] %v512
                  %v514 = vld [vmem:[%s492 + $0x38] sm:$0xff]
                  %515 = vst [vmem:[%s493 + $0x30] sm:$0xff] %v514
                  %v516 = vld [vmem:[%s492 + $0x40] sm:$0xff]
                  %517 = vst [vmem:[%s493 + $0x38] sm:$0xff] %v516
                  %v518 = vld [vmem:[%s492 + $0x48] sm:$0xff]
                  %519 = vst [vmem:[%s493 + $0x40] sm:$0xff] %v518
                  %v520 = vld [vmem:[%s492 + $0x50] sm:$0xff]
                  %521 = vst [vmem:[%s493 + $0x48] sm:$0xff] %v520
                  %v522 = vld [vmem:[%s492 + $0x58] sm:$0xff]
                  %523 = vst [vmem:[%s493 + $0x50] sm:$0xff] %v522
                  %v524 = vld [vmem:[%s492 + $0x60] sm:$0xff]
                  %525 = vst [vmem:[%s493 + $0x58] sm:$0xff] %v524
                  %v526 = vld [vmem:[%s492 + $0x50] sm:$0xff]
                  %527 = vst [vmem:[%s493 + $0x40] sm:$0xff] %v526
                  %v528 = vld [vmem:[%s492 + $0x58] sm:$0xff]
                  %529 = vst [vmem:[%s493 + $0x48] sm:$0xff] %v528
                  %v530 = vld [vmem:[%s492 + $0x60] sm:$0xff]
                  %531 = vst [vmem:[%s493 + $0x50] sm:$0xff] %v530
                  %v532 = vld [vmem:[%s492 + $0x68] sm:$0xff]
                  %533 = vst [vmem:[%s493 + $0x58] sm:$0xff] %v532
                  %v534 = vld [vmem:[%s492 + $0x70] sm:$0xff]
                  %535 = vst [vmem:[%s493 + $0x60] sm:$0xff] %v534
                  %v536 = vld [vmem:[%s492 + $0x78] sm:$0xff]
                  %537 = vst [vmem:[%s493 + $0x68] sm:$0xff] %v536
                  %v538 = vld [vmem:[%s492 + $0x80] sm:$0xff]
                  %539 = vst [vmem:[%s493 + $0x70] sm:$0xff] %v538
                  %v540 = vld [vmem:[%s492 + $0x88] sm:$0xff]
                  %541 = vst [vmem:[%s493 + $0x78] sm:$0xff] %v540
                  %v542 = vld [vmem:[%s492 + $0x78] sm:$0xff]
                  %543 = vst [vmem:[%s493 + $0x60] sm:$0xff] %v542
                  %v544 = vld [vmem:[%s492 + $0x80] sm:$0xff]
                  %545 = vst [vmem:[%s493 + $0x68] sm:$0xff] %v544
                  %v546 = vld [vmem:[%s492 + $0x88] sm:$0xff]
                  %547 = vst [vmem:[%s493 + $0x70] sm:$0xff] %v546
                  %v548 = vld [vmem:[%s492 + $0x90] sm:$0xff]
                  %549 = vst [vmem:[%s493 + $0x78] sm:$0xff] %v548
                  %v550 = vld [vmem:[%s492 + $0x98] sm:$0xff]
                  %551 = vst [vmem:[%s493 + $0x80] sm:$0xff] %v550
                  %v552 = vld [vmem:[%s492 + $0xa0] sm:$0xff]
                  %553 = vst [vmem:[%s493 + $0x88] sm:$0xff] %v552
                  %v554 = vld [vmem:[%s492 + $0xa8] sm:$0xff]
                  %555 = vst [vmem:[%s493 + $0x90] sm:$0xff] %v554
                  %v556 = vld [vmem:[%s492 + $0xb0] sm:$0xff]
                  %557 = vst [vmem:[%s493 + $0x98] sm:$0xff] %v556
                  %v558 = vld [vmem:[%s492 + $0xa0] sm:$0xff]
                  %559 = vst [vmem:[%s493 + $0x80] sm:$0xff] %v558
                  %v560 = vld [vmem:[%s492 + $0xa8] sm:$0xff]
                  %561 = vst [vmem:[%s493 + $0x88] sm:$0xff] %v560
                  %v562 = vld [vmem:[%s492 + $0xb0] sm:$0xff]
                  %563 = vst [vmem:[%s493 + $0x90] sm:$0xff] %v562
                  %v564 = vld [vmem:[%s492 + $0xb8] sm:$0xff]
                  %565 = vst [vmem:[%s493 + $0x98] sm:$0xff] %v564
                  %v566 = vld [vmem:[%s492 + $0xc0] sm:$0xff]
                  %567 = vst [vmem:[%s493 + $0xa0] sm:$0xff] %v566
                  %v568 = vld [vmem:[%s492 + $0xc8] sm:$0xff]
                  %569 = vst [vmem:[%s493 + $0xa8] sm:$0xff] %v568
                  %v570 = vld [vmem:[%s492 + $0xd0] sm:$0xff]
                  %571 = vst [vmem:[%s493 + $0xb0] sm:$0xff] %v570
                  %v572 = vld [vmem:[%s492 + $0xd8] sm:$0xff]
                  %573 = vst [vmem:[%s493 + $0xb8] sm:$0xff] %v572
                  %v574 = vld [vmem:[%s492 + $0xc8] sm:$0xff]
                  %575 = vst [vmem:[%s493 + $0xa0] sm:$0xff] %v574
                  %v576 = vld [vmem:[%s492 + $0xd0] sm:$0xff]
                  %577 = vst [vmem:[%s493 + $0xa8] sm:$0xff] %v576
                  %v578 = vld [vmem:[%s492 + $0xd8] sm:$0xff]
                  %579 = vst [vmem:[%s493 + $0xb0] sm:$0xff] %v578
                  %v580 = vld [vmem:[%s492 + $0xe0] sm:$0xff]
                  %581 = vst [vmem:[%s493 + $0xb8] sm:$0xff] %v580
                  %v582 = vld [vmem:[%s492 + $0xe8] sm:$0xff]
                  %583 = vst [vmem:[%s493 + $0xc0] sm:$0xff] %v582
                  %v584 = vld [vmem:[%s492 + $0xf0] sm:$0xff]
                  %585 = vst [vmem:[%s493 + $0xc8] sm:$0xff] %v584
                  %v586 = vld [vmem:[%s492 + $0xf8] sm:$0xff]
                  %587 = vst [vmem:[%s493 + $0xd0] sm:$0xff] %v586
                  %v588 = vld [vmem:[%s492 + $0x100] sm:$0xff]
                  %589 = vst [vmem:[%s493 + $0xd8] sm:$0xff] %v588
                  %v590 = vld [vmem:[%s492 + $0xf0] sm:$0xff]
                  %591 = vst [vmem:[%s493 + $0xc0] sm:$0xff] %v590
                  %v592 = vld [vmem:[%s492 + $0xf8] sm:$0xff]
                  %593 = vst [vmem:[%s493 + $0xc8] sm:$0xff] %v592
                  %v594 = vld [vmem:[%s492 + $0x100] sm:$0xff]
                  %595 = vst [vmem:[%s493 + $0xd0] sm:$0xff] %v594
                  %v596 = vld [vmem:[%s492 + $0x108] sm:$0xff]
                  %597 = vst [vmem:[%s493 + $0xd8] sm:$0xff] %v596
                  %v598 = vld [vmem:[%s492 + $0x110] sm:$0xff]
                  %599 = vst [vmem:[%s493 + $0xe0] sm:$0xff] %v598
                  %v600 = vld [vmem:[%s492 + $0x118] sm:$0xff]
                  %601 = vst [vmem:[%s493 + $0xe8] sm:$0xff] %v600
                  %v602 = vld [vmem:[%s492 + $0x120] sm:$0xff]
                  %603 = vst [vmem:[%s493 + $0xf0] sm:$0xff] %v602
                  %v604 = vld [vmem:[%s492 + $0x128] sm:$0xff]
                  %605 = vst [vmem:[%s493 + $0xf8] sm:$0xff] %v604
                  %v606 = vld [vmem:[%s492 + $0x118] sm:$0xff]
                  %607 = vst [vmem:[%s493 + $0xe0] sm:$0xff] %v606
                  %v608 = vld [vmem:[%s492 + $0x120] sm:$0xff]
                  %609 = vst [vmem:[%s493 + $0xe8] sm:$0xff] %v608
                  %v610 = vld [vmem:[%s492 + $0x128] sm:$0xff]
                  %611 = vst [vmem:[%s493 + $0xf0] sm:$0xff] %v610
                  %v612 = vld [vmem:[%s492 + $0x130] sm:$0xff]
                  %613 = vst [vmem:[%s493 + $0xf8] sm:$0xff] %v612
                  %v614 = vld [vmem:[%s492 + $0x138] sm:$0xff]
                  %615 = vst [vmem:[%s493 + $0x100] sm:$0xff] %v614
                  %v616 = vld [vmem:[%s492 + $0x140] sm:$0xff]
                  %617 = vst [vmem:[%s493 + $0x108] sm:$0xff] %v616
                  %v618 = vld [vmem:[%s492 + $0x148] sm:$0xff]
                  %619 = vst [vmem:[%s493 + $0x110] sm:$0xff] %v618
                  %v620 = vld [vmem:[%s492 + $0x150] sm:$0xff]
                  %621 = vst [vmem:[%s493 + $0x118] sm:$0xff] %v620
                  %v622 = vld [vmem:[%s492 + $0x140] sm:$0xff]
                  %623 = vst [vmem:[%s493 + $0x100] sm:$0xff] %v622
                  %v624 = vld [vmem:[%s492 + $0x148] sm:$0xff]
                  %625 = vst [vmem:[%s493 + $0x108] sm:$0xff] %v624
                  %v626 = vld [vmem:[%s492 + $0x150] sm:$0xff]
                  %627 = vst [vmem:[%s493 + $0x110] sm:$0xff] %v626
                  %v628 = vld [vmem:[%s492 + $0x158] sm:$0xff]
                  %629 = vst [vmem:[%s493 + $0x118] sm:$0xff] %v628
                  %v630 = vld [vmem:[%s492 + $0x160] sm:$0xff]
                  %631 = vst [vmem:[%s493 + $0x120] sm:$0xff] %v630
                  %v632 = vld [vmem:[%s492 + $0x168] sm:$0xff]
                  %633 = vst [vmem:[%s493 + $0x128] sm:$0xff] %v632
                  %v634 = vld [vmem:[%s492 + $0x170] sm:$0xff]
                  %635 = vst [vmem:[%s493 + $0x130] sm:$0xff] %v634
                  %v636 = vld [vmem:[%s492 + $0x178] sm:$0xff]
                  %637 = vst [vmem:[%s493 + $0x138] sm:$0xff] %v636
                  %s638 = sadd.s32 1, %s491
                  %p639 = scmp.ge.s32.totalorder %s638, %s482
                  %s640 = scalar_select %p639, 0, %s638
                  %s641 = smul.u32 %s640, 64
                  %s642 = smul.u32 %s640, 64
                  %s643 = scalar_lea.vmem %s220, %s641
                  %s644 = scalar_lea.vmem %s212, %s642 [#allocation2]
                $region86: #{tpu_custom_call.1} parent=80 // loop_footer
                  %s488 = sadd.s32 %s486, 1
                $region87: #{tpu_custom_call.1} parent=80 // loop_footer_branch
                  %485 = sbr.rel target = $region83
                $region88: #{tpu_custom_call.1} parent=80 // loop_exit
                  _
                %s645 = sshrl.u32 %s481, 3
                %s646 = sand.u32 %s481, 7
                %s647 = smul.u32 %s645, 8
                %s648 = smul.u32 128, %s647
                %s649 = sshra.s32 %s648, 4
                %s650 = scalar_lea.vmem %s220, %s649
                %s651 = smul.u32 128, %s647
                %s652 = sshra.s32 %s651, 4
                %s653 = scalar_lea.vmem %s212, %s652 [#allocation2]
                // While loop
                $region89: #{tpu_custom_call.1} parent=80 // loop_pre_header
                  _
                $region90: #{tpu_custom_call.1} parent=80 // loop_header
                  %s657 = sphi 0, %s659
                  %p658 = scmp.ge.s32.totalorder %s657, %s646
                  %s662 = sphi 0, %s685
                  %s663 = sphi %s650, %s688
                  %s664 = sphi %s653, %s689
                $region91: #{tpu_custom_call.1} parent=80 // loop_header_branch
                  %661 = sbr.rel (%p658) target = $region95
                $region92: #{tpu_custom_call.1} parent=80 // loop_body
                  %v665 = vld [vmem:[%s663] sm:$0xff]
                  %666 = vst [vmem:[%s664] sm:$0xff] %v665
                  %v667 = vld [vmem:[%s663 + $0x28] sm:$0xff]
                  %668 = vst [vmem:[%s664 + $0x20] sm:$0xff] %v667
                  %v669 = vld [vmem:[%s663 + $0x50] sm:$0xff]
                  %670 = vst [vmem:[%s664 + $0x40] sm:$0xff] %v669
                  %v671 = vld [vmem:[%s663 + $0x78] sm:$0xff]
                  %672 = vst [vmem:[%s664 + $0x60] sm:$0xff] %v671
                  %v673 = vld [vmem:[%s663 + $0xa0] sm:$0xff]
                  %674 = vst [vmem:[%s664 + $0x80] sm:$0xff] %v673
                  %v675 = vld [vmem:[%s663 + $0xc8] sm:$0xff]
                  %676 = vst [vmem:[%s664 + $0xa0] sm:$0xff] %v675
                  %v677 = vld [vmem:[%s663 + $0xf0] sm:$0xff]
                  %678 = vst [vmem:[%s664 + $0xc0] sm:$0xff] %v677
                  %v679 = vld [vmem:[%s663 + $0x118] sm:$0xff]
                  %680 = vst [vmem:[%s664 + $0xe0] sm:$0xff] %v679
                  %v681 = vld [vmem:[%s663 + $0x140] sm:$0xff]
                  %682 = vst [vmem:[%s664 + $0x100] sm:$0xff] %v681
                  %s683 = sadd.s32 1, %s662
                  %p684 = scmp.ge.s32.totalorder %s683, %s646
                  %s685 = scalar_select %p684, 0, %s683
                  %s686 = smul.u32 %s685, 8
                  %s687 = smul.u32 %s685, 8
                  %s688 = scalar_lea.vmem %s650, %s686
                  %s689 = scalar_lea.vmem %s653, %s687 [#allocation2]
                $region93: #{tpu_custom_call.1} parent=80 // loop_footer
                  %s659 = sadd.s32 %s657, 1
                $region94: #{tpu_custom_call.1} parent=80 // loop_footer_branch
                  %656 = sbr.rel target = $region90
                $region95: #{tpu_custom_call.1} parent=80 // loop_exit
                  _
                %s690 = sshllo.u32 0, %s476
                loop: start=0, step=1, limit=1
                $region96: #{tpu_custom_call.1} parent=80 // loop_pre_header
                  _
                $region97: #{tpu_custom_call.1} parent=80 // loop_header
                  %s692 = sphi 0, %s696
                  %p693 = scmp.ge.s32.totalorder %s692, 1
                  %s697 = sphi %s478, %s478
                  %s698 = sphi %s480, %s480
                $region98: #{tpu_custom_call.1} parent=80 // loop_header_branch
                  %695 = sbr.rel (%p693) target = $region102
                $region99: #{tpu_custom_call.1} parent=80 // loop_body
                  %v699 = vld [vmem:[%s697] sm:%s690]
                  %700 = vst [vmem:[%s698] sm:%s690] %v699
                  %v701 = vld [vmem:[%s697 + $0x28] sm:%s690]
                  %702 = vst [vmem:[%s698 + $0x20] sm:%s690] %v701
                  %v703 = vld [vmem:[%s697 + $0x50] sm:%s690]
                  %704 = vst [vmem:[%s698 + $0x40] sm:%s690] %v703
                  %v705 = vld [vmem:[%s697 + $0x78] sm:%s690]
                  %706 = vst [vmem:[%s698 + $0x60] sm:%s690] %v705
                  %v707 = vld [vmem:[%s697 + $0xa0] sm:%s690]
                  %708 = vst [vmem:[%s698 + $0x80] sm:%s690] %v707
                  %v709 = vld [vmem:[%s697 + $0xc8] sm:%s690]
                  %710 = vst [vmem:[%s698 + $0xa0] sm:%s690] %v709
                  %v711 = vld [vmem:[%s697 + $0xf0] sm:%s690]
                  %712 = vst [vmem:[%s698 + $0xc0] sm:%s690] %v711
                  %v713 = vld [vmem:[%s697 + $0x118] sm:%s690]
                  %714 = vst [vmem:[%s698 + $0xe0] sm:%s690] %v713
                  %v715 = vld [vmem:[%s697 + $0x140] sm:%s690]
                  %716 = vst [vmem:[%s698 + $0x100] sm:%s690] %v715
                $region100: #{tpu_custom_call.1} parent=80 // loop_footer
                  %s696 = sadd.s32 1, %s692
                $region101: #{tpu_custom_call.1} parent=80 // loop_footer_branch
                  %691 = sbr.rel target = $region97
                $region102: #{tpu_custom_call.1} parent=80 // loop_exit
                  _
              $region81: #{tpu_custom_call.1} parent=47 // pred_fallthru
                _
            $region48: #{tpu_custom_call.1} parent=43 // pred_fallthru
              _
            // Predicated region
            $region49: #{tpu_custom_call.1} parent=43 // pred_check
              %p229 = pneg %p225
            $region50: #{tpu_custom_call.1} parent=43 // pred_check_branch
              %231 = sbr.rel (%p229) target = $region52
            $region51: #{tpu_custom_call.1} parent=43 // pred_region
              %s232 = sshllo.u32 0, %s221
              loop: start=0, step=1, limit=1
              $region53: #{tpu_custom_call.1} parent=51 // loop_pre_header
                _
              $region54: #{tpu_custom_call.1} parent=51 // loop_header
                %s234 = sphi 0, %s238
                %p235 = scmp.ge.s32.totalorder %s234, 1
                %s239 = sphi %s220, %s220
                %s240 = sphi %s212, %s212
              $region55: #{tpu_custom_call.1} parent=51 // loop_header_branch
                %237 = sbr.rel (%p235) target = $region59
              $region56: #{tpu_custom_call.1} parent=51 // loop_body
                %v241 = vld [vmem:[%s239] sm:%s232]
                %242 = vst [vmem:[%s240] sm:%s232] %v241
                %v243 = vld [vmem:[%s239 + $0x28] sm:%s232]
                %244 = vst [vmem:[%s240 + $0x20] sm:%s232] %v243
                %v245 = vld [vmem:[%s239 + $0x50] sm:%s232]
                %246 = vst [vmem:[%s240 + $0x40] sm:%s232] %v245
                %v247 = vld [vmem:[%s239 + $0x78] sm:%s232]
                %248 = vst [vmem:[%s240 + $0x60] sm:%s232] %v247
                %v249 = vld [vmem:[%s239 + $0xa0] sm:%s232]
                %250 = vst [vmem:[%s240 + $0x80] sm:%s232] %v249
                %v251 = vld [vmem:[%s239 + $0xc8] sm:%s232]
                %252 = vst [vmem:[%s240 + $0xa0] sm:%s232] %v251
                %v253 = vld [vmem:[%s239 + $0xf0] sm:%s232]
                %254 = vst [vmem:[%s240 + $0xc0] sm:%s232] %v253
                %v255 = vld [vmem:[%s239 + $0x118] sm:%s232]
                %256 = vst [vmem:[%s240 + $0xe0] sm:%s232] %v255
                %v257 = vld [vmem:[%s239 + $0x140] sm:%s232]
                %258 = vst [vmem:[%s240 + $0x100] sm:%s232] %v257
              $region57: #{tpu_custom_call.1} parent=51 // loop_footer
                %s238 = sadd.s32 1, %s234
              $region58: #{tpu_custom_call.1} parent=51 // loop_footer_branch
                %233 = sbr.rel target = $region54
              $region59: #{tpu_custom_call.1} parent=51 // loop_exit
                _
            $region52: #{tpu_custom_call.1} parent=43 // pred_fallthru
              _
          $region44: #{tpu_custom_call.1} parent=39 // pred_fallthru
            _
          %717 = vnop
        $region40: #{tpu_custom_call.1} parent=35 // pred_fallthru
          _
      $region36: #{tpu_custom_call.1} parent=5 // pred_fallthru
        _
      %p718 = scmp.le.s32.totalorder 1, %s15
      %p719 = scmp.lt.s32.totalorder %s15, 3
      %p720 = pnand %p718, %p719
      %p721 = pneg %p720
      // Predicated region
      $region103: #{tpu_custom_call.1} parent=5 // pred_check
        _
      $region104: #{tpu_custom_call.1} parent=5 // pred_check_branch
        %723 = sbr.rel (%p720) target = $region106
      $region105: #{tpu_custom_call.1} parent=5 // pred_region
        %s724 = ssub.s32 %s15, 1
        %s725 = sand.u32 %s28, 1
        %s726 = sand.u32 %s28, 1
        %s727 = smul.addr %s726, 288
        %s728 = scalar_lea.vmem [#allocation2], %s727
        // Predicated region
        $region107: #{tpu_custom_call.1} parent=105 // pred_check
          %p729 = pneg %p41
        $region108: #{tpu_custom_call.1} parent=105 // pred_check_branch
          %731 = sbr.rel (%p729) target = $region110
        $region109: #{tpu_custom_call.1} parent=105 // pred_region
          _
        $region110: #{tpu_custom_call.1} parent=105 // pred_fallthru
          _
        %s732 = sand.u32 %s28, 1
        %s733 = sand.u32 %s28, 1
        %s734 = smul.addr %s733, 288
        %s735 = scalar_lea.vmem [#allocation2], %s734
        %p736 = pneg %p41
        %p737 = pneg %p38
        %p738 = pneg %p62
        %p739 = pneg %p59
        %p740 = pneg %p83
        %p741 = pneg %p80
        %p742 = pneg %p104
        %p743 = pneg %p101
        %p744 = pneg %p125
        %p745 = pneg %p122
        %p746 = pneg %p146
        %p747 = pneg %p143
        %p748 = pneg %p172
        %p749 = pneg %p169
        %s750 = sand.u32 %s159, 1
        %s751 = scalar_lea.sflag [#allocation4], %s750
        %s752 = sand.u32 %s159, 1
        %s753 = smul.addr %s752, 288
        %s754 = scalar_lea.vmem [#allocation3], %s753
        %s755 = smul.u32 4, %s20
        %s756 = ssub.s32 5, %s755
        %p757 = scmp.lt.s32.totalorder %s756, 4
        %s758 = scalar_select %p757, %s756, 4
        %s759 = smul.u32 1152, %s758
        %s760 = smul.u32 4, %s20
        %s761 = ssub.s32 5, %s760
        %p762 = scmp.lt.s32.totalorder %s761, 4
        %s763 = scalar_select %p762, %s761, 4
        %s764 = smul.u32 1152, %s763
        %v765 = vld [vmem:[%s728] sm:$0xff]
        %v766 = vld [vmem:[%s728 + $0x8] sm:$0xff]
        %v767 = vld [vmem:[%s728 + $0x10] sm:$0xff]
        %v768 = vld [vmem:[%s728 + $0x18] sm:$0xff]
        %v769 = vld [vmem:[%s728 + $0x20] sm:$0xff]
        %v770 = vld [vmem:[%s728 + $0x28] sm:$0xff]
        %v771 = vld [vmem:[%s728 + $0x30] sm:$0xff]
        %v772 = vld [vmem:[%s728 + $0x38] sm:$0xff]
        %v773 = vld [vmem:[%s728 + $0x40] sm:$0xff]
        %v774 = vld [vmem:[%s728 + $0x48] sm:$0xff]
        %v775 = vld [vmem:[%s728 + $0x50] sm:$0xff]
        %v776 = vld [vmem:[%s728 + $0x58] sm:$0xff]
        %v777 = vld [vmem:[%s728 + $0x60] sm:$0xff]
        %v778 = vld [vmem:[%s728 + $0x68] sm:$0xff]
        %v779 = vld [vmem:[%s728 + $0x70] sm:$0xff]
        %v780 = vld [vmem:[%s728 + $0x78] sm:$0xff]
        %v781 = vld [vmem:[%s728 + $0x80] sm:$0xff]
        %v782 = vld [vmem:[%s728 + $0x88] sm:$0xff]
        %v783 = vld [vmem:[%s728 + $0x90] sm:$0xff]
        %v784 = vld [vmem:[%s728 + $0x98] sm:$0xff]
        %v785 = vld [vmem:[%s728 + $0xa0] sm:$0xff]
        %v786 = vld [vmem:[%s728 + $0xa8] sm:$0xff]
        %v787 = vld [vmem:[%s728 + $0xb0] sm:$0xff]
        %v788 = vld [vmem:[%s728 + $0xb8] sm:$0xff]
        %v789 = vld [vmem:[%s728 + $0xc0] sm:$0xff]
        %v790 = vld [vmem:[%s728 + $0xc8] sm:$0xff]
        %v791 = vld [vmem:[%s728 + $0xd0] sm:$0xff]
        %v792 = vld [vmem:[%s728 + $0xd8] sm:$0xff]
        %v793 = vld [vmem:[%s728 + $0xe0] sm:$0xff]
        %v794 = vld [vmem:[%s728 + $0xe8] sm:$0xff]
        %v795 = vld [vmem:[%s728 + $0xf0] sm:$0xff]
        %v796 = vld [vmem:[%s728 + $0xf8] sm:$0xff]
        %v797 = vld [vmem:[%s728 + $0x100] sm:$0xff]
        %v798 = vld [vmem:[%s728 + $0x108] sm:$0xff]
        %v799 = vld [vmem:[%s728 + $0x110] sm:$0xff]
        %v800 = vld [vmem:[%s728 + $0x118] sm:$0xff]
        %v801 = vld [vmem:[%s1] sm:$0xff]
        %v802 = vld [vmem:[%s1 + $0x8] sm:$0xff]
        %v803 = vld [vmem:[%s1 + $0x10] sm:$0xff]
        %v804 = vld [vmem:[%s1 + $0x18] sm:$0xff]
        %v805 = vld [vmem:[%s1 + $0x20] sm:$0xff]
        %v806 = vld [vmem:[%s1 + $0x28] sm:$0xff]
        %v807 = vld [vmem:[%s1 + $0x30] sm:$0xff]
        %v808 = vld [vmem:[%s1 + $0x38] sm:$0xff]
        %v809 = vld [vmem:[%s1 + $0x40] sm:$0xff]
        %v810 = vld [vmem:[%s1 + $0x48] sm:$0xff]
        %v811 = vld [vmem:[%s1 + $0x50] sm:$0xff]
        %v812 = vld [vmem:[%s1 + $0x58] sm:$0xff]
        %v813 = vld [vmem:[%s1 + $0x60] sm:$0xff]
        %v814 = vld [vmem:[%s1 + $0x68] sm:$0xff]
        %v815 = vld [vmem:[%s1 + $0x70] sm:$0xff]
        %v816 = vld [vmem:[%s1 + $0x78] sm:$0xff]
        %v817 = vld [vmem:[%s1 + $0x80] sm:$0xff]
        %v818 = vld [vmem:[%s1 + $0x88] sm:$0xff]
        %v819 = vld [vmem:[%s1 + $0x90] sm:$0xff]
        %v820 = vld [vmem:[%s1 + $0x98] sm:$0xff]
        %v821 = vld [vmem:[%s1 + $0xa0] sm:$0xff]
        %v822 = vld [vmem:[%s1 + $0xa8] sm:$0xff]
        %v823 = vld [vmem:[%s1 + $0xb0] sm:$0xff]
        %v824 = vld [vmem:[%s1 + $0xb8] sm:$0xff]
        %v825 = vld [vmem:[%s1 + $0xc0] sm:$0xff]
        %v826 = vld [vmem:[%s1 + $0xc8] sm:$0xff]
        %v827 = vld [vmem:[%s1 + $0xd0] sm:$0xff]
        %v828 = vld [vmem:[%s2] sm:$0xff]
        %v829 = vld [vmem:[%s2 + $0x8] sm:$0xff]
        %v830 = vld [vmem:[%s2 + $0x10] sm:$0xff]
        %v831 = vld [vmem:[%s2 + $0x18] sm:$0xff]
        %v832 = vld [vmem:[%s2 + $0x20] sm:$0xff]
        %v833 = vld [vmem:[%s2 + $0x28] sm:$0xff]
        %v834 = vld [vmem:[%s2 + $0x30] sm:$0xff]
        %v835 = vld [vmem:[%s2 + $0x38] sm:$0xff]
        %v836 = vld [vmem:[%s2 + $0x40] sm:$0xff]
        %v837 = vld [vmem:[%s2 + $0x48] sm:$0xff]
        %v838 = vld [vmem:[%s2 + $0x50] sm:$0xff]
        %v839 = vld [vmem:[%s2 + $0x58] sm:$0xff]
        %v840 = vld [vmem:[%s2 + $0x60] sm:$0xff]
        %v841 = vld [vmem:[%s2 + $0x68] sm:$0xff]
        %v842 = vld [vmem:[%s2 + $0x70] sm:$0xff]
        %v843 = vld [vmem:[%s2 + $0x78] sm:$0xff]
        %v844 = vld [vmem:[%s2 + $0x80] sm:$0xff]
        %v845 = vld [vmem:[%s2 + $0x88] sm:$0xff]
        %v846 = vld [vmem:[%s2 + $0x90] sm:$0xff]
        %v847 = vld [vmem:[%s2 + $0x98] sm:$0xff]
        %v848 = vld [vmem:[%s2 + $0xa0] sm:$0xff]
        %v849 = vld [vmem:[%s2 + $0xa8] sm:$0xff]
        %v850 = vld [vmem:[%s2 + $0xb0] sm:$0xff]
        %v851 = vld [vmem:[%s2 + $0xb8] sm:$0xff]
        %v852 = vld [vmem:[%s2 + $0xc0] sm:$0xff]
        %v853 = vld [vmem:[%s2 + $0xc8] sm:$0xff]
        %v854 = vld [vmem:[%s2 + $0xd0] sm:$0xff]
        %856 = vset.pattern.permute.xlu0 0
        %857 = vperm.xlu0 %856, %v828
        %v858 = vpop.permute.xlu0 %857
        %861 = vset.pattern.permute.xlu0 0
        %862 = vperm.xlu0 %861, %v829
        %v863 = vpop.permute.xlu0 %862
        %866 = vset.pattern.permute.xlu0 0
        %867 = vperm.xlu0 %866, %v830
        %v868 = vpop.permute.xlu0 %867
        %871 = vset.pattern.permute.xlu0 0
        %872 = vperm.xlu0 %871, %v831
        %v873 = vpop.permute.xlu0 %872
        %876 = vset.pattern.permute.xlu0 0
        %877 = vperm.xlu0 %876, %v832
        %v878 = vpop.permute.xlu0 %877
        %881 = vset.pattern.permute.xlu0 0
        %882 = vperm.xlu0 %881, %v833
        %v883 = vpop.permute.xlu0 %882
        %886 = vset.pattern.permute.xlu0 0
        %887 = vperm.xlu0 %886, %v834
        %v888 = vpop.permute.xlu0 %887
        %891 = vset.pattern.permute.xlu0 0
        %892 = vperm.xlu0 %891, %v835
        %v893 = vpop.permute.xlu0 %892
        %896 = vset.pattern.permute.xlu0 0
        %897 = vperm.xlu0 %896, %v836
        %v898 = vpop.permute.xlu0 %897
        %901 = vset.pattern.permute.xlu0 0
        %902 = vperm.xlu0 %901, %v837
        %v903 = vpop.permute.xlu0 %902
        %906 = vset.pattern.permute.xlu0 0
        %907 = vperm.xlu0 %906, %v838
        %v908 = vpop.permute.xlu0 %907
        %911 = vset.pattern.permute.xlu0 0
        %912 = vperm.xlu0 %911, %v839
        %v913 = vpop.permute.xlu0 %912
        %916 = vset.pattern.permute.xlu0 0
        %917 = vperm.xlu0 %916, %v840
        %v918 = vpop.permute.xlu0 %917
        %921 = vset.pattern.permute.xlu0 0
        %922 = vperm.xlu0 %921, %v841
        %v923 = vpop.permute.xlu0 %922
        %926 = vset.pattern.permute.xlu0 0
        %927 = vperm.xlu0 %926, %v842
        %v928 = vpop.permute.xlu0 %927
        %931 = vset.pattern.permute.xlu0 0
        %932 = vperm.xlu0 %931, %v843
        %v933 = vpop.permute.xlu0 %932
        %936 = vset.pattern.permute.xlu0 0
        %937 = vperm.xlu0 %936, %v844
        %v938 = vpop.permute.xlu0 %937
        %941 = vset.pattern.permute.xlu0 0
        %942 = vperm.xlu0 %941, %v845
        %v943 = vpop.permute.xlu0 %942
        %946 = vset.pattern.permute.xlu0 0
        %947 = vperm.xlu0 %946, %v846
        %v948 = vpop.permute.xlu0 %947
        %951 = vset.pattern.permute.xlu0 0
        %952 = vperm.xlu0 %951, %v847
        %v953 = vpop.permute.xlu0 %952
        %956 = vset.pattern.permute.xlu0 0
        %957 = vperm.xlu0 %956, %v848
        %v958 = vpop.permute.xlu0 %957
        %961 = vset.pattern.permute.xlu0 0
        %962 = vperm.xlu0 %961, %v849
        %v963 = vpop.permute.xlu0 %962
        %966 = vset.pattern.permute.xlu0 0
        %967 = vperm.xlu0 %966, %v850
        %v968 = vpop.permute.xlu0 %967
        %971 = vset.pattern.permute.xlu0 0
        %972 = vperm.xlu0 %971, %v851
        %v973 = vpop.permute.xlu0 %972
        %976 = vset.pattern.permute.xlu0 0
        %977 = vperm.xlu0 %976, %v852
        %v978 = vpop.permute.xlu0 %977
        %981 = vset.pattern.permute.xlu0 0
        %982 = vperm.xlu0 %981, %v853
        %v983 = vpop.permute.xlu0 %982
        %986 = vset.pattern.permute.xlu0 0
        %987 = vperm.xlu0 %986, %v854
        %v988 = vpop.permute.xlu0 %987
        %vm990 = vcmask 588800
        %v992 = vsel %vm990, %v801, 0
        %v995 = vsel %vm990, %v802, 0
        %v998 = vsel %vm990, %v803, 0
        %v1001 = vsel %vm990, %v804, 0
        %v1004 = vsel %vm990, %v805, 0
        %v1007 = vsel %vm990, %v806, 0
        %v1010 = vsel %vm990, %v807, 0
        %v1013 = vsel %vm990, %v808, 0
        %v1016 = vsel %vm990, %v809, 0
        %v1019 = vsel %vm990, %v810, 0
        %v1022 = vsel %vm990, %v811, 0
        %v1025 = vsel %vm990, %v812, 0
        %v1028 = vsel %vm990, %v813, 0
        %v1031 = vsel %vm990, %v814, 0
        %v1034 = vsel %vm990, %v815, 0
        %v1037 = vsel %vm990, %v816, 0
        %v1040 = vsel %vm990, %v817, 0
        %v1043 = vsel %vm990, %v818, 0
        %v1046 = vsel %vm990, %v819, 0
        %v1049 = vsel %vm990, %v820, 0
        %v1052 = vsel %vm990, %v821, 0
        %v1055 = vsel %vm990, %v822, 0
        %v1058 = vsel %vm990, %v823, 0
        %v1061 = vsel %vm990, %v824, 0
        %v1064 = vsel %vm990, %v825, 0
        %v1067 = vsel %vm990, %v826, 0
        %v1070 = vsel %vm990, %v827, 0
        %v1072 = vand.u32 %v766, 4294901760
        %1073 = vmatprep.subr.mxu0 %v1072
        %v1074 = vand.u32 %v765, 4294901760
        %1075 = vmatpush1.msra.mxu0 %v1074
        %v1076 = vand.u32 %v770, 4294901760
        %1077 = vmatprep.subr.mxu0 %v1076
        %v1078 = vand.u32 %v769, 4294901760
        %1079 = vmatpush1.msra.mxu0 %v1078
        %v1080 = vand.u32 %v774, 4294901760
        %1081 = vmatprep.subr.mxu0 %v1080
        %v1082 = vand.u32 %v773, 4294901760
        %1083 = vmatpush1.msra.mxu0 %v1082
        %v1084 = vand.u32 %v778, 4294901760
        %1085 = vmatprep.subr.mxu0 %v1084
        %v1086 = vand.u32 %v777, 4294901760
        %1087 = vmatpush1.msra.mxu0 %v1086
        %v1088 = vand.u32 %v782, 4294901760
        %1089 = vmatprep.subr.mxu0 %v1088
        %v1090 = vand.u32 %v781, 4294901760
        %1091 = vmatpush1.msra.mxu0 %v1090
        %v1092 = vand.u32 %v786, 4294901760
        %1093 = vmatprep.subr.mxu0 %v1092
        %v1094 = vand.u32 %v785, 4294901760
        %1095 = vmatpush1.msra.mxu0 %v1094
        %v1096 = vand.u32 %v790, 4294901760
        %1097 = vmatprep.subr.mxu0 %v1096
        %v1098 = vand.u32 %v789, 4294901760
        %1099 = vmatpush1.msra.mxu0 %v1098
        %v1100 = vand.u32 %v794, 4294901760
        %1101 = vmatprep.subr.mxu0 %v1100
        %v1102 = vand.u32 %v793, 4294901760
        %1103 = vmatpush1.msra.mxu0 %v1102
        %v1104 = vand.u32 %v798, 4294901760
        %1105 = vmatprep.subr.mxu0 %v1104
        %v1106 = vand.u32 %v797, 4294901760
        %1107 = vmatpush1.msra.mxu0 %v1106
        %1108 = vmatprep.subr.mxu0 0.0
        %1109 = vmatpush1.msra.mxu0 0.0
        %1110 = vmatprep.subr.mxu0 0.0
        %1111 = vmatpush1.msra.mxu0 0.0
        %1112 = vmatprep.subr.mxu0 0.0
        %1113 = vmatpush1.msra.mxu0 0.0
        %1114 = vmatprep.subr.mxu0 0.0
        %1115 = vmatpush1.msra.mxu0 0.0
        %1116 = vmatprep.subr.mxu0 0.0
        %1117 = vmatpush1.msra.mxu0 0.0
        %1118 = vmatprep.subr.mxu0 0.0
        %1119 = vmatpush1.msra.mxu0 0.0
        %1120 = vmatprep.subr.mxu0 0.0
        %1121 = vmatpush1.msra.mxu0 0.0
        %1122 = vmatprep.subr.mxu0 0.0
        %1123 = vmatpush1.msra.mxu0 0.0
        %1124 = vmatprep.subr.mxu0 0.0
        %1125 = vmatpush1.msra.mxu0 0.0
        %1126 = vmatprep.subr.mxu0 0.0
        %1127 = vmatpush1.msra.mxu0 0.0
        %1128 = vmatprep.subr.mxu0 0.0
        %1129 = vmatpush1.msra.mxu0 0.0
        %1130 = vmatprep.subr.mxu0 0.0
        %1131 = vmatpush1.msra.mxu0 0.0
        %1132 = vmatprep.subr.mxu0 0.0
        %1133 = vmatpush1.msra.mxu0 0.0
        %1134 = vmatprep.subr.mxu0 0.0
        %1135 = vmatpush1.msra.mxu0 0.0
        %1136 = vmatprep.subr.mxu0 0.0
        %1137 = vmatpush1.msra.mxu0 0.0
        %1138 = vmatprep.subr.mxu0 0.0
        %1139 = vmatpush1.msra.mxu0 0.0
        %1140 = vmatprep.subr.mxu0 0.0
        %1141 = vmatpush1.msra.mxu0 0.0
        %1142 = vmatprep.subr.mxu0 0.0
        %1143 = vmatpush1.msra.mxu0 0.0
        %1144 = vmatprep.subr.mxu0 0.0
        %1145 = vmatpush1.msra.mxu0 0.0
        %1146 = vmatprep.subr.mxu0 0.0
        %1147 = vmatpush1.msra.mxu0 0.0
        %1148 = vmatprep.subr.mxu0 0.0
        %1149 = vmatpush1.msra.mxu0 0.0
        %1150 = vmatprep.subr.mxu0 0.0
        %1151 = vmatpush1.msra.mxu0 0.0
        %1152 = vmatprep.subr.mxu0 0.0
        %1153 = vmatpush1.msra.mxu0 0.0
        %1154 = vmatprep.mubr.f32.mxu0 0.0
        %v1155 = vand.u32 %v992, 4294901760
        %v1156 = vsub.f32 %v992, %v1155
        %v1157 = vand.u32 %v1156, 4294901760
        %v1158 = vsub.f32 %v1156, %v1157
        %v1159 = vand.u32 %v1158, 4294901760
        %1160 = vmatmul.mubr.f32.gmra.mrb[0].mxu0 %v1159
        %v1161 = vpop.f32.mrb[0].mxu0
        %v1162 = vadd.f32 %v858, %v1161
        %v1163 = vpop.f32.mrb[0].mxu0
        %v1164 = vadd.f32 %v858, %v1163
        %1165 = vmatprep.mubr.f32.mxu0 0.0
        %v1166 = vand.u32 %v995, 4294901760
        %v1167 = vsub.f32 %v995, %v1166
        %v1168 = vand.u32 %v1167, 4294901760
        %v1169 = vsub.f32 %v1167, %v1168
        %v1170 = vand.u32 %v1169, 4294901760
        %1171 = vmatmul.mubr.f32.gmra.mrb[0].mxu0 %v1170
        %v1172 = vpop.f32.mrb[0].mxu0
        %v1173 = vadd.f32 %v863, %v1172
        %v1174 = vpop.f32.mrb[0].mxu0
        %v1175 = vadd.f32 %v863, %v1174
        %1176 = vmatprep.mubr.f32.mxu0 0.0
        %v1177 = vand.u32 %v998, 4294901760
        %v1178 = vsub.f32 %v998, %v1177
        %v1179 = vand.u32 %v1178, 4294901760
        %v1180 = vsub.f32 %v1178, %v1179
        %v1181 = vand.u32 %v1180, 4294901760
        %1182 = vmatmul.mubr.f32.gmra.mrb[0].mxu0 %v1181
        %v1183 = vpop.f32.mrb[0].mxu0
        %v1184 = vadd.f32 %v868, %v1183
        %v1185 = vpop.f32.mrb[0].mxu0
        %v1186 = vadd.f32 %v868, %v1185
        %1187 = vmatprep.mubr.f32.mxu0 0.0
        %v1188 = vand.u32 %v1001, 4294901760
        %v1189 = vsub.f32 %v1001, %v1188
        %v1190 = vand.u32 %v1189, 4294901760
        %v1191 = vsub.f32 %v1189, %v1190
        %v1192 = vand.u32 %v1191, 4294901760
        %1193 = vmatmul.mubr.f32.gmra.mrb[0].mxu0 %v1192
        %v1194 = vpop.f32.mrb[0].mxu0
        %v1195 = vadd.f32 %v873, %v1194
        %v1196 = vpop.f32.mrb[0].mxu0
        %v1197 = vadd.f32 %v873, %v1196
        %1198 = vmatprep.mubr.f32.mxu0 0.0
        %v1199 = vand.u32 %v1004, 4294901760
        %v1200 = vsub.f32 %v1004, %v1199
        %v1201 = vand.u32 %v1200, 4294901760
        %v1202 = vsub.f32 %v1200, %v1201
        %v1203 = vand.u32 %v1202, 4294901760
        %1204 = vmatmul.mubr.f32.gmra.mrb[0].mxu0 %v1203
        %v1205 = vpop.f32.mrb[0].mxu0
        %v1206 = vadd.f32 %v878, %v1205
        %v1207 = vpop.f32.mrb[0].mxu0
        %v1208 = vadd.f32 %v878, %v1207
        %1209 = vmatprep.mubr.f32.mxu0 0.0
        %v1210 = vand.u32 %v1007, 4294901760
        %v1211 = vsub.f32 %v1007, %v1210
        %v1212 = vand.u32 %v1211, 4294901760
        %v1213 = vsub.f32 %v1211, %v1212
        %v1214 = vand.u32 %v1213, 4294901760
        %1215 = vmatmul.mubr.f32.gmra.mrb[0].mxu0 %v1214
        %v1216 = vpop.f32.mrb[0].mxu0
        %v1217 = vadd.f32 %v883, %v1216
        %v1218 = vpop.f32.mrb[0].mxu0
        %v1219 = vadd.f32 %v883, %v1218
        %1220 = vmatprep.mubr.f32.mxu0 0.0
        %v1221 = vand.u32 %v1010, 4294901760
        %v1222 = vsub.f32 %v1010, %v1221
        %v1223 = vand.u32 %v1222, 4294901760
        %v1224 = vsub.f32 %v1222, %v1223
        %v1225 = vand.u32 %v1224, 4294901760
        %1226 = vmatmul.mubr.f32.gmra.mrb[0].mxu0 %v1225
        %v1227 = vpop.f32.mrb[0].mxu0
        %v1228 = vadd.f32 %v888, %v1227
        %v1229 = vpop.f32.mrb[0].mxu0
        %v1230 = vadd.f32 %v888, %v1229
        %1231 = vmatprep.mubr.f32.mxu0 0.0
        %v1232 = vand.u32 %v1013, 4294901760
        %v1233 = vsub.f32 %v1013, %v1232
        %v1234 = vand.u32 %v1233, 4294901760
        %v1235 = vsub.f32 %v1233, %v1234
        %v1236 = vand.u32 %v1235, 4294901760
        %1237 = vmatmul.mubr.f32.gmra.mrb[0].mxu0 %v1236
        %v1238 = vpop.f32.mrb[0].mxu0
        %v1239 = vadd.f32 %v893, %v1238
        %v1240 = vpop.f32.mrb[0].mxu0
        %v1241 = vadd.f32 %v893, %v1240
        %1242 = vmatprep.mubr.f32.mxu0 0.0
        %v1243 = vand.u32 %v1016, 4294901760
        %v1244 = vsub.f32 %v1016, %v1243
        %v1245 = vand.u32 %v1244, 4294901760
        %v1246 = vsub.f32 %v1244, %v1245
        %v1247 = vand.u32 %v1246, 4294901760
        %1248 = vmatmul.mubr.f32.gmra.mrb[0].mxu0 %v1247
        %v1249 = vpop.f32.mrb[0].mxu0
        %v1250 = vadd.f32 %v898, %v1249
        %v1251 = vpop.f32.mrb[0].mxu0
        %v1252 = vadd.f32 %v898, %v1251
        %1253 = vmatprep.mubr.f32.mxu0 0.0
        %v1254 = vand.u32 %v1019, 4294901760
        %v1255 = vsub.f32 %v1019, %v1254
        %v1256 = vand.u32 %v1255, 4294901760
        %v1257 = vsub.f32 %v1255, %v1256
        %v1258 = vand.u32 %v1257, 4294901760
        %1259 = vmatmul.mubr.f32.gmra.mrb[0].mxu0 %v1258
        %v1260 = vpop.f32.mrb[0].mxu0
        %v1261 = vadd.f32 %v903, %v1260
        %v1262 = vpop.f32.mrb[0].mxu0
        %v1263 = vadd.f32 %v903, %v1262
        %1264 = vmatprep.mubr.f32.mxu0 0.0
        %v1265 = vand.u32 %v1022, 4294901760
        %v1266 = vsub.f32 %v1022, %v1265
        %v1267 = vand.u32 %v1266, 4294901760
        %v1268 = vsub.f32 %v1266, %v1267
        %v1269 = vand.u32 %v1268, 4294901760
        %1270 = vmatmul.mubr.f32.gmra.mrb[0].mxu0 %v1269
        %v1271 = vpop.f32.mrb[0].mxu0
        %v1272 = vadd.f32 %v908, %v1271
        %v1273 = vpop.f32.mrb[0].mxu0
        %v1274 = vadd.f32 %v908, %v1273
        %1275 = vmatprep.mubr.f32.mxu0 0.0
        %v1276 = vand.u32 %v1025, 4294901760
        %v1277 = vsub.f32 %v1025, %v1276
        %v1278 = vand.u32 %v1277, 4294901760
        %v1279 = vsub.f32 %v1277, %v1278
        %v1280 = vand.u32 %v1279, 4294901760
        %1281 = vmatmul.mubr.f32.gmra.mrb[0].mxu0 %v1280
        %v1282 = vpop.f32.mrb[0].mxu0
        %v1283 = vadd.f32 %v913, %v1282
        %v1284 = vpop.f32.mrb[0].mxu0
        %v1285 = vadd.f32 %v913, %v1284
        %1286 = vmatprep.mubr.f32.mxu0 0.0
        %v1287 = vand.u32 %v1028, 4294901760
        %v1288 = vsub.f32 %v1028, %v1287
        %v1289 = vand.u32 %v1288, 4294901760
        %v1290 = vsub.f32 %v1288, %v1289
        %v1291 = vand.u32 %v1290, 4294901760
        %1292 = vmatmul.mubr.f32.gmra.mrb[0].mxu0 %v1291
        %v1293 = vpop.f32.mrb[0].mxu0
        %v1294 = vadd.f32 %v918, %v1293
        %v1295 = vpop.f32.mrb[0].mxu0
        %v1296 = vadd.f32 %v918, %v1295
        %1297 = vmatprep.mubr.f32.mxu0 0.0
        %v1298 = vand.u32 %v1031, 4294901760
        %v1299 = vsub.f32 %v1031, %v1298
        %v1300 = vand.u32 %v1299, 4294901760
        %v1301 = vsub.f32 %v1299, %v1300
        %v1302 = vand.u32 %v1301, 4294901760
        %1303 = vmatmul.mubr.f32.gmra.mrb[0].mxu0 %v1302
        %v1304 = vpop.f32.mrb[0].mxu0
        %v1305 = vadd.f32 %v923, %v1304
        %v1306 = vpop.f32.mrb[0].mxu0
        %v1307 = vadd.f32 %v923, %v1306
        %1308 = vmatprep.mubr.f32.mxu0 0.0
        %v1309 = vand.u32 %v1034, 4294901760
        %v1310 = vsub.f32 %v1034, %v1309
        %v1311 = vand.u32 %v1310, 4294901760
        %v1312 = vsub.f32 %v1310, %v1311
        %v1313 = vand.u32 %v1312, 4294901760
        %1314 = vmatmul.mubr.f32.gmra.mrb[0].mxu0 %v1313
        %v1315 = vpop.f32.mrb[0].mxu0
        %v1316 = vadd.f32 %v928, %v1315
        %v1317 = vpop.f32.mrb[0].mxu0
        %v1318 = vadd.f32 %v928, %v1317
        %1319 = vmatprep.mubr.f32.mxu0 0.0
        %v1320 = vand.u32 %v1037, 4294901760
        %v1321 = vsub.f32 %v1037, %v1320
        %v1322 = vand.u32 %v1321, 4294901760
        %v1323 = vsub.f32 %v1321, %v1322
        %v1324 = vand.u32 %v1323, 4294901760
        %1325 = vmatmul.mubr.f32.gmra.mrb[0].mxu0 %v1324
        %v1326 = vpop.f32.mrb[0].mxu0
        %v1327 = vadd.f32 %v933, %v1326
        %v1328 = vpop.f32.mrb[0].mxu0
        %v1329 = vadd.f32 %v933, %v1328
        %1330 = vmatprep.mubr.f32.mxu0 0.0
        %v1331 = vand.u32 %v1040, 4294901760
        %v1332 = vsub.f32 %v1040, %v1331
        %v1333 = vand.u32 %v1332, 4294901760
        %v1334 = vsub.f32 %v1332, %v1333
        %v1335 = vand.u32 %v1334, 4294901760
        %1336 = vmatmul.mubr.f32.gmra.mrb[0].mxu0 %v1335
        %v1337 = vpop.f32.mrb[0].mxu0
        %v1338 = vadd.f32 %v938, %v1337
        %v1339 = vpop.f32.mrb[0].mxu0
        %v1340 = vadd.f32 %v938, %v1339
        %1341 = vmatprep.mubr.f32.mxu0 0.0
        %v1342 = vand.u32 %v1043, 4294901760
        %v1343 = vsub.f32 %v1043, %v1342
        %v1344 = vand.u32 %v1343, 4294901760
        %v1345 = vsub.f32 %v1343, %v1344
        %v1346 = vand.u32 %v1345, 4294901760
        %1347 = vmatmul.mubr.f32.gmra.mrb[0].mxu0 %v1346
        %v1348 = vpop.f32.mrb[0].mxu0
        %v1349 = vadd.f32 %v943, %v1348
        %v1350 = vpop.f32.mrb[0].mxu0
        %v1351 = vadd.f32 %v943, %v1350
        %1352 = vmatprep.mubr.f32.mxu0 0.0
        %v1353 = vand.u32 %v1046, 4294901760
        %v1354 = vsub.f32 %v1046, %v1353
        %v1355 = vand.u32 %v1354, 4294901760
        %v1356 = vsub.f32 %v1354, %v1355
        %v1357 = vand.u32 %v1356, 4294901760
        %1358 = vmatmul.mubr.f32.gmra.mrb[0].mxu0 %v1357
        %v1359 = vpop.f32.mrb[0].mxu0
        %v1360 = vadd.f32 %v948, %v1359
        %v1361 = vpop.f32.mrb[0].mxu0
        %v1362 = vadd.f32 %v948, %v1361
        %1363 = vmatprep.mubr.f32.mxu0 0.0
        %v1364 = vand.u32 %v1049, 4294901760
        %v1365 = vsub.f32 %v1049, %v1364
        %v1366 = vand.u32 %v1365, 4294901760
        %v1367 = vsub.f32 %v1365, %v1366
        %v1368 = vand.u32 %v1367, 4294901760
        %1369 = vmatmul.mubr.f32.gmra.mrb[0].mxu0 %v1368
        %v1370 = vpop.f32.mrb[0].mxu0
        %v1371 = vadd.f32 %v953, %v1370
        %v1372 = vpop.f32.mrb[0].mxu0
        %v1373 = vadd.f32 %v953, %v1372
        %1374 = vmatprep.mubr.f32.mxu0 0.0
        %v1375 = vand.u32 %v1052, 4294901760
        %v1376 = vsub.f32 %v1052, %v1375
        %v1377 = vand.u32 %v1376, 4294901760
        %v1378 = vsub.f32 %v1376, %v1377
        %v1379 = vand.u32 %v1378, 4294901760
        %1380 = vmatmul.mubr.f32.gmra.mrb[0].mxu0 %v1379
        %v1381 = vpop.f32.mrb[0].mxu0
        %v1382 = vadd.f32 %v958, %v1381
        %v1383 = vpop.f32.mrb[0].mxu0
        %v1384 = vadd.f32 %v958, %v1383
        %1385 = vmatprep.mubr.f32.mxu0 0.0
        %v1386 = vand.u32 %v1055, 4294901760
        %v1387 = vsub.f32 %v1055, %v1386
        %v1388 = vand.u32 %v1387, 4294901760
        %v1389 = vsub.f32 %v1387, %v1388
        %v1390 = vand.u32 %v1389, 4294901760
        %1391 = vmatmul.mubr.f32.gmra.mrb[0].mxu0 %v1390
        %v1392 = vpop.f32.mrb[0].mxu0
        %v1393 = vadd.f32 %v963, %v1392
        %v1394 = vpop.f32.mrb[0].mxu0
        %v1395 = vadd.f32 %v963, %v1394
        %1396 = vmatprep.mubr.f32.mxu0 0.0
        %v1397 = vand.u32 %v1058, 4294901760
        %v1398 = vsub.f32 %v1058, %v1397
        %v1399 = vand.u32 %v1398, 4294901760
        %v1400 = vsub.f32 %v1398, %v1399
        %v1401 = vand.u32 %v1400, 4294901760
        %1402 = vmatmul.mubr.f32.gmra.mrb[0].mxu0 %v1401
        %v1403 = vpop.f32.mrb[0].mxu0
        %v1404 = vadd.f32 %v968, %v1403
        %v1405 = vpop.f32.mrb[0].mxu0
        %v1406 = vadd.f32 %v968, %v1405
        %1407 = vmatprep.mubr.f32.mxu0 0.0
        %v1408 = vand.u32 %v1061, 4294901760
        %v1409 = vsub.f32 %v1061, %v1408
        %v1410 = vand.u32 %v1409, 4294901760
        %v1411 = vsub.f32 %v1409, %v1410
        %v1412 = vand.u32 %v1411, 4294901760
        %1413 = vmatmul.mubr.f32.gmra.mrb[0].mxu0 %v1412
        %v1414 = vpop.f32.mrb[0].mxu0
        %v1415 = vadd.f32 %v973, %v1414
        %v1416 = vpop.f32.mrb[0].mxu0
        %v1417 = vadd.f32 %v973, %v1416
        %1418 = vmatprep.mubr.f32.mxu0 0.0
        %v1419 = vand.u32 %v1064, 4294901760
        %v1420 = vsub.f32 %v1064, %v1419
        %v1421 = vand.u32 %v1420, 4294901760
        %v1422 = vsub.f32 %v1420, %v1421
        %v1423 = vand.u32 %v1422, 4294901760
        %1424 = vmatmul.mubr.f32.gmra.mrb[0].mxu0 %v1423
        %v1425 = vpop.f32.mrb[0].mxu0
        %v1426 = vadd.f32 %v978, %v1425
        %v1427 = vpop.f32.mrb[0].mxu0
        %v1428 = vadd.f32 %v978, %v1427
        %1429 = vmatprep.mubr.f32.mxu0 0.0
        %v1430 = vand.u32 %v1067, 4294901760
        %v1431 = vsub.f32 %v1067, %v1430
        %v1432 = vand.u32 %v1431, 4294901760
        %v1433 = vsub.f32 %v1431, %v1432
        %v1434 = vand.u32 %v1433, 4294901760
        %1435 = vmatmul.mubr.f32.gmra.mrb[0].mxu0 %v1434
        %v1436 = vpop.f32.mrb[0].mxu0
        %v1437 = vadd.f32 %v983, %v1436
        %v1438 = vpop.f32.mrb[0].mxu0
        %v1439 = vadd.f32 %v983, %v1438
        %1440 = vmatprep.mubr.f32.mxu0 0.0
        %v1441 = vand.u32 %v1070, 4294901760
        %v1442 = vsub.f32 %v1070, %v1441
        %v1443 = vand.u32 %v1442, 4294901760
        %v1444 = vsub.f32 %v1442, %v1443
        %v1445 = vand.u32 %v1444, 4294901760
        %1446 = vmatmul.mubr.f32.gmra.mrb[0].mxu0 %v1445
        %v1447 = vpop.f32.mrb[0].mxu0
        %v1448 = vadd.f32 %v988, %v1447
        %v1449 = vpop.f32.mrb[0].mxu0
        %v1450 = vadd.f32 %v988, %v1449
        %1451 = vdwg.mxu0
        %v1452 = vand.u32 %v766, 4294901760
        %v1453 = vsub.f32 %v766, %v1452
        %v1454 = vand.u32 %v1453, 4294901760
        %v1455 = vsub.f32 %v1453, %v1454
        %v1456 = vand.u32 %v1455, 4294901760
        %1457 = vmatprep.subr.mxu0 %v1456
        %v1458 = vand.u32 %v765, 4294901760
        %v1459 = vsub.f32 %v765, %v1458
        %v1460 = vand.u32 %v1459, 4294901760
        %v1461 = vsub.f32 %v1459, %v1460
        %v1462 = vand.u32 %v1461, 4294901760
        %1463 = vmatpush1.msra.mxu0 %v1462
        %v1464 = vand.u32 %v770, 4294901760
        %v1465 = vsub.f32 %v770, %v1464
        %v1466 = vand.u32 %v1465, 4294901760
        %v1467 = vsub.f32 %v1465, %v1466
        %v1468 = vand.u32 %v1467, 4294901760
        %1469 = vmatprep.subr.mxu0 %v1468
        %v1470 = vand.u32 %v769, 4294901760
        %v1471 = vsub.f32 %v769, %v1470
        %v1472 = vand.u32 %v1471, 4294901760
        %v1473 = vsub.f32 %v1471, %v1472
        %v1474 = vand.u32 %v1473, 4294901760
        %1475 = vmatpush1.msra.mxu0 %v1474
        %v1476 = vand.u32 %v774, 4294901760
        %v1477 = vsub.f32 %v774, %v1476
        %v1478 = vand.u32 %v1477, 4294901760
        %v1479 = vsub.f32 %v1477, %v1478
        %v1480 = vand.u32 %v1479, 4294901760
        %1481 = vmatprep.subr.mxu0 %v1480
        %v1482 = vand.u32 %v773, 4294901760
        %v1483 = vsub.f32 %v773, %v1482
        %v1484 = vand.u32 %v1483, 4294901760
        %v1485 = vsub.f32 %v1483, %v1484
        %v1486 = vand.u32 %v1485, 4294901760
        %1487 = vmatpush1.msra.mxu0 %v1486
        %v1488 = vand.u32 %v778, 4294901760
        %v1489 = vsub.f32 %v778, %v1488
        %v1490 = vand.u32 %v1489, 4294901760
        %v1491 = vsub.f32 %v1489, %v1490
        %v1492 = vand.u32 %v1491, 4294901760
        %1493 = vmatprep.subr.mxu0 %v1492
        %v1494 = vand.u32 %v777, 4294901760
        %v1495 = vsub.f32 %v777, %v1494
        %v1496 = vand.u32 %v1495, 4294901760
        %v1497 = vsub.f32 %v1495, %v1496
        %v1498 = vand.u32 %v1497, 4294901760
        %1499 = vmatpush1.msra.mxu0 %v1498
        %v1500 = vand.u32 %v782, 4294901760
        %v1501 = vsub.f32 %v782, %v1500
        %v1502 = vand.u32 %v1501, 4294901760
        %v1503 = vsub.f32 %v1501, %v1502
        %v1504 = vand.u32 %v1503, 4294901760
        %1505 = vmatprep.subr.mxu0 %v1504
        %v1506 = vand.u32 %v781, 4294901760
        %v1507 = vsub.f32 %v781, %v1506
        %v1508 = vand.u32 %v1507, 4294901760
        %v1509 = vsub.f32 %v1507, %v1508
        %v1510 = vand.u32 %v1509, 4294901760
        %1511 = vmatpush1.msra.mxu0 %v1510
        %v1512 = vand.u32 %v786, 4294901760
        %v1513 = vsub.f32 %v786, %v1512
        %v1514 = vand.u32 %v1513, 4294901760
        %v1515 = vsub.f32 %v1513, %v1514
        %v1516 = vand.u32 %v1515, 4294901760
        %1517 = vmatprep.subr.mxu0 %v1516
        %v1518 = vand.u32 %v785, 4294901760
        %v1519 = vsub.f32 %v785, %v1518
        %v1520 = vand.u32 %v1519, 4294901760
        %v1521 = vsub.f32 %v1519, %v1520
        %v1522 = vand.u32 %v1521, 4294901760
        %1523 = vmatpush1.msra.mxu0 %v1522
        %v1524 = vand.u32 %v790, 4294901760
        %v1525 = vsub.f32 %v790, %v1524
        %v1526 = vand.u32 %v1525, 4294901760
        %v1527 = vsub.f32 %v1525, %v1526
        %v1528 = vand.u32 %v1527, 4294901760
        %1529 = vmatprep.subr.mxu0 %v1528
        %v1530 = vand.u32 %v789, 4294901760
        %v1531 = vsub.f32 %v789, %v1530
        %v1532 = vand.u32 %v1531, 4294901760
        %v1533 = vsub.f32 %v1531, %v1532
        %v1534 = vand.u32 %v1533, 4294901760
        %1535 = vmatpush1.msra.mxu0 %v1534
        %v1536 = vand.u32 %v794, 4294901760
        %v1537 = vsub.f32 %v794, %v1536
        %v1538 = vand.u32 %v1537, 4294901760
        %v1539 = vsub.f32 %v1537, %v1538
        %v1540 = vand.u32 %v1539, 4294901760
        %1541 = vmatprep.subr.mxu0 %v1540
        %v1542 = vand.u32 %v793, 4294901760
        %v1543 = vsub.f32 %v793, %v1542
        %v1544 = vand.u32 %v1543, 4294901760
        %v1545 = vsub.f32 %v1543, %v1544
        %v1546 = vand.u32 %v1545, 4294901760
        %1547 = vmatpush1.msra.mxu0 %v1546
        %v1548 = vand.u32 %v798, 4294901760
        %v1549 = vsub.f32 %v798, %v1548
        %v1550 = vand.u32 %v1549, 4294901760
        %v1551 = vsub.f32 %v1549, %v1550
        %v1552 = vand.u32 %v1551, 4294901760
        %1553 = vmatprep.subr.mxu0 %v1552
        %v1554 = vand.u32 %v797, 4294901760
        %v1555 = vsub.f32 %v797, %v1554
        %v1556 = vand.u32 %v1555, 4294901760
        %v1557 = vsub.f32 %v1555, %v1556
        %v1558 = vand.u32 %v1557, 4294901760
        %1559 = vmatpush1.msra.mxu0 %v1558
        %1560 = vmatprep.subr.mxu0 0.0
        %1561 = vmatpush1.msra.mxu0 0.0
        %1562 = vmatprep.subr.mxu0 0.0
        %1563 = vmatpush1.msra.mxu0 0.0
        %1564 = vmatprep.subr.mxu0 0.0
        %1565 = vmatpush1.msra.mxu0 0.0
        %1566 = vmatprep.subr.mxu0 0.0
        %1567 = vmatpush1.msra.mxu0 0.0
        %1568 = vmatprep.subr.mxu0 0.0
        %1569 = vmatpush1.msra.mxu0 0.0
        %1570 = vmatprep.subr.mxu0 0.0
        %1571 = vmatpush1.msra.mxu0 0.0
        %1572 = vmatprep.subr.mxu0 0.0
        %1573 = vmatpush1.msra.mxu0 0.0
        %1574 = vmatprep.subr.mxu0 0.0
        %1575 = vmatpush1.msra.mxu0 0.0
        %1576 = vmatprep.subr.mxu0 0.0
        %1577 = vmatpush1.msra.mxu0 0.0
        %1578 = vmatprep.subr.mxu0 0.0
        %1579 = vmatpush1.msra.mxu0 0.0
        %1580 = vmatprep.subr.mxu0 0.0
        %1581 = vmatpush1.msra.mxu0 0.0
        %1582 = vmatprep.subr.mxu0 0.0
        %1583 = vmatpush1.msra.mxu0 0.0
        %1584 = vmatprep.subr.mxu0 0.0
        %1585 = vmatpush1.msra.mxu0 0.0
        %1586 = vmatprep.subr.mxu0 0.0
        %1587 = vmatpush1.msra.mxu0 0.0
        %1588 = vmatprep.subr.mxu0 0.0
        %1589 = vmatpush1.msra.mxu0 0.0
        %1590 = vmatprep.subr.mxu0 0.0
        %1591 = vmatpush1.msra.mxu0 0.0
        %1592 = vmatprep.subr.mxu0 0.0
        %1593 = vmatpush1.msra.mxu0 0.0
        %1594 = vmatprep.subr.mxu0 0.0
        %1595 = vmatpush1.msra.mxu0 0.0
        %1596 = vmatprep.subr.mxu0 0.0
        %1597 = vmatpush1.msra.mxu0 0.0
        %1598 = vmatprep.subr.mxu0 0.0
        %1599 = vmatpush1.msra.mxu0 0.0
        %1600 = vmatprep.subr.mxu0 0.0
        %1601 = vmatpush1.msra.mxu0 0.0
        %1602 = vmatprep.subr.mxu0 0.0
        %1603 = vmatpush1.msra.mxu0 0.0
        %1604 = vmatprep.subr.mxu0 0.0
        %1605 = vmatpush1.msra.mxu0 0.0
        %1606 = vmatprep.mubr.f32.mxu0 0.0
        %v1607 = vand.u32 %v992, 4294901760
        %1608 = vmatmul.mubr.f32.gmra.mrb[0].mxu0 %v1607
        %v1609 = vpop.f32.mrb[0].mxu0
        %v1610 = vadd.f32 %v1162, %v1609
        %v1611 = vpop.f32.mrb[0].mxu0
        %v1612 = vadd.f32 %v1164, %v1611
        %1613 = vmatprep.mubr.f32.mxu0 0.0
        %v1614 = vand.u32 %v995, 4294901760
        %1615 = vmatmul.mubr.f32.gmra.mrb[0].mxu0 %v1614
        %v1616 = vpop.f32.mrb[0].mxu0
        %v1617 = vadd.f32 %v1173, %v1616
        %v1618 = vpop.f32.mrb[0].mxu0
        %v1619 = vadd.f32 %v1175, %v1618
        %1620 = vmatprep.mubr.f32.mxu0 0.0
        %v1621 = vand.u32 %v998, 4294901760
        %1622 = vmatmul.mubr.f32.gmra.mrb[0].mxu0 %v1621
        %v1623 = vpop.f32.mrb[0].mxu0
        %v1624 = vadd.f32 %v1184, %v1623
        %v1625 = vpop.f32.mrb[0].mxu0
        %v1626 = vadd.f32 %v1186, %v1625
        %1627 = vmatprep.mubr.f32.mxu0 0.0
        %v1628 = vand.u32 %v1001, 4294901760
        %1629 = vmatmul.mubr.f32.gmra.mrb[0].mxu0 %v1628
        %v1630 = vpop.f32.mrb[0].mxu0
        %v1631 = vadd.f32 %v1195, %v1630
        %v1632 = vpop.f32.mrb[0].mxu0
        %v1633 = vadd.f32 %v1197, %v1632
        %1634 = vmatprep.mubr.f32.mxu0 0.0
        %v1635 = vand.u32 %v1004, 4294901760
        %1636 = vmatmul.mubr.f32.gmra.mrb[0].mxu0 %v1635
        %v1637 = vpop.f32.mrb[0].mxu0
        %v1638 = vadd.f32 %v1206, %v1637
        %v1639 = vpop.f32.mrb[0].mxu0
        %v1640 = vadd.f32 %v1208, %v1639
        %1641 = vmatprep.mubr.f32.mxu0 0.0
        %v1642 = vand.u32 %v1007, 4294901760
        %1643 = vmatmul.mubr.f32.gmra.mrb[0].mxu0 %v1642
        %v1644 = vpop.f32.mrb[0].mxu0
        %v1645 = vadd.f32 %v1217, %v1644
        %v1646 = vpop.f32.mrb[0].mxu0
        %v1647 = vadd.f32 %v1219, %v1646
        %1648 = vmatprep.mubr.f32.mxu0 0.0
        %v1649 = vand.u32 %v1010, 4294901760
        %1650 = vmatmul.mubr.f32.gmra.mrb[0].mxu0 %v1649
        %v1651 = vpop.f32.mrb[0].mxu0
        %v1652 = vadd.f32 %v1228, %v1651
        %v1653 = vpop.f32.mrb[0].mxu0
        %v1654 = vadd.f32 %v1230, %v1653
        %1655 = vmatprep.mubr.f32.mxu0 0.0
        %v1656 = vand.u32 %v1013, 4294901760
        %1657 = vmatmul.mubr.f32.gmra.mrb[0].mxu0 %v1656
        %v1658 = vpop.f32.mrb[0].mxu0
        %v1659 = vadd.f32 %v1239, %v1658
        %v1660 = vpop.f32.mrb[0].mxu0
        %v1661 = vadd.f32 %v1241, %v1660
        %1662 = vmatprep.mubr.f32.mxu0 0.0
        %v1663 = vand.u32 %v1016, 4294901760
        %1664 = vmatmul.mubr.f32.gmra.mrb[0].mxu0 %v1663
        %v1665 = vpop.f32.mrb[0].mxu0
        %v1666 = vadd.f32 %v1250, %v1665
        %v1667 = vpop.f32.mrb[0].mxu0
        %v1668 = vadd.f32 %v1252, %v1667
        %1669 = vmatprep.mubr.f32.mxu0 0.0
        %v1670 = vand.u32 %v1019, 4294901760
        %1671 = vmatmul.mubr.f32.gmra.mrb[0].mxu0 %v1670
        %v1672 = vpop.f32.mrb[0].mxu0
        %v1673 = vadd.f32 %v1261, %v1672
        %v1674 = vpop.f32.mrb[0].mxu0
        %v1675 = vadd.f32 %v1263, %v1674
        %1676 = vmatprep.mubr.f32.mxu0 0.0
        %v1677 = vand.u32 %v1022, 4294901760
        %1678 = vmatmul.mubr.f32.gmra.mrb[0].mxu0 %v1677
        %v1679 = vpop.f32.mrb[0].mxu0
        %v1680 = vadd.f32 %v1272, %v1679
        %v1681 = vpop.f32.mrb[0].mxu0
        %v1682 = vadd.f32 %v1274, %v1681
        %1683 = vmatprep.mubr.f32.mxu0 0.0
        %v1684 = vand.u32 %v1025, 4294901760
        %1685 = vmatmul.mubr.f32.gmra.mrb[0].mxu0 %v1684
        %v1686 = vpop.f32.mrb[0].mxu0
        %v1687 = vadd.f32 %v1283, %v1686
        %v1688 = vpop.f32.mrb[0].mxu0
        %v1689 = vadd.f32 %v1285, %v1688
        %1690 = vmatprep.mubr.f32.mxu0 0.0
        %v1691 = vand.u32 %v1028, 4294901760
        %1692 = vmatmul.mubr.f32.gmra.mrb[0].mxu0 %v1691
        %v1693 = vpop.f32.mrb[0].mxu0
        %v1694 = vadd.f32 %v1294, %v1693
        %v1695 = vpop.f32.mrb[0].mxu0
        %v1696 = vadd.f32 %v1296, %v1695
        %1697 = vmatprep.mubr.f32.mxu0 0.0
        %v1698 = vand.u32 %v1031, 4294901760
        %1699 = vmatmul.mubr.f32.gmra.mrb[0].mxu0 %v1698
        %v1700 = vpop.f32.mrb[0].mxu0
        %v1701 = vadd.f32 %v1305, %v1700
        %v1702 = vpop.f32.mrb[0].mxu0
        %v1703 = vadd.f32 %v1307, %v1702
        %1704 = vmatprep.mubr.f32.mxu0 0.0
        %v1705 = vand.u32 %v1034, 4294901760
        %1706 = vmatmul.mubr.f32.gmra.mrb[0].mxu0 %v1705
        %v1707 = vpop.f32.mrb[0].mxu0
        %v1708 = vadd.f32 %v1316, %v1707
        %v1709 = vpop.f32.mrb[0].mxu0
        %v1710 = vadd.f32 %v1318, %v1709
        %1711 = vmatprep.mubr.f32.mxu0 0.0
        %v1712 = vand.u32 %v1037, 4294901760
        %1713 = vmatmul.mubr.f32.gmra.mrb[0].mxu0 %v1712
        %v1714 = vpop.f32.mrb[0].mxu0
        %v1715 = vadd.f32 %v1327, %v1714
        %v1716 = vpop.f32.mrb[0].mxu0
        %v1717 = vadd.f32 %v1329, %v1716
        %1718 = vmatprep.mubr.f32.mxu0 0.0
        %v1719 = vand.u32 %v1040, 4294901760
        %1720 = vmatmul.mubr.f32.gmra.mrb[0].mxu0 %v1719
        %v1721 = vpop.f32.mrb[0].mxu0
        %v1722 = vadd.f32 %v1338, %v1721
        %v1723 = vpop.f32.mrb[0].mxu0
        %v1724 = vadd.f32 %v1340, %v1723
        %1725 = vmatprep.mubr.f32.mxu0 0.0
        %v1726 = vand.u32 %v1043, 4294901760
        %1727 = vmatmul.mubr.f32.gmra.mrb[0].mxu0 %v1726
        %v1728 = vpop.f32.mrb[0].mxu0
        %v1729 = vadd.f32 %v1349, %v1728
        %v1730 = vpop.f32.mrb[0].mxu0
        %v1731 = vadd.f32 %v1351, %v1730
        %1732 = vmatprep.mubr.f32.mxu0 0.0
        %v1733 = vand.u32 %v1046, 4294901760
        %1734 = vmatmul.mubr.f32.gmra.mrb[0].mxu0 %v1733
        %v1735 = vpop.f32.mrb[0].mxu0
        %v1736 = vadd.f32 %v1360, %v1735
        %v1737 = vpop.f32.mrb[0].mxu0
        %v1738 = vadd.f32 %v1362, %v1737
        %1739 = vmatprep.mubr.f32.mxu0 0.0
        %v1740 = vand.u32 %v1049, 4294901760
        %1741 = vmatmul.mubr.f32.gmra.mrb[0].mxu0 %v1740
        %v1742 = vpop.f32.mrb[0].mxu0
        %v1743 = vadd.f32 %v1371, %v1742
        %v1744 = vpop.f32.mrb[0].mxu0
        %v1745 = vadd.f32 %v1373, %v1744
        %1746 = vmatprep.mubr.f32.mxu0 0.0
        %v1747 = vand.u32 %v1052, 4294901760
        %1748 = vmatmul.mubr.f32.gmra.mrb[0].mxu0 %v1747
        %v1749 = vpop.f32.mrb[0].mxu0
        %v1750 = vadd.f32 %v1382, %v1749
        %v1751 = vpop.f32.mrb[0].mxu0
        %v1752 = vadd.f32 %v1384, %v1751
        %1753 = vmatprep.mubr.f32.mxu0 0.0
        %v1754 = vand.u32 %v1055, 4294901760
        %1755 = vmatmul.mubr.f32.gmra.mrb[0].mxu0 %v1754
        %v1756 = vpop.f32.mrb[0].mxu0
        %v1757 = vadd.f32 %v1393, %v1756
        %v1758 = vpop.f32.mrb[0].mxu0
        %v1759 = vadd.f32 %v1395, %v1758
        %1760 = vmatprep.mubr.f32.mxu0 0.0
        %v1761 = vand.u32 %v1058, 4294901760
        %1762 = vmatmul.mubr.f32.gmra.mrb[0].mxu0 %v1761
        %v1763 = vpop.f32.mrb[0].mxu0
        %v1764 = vadd.f32 %v1404, %v1763
        %v1765 = vpop.f32.mrb[0].mxu0
        %v1766 = vadd.f32 %v1406, %v1765
        %1767 = vmatprep.mubr.f32.mxu0 0.0
        %v1768 = vand.u32 %v1061, 4294901760
        %1769 = vmatmul.mubr.f32.gmra.mrb[0].mxu0 %v1768
        %v1770 = vpop.f32.mrb[0].mxu0
        %v1771 = vadd.f32 %v1415, %v1770
        %v1772 = vpop.f32.mrb[0].mxu0
        %v1773 = vadd.f32 %v1417, %v1772
        %1774 = vmatprep.mubr.f32.mxu0 0.0
        %v1775 = vand.u32 %v1064, 4294901760
        %1776 = vmatmul.mubr.f32.gmra.mrb[0].mxu0 %v1775
        %v1777 = vpop.f32.mrb[0].mxu0
        %v1778 = vadd.f32 %v1426, %v1777
        %v1779 = vpop.f32.mrb[0].mxu0
        %v1780 = vadd.f32 %v1428, %v1779
        %1781 = vmatprep.mubr.f32.mxu0 0.0
        %v1782 = vand.u32 %v1067, 4294901760
        %1783 = vmatmul.mubr.f32.gmra.mrb[0].mxu0 %v1782
        %v1784 = vpop.f32.mrb[0].mxu0
        %v1785 = vadd.f32 %v1437, %v1784
        %v1786 = vpop.f32.mrb[0].mxu0
        %v1787 = vadd.f32 %v1439, %v1786
        %1788 = vmatprep.mubr.f32.mxu0 0.0
        %v1789 = vand.u32 %v1070, 4294901760
        %1790 = vmatmul.mubr.f32.gmra.mrb[0].mxu0 %v1789
        %v1791 = vpop.f32.mrb[0].mxu0
        %v1792 = vadd.f32 %v1448, %v1791
        %v1793 = vpop.f32.mrb[0].mxu0
        %v1794 = vadd.f32 %v1450, %v1793
        %1795 = vdwg.mxu0
        %v1796 = vand.u32 %v766, 4294901760
        %v1797 = vsub.f32 %v766, %v1796
        %1798 = vmatprep.subr.mxu0 %v1797
        %v1799 = vand.u32 %v765, 4294901760
        %v1800 = vsub.f32 %v765, %v1799
        %1801 = vmatpush1.msra.mxu0 %v1800
        %v1802 = vand.u32 %v770, 4294901760
        %v1803 = vsub.f32 %v770, %v1802
        %1804 = vmatprep.subr.mxu0 %v1803
        %v1805 = vand.u32 %v769, 4294901760
        %v1806 = vsub.f32 %v769, %v1805
        %1807 = vmatpush1.msra.mxu0 %v1806
        %v1808 = vand.u32 %v774, 4294901760
        %v1809 = vsub.f32 %v774, %v1808
        %1810 = vmatprep.subr.mxu0 %v1809
        %v1811 = vand.u32 %v773, 4294901760
        %v1812 = vsub.f32 %v773, %v1811
        %1813 = vmatpush1.msra.mxu0 %v1812
        %v1814 = vand.u32 %v778, 4294901760
        %v1815 = vsub.f32 %v778, %v1814
        %1816 = vmatprep.subr.mxu0 %v1815
        %v1817 = vand.u32 %v777, 4294901760
        %v1818 = vsub.f32 %v777, %v1817
        %1819 = vmatpush1.msra.mxu0 %v1818
        %v1820 = vand.u32 %v782, 4294901760
        %v1821 = vsub.f32 %v782, %v1820
        %1822 = vmatprep.subr.mxu0 %v1821
        %v1823 = vand.u32 %v781, 4294901760
        %v1824 = vsub.f32 %v781, %v1823
        %1825 = vmatpush1.msra.mxu0 %v1824
        %v1826 = vand.u32 %v786, 4294901760
        %v1827 = vsub.f32 %v786, %v1826
        %1828 = vmatprep.subr.mxu0 %v1827
        %v1829 = vand.u32 %v785, 4294901760
        %v1830 = vsub.f32 %v785, %v1829
        %1831 = vmatpush1.msra.mxu0 %v1830
        %v1832 = vand.u32 %v790, 4294901760
        %v1833 = vsub.f32 %v790, %v1832
        %1834 = vmatprep.subr.mxu0 %v1833
        %v1835 = vand.u32 %v789, 4294901760
        %v1836 = vsub.f32 %v789, %v1835
        %1837 = vmatpush1.msra.mxu0 %v1836
        %v1838 = vand.u32 %v794, 4294901760
        %v1839 = vsub.f32 %v794, %v1838
        %1840 = vmatprep.subr.mxu0 %v1839
        %v1841 = vand.u32 %v793, 4294901760
        %v1842 = vsub.f32 %v793, %v1841
        %1843 = vmatpush1.msra.mxu0 %v1842
        %v1844 = vand.u32 %v798, 4294901760
        %v1845 = vsub.f32 %v798, %v1844
        %1846 = vmatprep.subr.mxu0 %v1845
        %v1847 = vand.u32 %v797, 4294901760
        %v1848 = vsub.f32 %v797, %v1847
        %1849 = vmatpush1.msra.mxu0 %v1848
        %1850 = vmatprep.subr.mxu0 0.0
        %1851 = vmatpush1.msra.mxu0 0.0
        %1852 = vmatprep.subr.mxu0 0.0
        %1853 = vmatpush1.msra.mxu0 0.0
        %1854 = vmatprep.subr.mxu0 0.0
        %1855 = vmatpush1.msra.mxu0 0.0
        %1856 = vmatprep.subr.mxu0 0.0
        %1857 = vmatpush1.msra.mxu0 0.0
        %1858 = vmatprep.subr.mxu0 0.0
        %1859 = vmatpush1.msra.mxu0 0.0
        %1860 = vmatprep.subr.mxu0 0.0
        %1861 = vmatpush1.msra.mxu0 0.0
        %1862 = vmatprep.subr.mxu0 0.0
        %1863 = vmatpush1.msra.mxu0 0.0
        %1864 = vmatprep.subr.mxu0 0.0
        %1865 = vmatpush1.msra.mxu0 0.0
        %1866 = vmatprep.subr.mxu0 0.0
        %1867 = vmatpush1.msra.mxu0 0.0
        %1868 = vmatprep.subr.mxu0 0.0
        %1869 = vmatpush1.msra.mxu0 0.0
        %1870 = vmatprep.subr.mxu0 0.0
        %1871 = vmatpush1.msra.mxu0 0.0
        %1872 = vmatprep.subr.mxu0 0.0
        %1873 = vmatpush1.msra.mxu0 0.0
        %1874 = vmatprep.subr.mxu0 0.0
        %1875 = vmatpush1.msra.mxu0 0.0
        %1876 = vmatprep.subr.mxu0 0.0
        %1877 = vmatpush1.msra.mxu0 0.0
        %1878 = vmatprep.subr.mxu0 0.0
        %1879 = vmatpush1.msra.mxu0 0.0
        %1880 = vmatprep.subr.mxu0 0.0
        %1881 = vmatpush1.msra.mxu0 0.0
        %1882 = vmatprep.subr.mxu0 0.0
        %1883 = vmatpush1.msra.mxu0 0.0
        %1884 = vmatprep.subr.mxu0 0.0
        %1885 = vmatpush1.msra.mxu0 0.0
        %1886 = vmatprep.subr.mxu0 0.0
        %1887 = vmatpush1.msra.mxu0 0.0
        %1888 = vmatprep.subr.mxu0 0.0
        %1889 = vmatpush1.msra.mxu0 0.0
        %1890 = vmatprep.subr.mxu0 0.0
        %1891 = vmatpush1.msra.mxu0 0.0
        %1892 = vmatprep.subr.mxu0 0.0
        %1893 = vmatpush1.msra.mxu0 0.0
        %1894 = vmatprep.subr.mxu0 0.0
        %1895 = vmatpush1.msra.mxu0 0.0
        %1896 = vmatprep.mubr.f32.mxu0 0.0
        %v1897 = vand.u32 %v992, 4294901760
        %v1898 = vsub.f32 %v992, %v1897
        %1899 = vmatmul.mubr.f32.gmra.mrb[0].mxu0 %v1898
        %v1900 = vpop.f32.mrb[0].mxu0
        %v1901 = vadd.f32 %v1610, %v1900
        %v1902 = vpop.f32.mrb[0].mxu0
        %v1903 = vadd.f32 %v1612, %v1902
        %1904 = vmatprep.mubr.f32.mxu0 0.0
        %v1905 = vand.u32 %v995, 4294901760
        %v1906 = vsub.f32 %v995, %v1905
        %1907 = vmatmul.mubr.f32.gmra.mrb[0].mxu0 %v1906
        %v1908 = vpop.f32.mrb[0].mxu0
        %v1909 = vadd.f32 %v1617, %v1908
        %v1910 = vpop.f32.mrb[0].mxu0
        %v1911 = vadd.f32 %v1619, %v1910
        %1912 = vmatprep.mubr.f32.mxu0 0.0
        %v1913 = vand.u32 %v998, 4294901760
        %v1914 = vsub.f32 %v998, %v1913
        %1915 = vmatmul.mubr.f32.gmra.mrb[0].mxu0 %v1914
        %v1916 = vpop.f32.mrb[0].mxu0
        %v1917 = vadd.f32 %v1624, %v1916
        %v1918 = vpop.f32.mrb[0].mxu0
        %v1919 = vadd.f32 %v1626, %v1918
        %1920 = vmatprep.mubr.f32.mxu0 0.0
        %v1921 = vand.u32 %v1001, 4294901760
        %v1922 = vsub.f32 %v1001, %v1921
        %1923 = vmatmul.mubr.f32.gmra.mrb[0].mxu0 %v1922
        %v1924 = vpop.f32.mrb[0].mxu0
        %v1925 = vadd.f32 %v1631, %v1924
        %v1926 = vpop.f32.mrb[0].mxu0
        %v1927 = vadd.f32 %v1633, %v1926
        %1928 = vmatprep.mubr.f32.mxu0 0.0
        %v1929 = vand.u32 %v1004, 4294901760
        %v1930 = vsub.f32 %v1004, %v1929
        %1931 = vmatmul.mubr.f32.gmra.mrb[0].mxu0 %v1930
        %v1932 = vpop.f32.mrb[0].mxu0
        %v1933 = vadd.f32 %v1638, %v1932
        %v1934 = vpop.f32.mrb[0].mxu0
        %v1935 = vadd.f32 %v1640, %v1934
        %1936 = vmatprep.mubr.f32.mxu0 0.0
        %v1937 = vand.u32 %v1007, 4294901760
        %v1938 = vsub.f32 %v1007, %v1937
        %1939 = vmatmul.mubr.f32.gmra.mrb[0].mxu0 %v1938
        %v1940 = vpop.f32.mrb[0].mxu0
        %v1941 = vadd.f32 %v1645, %v1940
        %v1942 = vpop.f32.mrb[0].mxu0
        %v1943 = vadd.f32 %v1647, %v1942
        %1944 = vmatprep.mubr.f32.mxu0 0.0
        %v1945 = vand.u32 %v1010, 4294901760
        %v1946 = vsub.f32 %v1010, %v1945
        %1947 = vmatmul.mubr.f32.gmra.mrb[0].mxu0 %v1946
        %v1948 = vpop.f32.mrb[0].mxu0
        %v1949 = vadd.f32 %v1652, %v1948
        %v1950 = vpop.f32.mrb[0].mxu0
        %v1951 = vadd.f32 %v1654, %v1950
        %1952 = vmatprep.mubr.f32.mxu0 0.0
        %v1953 = vand.u32 %v1013, 4294901760
        %v1954 = vsub.f32 %v1013, %v1953
        %1955 = vmatmul.mubr.f32.gmra.mrb[0].mxu0 %v1954
        %v1956 = vpop.f32.mrb[0].mxu0
        %v1957 = vadd.f32 %v1659, %v1956
        %v1958 = vpop.f32.mrb[0].mxu0
        %v1959 = vadd.f32 %v1661, %v1958
        %1960 = vmatprep.mubr.f32.mxu0 0.0
        %v1961 = vand.u32 %v1016, 4294901760
        %v1962 = vsub.f32 %v1016, %v1961
        %1963 = vmatmul.mubr.f32.gmra.mrb[0].mxu0 %v1962
        %v1964 = vpop.f32.mrb[0].mxu0
        %v1965 = vadd.f32 %v1666, %v1964
        %v1966 = vpop.f32.mrb[0].mxu0
        %v1967 = vadd.f32 %v1668, %v1966
        %1968 = vmatprep.mubr.f32.mxu0 0.0
        %v1969 = vand.u32 %v1019, 4294901760
        %v1970 = vsub.f32 %v1019, %v1969
        %1971 = vmatmul.mubr.f32.gmra.mrb[0].mxu0 %v1970
        %v1972 = vpop.f32.mrb[0].mxu0
        %v1973 = vadd.f32 %v1673, %v1972
        %v1974 = vpop.f32.mrb[0].mxu0
        %v1975 = vadd.f32 %v1675, %v1974
        %1976 = vmatprep.mubr.f32.mxu0 0.0
        %v1977 = vand.u32 %v1022, 4294901760
        %v1978 = vsub.f32 %v1022, %v1977
        %1979 = vmatmul.mubr.f32.gmra.mrb[0].mxu0 %v1978
        %v1980 = vpop.f32.mrb[0].mxu0
        %v1981 = vadd.f32 %v1680, %v1980
        %v1982 = vpop.f32.mrb[0].mxu0
        %v1983 = vadd.f32 %v1682, %v1982
        %1984 = vmatprep.mubr.f32.mxu0 0.0
        %v1985 = vand.u32 %v1025, 4294901760
        %v1986 = vsub.f32 %v1025, %v1985
        %1987 = vmatmul.mubr.f32.gmra.mrb[0].mxu0 %v1986
        %v1988 = vpop.f32.mrb[0].mxu0
        %v1989 = vadd.f32 %v1687, %v1988
        %v1990 = vpop.f32.mrb[0].mxu0
        %v1991 = vadd.f32 %v1689, %v1990
        %1992 = vmatprep.mubr.f32.mxu0 0.0
        %v1993 = vand.u32 %v1028, 4294901760
        %v1994 = vsub.f32 %v1028, %v1993
        %1995 = vmatmul.mubr.f32.gmra.mrb[0].mxu0 %v1994
        %v1996 = vpop.f32.mrb[0].mxu0
        %v1997 = vadd.f32 %v1694, %v1996
        %v1998 = vpop.f32.mrb[0].mxu0
        %v1999 = vadd.f32 %v1696, %v1998
        %2000 = vmatprep.mubr.f32.mxu0 0.0
        %v2001 = vand.u32 %v1031, 4294901760
        %v2002 = vsub.f32 %v1031, %v2001
        %2003 = vmatmul.mubr.f32.gmra.mrb[0].mxu0 %v2002
        %v2004 = vpop.f32.mrb[0].mxu0
        %v2005 = vadd.f32 %v1701, %v2004
        %v2006 = vpop.f32.mrb[0].mxu0
        %v2007 = vadd.f32 %v1703, %v2006
        %2008 = vmatprep.mubr.f32.mxu0 0.0
        %v2009 = vand.u32 %v1034, 4294901760
        %v2010 = vsub.f32 %v1034, %v2009
        %2011 = vmatmul.mubr.f32.gmra.mrb[0].mxu0 %v2010
        %v2012 = vpop.f32.mrb[0].mxu0
        %v2013 = vadd.f32 %v1708, %v2012
        %v2014 = vpop.f32.mrb[0].mxu0
        %v2015 = vadd.f32 %v1710, %v2014
        %2016 = vmatprep.mubr.f32.mxu0 0.0
        %v2017 = vand.u32 %v1037, 4294901760
        %v2018 = vsub.f32 %v1037, %v2017
        %2019 = vmatmul.mubr.f32.gmra.mrb[0].mxu0 %v2018
        %v2020 = vpop.f32.mrb[0].mxu0
        %v2021 = vadd.f32 %v1715, %v2020
        %v2022 = vpop.f32.mrb[0].mxu0
        %v2023 = vadd.f32 %v1717, %v2022
        %2024 = vmatprep.mubr.f32.mxu0 0.0
        %v2025 = vand.u32 %v1040, 4294901760
        %v2026 = vsub.f32 %v1040, %v2025
        %2027 = vmatmul.mubr.f32.gmra.mrb[0].mxu0 %v2026
        %v2028 = vpop.f32.mrb[0].mxu0
        %v2029 = vadd.f32 %v1722, %v2028
        %v2030 = vpop.f32.mrb[0].mxu0
        %v2031 = vadd.f32 %v1724, %v2030
        %2032 = vmatprep.mubr.f32.mxu0 0.0
        %v2033 = vand.u32 %v1043, 4294901760
        %v2034 = vsub.f32 %v1043, %v2033
        %2035 = vmatmul.mubr.f32.gmra.mrb[0].mxu0 %v2034
        %v2036 = vpop.f32.mrb[0].mxu0
        %v2037 = vadd.f32 %v1729, %v2036
        %v2038 = vpop.f32.mrb[0].mxu0
        %v2039 = vadd.f32 %v1731, %v2038
        %2040 = vmatprep.mubr.f32.mxu0 0.0
        %v2041 = vand.u32 %v1046, 4294901760
        %v2042 = vsub.f32 %v1046, %v2041
        %2043 = vmatmul.mubr.f32.gmra.mrb[0].mxu0 %v2042
        %v2044 = vpop.f32.mrb[0].mxu0
        %v2045 = vadd.f32 %v1736, %v2044
        %v2046 = vpop.f32.mrb[0].mxu0
        %v2047 = vadd.f32 %v1738, %v2046
        %2048 = vmatprep.mubr.f32.mxu0 0.0
        %v2049 = vand.u32 %v1049, 4294901760
        %v2050 = vsub.f32 %v1049, %v2049
        %2051 = vmatmul.mubr.f32.gmra.mrb[0].mxu0 %v2050
        %v2052 = vpop.f32.mrb[0].mxu0
        %v2053 = vadd.f32 %v1743, %v2052
        %v2054 = vpop.f32.mrb[0].mxu0
        %v2055 = vadd.f32 %v1745, %v2054
        %2056 = vmatprep.mubr.f32.mxu0 0.0
        %v2057 = vand.u32 %v1052, 4294901760
        %v2058 = vsub.f32 %v1052, %v2057
        %2059 = vmatmul.mubr.f32.gmra.mrb[0].mxu0 %v2058
        %v2060 = vpop.f32.mrb[0].mxu0
        %v2061 = vadd.f32 %v1750, %v2060
        %v2062 = vpop.f32.mrb[0].mxu0
        %v2063 = vadd.f32 %v1752, %v2062
        %2064 = vmatprep.mubr.f32.mxu0 0.0
        %v2065 = vand.u32 %v1055, 4294901760
        %v2066 = vsub.f32 %v1055, %v2065
        %2067 = vmatmul.mubr.f32.gmra.mrb[0].mxu0 %v2066
        %v2068 = vpop.f32.mrb[0].mxu0
        %v2069 = vadd.f32 %v1757, %v2068
        %v2070 = vpop.f32.mrb[0].mxu0
        %v2071 = vadd.f32 %v1759, %v2070
        %2072 = vmatprep.mubr.f32.mxu0 0.0
        %v2073 = vand.u32 %v1058, 4294901760
        %v2074 = vsub.f32 %v1058, %v2073
        %2075 = vmatmul.mubr.f32.gmra.mrb[0].mxu0 %v2074
        %v2076 = vpop.f32.mrb[0].mxu0
        %v2077 = vadd.f32 %v1764, %v2076
        %v2078 = vpop.f32.mrb[0].mxu0
        %v2079 = vadd.f32 %v1766, %v2078
        %2080 = vmatprep.mubr.f32.mxu0 0.0
        %v2081 = vand.u32 %v1061, 4294901760
        %v2082 = vsub.f32 %v1061, %v2081
        %2083 = vmatmul.mubr.f32.gmra.mrb[0].mxu0 %v2082
        %v2084 = vpop.f32.mrb[0].mxu0
        %v2085 = vadd.f32 %v1771, %v2084
        %v2086 = vpop.f32.mrb[0].mxu0
        %v2087 = vadd.f32 %v1773, %v2086
        %2088 = vmatprep.mubr.f32.mxu0 0.0
        %v2089 = vand.u32 %v1064, 4294901760
        %v2090 = vsub.f32 %v1064, %v2089
        %2091 = vmatmul.mubr.f32.gmra.mrb[0].mxu0 %v2090
        %v2092 = vpop.f32.mrb[0].mxu0
        %v2093 = vadd.f32 %v1778, %v2092
        %v2094 = vpop.f32.mrb[0].mxu0
        %v2095 = vadd.f32 %v1780, %v2094
        %2096 = vmatprep.mubr.f32.mxu0 0.0
        %v2097 = vand.u32 %v1067, 4294901760
        %v2098 = vsub.f32 %v1067, %v2097
        %2099 = vmatmul.mubr.f32.gmra.mrb[0].mxu0 %v2098
        %v2100 = vpop.f32.mrb[0].mxu0
        %v2101 = vadd.f32 %v1785, %v2100
        %v2102 = vpop.f32.mrb[0].mxu0
        %v2103 = vadd.f32 %v1787, %v2102
        %2104 = vmatprep.mubr.f32.mxu0 0.0
        %v2105 = vand.u32 %v1070, 4294901760
        %v2106 = vsub.f32 %v1070, %v2105
        %2107 = vmatmul.mubr.f32.gmra.mrb[0].mxu0 %v2106
        %v2108 = vpop.f32.mrb[0].mxu0
        %v2109 = vadd.f32 %v1792, %v2108
        %v2110 = vpop.f32.mrb[0].mxu0
        %v2111 = vadd.f32 %v1794, %v2110
        %2112 = vdwg.mxu0
        %v2113 = vand.u32 %v766, 4294901760
        %2114 = vmatprep.subr.mxu0 %v2113
        %v2115 = vand.u32 %v765, 4294901760
        %2116 = vmatpush1.msra.mxu0 %v2115
        %v2117 = vand.u32 %v770, 4294901760
        %2118 = vmatprep.subr.mxu0 %v2117
        %v2119 = vand.u32 %v769, 4294901760
        %2120 = vmatpush1.msra.mxu0 %v2119
        %v2121 = vand.u32 %v774, 4294901760
        %2122 = vmatprep.subr.mxu0 %v2121
        %v2123 = vand.u32 %v773, 4294901760
        %2124 = vmatpush1.msra.mxu0 %v2123
        %v2125 = vand.u32 %v778, 4294901760
        %2126 = vmatprep.subr.mxu0 %v2125
        %v2127 = vand.u32 %v777, 4294901760
        %2128 = vmatpush1.msra.mxu0 %v2127
        %v2129 = vand.u32 %v782, 4294901760
        %2130 = vmatprep.subr.mxu0 %v2129
        %v2131 = vand.u32 %v781, 4294901760
        %2132 = vmatpush1.msra.mxu0 %v2131
        %v2133 = vand.u32 %v786, 4294901760
        %2134 = vmatprep.subr.mxu0 %v2133
        %v2135 = vand.u32 %v785, 4294901760
        %2136 = vmatpush1.msra.mxu0 %v2135
        %v2137 = vand.u32 %v790, 4294901760
        %2138 = vmatprep.subr.mxu0 %v2137
        %v2139 = vand.u32 %v789, 4294901760
        %2140 = vmatpush1.msra.mxu0 %v2139
        %v2141 = vand.u32 %v794, 4294901760
        %2142 = vmatprep.subr.mxu0 %v2141
        %v2143 = vand.u32 %v793, 4294901760
        %2144 = vmatpush1.msra.mxu0 %v2143
        %v2145 = vand.u32 %v798, 4294901760
        %2146 = vmatprep.subr.mxu0 %v2145
        %v2147 = vand.u32 %v797, 4294901760
        %2148 = vmatpush1.msra.mxu0 %v2147
        %2149 = vmatprep.subr.mxu0 0.0
        %2150 = vmatpush1.msra.mxu0 0.0
        %2151 = vmatprep.subr.mxu0 0.0
        %2152 = vmatpush1.msra.mxu0 0.0
        %2153 = vmatprep.subr.mxu0 0.0
        %2154 = vmatpush1.msra.mxu0 0.0
        %2155 = vmatprep.subr.mxu0 0.0
        %2156 = vmatpush1.msra.mxu0 0.0
        %2157 = vmatprep.subr.mxu0 0.0
        %2158 = vmatpush1.msra.mxu0 0.0
        %2159 = vmatprep.subr.mxu0 0.0
        %2160 = vmatpush1.msra.mxu0 0.0
        %2161 = vmatprep.subr.mxu0 0.0
        %2162 = vmatpush1.msra.mxu0 0.0
        %2163 = vmatprep.subr.mxu0 0.0
        %2164 = vmatpush1.msra.mxu0 0.0
        %2165 = vmatprep.subr.mxu0 0.0
        %2166 = vmatpush1.msra.mxu0 0.0
        %2167 = vmatprep.subr.mxu0 0.0
        %2168 = vmatpush1.msra.mxu0 0.0
        %2169 = vmatprep.subr.mxu0 0.0
        %2170 = vmatpush1.msra.mxu0 0.0
        %2171 = vmatprep.subr.mxu0 0.0
        %2172 = vmatpush1.msra.mxu0 0.0
        %2173 = vmatprep.subr.mxu0 0.0
        %2174 = vmatpush1.msra.mxu0 0.0
        %2175 = vmatprep.subr.mxu0 0.0
        %2176 = vmatpush1.msra.mxu0 0.0
        %2177 = vmatprep.subr.mxu0 0.0
        %2178 = vmatpush1.msra.mxu0 0.0
        %2179 = vmatprep.subr.mxu0 0.0
        %2180 = vmatpush1.msra.mxu0 0.0
        %2181 = vmatprep.subr.mxu0 0.0
        %2182 = vmatpush1.msra.mxu0 0.0
        %2183 = vmatprep.subr.mxu0 0.0
        %2184 = vmatpush1.msra.mxu0 0.0
        %2185 = vmatprep.subr.mxu0 0.0
        %2186 = vmatpush1.msra.mxu0 0.0
        %2187 = vmatprep.subr.mxu0 0.0
        %2188 = vmatpush1.msra.mxu0 0.0
        %2189 = vmatprep.subr.mxu0 0.0
        %2190 = vmatpush1.msra.mxu0 0.0
        %2191 = vmatprep.subr.mxu0 0.0
        %2192 = vmatpush1.msra.mxu0 0.0
        %2193 = vmatprep.subr.mxu0 0.0
        %2194 = vmatpush1.msra.mxu0 0.0
        %2195 = vmatprep.mubr.f32.mxu0 0.0
        %v2196 = vand.u32 %v992, 4294901760
        %v2197 = vsub.f32 %v992, %v2196
        %v2198 = vand.u32 %v2197, 4294901760
        %2199 = vmatmul.mubr.f32.gmra.mrb[0].mxu0 %v2198
        %v2200 = vpop.f32.mrb[0].mxu0
        %v2201 = vadd.f32 %v1901, %v2200
        %v2202 = vpop.f32.mrb[0].mxu0
        %v2203 = vadd.f32 %v1903, %v2202
        %2204 = vmatprep.mubr.f32.mxu0 0.0
        %v2205 = vand.u32 %v995, 4294901760
        %v2206 = vsub.f32 %v995, %v2205
        %v2207 = vand.u32 %v2206, 4294901760
        %2208 = vmatmul.mubr.f32.gmra.mrb[0].mxu0 %v2207
        %v2209 = vpop.f32.mrb[0].mxu0
        %v2210 = vadd.f32 %v1909, %v2209
        %v2211 = vpop.f32.mrb[0].mxu0
        %v2212 = vadd.f32 %v1911, %v2211
        %2213 = vmatprep.mubr.f32.mxu0 0.0
        %v2214 = vand.u32 %v998, 4294901760
        %v2215 = vsub.f32 %v998, %v2214
        %v2216 = vand.u32 %v2215, 4294901760
        %2217 = vmatmul.mubr.f32.gmra.mrb[0].mxu0 %v2216
        %v2218 = vpop.f32.mrb[0].mxu0
        %v2219 = vadd.f32 %v1917, %v2218
        %v2220 = vpop.f32.mrb[0].mxu0
        %v2221 = vadd.f32 %v1919, %v2220
        %2222 = vmatprep.mubr.f32.mxu0 0.0
        %v2223 = vand.u32 %v1001, 4294901760
        %v2224 = vsub.f32 %v1001, %v2223
        %v2225 = vand.u32 %v2224, 4294901760
        %2226 = vmatmul.mubr.f32.gmra.mrb[0].mxu0 %v2225
        %v2227 = vpop.f32.mrb[0].mxu0
        %v2228 = vadd.f32 %v1925, %v2227
        %v2229 = vpop.f32.mrb[0].mxu0
        %v2230 = vadd.f32 %v1927, %v2229
        %2231 = vmatprep.mubr.f32.mxu0 0.0
        %v2232 = vand.u32 %v1004, 4294901760
        %v2233 = vsub.f32 %v1004, %v2232
        %v2234 = vand.u32 %v2233, 4294901760
        %2235 = vmatmul.mubr.f32.gmra.mrb[0].mxu0 %v2234
        %v2236 = vpop.f32.mrb[0].mxu0
        %v2237 = vadd.f32 %v1933, %v2236
        %v2238 = vpop.f32.mrb[0].mxu0
        %v2239 = vadd.f32 %v1935, %v2238
        %2240 = vmatprep.mubr.f32.mxu0 0.0
        %v2241 = vand.u32 %v1007, 4294901760
        %v2242 = vsub.f32 %v1007, %v2241
        %v2243 = vand.u32 %v2242, 4294901760
        %2244 = vmatmul.mubr.f32.gmra.mrb[0].mxu0 %v2243
        %v2245 = vpop.f32.mrb[0].mxu0
        %v2246 = vadd.f32 %v1941, %v2245
        %v2247 = vpop.f32.mrb[0].mxu0
        %v2248 = vadd.f32 %v1943, %v2247
        %2249 = vmatprep.mubr.f32.mxu0 0.0
        %v2250 = vand.u32 %v1010, 4294901760
        %v2251 = vsub.f32 %v1010, %v2250
        %v2252 = vand.u32 %v2251, 4294901760
        %2253 = vmatmul.mubr.f32.gmra.mrb[0].mxu0 %v2252
        %v2254 = vpop.f32.mrb[0].mxu0
        %v2255 = vadd.f32 %v1949, %v2254
        %v2256 = vpop.f32.mrb[0].mxu0
        %v2257 = vadd.f32 %v1951, %v2256
        %2258 = vmatprep.mubr.f32.mxu0 0.0
        %v2259 = vand.u32 %v1013, 4294901760
        %v2260 = vsub.f32 %v1013, %v2259
        %v2261 = vand.u32 %v2260, 4294901760
        %2262 = vmatmul.mubr.f32.gmra.mrb[0].mxu0 %v2261
        %v2263 = vpop.f32.mrb[0].mxu0
        %v2264 = vadd.f32 %v1957, %v2263
        %v2265 = vpop.f32.mrb[0].mxu0
        %v2266 = vadd.f32 %v1959, %v2265
        %2267 = vmatprep.mubr.f32.mxu0 0.0
        %v2268 = vand.u32 %v1016, 4294901760
        %v2269 = vsub.f32 %v1016, %v2268
        %v2270 = vand.u32 %v2269, 4294901760
        %2271 = vmatmul.mubr.f32.gmra.mrb[0].mxu0 %v2270
        %v2272 = vpop.f32.mrb[0].mxu0
        %v2273 = vadd.f32 %v1965, %v2272
        %v2274 = vpop.f32.mrb[0].mxu0
        %v2275 = vadd.f32 %v1967, %v2274
        %2276 = vmatprep.mubr.f32.mxu0 0.0
        %v2277 = vand.u32 %v1019, 4294901760
        %v2278 = vsub.f32 %v1019, %v2277
        %v2279 = vand.u32 %v2278, 4294901760
        %2280 = vmatmul.mubr.f32.gmra.mrb[0].mxu0 %v2279
        %v2281 = vpop.f32.mrb[0].mxu0
        %v2282 = vadd.f32 %v1973, %v2281
        %v2283 = vpop.f32.mrb[0].mxu0
        %v2284 = vadd.f32 %v1975, %v2283
        %2285 = vmatprep.mubr.f32.mxu0 0.0
        %v2286 = vand.u32 %v1022, 4294901760
        %v2287 = vsub.f32 %v1022, %v2286
        %v2288 = vand.u32 %v2287, 4294901760
        %2289 = vmatmul.mubr.f32.gmra.mrb[0].mxu0 %v2288
        %v2290 = vpop.f32.mrb[0].mxu0
        %v2291 = vadd.f32 %v1981, %v2290
        %v2292 = vpop.f32.mrb[0].mxu0
        %v2293 = vadd.f32 %v1983, %v2292
        %2294 = vmatprep.mubr.f32.mxu0 0.0
        %v2295 = vand.u32 %v1025, 4294901760
        %v2296 = vsub.f32 %v1025, %v2295
        %v2297 = vand.u32 %v2296, 4294901760
        %2298 = vmatmul.mubr.f32.gmra.mrb[0].mxu0 %v2297
        %v2299 = vpop.f32.mrb[0].mxu0
        %v2300 = vadd.f32 %v1989, %v2299
        %v2301 = vpop.f32.mrb[0].mxu0
        %v2302 = vadd.f32 %v1991, %v2301
        %2303 = vmatprep.mubr.f32.mxu0 0.0
        %v2304 = vand.u32 %v1028, 4294901760
        %v2305 = vsub.f32 %v1028, %v2304
        %v2306 = vand.u32 %v2305, 4294901760
        %2307 = vmatmul.mubr.f32.gmra.mrb[0].mxu0 %v2306
        %v2308 = vpop.f32.mrb[0].mxu0
        %v2309 = vadd.f32 %v1997, %v2308
        %v2310 = vpop.f32.mrb[0].mxu0
        %v2311 = vadd.f32 %v1999, %v2310
        %2312 = vmatprep.mubr.f32.mxu0 0.0
        %v2313 = vand.u32 %v1031, 4294901760
        %v2314 = vsub.f32 %v1031, %v2313
        %v2315 = vand.u32 %v2314, 4294901760
        %2316 = vmatmul.mubr.f32.gmra.mrb[0].mxu0 %v2315
        %v2317 = vpop.f32.mrb[0].mxu0
        %v2318 = vadd.f32 %v2005, %v2317
        %v2319 = vpop.f32.mrb[0].mxu0
        %v2320 = vadd.f32 %v2007, %v2319
        %2321 = vmatprep.mubr.f32.mxu0 0.0
        %v2322 = vand.u32 %v1034, 4294901760
        %v2323 = vsub.f32 %v1034, %v2322
        %v2324 = vand.u32 %v2323, 4294901760
        %2325 = vmatmul.mubr.f32.gmra.mrb[0].mxu0 %v2324
        %v2326 = vpop.f32.mrb[0].mxu0
        %v2327 = vadd.f32 %v2013, %v2326
        %v2328 = vpop.f32.mrb[0].mxu0
        %v2329 = vadd.f32 %v2015, %v2328
        %2330 = vmatprep.mubr.f32.mxu0 0.0
        %v2331 = vand.u32 %v1037, 4294901760
        %v2332 = vsub.f32 %v1037, %v2331
        %v2333 = vand.u32 %v2332, 4294901760
        %2334 = vmatmul.mubr.f32.gmra.mrb[0].mxu0 %v2333
        %v2335 = vpop.f32.mrb[0].mxu0
        %v2336 = vadd.f32 %v2021, %v2335
        %v2337 = vpop.f32.mrb[0].mxu0
        %v2338 = vadd.f32 %v2023, %v2337
        %2339 = vmatprep.mubr.f32.mxu0 0.0
        %v2340 = vand.u32 %v1040, 4294901760
        %v2341 = vsub.f32 %v1040, %v2340
        %v2342 = vand.u32 %v2341, 4294901760
        %2343 = vmatmul.mubr.f32.gmra.mrb[0].mxu0 %v2342
        %v2344 = vpop.f32.mrb[0].mxu0
        %v2345 = vadd.f32 %v2029, %v2344
        %v2346 = vpop.f32.mrb[0].mxu0
        %v2347 = vadd.f32 %v2031, %v2346
        %2348 = vmatprep.mubr.f32.mxu0 0.0
        %v2349 = vand.u32 %v1043, 4294901760
        %v2350 = vsub.f32 %v1043, %v2349
        %v2351 = vand.u32 %v2350, 4294901760
        %2352 = vmatmul.mubr.f32.gmra.mrb[0].mxu0 %v2351
        %v2353 = vpop.f32.mrb[0].mxu0
        %v2354 = vadd.f32 %v2037, %v2353
        %v2355 = vpop.f32.mrb[0].mxu0
        %v2356 = vadd.f32 %v2039, %v2355
        %2357 = vmatprep.mubr.f32.mxu0 0.0
        %v2358 = vand.u32 %v1046, 4294901760
        %v2359 = vsub.f32 %v1046, %v2358
        %v2360 = vand.u32 %v2359, 4294901760
        %2361 = vmatmul.mubr.f32.gmra.mrb[0].mxu0 %v2360
        %v2362 = vpop.f32.mrb[0].mxu0
        %v2363 = vadd.f32 %v2045, %v2362
        %v2364 = vpop.f32.mrb[0].mxu0
        %v2365 = vadd.f32 %v2047, %v2364
        %2366 = vmatprep.mubr.f32.mxu0 0.0
        %v2367 = vand.u32 %v1049, 4294901760
        %v2368 = vsub.f32 %v1049, %v2367
        %v2369 = vand.u32 %v2368, 4294901760
        %2370 = vmatmul.mubr.f32.gmra.mrb[0].mxu0 %v2369
        %v2371 = vpop.f32.mrb[0].mxu0
        %v2372 = vadd.f32 %v2053, %v2371
        %v2373 = vpop.f32.mrb[0].mxu0
        %v2374 = vadd.f32 %v2055, %v2373
        %2375 = vmatprep.mubr.f32.mxu0 0.0
        %v2376 = vand.u32 %v1052, 4294901760
        %v2377 = vsub.f32 %v1052, %v2376
        %v2378 = vand.u32 %v2377, 4294901760
        %2379 = vmatmul.mubr.f32.gmra.mrb[0].mxu0 %v2378
        %v2380 = vpop.f32.mrb[0].mxu0
        %v2381 = vadd.f32 %v2061, %v2380
        %v2382 = vpop.f32.mrb[0].mxu0
        %v2383 = vadd.f32 %v2063, %v2382
        %2384 = vmatprep.mubr.f32.mxu0 0.0
        %v2385 = vand.u32 %v1055, 4294901760
        %v2386 = vsub.f32 %v1055, %v2385
        %v2387 = vand.u32 %v2386, 4294901760
        %2388 = vmatmul.mubr.f32.gmra.mrb[0].mxu0 %v2387
        %v2389 = vpop.f32.mrb[0].mxu0
        %v2390 = vadd.f32 %v2069, %v2389
        %v2391 = vpop.f32.mrb[0].mxu0
        %v2392 = vadd.f32 %v2071, %v2391
        %2393 = vmatprep.mubr.f32.mxu0 0.0
        %v2394 = vand.u32 %v1058, 4294901760
        %v2395 = vsub.f32 %v1058, %v2394
        %v2396 = vand.u32 %v2395, 4294901760
        %2397 = vmatmul.mubr.f32.gmra.mrb[0].mxu0 %v2396
        %v2398 = vpop.f32.mrb[0].mxu0
        %v2399 = vadd.f32 %v2077, %v2398
        %v2400 = vpop.f32.mrb[0].mxu0
        %v2401 = vadd.f32 %v2079, %v2400
        %2402 = vmatprep.mubr.f32.mxu0 0.0
        %v2403 = vand.u32 %v1061, 4294901760
        %v2404 = vsub.f32 %v1061, %v2403
        %v2405 = vand.u32 %v2404, 4294901760
        %2406 = vmatmul.mubr.f32.gmra.mrb[0].mxu0 %v2405
        %v2407 = vpop.f32.mrb[0].mxu0
        %v2408 = vadd.f32 %v2085, %v2407
        %v2409 = vpop.f32.mrb[0].mxu0
        %v2410 = vadd.f32 %v2087, %v2409
        %2411 = vmatprep.mubr.f32.mxu0 0.0
        %v2412 = vand.u32 %v1064, 4294901760
        %v2413 = vsub.f32 %v1064, %v2412
        %v2414 = vand.u32 %v2413, 4294901760
        %2415 = vmatmul.mubr.f32.gmra.mrb[0].mxu0 %v2414
        %v2416 = vpop.f32.mrb[0].mxu0
        %v2417 = vadd.f32 %v2093, %v2416
        %v2418 = vpop.f32.mrb[0].mxu0
        %v2419 = vadd.f32 %v2095, %v2418
        %2420 = vmatprep.mubr.f32.mxu0 0.0
        %v2421 = vand.u32 %v1067, 4294901760
        %v2422 = vsub.f32 %v1067, %v2421
        %v2423 = vand.u32 %v2422, 4294901760
        %2424 = vmatmul.mubr.f32.gmra.mrb[0].mxu0 %v2423
        %v2425 = vpop.f32.mrb[0].mxu0
        %v2426 = vadd.f32 %v2101, %v2425
        %v2427 = vpop.f32.mrb[0].mxu0
        %v2428 = vadd.f32 %v2103, %v2427
        %2429 = vmatprep.mubr.f32.mxu0 0.0
        %v2430 = vand.u32 %v1070, 4294901760
        %v2431 = vsub.f32 %v1070, %v2430
        %v2432 = vand.u32 %v2431, 4294901760
        %2433 = vmatmul.mubr.f32.gmra.mrb[0].mxu0 %v2432
        %v2434 = vpop.f32.mrb[0].mxu0
        %v2435 = vadd.f32 %v2109, %v2434
        %v2436 = vpop.f32.mrb[0].mxu0
        %v2437 = vadd.f32 %v2111, %v2436
        %2438 = vdwg.mxu0
        %v2439 = vand.u32 %v766, 4294901760
        %v2440 = vsub.f32 %v766, %v2439
        %v2441 = vand.u32 %v2440, 4294901760
        %2442 = vmatprep.subr.mxu0 %v2441
        %v2443 = vand.u32 %v765, 4294901760
        %v2444 = vsub.f32 %v765, %v2443
        %v2445 = vand.u32 %v2444, 4294901760
        %2446 = vmatpush1.msra.mxu0 %v2445
        %v2447 = vand.u32 %v770, 4294901760
        %v2448 = vsub.f32 %v770, %v2447
        %v2449 = vand.u32 %v2448, 4294901760
        %2450 = vmatprep.subr.mxu0 %v2449
        %v2451 = vand.u32 %v769, 4294901760
        %v2452 = vsub.f32 %v769, %v2451
        %v2453 = vand.u32 %v2452, 4294901760
        %2454 = vmatpush1.msra.mxu0 %v2453
        %v2455 = vand.u32 %v774, 4294901760
        %v2456 = vsub.f32 %v774, %v2455
        %v2457 = vand.u32 %v2456, 4294901760
        %2458 = vmatprep.subr.mxu0 %v2457
        %v2459 = vand.u32 %v773, 4294901760
        %v2460 = vsub.f32 %v773, %v2459
        %v2461 = vand.u32 %v2460, 4294901760
        %2462 = vmatpush1.msra.mxu0 %v2461
        %v2463 = vand.u32 %v778, 4294901760
        %v2464 = vsub.f32 %v778, %v2463
        %v2465 = vand.u32 %v2464, 4294901760
        %2466 = vmatprep.subr.mxu0 %v2465
        %v2467 = vand.u32 %v777, 4294901760
        %v2468 = vsub.f32 %v777, %v2467
        %v2469 = vand.u32 %v2468, 4294901760
        %2470 = vmatpush1.msra.mxu0 %v2469
        %v2471 = vand.u32 %v782, 4294901760
        %v2472 = vsub.f32 %v782, %v2471
        %v2473 = vand.u32 %v2472, 4294901760
        %2474 = vmatprep.subr.mxu0 %v2473
        %v2475 = vand.u32 %v781, 4294901760
        %v2476 = vsub.f32 %v781, %v2475
        %v2477 = vand.u32 %v2476, 4294901760
        %2478 = vmatpush1.msra.mxu0 %v2477
        %v2479 = vand.u32 %v786, 4294901760
        %v2480 = vsub.f32 %v786, %v2479
        %v2481 = vand.u32 %v2480, 4294901760
        %2482 = vmatprep.subr.mxu0 %v2481
        %v2483 = vand.u32 %v785, 4294901760
        %v2484 = vsub.f32 %v785, %v2483
        %v2485 = vand.u32 %v2484, 4294901760
        %2486 = vmatpush1.msra.mxu0 %v2485
        %v2487 = vand.u32 %v790, 4294901760
        %v2488 = vsub.f32 %v790, %v2487
        %v2489 = vand.u32 %v2488, 4294901760
        %2490 = vmatprep.subr.mxu0 %v2489
        %v2491 = vand.u32 %v789, 4294901760
        %v2492 = vsub.f32 %v789, %v2491
        %v2493 = vand.u32 %v2492, 4294901760
        %2494 = vmatpush1.msra.mxu0 %v2493
        %v2495 = vand.u32 %v794, 4294901760
        %v2496 = vsub.f32 %v794, %v2495
        %v2497 = vand.u32 %v2496, 4294901760
        %2498 = vmatprep.subr.mxu0 %v2497
        %v2499 = vand.u32 %v793, 4294901760
        %v2500 = vsub.f32 %v793, %v2499
        %v2501 = vand.u32 %v2500, 4294901760
        %2502 = vmatpush1.msra.mxu0 %v2501
        %v2503 = vand.u32 %v798, 4294901760
        %v2504 = vsub.f32 %v798, %v2503
        %v2505 = vand.u32 %v2504, 4294901760
        %2506 = vmatprep.subr.mxu0 %v2505
        %v2507 = vand.u32 %v797, 4294901760
        %v2508 = vsub.f32 %v797, %v2507
        %v2509 = vand.u32 %v2508, 4294901760
        %2510 = vmatpush1.msra.mxu0 %v2509
        %2511 = vmatprep.subr.mxu0 0.0
        %2512 = vmatpush1.msra.mxu0 0.0
        %2513 = vmatprep.subr.mxu0 0.0
        %2514 = vmatpush1.msra.mxu0 0.0
        %2515 = vmatprep.subr.mxu0 0.0
        %2516 = vmatpush1.msra.mxu0 0.0
        %2517 = vmatprep.subr.mxu0 0.0
        %2518 = vmatpush1.msra.mxu0 0.0
        %2519 = vmatprep.subr.mxu0 0.0
        %2520 = vmatpush1.msra.mxu0 0.0
        %2521 = vmatprep.subr.mxu0 0.0
        %2522 = vmatpush1.msra.mxu0 0.0
        %2523 = vmatprep.subr.mxu0 0.0
        %2524 = vmatpush1.msra.mxu0 0.0
        %2525 = vmatprep.subr.mxu0 0.0
        %2526 = vmatpush1.msra.mxu0 0.0
        %2527 = vmatprep.subr.mxu0 0.0
        %2528 = vmatpush1.msra.mxu0 0.0
        %2529 = vmatprep.subr.mxu0 0.0
        %2530 = vmatpush1.msra.mxu0 0.0
        %2531 = vmatprep.subr.mxu0 0.0
        %2532 = vmatpush1.msra.mxu0 0.0
        %2533 = vmatprep.subr.mxu0 0.0
        %2534 = vmatpush1.msra.mxu0 0.0
        %2535 = vmatprep.subr.mxu0 0.0
        %2536 = vmatpush1.msra.mxu0 0.0
        %2537 = vmatprep.subr.mxu0 0.0
        %2538 = vmatpush1.msra.mxu0 0.0
        %2539 = vmatprep.subr.mxu0 0.0
        %2540 = vmatpush1.msra.mxu0 0.0
        %2541 = vmatprep.subr.mxu0 0.0
        %2542 = vmatpush1.msra.mxu0 0.0
        %2543 = vmatprep.subr.mxu0 0.0
        %2544 = vmatpush1.msra.mxu0 0.0
        %2545 = vmatprep.subr.mxu0 0.0
        %2546 = vmatpush1.msra.mxu0 0.0
        %2547 = vmatprep.subr.mxu0 0.0
        %2548 = vmatpush1.msra.mxu0 0.0
        %2549 = vmatprep.subr.mxu0 0.0
        %2550 = vmatpush1.msra.mxu0 0.0
        %2551 = vmatprep.subr.mxu0 0.0
        %2552 = vmatpush1.msra.mxu0 0.0
        %2553 = vmatprep.subr.mxu0 0.0
        %2554 = vmatpush1.msra.mxu0 0.0
        %2555 = vmatprep.subr.mxu0 0.0
        %2556 = vmatpush1.msra.mxu0 0.0
        %2557 = vmatprep.mubr.f32.mxu0 0.0
        %v2558 = vand.u32 %v992, 4294901760
        %2559 = vmatmul.mubr.f32.gmra.mrb[0].mxu0 %v2558
        %v2560 = vpop.f32.mrb[0].mxu0
        %v2561 = vadd.f32 %v2201, %v2560
        %v2562 = vpop.f32.mrb[0].mxu0
        %v2563 = vadd.f32 %v2203, %v2562
        %2564 = vmatprep.mubr.f32.mxu0 0.0
        %v2565 = vand.u32 %v995, 4294901760
        %2566 = vmatmul.mubr.f32.gmra.mrb[0].mxu0 %v2565
        %v2567 = vpop.f32.mrb[0].mxu0
        %v2568 = vadd.f32 %v2210, %v2567
        %v2569 = vpop.f32.mrb[0].mxu0
        %v2570 = vadd.f32 %v2212, %v2569
        %2571 = vmatprep.mubr.f32.mxu0 0.0
        %v2572 = vand.u32 %v998, 4294901760
        %2573 = vmatmul.mubr.f32.gmra.mrb[0].mxu0 %v2572
        %v2574 = vpop.f32.mrb[0].mxu0
        %v2575 = vadd.f32 %v2219, %v2574
        %v2576 = vpop.f32.mrb[0].mxu0
        %v2577 = vadd.f32 %v2221, %v2576
        %2578 = vmatprep.mubr.f32.mxu0 0.0
        %v2579 = vand.u32 %v1001, 4294901760
        %2580 = vmatmul.mubr.f32.gmra.mrb[0].mxu0 %v2579
        %v2581 = vpop.f32.mrb[0].mxu0
        %v2582 = vadd.f32 %v2228, %v2581
        %v2583 = vpop.f32.mrb[0].mxu0
        %v2584 = vadd.f32 %v2230, %v2583
        %2585 = vmatprep.mubr.f32.mxu0 0.0
        %v2586 = vand.u32 %v1004, 4294901760
        %2587 = vmatmul.mubr.f32.gmra.mrb[0].mxu0 %v2586
        %v2588 = vpop.f32.mrb[0].mxu0
        %v2589 = vadd.f32 %v2237, %v2588
        %v2590 = vpop.f32.mrb[0].mxu0
        %v2591 = vadd.f32 %v2239, %v2590
        %2592 = vmatprep.mubr.f32.mxu0 0.0
        %v2593 = vand.u32 %v1007, 4294901760
        %2594 = vmatmul.mubr.f32.gmra.mrb[0].mxu0 %v2593
        %v2595 = vpop.f32.mrb[0].mxu0
        %v2596 = vadd.f32 %v2246, %v2595
        %v2597 = vpop.f32.mrb[0].mxu0
        %v2598 = vadd.f32 %v2248, %v2597
        %2599 = vmatprep.mubr.f32.mxu0 0.0
        %v2600 = vand.u32 %v1010, 4294901760
        %2601 = vmatmul.mubr.f32.gmra.mrb[0].mxu0 %v2600
        %v2602 = vpop.f32.mrb[0].mxu0
        %v2603 = vadd.f32 %v2255, %v2602
        %v2604 = vpop.f32.mrb[0].mxu0
        %v2605 = vadd.f32 %v2257, %v2604
        %2606 = vmatprep.mubr.f32.mxu0 0.0
        %v2607 = vand.u32 %v1013, 4294901760
        %2608 = vmatmul.mubr.f32.gmra.mrb[0].mxu0 %v2607
        %v2609 = vpop.f32.mrb[0].mxu0
        %v2610 = vadd.f32 %v2264, %v2609
        %v2611 = vpop.f32.mrb[0].mxu0
        %v2612 = vadd.f32 %v2266, %v2611
        %2613 = vmatprep.mubr.f32.mxu0 0.0
        %v2614 = vand.u32 %v1016, 4294901760
        %2615 = vmatmul.mubr.f32.gmra.mrb[0].mxu0 %v2614
        %v2616 = vpop.f32.mrb[0].mxu0
        %v2617 = vadd.f32 %v2273, %v2616
        %v2618 = vpop.f32.mrb[0].mxu0
        %v2619 = vadd.f32 %v2275, %v2618
        %2620 = vmatprep.mubr.f32.mxu0 0.0
        %v2621 = vand.u32 %v1019, 4294901760
        %2622 = vmatmul.mubr.f32.gmra.mrb[0].mxu0 %v2621
        %v2623 = vpop.f32.mrb[0].mxu0
        %v2624 = vadd.f32 %v2282, %v2623
        %v2625 = vpop.f32.mrb[0].mxu0
        %v2626 = vadd.f32 %v2284, %v2625
        %2627 = vmatprep.mubr.f32.mxu0 0.0
        %v2628 = vand.u32 %v1022, 4294901760
        %2629 = vmatmul.mubr.f32.gmra.mrb[0].mxu0 %v2628
        %v2630 = vpop.f32.mrb[0].mxu0
        %v2631 = vadd.f32 %v2291, %v2630
        %v2632 = vpop.f32.mrb[0].mxu0
        %v2633 = vadd.f32 %v2293, %v2632
        %2634 = vmatprep.mubr.f32.mxu0 0.0
        %v2635 = vand.u32 %v1025, 4294901760
        %2636 = vmatmul.mubr.f32.gmra.mrb[0].mxu0 %v2635
        %v2637 = vpop.f32.mrb[0].mxu0
        %v2638 = vadd.f32 %v2300, %v2637
        %v2639 = vpop.f32.mrb[0].mxu0
        %v2640 = vadd.f32 %v2302, %v2639
        %2641 = vmatprep.mubr.f32.mxu0 0.0
        %v2642 = vand.u32 %v1028, 4294901760
        %2643 = vmatmul.mubr.f32.gmra.mrb[0].mxu0 %v2642
        %v2644 = vpop.f32.mrb[0].mxu0
        %v2645 = vadd.f32 %v2309, %v2644
        %v2646 = vpop.f32.mrb[0].mxu0
        %v2647 = vadd.f32 %v2311, %v2646
        %2648 = vmatprep.mubr.f32.mxu0 0.0
        %v2649 = vand.u32 %v1031, 4294901760
        %2650 = vmatmul.mubr.f32.gmra.mrb[0].mxu0 %v2649
        %v2651 = vpop.f32.mrb[0].mxu0
        %v2652 = vadd.f32 %v2318, %v2651
        %v2653 = vpop.f32.mrb[0].mxu0
        %v2654 = vadd.f32 %v2320, %v2653
        %2655 = vmatprep.mubr.f32.mxu0 0.0
        %v2656 = vand.u32 %v1034, 4294901760
        %2657 = vmatmul.mubr.f32.gmra.mrb[0].mxu0 %v2656
        %v2658 = vpop.f32.mrb[0].mxu0
        %v2659 = vadd.f32 %v2327, %v2658
        %v2660 = vpop.f32.mrb[0].mxu0
        %v2661 = vadd.f32 %v2329, %v2660
        %2662 = vmatprep.mubr.f32.mxu0 0.0
        %v2663 = vand.u32 %v1037, 4294901760
        %2664 = vmatmul.mubr.f32.gmra.mrb[0].mxu0 %v2663
        %v2665 = vpop.f32.mrb[0].mxu0
        %v2666 = vadd.f32 %v2336, %v2665
        %v2667 = vpop.f32.mrb[0].mxu0
        %v2668 = vadd.f32 %v2338, %v2667
        %2669 = vmatprep.mubr.f32.mxu0 0.0
        %v2670 = vand.u32 %v1040, 4294901760
        %2671 = vmatmul.mubr.f32.gmra.mrb[0].mxu0 %v2670
        %v2672 = vpop.f32.mrb[0].mxu0
        %v2673 = vadd.f32 %v2345, %v2672
        %v2674 = vpop.f32.mrb[0].mxu0
        %v2675 = vadd.f32 %v2347, %v2674
        %2676 = vmatprep.mubr.f32.mxu0 0.0
        %v2677 = vand.u32 %v1043, 4294901760
        %2678 = vmatmul.mubr.f32.gmra.mrb[0].mxu0 %v2677
        %v2679 = vpop.f32.mrb[0].mxu0
        %v2680 = vadd.f32 %v2354, %v2679
        %v2681 = vpop.f32.mrb[0].mxu0
        %v2682 = vadd.f32 %v2356, %v2681
        %2683 = vmatprep.mubr.f32.mxu0 0.0
        %v2684 = vand.u32 %v1046, 4294901760
        %2685 = vmatmul.mubr.f32.gmra.mrb[0].mxu0 %v2684
        %v2686 = vpop.f32.mrb[0].mxu0
        %v2687 = vadd.f32 %v2363, %v2686
        %v2688 = vpop.f32.mrb[0].mxu0
        %v2689 = vadd.f32 %v2365, %v2688
        %2690 = vmatprep.mubr.f32.mxu0 0.0
        %v2691 = vand.u32 %v1049, 4294901760
        %2692 = vmatmul.mubr.f32.gmra.mrb[0].mxu0 %v2691
        %v2693 = vpop.f32.mrb[0].mxu0
        %v2694 = vadd.f32 %v2372, %v2693
        %v2695 = vpop.f32.mrb[0].mxu0
        %v2696 = vadd.f32 %v2374, %v2695
        %2697 = vmatprep.mubr.f32.mxu0 0.0
        %v2698 = vand.u32 %v1052, 4294901760
        %2699 = vmatmul.mubr.f32.gmra.mrb[0].mxu0 %v2698
        %v2700 = vpop.f32.mrb[0].mxu0
        %v2701 = vadd.f32 %v2381, %v2700
        %v2702 = vpop.f32.mrb[0].mxu0
        %v2703 = vadd.f32 %v2383, %v2702
        %2704 = vmatprep.mubr.f32.mxu0 0.0
        %v2705 = vand.u32 %v1055, 4294901760
        %2706 = vmatmul.mubr.f32.gmra.mrb[0].mxu0 %v2705
        %v2707 = vpop.f32.mrb[0].mxu0
        %v2708 = vadd.f32 %v2390, %v2707
        %v2709 = vpop.f32.mrb[0].mxu0
        %v2710 = vadd.f32 %v2392, %v2709
        %2711 = vmatprep.mubr.f32.mxu0 0.0
        %v2712 = vand.u32 %v1058, 4294901760
        %2713 = vmatmul.mubr.f32.gmra.mrb[0].mxu0 %v2712
        %v2714 = vpop.f32.mrb[0].mxu0
        %v2715 = vadd.f32 %v2399, %v2714
        %v2716 = vpop.f32.mrb[0].mxu0
        %v2717 = vadd.f32 %v2401, %v2716
        %2718 = vmatprep.mubr.f32.mxu0 0.0
        %v2719 = vand.u32 %v1061, 4294901760
        %2720 = vmatmul.mubr.f32.gmra.mrb[0].mxu0 %v2719
        %v2721 = vpop.f32.mrb[0].mxu0
        %v2722 = vadd.f32 %v2408, %v2721
        %v2723 = vpop.f32.mrb[0].mxu0
        %v2724 = vadd.f32 %v2410, %v2723
        %2725 = vmatprep.mubr.f32.mxu0 0.0
        %v2726 = vand.u32 %v1064, 4294901760
        %2727 = vmatmul.mubr.f32.gmra.mrb[0].mxu0 %v2726
        %v2728 = vpop.f32.mrb[0].mxu0
        %v2729 = vadd.f32 %v2417, %v2728
        %v2730 = vpop.f32.mrb[0].mxu0
        %v2731 = vadd.f32 %v2419, %v2730
        %2732 = vmatprep.mubr.f32.mxu0 0.0
        %v2733 = vand.u32 %v1067, 4294901760
        %2734 = vmatmul.mubr.f32.gmra.mrb[0].mxu0 %v2733
        %v2735 = vpop.f32.mrb[0].mxu0
        %v2736 = vadd.f32 %v2426, %v2735
        %v2737 = vpop.f32.mrb[0].mxu0
        %v2738 = vadd.f32 %v2428, %v2737
        %2739 = vmatprep.mubr.f32.mxu0 0.0
        %v2740 = vand.u32 %v1070, 4294901760
        %2741 = vmatmul.mubr.f32.gmra.mrb[0].mxu0 %v2740
        %v2742 = vpop.f32.mrb[0].mxu0
        %v2743 = vadd.f32 %v2435, %v2742
        %v2744 = vpop.f32.mrb[0].mxu0
        %v2745 = vadd.f32 %v2437, %v2744
        %2746 = vdwg.mxu0
        %v2747 = vand.u32 %v766, 4294901760
        %2748 = vmatprep.subr.mxu0 %v2747
        %v2749 = vand.u32 %v765, 4294901760
        %2750 = vmatpush1.msra.mxu0 %v2749
        %v2751 = vand.u32 %v770, 4294901760
        %2752 = vmatprep.subr.mxu0 %v2751
        %v2753 = vand.u32 %v769, 4294901760
        %2754 = vmatpush1.msra.mxu0 %v2753
        %v2755 = vand.u32 %v774, 4294901760
        %2756 = vmatprep.subr.mxu0 %v2755
        %v2757 = vand.u32 %v773, 4294901760
        %2758 = vmatpush1.msra.mxu0 %v2757
        %v2759 = vand.u32 %v778, 4294901760
        %2760 = vmatprep.subr.mxu0 %v2759
        %v2761 = vand.u32 %v777, 4294901760
        %2762 = vmatpush1.msra.mxu0 %v2761
        %v2763 = vand.u32 %v782, 4294901760
        %2764 = vmatprep.subr.mxu0 %v2763
        %v2765 = vand.u32 %v781, 4294901760
        %2766 = vmatpush1.msra.mxu0 %v2765
        %v2767 = vand.u32 %v786, 4294901760
        %2768 = vmatprep.subr.mxu0 %v2767
        %v2769 = vand.u32 %v785, 4294901760
        %2770 = vmatpush1.msra.mxu0 %v2769
        %v2771 = vand.u32 %v790, 4294901760
        %2772 = vmatprep.subr.mxu0 %v2771
        %v2773 = vand.u32 %v789, 4294901760
        %2774 = vmatpush1.msra.mxu0 %v2773
        %v2775 = vand.u32 %v794, 4294901760
        %2776 = vmatprep.subr.mxu0 %v2775
        %v2777 = vand.u32 %v793, 4294901760
        %2778 = vmatpush1.msra.mxu0 %v2777
        %v2779 = vand.u32 %v798, 4294901760
        %2780 = vmatprep.subr.mxu0 %v2779
        %v2781 = vand.u32 %v797, 4294901760
        %2782 = vmatpush1.msra.mxu0 %v2781
        %2783 = vmatprep.subr.mxu0 0.0
        %2784 = vmatpush1.msra.mxu0 0.0
        %2785 = vmatprep.subr.mxu0 0.0
        %2786 = vmatpush1.msra.mxu0 0.0
        %2787 = vmatprep.subr.mxu0 0.0
        %2788 = vmatpush1.msra.mxu0 0.0
        %2789 = vmatprep.subr.mxu0 0.0
        %2790 = vmatpush1.msra.mxu0 0.0
        %2791 = vmatprep.subr.mxu0 0.0
        %2792 = vmatpush1.msra.mxu0 0.0
        %2793 = vmatprep.subr.mxu0 0.0
        %2794 = vmatpush1.msra.mxu0 0.0
        %2795 = vmatprep.subr.mxu0 0.0
        %2796 = vmatpush1.msra.mxu0 0.0
        %2797 = vmatprep.subr.mxu0 0.0
        %2798 = vmatpush1.msra.mxu0 0.0
        %2799 = vmatprep.subr.mxu0 0.0
        %2800 = vmatpush1.msra.mxu0 0.0
        %2801 = vmatprep.subr.mxu0 0.0
        %2802 = vmatpush1.msra.mxu0 0.0
        %2803 = vmatprep.subr.mxu0 0.0
        %2804 = vmatpush1.msra.mxu0 0.0
        %2805 = vmatprep.subr.mxu0 0.0
        %2806 = vmatpush1.msra.mxu0 0.0
        %2807 = vmatprep.subr.mxu0 0.0
        %2808 = vmatpush1.msra.mxu0 0.0
        %2809 = vmatprep.subr.mxu0 0.0
        %2810 = vmatpush1.msra.mxu0 0.0
        %2811 = vmatprep.subr.mxu0 0.0
        %2812 = vmatpush1.msra.mxu0 0.0
        %2813 = vmatprep.subr.mxu0 0.0
        %2814 = vmatpush1.msra.mxu0 0.0
        %2815 = vmatprep.subr.mxu0 0.0
        %2816 = vmatpush1.msra.mxu0 0.0
        %2817 = vmatprep.subr.mxu0 0.0
        %2818 = vmatpush1.msra.mxu0 0.0
        %2819 = vmatprep.subr.mxu0 0.0
        %2820 = vmatpush1.msra.mxu0 0.0
        %2821 = vmatprep.subr.mxu0 0.0
        %2822 = vmatpush1.msra.mxu0 0.0
        %2823 = vmatprep.subr.mxu0 0.0
        %2824 = vmatpush1.msra.mxu0 0.0
        %2825 = vmatprep.subr.mxu0 0.0
        %2826 = vmatpush1.msra.mxu0 0.0
        %2827 = vmatprep.subr.mxu0 0.0
        %2828 = vmatpush1.msra.mxu0 0.0
        %2829 = vmatprep.mubr.f32.mxu0 0.0
        %v2830 = vand.u32 %v992, 4294901760
        %2831 = vmatmul.mubr.f32.gmra.mrb[0].mxu0 %v2830
        %v2832 = vpop.f32.mrb[0].mxu0
        %v2833 = vadd.f32 %v2561, %v2832
        %v2834 = vpop.f32.mrb[0].mxu0
        %v2835 = vadd.f32 %v2563, %v2834
        %2836 = vmatprep.mubr.f32.mxu0 0.0
        %v2837 = vand.u32 %v995, 4294901760
        %2838 = vmatmul.mubr.f32.gmra.mrb[0].mxu0 %v2837
        %v2839 = vpop.f32.mrb[0].mxu0
        %v2840 = vadd.f32 %v2568, %v2839
        %v2841 = vpop.f32.mrb[0].mxu0
        %v2842 = vadd.f32 %v2570, %v2841
        %2843 = vmatprep.mubr.f32.mxu0 0.0
        %v2844 = vand.u32 %v998, 4294901760
        %2845 = vmatmul.mubr.f32.gmra.mrb[0].mxu0 %v2844
        %v2846 = vpop.f32.mrb[0].mxu0
        %v2847 = vadd.f32 %v2575, %v2846
        %v2848 = vpop.f32.mrb[0].mxu0
        %v2849 = vadd.f32 %v2577, %v2848
        %2850 = vmatprep.mubr.f32.mxu0 0.0
        %v2851 = vand.u32 %v1001, 4294901760
        %2852 = vmatmul.mubr.f32.gmra.mrb[0].mxu0 %v2851
        %v2853 = vpop.f32.mrb[0].mxu0
        %v2854 = vadd.f32 %v2582, %v2853
        %v2855 = vpop.f32.mrb[0].mxu0
        %v2856 = vadd.f32 %v2584, %v2855
        %2857 = vmatprep.mubr.f32.mxu0 0.0
        %v2858 = vand.u32 %v1004, 4294901760
        %2859 = vmatmul.mubr.f32.gmra.mrb[0].mxu0 %v2858
        %v2860 = vpop.f32.mrb[0].mxu0
        %v2861 = vadd.f32 %v2589, %v2860
        %v2862 = vpop.f32.mrb[0].mxu0
        %v2863 = vadd.f32 %v2591, %v2862
        %2864 = vmatprep.mubr.f32.mxu0 0.0
        %v2865 = vand.u32 %v1007, 4294901760
        %2866 = vmatmul.mubr.f32.gmra.mrb[0].mxu0 %v2865
        %v2867 = vpop.f32.mrb[0].mxu0
        %v2868 = vadd.f32 %v2596, %v2867
        %v2869 = vpop.f32.mrb[0].mxu0
        %v2870 = vadd.f32 %v2598, %v2869
        %2871 = vmatprep.mubr.f32.mxu0 0.0
        %v2872 = vand.u32 %v1010, 4294901760
        %2873 = vmatmul.mubr.f32.gmra.mrb[0].mxu0 %v2872
        %v2874 = vpop.f32.mrb[0].mxu0
        %v2875 = vadd.f32 %v2603, %v2874
        %v2876 = vpop.f32.mrb[0].mxu0
        %v2877 = vadd.f32 %v2605, %v2876
        %2878 = vmatprep.mubr.f32.mxu0 0.0
        %v2879 = vand.u32 %v1013, 4294901760
        %2880 = vmatmul.mubr.f32.gmra.mrb[0].mxu0 %v2879
        %v2881 = vpop.f32.mrb[0].mxu0
        %v2882 = vadd.f32 %v2610, %v2881
        %v2883 = vpop.f32.mrb[0].mxu0
        %v2884 = vadd.f32 %v2612, %v2883
        %2885 = vmatprep.mubr.f32.mxu0 0.0
        %v2886 = vand.u32 %v1016, 4294901760
        %2887 = vmatmul.mubr.f32.gmra.mrb[0].mxu0 %v2886
        %v2888 = vpop.f32.mrb[0].mxu0
        %v2889 = vadd.f32 %v2617, %v2888
        %v2890 = vpop.f32.mrb[0].mxu0
        %v2891 = vadd.f32 %v2619, %v2890
        %2892 = vmatprep.mubr.f32.mxu0 0.0
        %v2893 = vand.u32 %v1019, 4294901760
        %2894 = vmatmul.mubr.f32.gmra.mrb[0].mxu0 %v2893
        %v2895 = vpop.f32.mrb[0].mxu0
        %v2896 = vadd.f32 %v2624, %v2895
        %v2897 = vpop.f32.mrb[0].mxu0
        %v2898 = vadd.f32 %v2626, %v2897
        %2899 = vmatprep.mubr.f32.mxu0 0.0
        %v2900 = vand.u32 %v1022, 4294901760
        %2901 = vmatmul.mubr.f32.gmra.mrb[0].mxu0 %v2900
        %v2902 = vpop.f32.mrb[0].mxu0
        %v2903 = vadd.f32 %v2631, %v2902
        %v2904 = vpop.f32.mrb[0].mxu0
        %v2905 = vadd.f32 %v2633, %v2904
        %2906 = vmatprep.mubr.f32.mxu0 0.0
        %v2907 = vand.u32 %v1025, 4294901760
        %2908 = vmatmul.mubr.f32.gmra.mrb[0].mxu0 %v2907
        %v2909 = vpop.f32.mrb[0].mxu0
        %v2910 = vadd.f32 %v2638, %v2909
        %v2911 = vpop.f32.mrb[0].mxu0
        %v2912 = vadd.f32 %v2640, %v2911
        %2913 = vmatprep.mubr.f32.mxu0 0.0
        %v2914 = vand.u32 %v1028, 4294901760
        %2915 = vmatmul.mubr.f32.gmra.mrb[0].mxu0 %v2914
        %v2916 = vpop.f32.mrb[0].mxu0
        %v2917 = vadd.f32 %v2645, %v2916
        %v2918 = vpop.f32.mrb[0].mxu0
        %v2919 = vadd.f32 %v2647, %v2918
        %2920 = vmatprep.mubr.f32.mxu0 0.0
        %v2921 = vand.u32 %v1031, 4294901760
        %2922 = vmatmul.mubr.f32.gmra.mrb[0].mxu0 %v2921
        %v2923 = vpop.f32.mrb[0].mxu0
        %v2924 = vadd.f32 %v2652, %v2923
        %v2925 = vpop.f32.mrb[0].mxu0
        %v2926 = vadd.f32 %v2654, %v2925
        %2927 = vmatprep.mubr.f32.mxu0 0.0
        %v2928 = vand.u32 %v1034, 4294901760
        %2929 = vmatmul.mubr.f32.gmra.mrb[0].mxu0 %v2928
        %v2930 = vpop.f32.mrb[0].mxu0
        %v2931 = vadd.f32 %v2659, %v2930
        %v2932 = vpop.f32.mrb[0].mxu0
        %v2933 = vadd.f32 %v2661, %v2932
        %2934 = vmatprep.mubr.f32.mxu0 0.0
        %v2935 = vand.u32 %v1037, 4294901760
        %2936 = vmatmul.mubr.f32.gmra.mrb[0].mxu0 %v2935
        %v2937 = vpop.f32.mrb[0].mxu0
        %v2938 = vadd.f32 %v2666, %v2937
        %v2939 = vpop.f32.mrb[0].mxu0
        %v2940 = vadd.f32 %v2668, %v2939
        %2941 = vmatprep.mubr.f32.mxu0 0.0
        %v2942 = vand.u32 %v1040, 4294901760
        %2943 = vmatmul.mubr.f32.gmra.mrb[0].mxu0 %v2942
        %v2944 = vpop.f32.mrb[0].mxu0
        %v2945 = vadd.f32 %v2673, %v2944
        %v2946 = vpop.f32.mrb[0].mxu0
        %v2947 = vadd.f32 %v2675, %v2946
        %2948 = vmatprep.mubr.f32.mxu0 0.0
        %v2949 = vand.u32 %v1043, 4294901760
        %2950 = vmatmul.mubr.f32.gmra.mrb[0].mxu0 %v2949
        %v2951 = vpop.f32.mrb[0].mxu0
        %v2952 = vadd.f32 %v2680, %v2951
        %v2953 = vpop.f32.mrb[0].mxu0
        %v2954 = vadd.f32 %v2682, %v2953
        %2955 = vmatprep.mubr.f32.mxu0 0.0
        %v2956 = vand.u32 %v1046, 4294901760
        %2957 = vmatmul.mubr.f32.gmra.mrb[0].mxu0 %v2956
        %v2958 = vpop.f32.mrb[0].mxu0
        %v2959 = vadd.f32 %v2687, %v2958
        %v2960 = vpop.f32.mrb[0].mxu0
        %v2961 = vadd.f32 %v2689, %v2960
        %2962 = vmatprep.mubr.f32.mxu0 0.0
        %v2963 = vand.u32 %v1049, 4294901760
        %2964 = vmatmul.mubr.f32.gmra.mrb[0].mxu0 %v2963
        %v2965 = vpop.f32.mrb[0].mxu0
        %v2966 = vadd.f32 %v2694, %v2965
        %v2967 = vpop.f32.mrb[0].mxu0
        %v2968 = vadd.f32 %v2696, %v2967
        %2969 = vmatprep.mubr.f32.mxu0 0.0
        %v2970 = vand.u32 %v1052, 4294901760
        %2971 = vmatmul.mubr.f32.gmra.mrb[0].mxu0 %v2970
        %v2972 = vpop.f32.mrb[0].mxu0
        %v2973 = vadd.f32 %v2701, %v2972
        %v2974 = vpop.f32.mrb[0].mxu0
        %v2975 = vadd.f32 %v2703, %v2974
        %2976 = vmatprep.mubr.f32.mxu0 0.0
        %v2977 = vand.u32 %v1055, 4294901760
        %2978 = vmatmul.mubr.f32.gmra.mrb[0].mxu0 %v2977
        %v2979 = vpop.f32.mrb[0].mxu0
        %v2980 = vadd.f32 %v2708, %v2979
        %v2981 = vpop.f32.mrb[0].mxu0
        %v2982 = vadd.f32 %v2710, %v2981
        %2983 = vmatprep.mubr.f32.mxu0 0.0
        %v2984 = vand.u32 %v1058, 4294901760
        %2985 = vmatmul.mubr.f32.gmra.mrb[0].mxu0 %v2984
        %v2986 = vpop.f32.mrb[0].mxu0
        %v2987 = vadd.f32 %v2715, %v2986
        %v2988 = vpop.f32.mrb[0].mxu0
        %v2989 = vadd.f32 %v2717, %v2988
        %2990 = vmatprep.mubr.f32.mxu0 0.0
        %v2991 = vand.u32 %v1061, 4294901760
        %2992 = vmatmul.mubr.f32.gmra.mrb[0].mxu0 %v2991
        %v2993 = vpop.f32.mrb[0].mxu0
        %v2994 = vadd.f32 %v2722, %v2993
        %v2995 = vpop.f32.mrb[0].mxu0
        %v2996 = vadd.f32 %v2724, %v2995
        %2997 = vmatprep.mubr.f32.mxu0 0.0
        %v2998 = vand.u32 %v1064, 4294901760
        %2999 = vmatmul.mubr.f32.gmra.mrb[0].mxu0 %v2998
        %v3000 = vpop.f32.mrb[0].mxu0
        %v3001 = vadd.f32 %v2729, %v3000
        %v3002 = vpop.f32.mrb[0].mxu0
        %v3003 = vadd.f32 %v2731, %v3002
        %3004 = vmatprep.mubr.f32.mxu0 0.0
        %v3005 = vand.u32 %v1067, 4294901760
        %3006 = vmatmul.mubr.f32.gmra.mrb[0].mxu0 %v3005
        %v3007 = vpop.f32.mrb[0].mxu0
        %v3008 = vadd.f32 %v2736, %v3007
        %v3009 = vpop.f32.mrb[0].mxu0
        %v3010 = vadd.f32 %v2738, %v3009
        %3011 = vmatprep.mubr.f32.mxu0 0.0
        %v3012 = vand.u32 %v1070, 4294901760
        %3013 = vmatmul.mubr.f32.gmra.mrb[0].mxu0 %v3012
        %v3014 = vpop.f32.mrb[0].mxu0
        %v3015 = vadd.f32 %v2743, %v3014
        %v3016 = vpop.f32.mrb[0].mxu0
        %v3017 = vadd.f32 %v2745, %v3016
        %3018 = vdwg.mxu0
        %v3019 = vand.u32 %v768, 4294901760
        %3020 = vmatprep.subr.mxu0 %v3019
        %v3021 = vand.u32 %v767, 4294901760
        %3022 = vmatpush1.msra.mxu0 %v3021
        %v3023 = vand.u32 %v772, 4294901760
        %3024 = vmatprep.subr.mxu0 %v3023
        %v3025 = vand.u32 %v771, 4294901760
        %3026 = vmatpush1.msra.mxu0 %v3025
        %v3027 = vand.u32 %v776, 4294901760
        %3028 = vmatprep.subr.mxu0 %v3027
        %v3029 = vand.u32 %v775, 4294901760
        %3030 = vmatpush1.msra.mxu0 %v3029
        %v3031 = vand.u32 %v780, 4294901760
        %3032 = vmatprep.subr.mxu0 %v3031
        %v3033 = vand.u32 %v779, 4294901760
        %3034 = vmatpush1.msra.mxu0 %v3033
        %v3035 = vand.u32 %v784, 4294901760
        %3036 = vmatprep.subr.mxu0 %v3035
        %v3037 = vand.u32 %v783, 4294901760
        %3038 = vmatpush1.msra.mxu0 %v3037
        %v3039 = vand.u32 %v788, 4294901760
        %3040 = vmatprep.subr.mxu0 %v3039
        %v3041 = vand.u32 %v787, 4294901760
        %3042 = vmatpush1.msra.mxu0 %v3041
        %v3043 = vand.u32 %v792, 4294901760
        %3044 = vmatprep.subr.mxu0 %v3043
        %v3045 = vand.u32 %v791, 4294901760
        %3046 = vmatpush1.msra.mxu0 %v3045
        %v3047 = vand.u32 %v796, 4294901760
        %3048 = vmatprep.subr.mxu0 %v3047
        %v3049 = vand.u32 %v795, 4294901760
        %3050 = vmatpush1.msra.mxu0 %v3049
        %v3051 = vand.u32 %v800, 4294901760
        %3052 = vmatprep.subr.mxu0 %v3051
        %v3053 = vand.u32 %v799, 4294901760
        %3054 = vmatpush1.msra.mxu0 %v3053
        %3055 = vmatprep.subr.mxu0 0.0
        %3056 = vmatpush1.msra.mxu0 0.0
        %3057 = vmatprep.subr.mxu0 0.0
        %3058 = vmatpush1.msra.mxu0 0.0
        %3059 = vmatprep.subr.mxu0 0.0
        %3060 = vmatpush1.msra.mxu0 0.0
        %3061 = vmatprep.subr.mxu0 0.0
        %3062 = vmatpush1.msra.mxu0 0.0
        %3063 = vmatprep.subr.mxu0 0.0
        %3064 = vmatpush1.msra.mxu0 0.0
        %3065 = vmatprep.subr.mxu0 0.0
        %3066 = vmatpush1.msra.mxu0 0.0
        %3067 = vmatprep.subr.mxu0 0.0
        %3068 = vmatpush1.msra.mxu0 0.0
        %3069 = vmatprep.subr.mxu0 0.0
        %3070 = vmatpush1.msra.mxu0 0.0
        %3071 = vmatprep.subr.mxu0 0.0
        %3072 = vmatpush1.msra.mxu0 0.0
        %3073 = vmatprep.subr.mxu0 0.0
        %3074 = vmatpush1.msra.mxu0 0.0
        %3075 = vmatprep.subr.mxu0 0.0
        %3076 = vmatpush1.msra.mxu0 0.0
        %3077 = vmatprep.subr.mxu0 0.0
        %3078 = vmatpush1.msra.mxu0 0.0
        %3079 = vmatprep.subr.mxu0 0.0
        %3080 = vmatpush1.msra.mxu0 0.0
        %3081 = vmatprep.subr.mxu0 0.0
        %3082 = vmatpush1.msra.mxu0 0.0
        %3083 = vmatprep.subr.mxu0 0.0
        %3084 = vmatpush1.msra.mxu0 0.0
        %3085 = vmatprep.subr.mxu0 0.0
        %3086 = vmatpush1.msra.mxu0 0.0
        %3087 = vmatprep.subr.mxu0 0.0
        %3088 = vmatpush1.msra.mxu0 0.0
        %3089 = vmatprep.subr.mxu0 0.0
        %3090 = vmatpush1.msra.mxu0 0.0
        %3091 = vmatprep.subr.mxu0 0.0
        %3092 = vmatpush1.msra.mxu0 0.0
        %3093 = vmatprep.subr.mxu0 0.0
        %3094 = vmatpush1.msra.mxu0 0.0
        %3095 = vmatprep.subr.mxu0 0.0
        %3096 = vmatpush1.msra.mxu0 0.0
        %3097 = vmatprep.subr.mxu0 0.0
        %3098 = vmatpush1.msra.mxu0 0.0
        %3099 = vmatprep.subr.mxu0 0.0
        %3100 = vmatpush1.msra.mxu0 0.0
        %3101 = vmatprep.mubr.f32.mxu0 0.0
        %v3102 = vand.u32 %v992, 4294901760
        %v3103 = vsub.f32 %v992, %v3102
        %v3104 = vand.u32 %v3103, 4294901760
        %v3105 = vsub.f32 %v3103, %v3104
        %v3106 = vand.u32 %v3105, 4294901760
        %3107 = vmatmul.mubr.f32.gmra.mrb[0].mxu0 %v3106
        %v3108 = vpop.f32.mrb[0].mxu0
        %v3109 = vadd.f32 %v858, %v3108
        %v3110 = vpop.f32.mrb[0].mxu0
        %v3111 = vadd.f32 %v858, %v3110
        %3112 = vmatprep.mubr.f32.mxu0 0.0
        %v3113 = vand.u32 %v995, 4294901760
        %v3114 = vsub.f32 %v995, %v3113
        %v3115 = vand.u32 %v3114, 4294901760
        %v3116 = vsub.f32 %v3114, %v3115
        %v3117 = vand.u32 %v3116, 4294901760
        %3118 = vmatmul.mubr.f32.gmra.mrb[0].mxu0 %v3117
        %v3119 = vpop.f32.mrb[0].mxu0
        %v3120 = vadd.f32 %v863, %v3119
        %v3121 = vpop.f32.mrb[0].mxu0
        %v3122 = vadd.f32 %v863, %v3121
        %3123 = vmatprep.mubr.f32.mxu0 0.0
        %v3124 = vand.u32 %v998, 4294901760
        %v3125 = vsub.f32 %v998, %v3124
        %v3126 = vand.u32 %v3125, 4294901760
        %v3127 = vsub.f32 %v3125, %v3126
        %v3128 = vand.u32 %v3127, 4294901760
        %3129 = vmatmul.mubr.f32.gmra.mrb[0].mxu0 %v3128
        %v3130 = vpop.f32.mrb[0].mxu0
        %v3131 = vadd.f32 %v868, %v3130
        %v3132 = vpop.f32.mrb[0].mxu0
        %v3133 = vadd.f32 %v868, %v3132
        %3134 = vmatprep.mubr.f32.mxu0 0.0
        %v3135 = vand.u32 %v1001, 4294901760
        %v3136 = vsub.f32 %v1001, %v3135
        %v3137 = vand.u32 %v3136, 4294901760
        %v3138 = vsub.f32 %v3136, %v3137
        %v3139 = vand.u32 %v3138, 4294901760
        %3140 = vmatmul.mubr.f32.gmra.mrb[0].mxu0 %v3139
        %v3141 = vpop.f32.mrb[0].mxu0
        %v3142 = vadd.f32 %v873, %v3141
        %v3143 = vpop.f32.mrb[0].mxu0
        %v3144 = vadd.f32 %v873, %v3143
        %3145 = vmatprep.mubr.f32.mxu0 0.0
        %v3146 = vand.u32 %v1004, 4294901760
        %v3147 = vsub.f32 %v1004, %v3146
        %v3148 = vand.u32 %v3147, 4294901760
        %v3149 = vsub.f32 %v3147, %v3148
        %v3150 = vand.u32 %v3149, 4294901760
        %3151 = vmatmul.mubr.f32.gmra.mrb[0].mxu0 %v3150
        %v3152 = vpop.f32.mrb[0].mxu0
        %v3153 = vadd.f32 %v878, %v3152
        %v3154 = vpop.f32.mrb[0].mxu0
        %v3155 = vadd.f32 %v878, %v3154
        %3156 = vmatprep.mubr.f32.mxu0 0.0
        %v3157 = vand.u32 %v1007, 4294901760
        %v3158 = vsub.f32 %v1007, %v3157
        %v3159 = vand.u32 %v3158, 4294901760
        %v3160 = vsub.f32 %v3158, %v3159
        %v3161 = vand.u32 %v3160, 4294901760
        %3162 = vmatmul.mubr.f32.gmra.mrb[0].mxu0 %v3161
        %v3163 = vpop.f32.mrb[0].mxu0
        %v3164 = vadd.f32 %v883, %v3163
        %v3165 = vpop.f32.mrb[0].mxu0
        %v3166 = vadd.f32 %v883, %v3165
        %3167 = vmatprep.mubr.f32.mxu0 0.0
        %v3168 = vand.u32 %v1010, 4294901760
        %v3169 = vsub.f32 %v1010, %v3168
        %v3170 = vand.u32 %v3169, 4294901760
        %v3171 = vsub.f32 %v3169, %v3170
        %v3172 = vand.u32 %v3171, 4294901760
        %3173 = vmatmul.mubr.f32.gmra.mrb[0].mxu0 %v3172
        %v3174 = vpop.f32.mrb[0].mxu0
        %v3175 = vadd.f32 %v888, %v3174
        %v3176 = vpop.f32.mrb[0].mxu0
        %v3177 = vadd.f32 %v888, %v3176
        %3178 = vmatprep.mubr.f32.mxu0 0.0
        %v3179 = vand.u32 %v1013, 4294901760
        %v3180 = vsub.f32 %v1013, %v3179
        %v3181 = vand.u32 %v3180, 4294901760
        %v3182 = vsub.f32 %v3180, %v3181
        %v3183 = vand.u32 %v3182, 4294901760
        %3184 = vmatmul.mubr.f32.gmra.mrb[0].mxu0 %v3183
        %v3185 = vpop.f32.mrb[0].mxu0
        %v3186 = vadd.f32 %v893, %v3185
        %v3187 = vpop.f32.mrb[0].mxu0
        %v3188 = vadd.f32 %v893, %v3187
        %3189 = vmatprep.mubr.f32.mxu0 0.0
        %v3190 = vand.u32 %v1016, 4294901760
        %v3191 = vsub.f32 %v1016, %v3190
        %v3192 = vand.u32 %v3191, 4294901760
        %v3193 = vsub.f32 %v3191, %v3192
        %v3194 = vand.u32 %v3193, 4294901760
        %3195 = vmatmul.mubr.f32.gmra.mrb[0].mxu0 %v3194
        %v3196 = vpop.f32.mrb[0].mxu0
        %v3197 = vadd.f32 %v898, %v3196
        %v3198 = vpop.f32.mrb[0].mxu0
        %v3199 = vadd.f32 %v898, %v3198
        %3200 = vmatprep.mubr.f32.mxu0 0.0
        %v3201 = vand.u32 %v1019, 4294901760
        %v3202 = vsub.f32 %v1019, %v3201
        %v3203 = vand.u32 %v3202, 4294901760
        %v3204 = vsub.f32 %v3202, %v3203
        %v3205 = vand.u32 %v3204, 4294901760
        %3206 = vmatmul.mubr.f32.gmra.mrb[0].mxu0 %v3205
        %v3207 = vpop.f32.mrb[0].mxu0
        %v3208 = vadd.f32 %v903, %v3207
        %v3209 = vpop.f32.mrb[0].mxu0
        %v3210 = vadd.f32 %v903, %v3209
        %3211 = vmatprep.mubr.f32.mxu0 0.0
        %v3212 = vand.u32 %v1022, 4294901760
        %v3213 = vsub.f32 %v1022, %v3212
        %v3214 = vand.u32 %v3213, 4294901760
        %v3215 = vsub.f32 %v3213, %v3214
        %v3216 = vand.u32 %v3215, 4294901760
        %3217 = vmatmul.mubr.f32.gmra.mrb[0].mxu0 %v3216
        %v3218 = vpop.f32.mrb[0].mxu0
        %v3219 = vadd.f32 %v908, %v3218
        %v3220 = vpop.f32.mrb[0].mxu0
        %v3221 = vadd.f32 %v908, %v3220
        %3222 = vmatprep.mubr.f32.mxu0 0.0
        %v3223 = vand.u32 %v1025, 4294901760
        %v3224 = vsub.f32 %v1025, %v3223
        %v3225 = vand.u32 %v3224, 4294901760
        %v3226 = vsub.f32 %v3224, %v3225
        %v3227 = vand.u32 %v3226, 4294901760
        %3228 = vmatmul.mubr.f32.gmra.mrb[0].mxu0 %v3227
        %v3229 = vpop.f32.mrb[0].mxu0
        %v3230 = vadd.f32 %v913, %v3229
        %v3231 = vpop.f32.mrb[0].mxu0
        %v3232 = vadd.f32 %v913, %v3231
        %3233 = vmatprep.mubr.f32.mxu0 0.0
        %v3234 = vand.u32 %v1028, 4294901760
        %v3235 = vsub.f32 %v1028, %v3234
        %v3236 = vand.u32 %v3235, 4294901760
        %v3237 = vsub.f32 %v3235, %v3236
        %v3238 = vand.u32 %v3237, 4294901760
        %3239 = vmatmul.mubr.f32.gmra.mrb[0].mxu0 %v3238
        %v3240 = vpop.f32.mrb[0].mxu0
        %v3241 = vadd.f32 %v918, %v3240
        %v3242 = vpop.f32.mrb[0].mxu0
        %v3243 = vadd.f32 %v918, %v3242
        %3244 = vmatprep.mubr.f32.mxu0 0.0
        %v3245 = vand.u32 %v1031, 4294901760
        %v3246 = vsub.f32 %v1031, %v3245
        %v3247 = vand.u32 %v3246, 4294901760
        %v3248 = vsub.f32 %v3246, %v3247
        %v3249 = vand.u32 %v3248, 4294901760
        %3250 = vmatmul.mubr.f32.gmra.mrb[0].mxu0 %v3249
        %v3251 = vpop.f32.mrb[0].mxu0
        %v3252 = vadd.f32 %v923, %v3251
        %v3253 = vpop.f32.mrb[0].mxu0
        %v3254 = vadd.f32 %v923, %v3253
        %3255 = vmatprep.mubr.f32.mxu0 0.0
        %v3256 = vand.u32 %v1034, 4294901760
        %v3257 = vsub.f32 %v1034, %v3256
        %v3258 = vand.u32 %v3257, 4294901760
        %v3259 = vsub.f32 %v3257, %v3258
        %v3260 = vand.u32 %v3259, 4294901760
        %3261 = vmatmul.mubr.f32.gmra.mrb[0].mxu0 %v3260
        %v3262 = vpop.f32.mrb[0].mxu0
        %v3263 = vadd.f32 %v928, %v3262
        %v3264 = vpop.f32.mrb[0].mxu0
        %v3265 = vadd.f32 %v928, %v3264
        %3266 = vmatprep.mubr.f32.mxu0 0.0
        %v3267 = vand.u32 %v1037, 4294901760
        %v3268 = vsub.f32 %v1037, %v3267
        %v3269 = vand.u32 %v3268, 4294901760
        %v3270 = vsub.f32 %v3268, %v3269
        %v3271 = vand.u32 %v3270, 4294901760
        %3272 = vmatmul.mubr.f32.gmra.mrb[0].mxu0 %v3271
        %v3273 = vpop.f32.mrb[0].mxu0
        %v3274 = vadd.f32 %v933, %v3273
        %v3275 = vpop.f32.mrb[0].mxu0
        %v3276 = vadd.f32 %v933, %v3275
        %3277 = vmatprep.mubr.f32.mxu0 0.0
        %v3278 = vand.u32 %v1040, 4294901760
        %v3279 = vsub.f32 %v1040, %v3278
        %v3280 = vand.u32 %v3279, 4294901760
        %v3281 = vsub.f32 %v3279, %v3280
        %v3282 = vand.u32 %v3281, 4294901760
        %3283 = vmatmul.mubr.f32.gmra.mrb[0].mxu0 %v3282
        %v3284 = vpop.f32.mrb[0].mxu0
        %v3285 = vadd.f32 %v938, %v3284
        %v3286 = vpop.f32.mrb[0].mxu0
        %v3287 = vadd.f32 %v938, %v3286
        %3288 = vmatprep.mubr.f32.mxu0 0.0
        %v3289 = vand.u32 %v1043, 4294901760
        %v3290 = vsub.f32 %v1043, %v3289
        %v3291 = vand.u32 %v3290, 4294901760
        %v3292 = vsub.f32 %v3290, %v3291
        %v3293 = vand.u32 %v3292, 4294901760
        %3294 = vmatmul.mubr.f32.gmra.mrb[0].mxu0 %v3293
        %v3295 = vpop.f32.mrb[0].mxu0
        %v3296 = vadd.f32 %v943, %v3295
        %v3297 = vpop.f32.mrb[0].mxu0
        %v3298 = vadd.f32 %v943, %v3297
        %3299 = vmatprep.mubr.f32.mxu0 0.0
        %v3300 = vand.u32 %v1046, 4294901760
        %v3301 = vsub.f32 %v1046, %v3300
        %v3302 = vand.u32 %v3301, 4294901760
        %v3303 = vsub.f32 %v3301, %v3302
        %v3304 = vand.u32 %v3303, 4294901760
        %3305 = vmatmul.mubr.f32.gmra.mrb[0].mxu0 %v3304
        %v3306 = vpop.f32.mrb[0].mxu0
        %v3307 = vadd.f32 %v948, %v3306
        %v3308 = vpop.f32.mrb[0].mxu0
        %v3309 = vadd.f32 %v948, %v3308
        %3310 = vmatprep.mubr.f32.mxu0 0.0
        %v3311 = vand.u32 %v1049, 4294901760
        %v3312 = vsub.f32 %v1049, %v3311
        %v3313 = vand.u32 %v3312, 4294901760
        %v3314 = vsub.f32 %v3312, %v3313
        %v3315 = vand.u32 %v3314, 4294901760
        %3316 = vmatmul.mubr.f32.gmra.mrb[0].mxu0 %v3315
        %v3317 = vpop.f32.mrb[0].mxu0
        %v3318 = vadd.f32 %v953, %v3317
        %v3319 = vpop.f32.mrb[0].mxu0
        %v3320 = vadd.f32 %v953, %v3319
        %3321 = vmatprep.mubr.f32.mxu0 0.0
        %v3322 = vand.u32 %v1052, 4294901760
        %v3323 = vsub.f32 %v1052, %v3322
        %v3324 = vand.u32 %v3323, 4294901760
        %v3325 = vsub.f32 %v3323, %v3324
        %v3326 = vand.u32 %v3325, 4294901760
        %3327 = vmatmul.mubr.f32.gmra.mrb[0].mxu0 %v3326
        %v3328 = vpop.f32.mrb[0].mxu0
        %v3329 = vadd.f32 %v958, %v3328
        %v3330 = vpop.f32.mrb[0].mxu0
        %v3331 = vadd.f32 %v958, %v3330
        %3332 = vmatprep.mubr.f32.mxu0 0.0
        %v3333 = vand.u32 %v1055, 4294901760
        %v3334 = vsub.f32 %v1055, %v3333
        %v3335 = vand.u32 %v3334, 4294901760
        %v3336 = vsub.f32 %v3334, %v3335
        %v3337 = vand.u32 %v3336, 4294901760
        %3338 = vmatmul.mubr.f32.gmra.mrb[0].mxu0 %v3337
        %v3339 = vpop.f32.mrb[0].mxu0
        %v3340 = vadd.f32 %v963, %v3339
        %v3341 = vpop.f32.mrb[0].mxu0
        %v3342 = vadd.f32 %v963, %v3341
        %3343 = vmatprep.mubr.f32.mxu0 0.0
        %v3344 = vand.u32 %v1058, 4294901760
        %v3345 = vsub.f32 %v1058, %v3344
        %v3346 = vand.u32 %v3345, 4294901760
        %v3347 = vsub.f32 %v3345, %v3346
        %v3348 = vand.u32 %v3347, 4294901760
        %3349 = vmatmul.mubr.f32.gmra.mrb[0].mxu0 %v3348
        %v3350 = vpop.f32.mrb[0].mxu0
        %v3351 = vadd.f32 %v968, %v3350
        %v3352 = vpop.f32.mrb[0].mxu0
        %v3353 = vadd.f32 %v968, %v3352
        %3354 = vmatprep.mubr.f32.mxu0 0.0
        %v3355 = vand.u32 %v1061, 4294901760
        %v3356 = vsub.f32 %v1061, %v3355
        %v3357 = vand.u32 %v3356, 4294901760
        %v3358 = vsub.f32 %v3356, %v3357
        %v3359 = vand.u32 %v3358, 4294901760
        %3360 = vmatmul.mubr.f32.gmra.mrb[0].mxu0 %v3359
        %v3361 = vpop.f32.mrb[0].mxu0
        %v3362 = vadd.f32 %v973, %v3361
        %v3363 = vpop.f32.mrb[0].mxu0
        %v3364 = vadd.f32 %v973, %v3363
        %3365 = vmatprep.mubr.f32.mxu0 0.0
        %v3366 = vand.u32 %v1064, 4294901760
        %v3367 = vsub.f32 %v1064, %v3366
        %v3368 = vand.u32 %v3367, 4294901760
        %v3369 = vsub.f32 %v3367, %v3368
        %v3370 = vand.u32 %v3369, 4294901760
        %3371 = vmatmul.mubr.f32.gmra.mrb[0].mxu0 %v3370
        %v3372 = vpop.f32.mrb[0].mxu0
        %v3373 = vadd.f32 %v978, %v3372
        %v3374 = vpop.f32.mrb[0].mxu0
        %v3375 = vadd.f32 %v978, %v3374
        %3376 = vmatprep.mubr.f32.mxu0 0.0
        %v3377 = vand.u32 %v1067, 4294901760
        %v3378 = vsub.f32 %v1067, %v3377
        %v3379 = vand.u32 %v3378, 4294901760
        %v3380 = vsub.f32 %v3378, %v3379
        %v3381 = vand.u32 %v3380, 4294901760
        %3382 = vmatmul.mubr.f32.gmra.mrb[0].mxu0 %v3381
        %v3383 = vpop.f32.mrb[0].mxu0
        %v3384 = vadd.f32 %v983, %v3383
        %v3385 = vpop.f32.mrb[0].mxu0
        %v3386 = vadd.f32 %v983, %v3385
        %3387 = vmatprep.mubr.f32.mxu0 0.0
        %v3388 = vand.u32 %v1070, 4294901760
        %v3389 = vsub.f32 %v1070, %v3388
        %v3390 = vand.u32 %v3389, 4294901760
        %v3391 = vsub.f32 %v3389, %v3390
        %v3392 = vand.u32 %v3391, 4294901760
        %3393 = vmatmul.mubr.f32.gmra.mrb[0].mxu0 %v3392
        %v3394 = vpop.f32.mrb[0].mxu0
        %v3395 = vadd.f32 %v988, %v3394
        %v3396 = vpop.f32.mrb[0].mxu0
        %v3397 = vadd.f32 %v988, %v3396
        %3398 = vdwg.mxu0
        %v3399 = vand.u32 %v768, 4294901760
        %v3400 = vsub.f32 %v768, %v3399
        %v3401 = vand.u32 %v3400, 4294901760
        %v3402 = vsub.f32 %v3400, %v3401
        %v3403 = vand.u32 %v3402, 4294901760
        %3404 = vmatprep.subr.mxu0 %v3403
        %v3405 = vand.u32 %v767, 4294901760
        %v3406 = vsub.f32 %v767, %v3405
        %v3407 = vand.u32 %v3406, 4294901760
        %v3408 = vsub.f32 %v3406, %v3407
        %v3409 = vand.u32 %v3408, 4294901760
        %3410 = vmatpush1.msra.mxu0 %v3409
        %v3411 = vand.u32 %v772, 4294901760
        %v3412 = vsub.f32 %v772, %v3411
        %v3413 = vand.u32 %v3412, 4294901760
        %v3414 = vsub.f32 %v3412, %v3413
        %v3415 = vand.u32 %v3414, 4294901760
        %3416 = vmatprep.subr.mxu0 %v3415
        %v3417 = vand.u32 %v771, 4294901760
        %v3418 = vsub.f32 %v771, %v3417
        %v3419 = vand.u32 %v3418, 4294901760
        %v3420 = vsub.f32 %v3418, %v3419
        %v3421 = vand.u32 %v3420, 4294901760
        %3422 = vmatpush1.msra.mxu0 %v3421
        %v3423 = vand.u32 %v776, 4294901760
        %v3424 = vsub.f32 %v776, %v3423
        %v3425 = vand.u32 %v3424, 4294901760
        %v3426 = vsub.f32 %v3424, %v3425
        %v3427 = vand.u32 %v3426, 4294901760
        %3428 = vmatprep.subr.mxu0 %v3427
        %v3429 = vand.u32 %v775, 4294901760
        %v3430 = vsub.f32 %v775, %v3429
        %v3431 = vand.u32 %v3430, 4294901760
        %v3432 = vsub.f32 %v3430, %v3431
        %v3433 = vand.u32 %v3432, 4294901760
        %3434 = vmatpush1.msra.mxu0 %v3433
        %v3435 = vand.u32 %v780, 4294901760
        %v3436 = vsub.f32 %v780, %v3435
        %v3437 = vand.u32 %v3436, 4294901760
        %v3438 = vsub.f32 %v3436, %v3437
        %v3439 = vand.u32 %v3438, 4294901760
        %3440 = vmatprep.subr.mxu0 %v3439
        %v3441 = vand.u32 %v779, 4294901760
        %v3442 = vsub.f32 %v779, %v3441
        %v3443 = vand.u32 %v3442, 4294901760
        %v3444 = vsub.f32 %v3442, %v3443
        %v3445 = vand.u32 %v3444, 4294901760
        %3446 = vmatpush1.msra.mxu0 %v3445
        %v3447 = vand.u32 %v784, 4294901760
        %v3448 = vsub.f32 %v784, %v3447
        %v3449 = vand.u32 %v3448, 4294901760
        %v3450 = vsub.f32 %v3448, %v3449
        %v3451 = vand.u32 %v3450, 4294901760
        %3452 = vmatprep.subr.mxu0 %v3451
        %v3453 = vand.u32 %v783, 4294901760
        %v3454 = vsub.f32 %v783, %v3453
        %v3455 = vand.u32 %v3454, 4294901760
        %v3456 = vsub.f32 %v3454, %v3455
        %v3457 = vand.u32 %v3456, 4294901760
        %3458 = vmatpush1.msra.mxu0 %v3457
        %v3459 = vand.u32 %v788, 4294901760
        %v3460 = vsub.f32 %v788, %v3459
        %v3461 = vand.u32 %v3460, 4294901760
        %v3462 = vsub.f32 %v3460, %v3461
        %v3463 = vand.u32 %v3462, 4294901760
        %3464 = vmatprep.subr.mxu0 %v3463
        %v3465 = vand.u32 %v787, 4294901760
        %v3466 = vsub.f32 %v787, %v3465
        %v3467 = vand.u32 %v3466, 4294901760
        %v3468 = vsub.f32 %v3466, %v3467
        %v3469 = vand.u32 %v3468, 4294901760
        %3470 = vmatpush1.msra.mxu0 %v3469
        %v3471 = vand.u32 %v792, 4294901760
        %v3472 = vsub.f32 %v792, %v3471
        %v3473 = vand.u32 %v3472, 4294901760
        %v3474 = vsub.f32 %v3472, %v3473
        %v3475 = vand.u32 %v3474, 4294901760
        %3476 = vmatprep.subr.mxu0 %v3475
        %v3477 = vand.u32 %v791, 4294901760
        %v3478 = vsub.f32 %v791, %v3477
        %v3479 = vand.u32 %v3478, 4294901760
        %v3480 = vsub.f32 %v3478, %v3479
        %v3481 = vand.u32 %v3480, 4294901760
        %3482 = vmatpush1.msra.mxu0 %v3481
        %v3483 = vand.u32 %v796, 4294901760
        %v3484 = vsub.f32 %v796, %v3483
        %v3485 = vand.u32 %v3484, 4294901760
        %v3486 = vsub.f32 %v3484, %v3485
        %v3487 = vand.u32 %v3486, 4294901760
        %3488 = vmatprep.subr.mxu0 %v3487
        %v3489 = vand.u32 %v795, 4294901760
        %v3490 = vsub.f32 %v795, %v3489
        %v3491 = vand.u32 %v3490, 4294901760
        %v3492 = vsub.f32 %v3490, %v3491
        %v3493 = vand.u32 %v3492, 4294901760
        %3494 = vmatpush1.msra.mxu0 %v3493
        %v3495 = vand.u32 %v800, 4294901760
        %v3496 = vsub.f32 %v800, %v3495
        %v3497 = vand.u32 %v3496, 4294901760
        %v3498 = vsub.f32 %v3496, %v3497
        %v3499 = vand.u32 %v3498, 4294901760
        %3500 = vmatprep.subr.mxu0 %v3499
        %v3501 = vand.u32 %v799, 4294901760
        %v3502 = vsub.f32 %v799, %v3501
        %v3503 = vand.u32 %v3502, 4294901760
        %v3504 = vsub.f32 %v3502, %v3503
        %v3505 = vand.u32 %v3504, 4294901760
        %3506 = vmatpush1.msra.mxu0 %v3505
        %3507 = vmatprep.subr.mxu0 0.0
        %3508 = vmatpush1.msra.mxu0 0.0
        %3509 = vmatprep.subr.mxu0 0.0
        %3510 = vmatpush1.msra.mxu0 0.0
        %3511 = vmatprep.subr.mxu0 0.0
        %3512 = vmatpush1.msra.mxu0 0.0
        %3513 = vmatprep.subr.mxu0 0.0
        %3514 = vmatpush1.msra.mxu0 0.0
        %3515 = vmatprep.subr.mxu0 0.0
        %3516 = vmatpush1.msra.mxu0 0.0
        %3517 = vmatprep.subr.mxu0 0.0
        %3518 = vmatpush1.msra.mxu0 0.0
        %3519 = vmatprep.subr.mxu0 0.0
        %3520 = vmatpush1.msra.mxu0 0.0
        %3521 = vmatprep.subr.mxu0 0.0
        %3522 = vmatpush1.msra.mxu0 0.0
        %3523 = vmatprep.subr.mxu0 0.0
        %3524 = vmatpush1.msra.mxu0 0.0
        %3525 = vmatprep.subr.mxu0 0.0
        %3526 = vmatpush1.msra.mxu0 0.0
        %3527 = vmatprep.subr.mxu0 0.0
        %3528 = vmatpush1.msra.mxu0 0.0
        %3529 = vmatprep.subr.mxu0 0.0
        %3530 = vmatpush1.msra.mxu0 0.0
        %3531 = vmatprep.subr.mxu0 0.0
        %3532 = vmatpush1.msra.mxu0 0.0
        %3533 = vmatprep.subr.mxu0 0.0
        %3534 = vmatpush1.msra.mxu0 0.0
        %3535 = vmatprep.subr.mxu0 0.0
        %3536 = vmatpush1.msra.mxu0 0.0
        %3537 = vmatprep.subr.mxu0 0.0
        %3538 = vmatpush1.msra.mxu0 0.0
        %3539 = vmatprep.subr.mxu0 0.0
        %3540 = vmatpush1.msra.mxu0 0.0
        %3541 = vmatprep.subr.mxu0 0.0
        %3542 = vmatpush1.msra.mxu0 0.0
        %3543 = vmatprep.subr.mxu0 0.0
        %3544 = vmatpush1.msra.mxu0 0.0
        %3545 = vmatprep.subr.mxu0 0.0
        %3546 = vmatpush1.msra.mxu0 0.0
        %3547 = vmatprep.subr.mxu0 0.0
        %3548 = vmatpush1.msra.mxu0 0.0
        %3549 = vmatprep.subr.mxu0 0.0
        %3550 = vmatpush1.msra.mxu0 0.0
        %3551 = vmatprep.subr.mxu0 0.0
        %3552 = vmatpush1.msra.mxu0 0.0
        %3553 = vmatprep.mubr.f32.mxu0 0.0
        %v3554 = vand.u32 %v992, 4294901760
        %3555 = vmatmul.mubr.f32.gmra.mrb[0].mxu0 %v3554
        %v3556 = vpop.f32.mrb[0].mxu0
        %v3557 = vadd.f32 %v3109, %v3556
        %v3558 = vpop.f32.mrb[0].mxu0
        %v3559 = vadd.f32 %v3111, %v3558
        %3560 = vmatprep.mubr.f32.mxu0 0.0
        %v3561 = vand.u32 %v995, 4294901760
        %3562 = vmatmul.mubr.f32.gmra.mrb[0].mxu0 %v3561
        %v3563 = vpop.f32.mrb[0].mxu0
        %v3564 = vadd.f32 %v3120, %v3563
        %v3565 = vpop.f32.mrb[0].mxu0
        %v3566 = vadd.f32 %v3122, %v3565
        %3567 = vmatprep.mubr.f32.mxu0 0.0
        %v3568 = vand.u32 %v998, 4294901760
        %3569 = vmatmul.mubr.f32.gmra.mrb[0].mxu0 %v3568
        %v3570 = vpop.f32.mrb[0].mxu0
        %v3571 = vadd.f32 %v3131, %v3570
        %v3572 = vpop.f32.mrb[0].mxu0
        %v3573 = vadd.f32 %v3133, %v3572
        %3574 = vmatprep.mubr.f32.mxu0 0.0
        %v3575 = vand.u32 %v1001, 4294901760
        %3576 = vmatmul.mubr.f32.gmra.mrb[0].mxu0 %v3575
        %v3577 = vpop.f32.mrb[0].mxu0
        %v3578 = vadd.f32 %v3142, %v3577
        %v3579 = vpop.f32.mrb[0].mxu0
        %v3580 = vadd.f32 %v3144, %v3579
        %3581 = vmatprep.mubr.f32.mxu0 0.0
        %v3582 = vand.u32 %v1004, 4294901760
        %3583 = vmatmul.mubr.f32.gmra.mrb[0].mxu0 %v3582
        %v3584 = vpop.f32.mrb[0].mxu0
        %v3585 = vadd.f32 %v3153, %v3584
        %v3586 = vpop.f32.mrb[0].mxu0
        %v3587 = vadd.f32 %v3155, %v3586
        %3588 = vmatprep.mubr.f32.mxu0 0.0
        %v3589 = vand.u32 %v1007, 4294901760
        %3590 = vmatmul.mubr.f32.gmra.mrb[0].mxu0 %v3589
        %v3591 = vpop.f32.mrb[0].mxu0
        %v3592 = vadd.f32 %v3164, %v3591
        %v3593 = vpop.f32.mrb[0].mxu0
        %v3594 = vadd.f32 %v3166, %v3593
        %3595 = vmatprep.mubr.f32.mxu0 0.0
        %v3596 = vand.u32 %v1010, 4294901760
        %3597 = vmatmul.mubr.f32.gmra.mrb[0].mxu0 %v3596
        %v3598 = vpop.f32.mrb[0].mxu0
        %v3599 = vadd.f32 %v3175, %v3598
        %v3600 = vpop.f32.mrb[0].mxu0
        %v3601 = vadd.f32 %v3177, %v3600
        %3602 = vmatprep.mubr.f32.mxu0 0.0
        %v3603 = vand.u32 %v1013, 4294901760
        %3604 = vmatmul.mubr.f32.gmra.mrb[0].mxu0 %v3603
        %v3605 = vpop.f32.mrb[0].mxu0
        %v3606 = vadd.f32 %v3186, %v3605
        %v3607 = vpop.f32.mrb[0].mxu0
        %v3608 = vadd.f32 %v3188, %v3607
        %3609 = vmatprep.mubr.f32.mxu0 0.0
        %v3610 = vand.u32 %v1016, 4294901760
        %3611 = vmatmul.mubr.f32.gmra.mrb[0].mxu0 %v3610
        %v3612 = vpop.f32.mrb[0].mxu0
        %v3613 = vadd.f32 %v3197, %v3612
        %v3614 = vpop.f32.mrb[0].mxu0
        %v3615 = vadd.f32 %v3199, %v3614
        %3616 = vmatprep.mubr.f32.mxu0 0.0
        %v3617 = vand.u32 %v1019, 4294901760
        %3618 = vmatmul.mubr.f32.gmra.mrb[0].mxu0 %v3617
        %v3619 = vpop.f32.mrb[0].mxu0
        %v3620 = vadd.f32 %v3208, %v3619
        %v3621 = vpop.f32.mrb[0].mxu0
        %v3622 = vadd.f32 %v3210, %v3621
        %3623 = vmatprep.mubr.f32.mxu0 0.0
        %v3624 = vand.u32 %v1022, 4294901760
        %3625 = vmatmul.mubr.f32.gmra.mrb[0].mxu0 %v3624
        %v3626 = vpop.f32.mrb[0].mxu0
        %v3627 = vadd.f32 %v3219, %v3626
        %v3628 = vpop.f32.mrb[0].mxu0
        %v3629 = vadd.f32 %v3221, %v3628
        %3630 = vmatprep.mubr.f32.mxu0 0.0
        %v3631 = vand.u32 %v1025, 4294901760
        %3632 = vmatmul.mubr.f32.gmra.mrb[0].mxu0 %v3631
        %v3633 = vpop.f32.mrb[0].mxu0
        %v3634 = vadd.f32 %v3230, %v3633
        %v3635 = vpop.f32.mrb[0].mxu0
        %v3636 = vadd.f32 %v3232, %v3635
        %3637 = vmatprep.mubr.f32.mxu0 0.0
        %v3638 = vand.u32 %v1028, 4294901760
        %3639 = vmatmul.mubr.f32.gmra.mrb[0].mxu0 %v3638
        %v3640 = vpop.f32.mrb[0].mxu0
        %v3641 = vadd.f32 %v3241, %v3640
        %v3642 = vpop.f32.mrb[0].mxu0
        %v3643 = vadd.f32 %v3243, %v3642
        %3644 = vmatprep.mubr.f32.mxu0 0.0
        %v3645 = vand.u32 %v1031, 4294901760
        %3646 = vmatmul.mubr.f32.gmra.mrb[0].mxu0 %v3645
        %v3647 = vpop.f32.mrb[0].mxu0
        %v3648 = vadd.f32 %v3252, %v3647
        %v3649 = vpop.f32.mrb[0].mxu0
        %v3650 = vadd.f32 %v3254, %v3649
        %3651 = vmatprep.mubr.f32.mxu0 0.0
        %v3652 = vand.u32 %v1034, 4294901760
        %3653 = vmatmul.mubr.f32.gmra.mrb[0].mxu0 %v3652
        %v3654 = vpop.f32.mrb[0].mxu0
        %v3655 = vadd.f32 %v3263, %v3654
        %v3656 = vpop.f32.mrb[0].mxu0
        %v3657 = vadd.f32 %v3265, %v3656
        %3658 = vmatprep.mubr.f32.mxu0 0.0
        %v3659 = vand.u32 %v1037, 4294901760
        %3660 = vmatmul.mubr.f32.gmra.mrb[0].mxu0 %v3659
        %v3661 = vpop.f32.mrb[0].mxu0
        %v3662 = vadd.f32 %v3274, %v3661
        %v3663 = vpop.f32.mrb[0].mxu0
        %v3664 = vadd.f32 %v3276, %v3663
        %3665 = vmatprep.mubr.f32.mxu0 0.0
        %v3666 = vand.u32 %v1040, 4294901760
        %3667 = vmatmul.mubr.f32.gmra.mrb[0].mxu0 %v3666
        %v3668 = vpop.f32.mrb[0].mxu0
        %v3669 = vadd.f32 %v3285, %v3668
        %v3670 = vpop.f32.mrb[0].mxu0
        %v3671 = vadd.f32 %v3287, %v3670
        %3672 = vmatprep.mubr.f32.mxu0 0.0
        %v3673 = vand.u32 %v1043, 4294901760
        %3674 = vmatmul.mubr.f32.gmra.mrb[0].mxu0 %v3673
        %v3675 = vpop.f32.mrb[0].mxu0
        %v3676 = vadd.f32 %v3296, %v3675
        %v3677 = vpop.f32.mrb[0].mxu0
        %v3678 = vadd.f32 %v3298, %v3677
        %3679 = vmatprep.mubr.f32.mxu0 0.0
        %v3680 = vand.u32 %v1046, 4294901760
        %3681 = vmatmul.mubr.f32.gmra.mrb[0].mxu0 %v3680
        %v3682 = vpop.f32.mrb[0].mxu0
        %v3683 = vadd.f32 %v3307, %v3682
        %v3684 = vpop.f32.mrb[0].mxu0
        %v3685 = vadd.f32 %v3309, %v3684
        %3686 = vmatprep.mubr.f32.mxu0 0.0
        %v3687 = vand.u32 %v1049, 4294901760
        %3688 = vmatmul.mubr.f32.gmra.mrb[0].mxu0 %v3687
        %v3689 = vpop.f32.mrb[0].mxu0
        %v3690 = vadd.f32 %v3318, %v3689
        %v3691 = vpop.f32.mrb[0].mxu0
        %v3692 = vadd.f32 %v3320, %v3691
        %3693 = vmatprep.mubr.f32.mxu0 0.0
        %v3694 = vand.u32 %v1052, 4294901760
        %3695 = vmatmul.mubr.f32.gmra.mrb[0].mxu0 %v3694
        %v3696 = vpop.f32.mrb[0].mxu0
        %v3697 = vadd.f32 %v3329, %v3696
        %v3698 = vpop.f32.mrb[0].mxu0
        %v3699 = vadd.f32 %v3331, %v3698
        %3700 = vmatprep.mubr.f32.mxu0 0.0
        %v3701 = vand.u32 %v1055, 4294901760
        %3702 = vmatmul.mubr.f32.gmra.mrb[0].mxu0 %v3701
        %v3703 = vpop.f32.mrb[0].mxu0
        %v3704 = vadd.f32 %v3340, %v3703
        %v3705 = vpop.f32.mrb[0].mxu0
        %v3706 = vadd.f32 %v3342, %v3705
        %3707 = vmatprep.mubr.f32.mxu0 0.0
        %v3708 = vand.u32 %v1058, 4294901760
        %3709 = vmatmul.mubr.f32.gmra.mrb[0].mxu0 %v3708
        %v3710 = vpop.f32.mrb[0].mxu0
        %v3711 = vadd.f32 %v3351, %v3710
        %v3712 = vpop.f32.mrb[0].mxu0
        %v3713 = vadd.f32 %v3353, %v3712
        %3714 = vmatprep.mubr.f32.mxu0 0.0
        %v3715 = vand.u32 %v1061, 4294901760
        %3716 = vmatmul.mubr.f32.gmra.mrb[0].mxu0 %v3715
        %v3717 = vpop.f32.mrb[0].mxu0
        %v3718 = vadd.f32 %v3362, %v3717
        %v3719 = vpop.f32.mrb[0].mxu0
        %v3720 = vadd.f32 %v3364, %v3719
        %3721 = vmatprep.mubr.f32.mxu0 0.0
        %v3722 = vand.u32 %v1064, 4294901760
        %3723 = vmatmul.mubr.f32.gmra.mrb[0].mxu0 %v3722
        %v3724 = vpop.f32.mrb[0].mxu0
        %v3725 = vadd.f32 %v3373, %v3724
        %v3726 = vpop.f32.mrb[0].mxu0
        %v3727 = vadd.f32 %v3375, %v3726
        %3728 = vmatprep.mubr.f32.mxu0 0.0
        %v3729 = vand.u32 %v1067, 4294901760
        %3730 = vmatmul.mubr.f32.gmra.mrb[0].mxu0 %v3729
        %v3731 = vpop.f32.mrb[0].mxu0
        %v3732 = vadd.f32 %v3384, %v3731
        %v3733 = vpop.f32.mrb[0].mxu0
        %v3734 = vadd.f32 %v3386, %v3733
        %3735 = vmatprep.mubr.f32.mxu0 0.0
        %v3736 = vand.u32 %v1070, 4294901760
        %3737 = vmatmul.mubr.f32.gmra.mrb[0].mxu0 %v3736
        %v3738 = vpop.f32.mrb[0].mxu0
        %v3739 = vadd.f32 %v3395, %v3738
        %v3740 = vpop.f32.mrb[0].mxu0
        %v3741 = vadd.f32 %v3397, %v3740
        %3742 = vdwg.mxu0
        %v3743 = vand.u32 %v768, 4294901760
        %v3744 = vsub.f32 %v768, %v3743
        %3745 = vmatprep.subr.mxu0 %v3744
        %v3746 = vand.u32 %v767, 4294901760
        %v3747 = vsub.f32 %v767, %v3746
        %3748 = vmatpush1.msra.mxu0 %v3747
        %v3749 = vand.u32 %v772, 4294901760
        %v3750 = vsub.f32 %v772, %v3749
        %3751 = vmatprep.subr.mxu0 %v3750
        %v3752 = vand.u32 %v771, 4294901760
        %v3753 = vsub.f32 %v771, %v3752
        %3754 = vmatpush1.msra.mxu0 %v3753
        %v3755 = vand.u32 %v776, 4294901760
        %v3756 = vsub.f32 %v776, %v3755
        %3757 = vmatprep.subr.mxu0 %v3756
        %v3758 = vand.u32 %v775, 4294901760
        %v3759 = vsub.f32 %v775, %v3758
        %3760 = vmatpush1.msra.mxu0 %v3759
        %v3761 = vand.u32 %v780, 4294901760
        %v3762 = vsub.f32 %v780, %v3761
        %3763 = vmatprep.subr.mxu0 %v3762
        %v3764 = vand.u32 %v779, 4294901760
        %v3765 = vsub.f32 %v779, %v3764
        %3766 = vmatpush1.msra.mxu0 %v3765
        %v3767 = vand.u32 %v784, 4294901760
        %v3768 = vsub.f32 %v784, %v3767
        %3769 = vmatprep.subr.mxu0 %v3768
        %v3770 = vand.u32 %v783, 4294901760
        %v3771 = vsub.f32 %v783, %v3770
        %3772 = vmatpush1.msra.mxu0 %v3771
        %v3773 = vand.u32 %v788, 4294901760
        %v3774 = vsub.f32 %v788, %v3773
        %3775 = vmatprep.subr.mxu0 %v3774
        %v3776 = vand.u32 %v787, 4294901760
        %v3777 = vsub.f32 %v787, %v3776
        %3778 = vmatpush1.msra.mxu0 %v3777
        %v3779 = vand.u32 %v792, 4294901760
        %v3780 = vsub.f32 %v792, %v3779
        %3781 = vmatprep.subr.mxu0 %v3780
        %v3782 = vand.u32 %v791, 4294901760
        %v3783 = vsub.f32 %v791, %v3782
        %3784 = vmatpush1.msra.mxu0 %v3783
        %v3785 = vand.u32 %v796, 4294901760
        %v3786 = vsub.f32 %v796, %v3785
        %3787 = vmatprep.subr.mxu0 %v3786
        %v3788 = vand.u32 %v795, 4294901760
        %v3789 = vsub.f32 %v795, %v3788
        %3790 = vmatpush1.msra.mxu0 %v3789
        %v3791 = vand.u32 %v800, 4294901760
        %v3792 = vsub.f32 %v800, %v3791
        %3793 = vmatprep.subr.mxu0 %v3792
        %v3794 = vand.u32 %v799, 4294901760
        %v3795 = vsub.f32 %v799, %v3794
        %3796 = vmatpush1.msra.mxu0 %v3795
        %3797 = vmatprep.subr.mxu0 0.0
        %3798 = vmatpush1.msra.mxu0 0.0
        %3799 = vmatprep.subr.mxu0 0.0
        %3800 = vmatpush1.msra.mxu0 0.0
        %3801 = vmatprep.subr.mxu0 0.0
        %3802 = vmatpush1.msra.mxu0 0.0
        %3803 = vmatprep.subr.mxu0 0.0
        %3804 = vmatpush1.msra.mxu0 0.0
        %3805 = vmatprep.subr.mxu0 0.0
        %3806 = vmatpush1.msra.mxu0 0.0
        %3807 = vmatprep.subr.mxu0 0.0
        %3808 = vmatpush1.msra.mxu0 0.0
        %3809 = vmatprep.subr.mxu0 0.0
        %3810 = vmatpush1.msra.mxu0 0.0
        %3811 = vmatprep.subr.mxu0 0.0
        %3812 = vmatpush1.msra.mxu0 0.0
        %3813 = vmatprep.subr.mxu0 0.0
        %3814 = vmatpush1.msra.mxu0 0.0
        %3815 = vmatprep.subr.mxu0 0.0
        %3816 = vmatpush1.msra.mxu0 0.0
        %3817 = vmatprep.subr.mxu0 0.0
        %3818 = vmatpush1.msra.mxu0 0.0
        %3819 = vmatprep.subr.mxu0 0.0
        %3820 = vmatpush1.msra.mxu0 0.0
        %3821 = vmatprep.subr.mxu0 0.0
        %3822 = vmatpush1.msra.mxu0 0.0
        %3823 = vmatprep.subr.mxu0 0.0
        %3824 = vmatpush1.msra.mxu0 0.0
        %3825 = vmatprep.subr.mxu0 0.0
        %3826 = vmatpush1.msra.mxu0 0.0
        %3827 = vmatprep.subr.mxu0 0.0
        %3828 = vmatpush1.msra.mxu0 0.0
        %3829 = vmatprep.subr.mxu0 0.0
        %3830 = vmatpush1.msra.mxu0 0.0
        %3831 = vmatprep.subr.mxu0 0.0
        %3832 = vmatpush1.msra.mxu0 0.0
        %3833 = vmatprep.subr.mxu0 0.0
        %3834 = vmatpush1.msra.mxu0 0.0
        %3835 = vmatprep.subr.mxu0 0.0
        %3836 = vmatpush1.msra.mxu0 0.0
        %3837 = vmatprep.subr.mxu0 0.0
        %3838 = vmatpush1.msra.mxu0 0.0
        %3839 = vmatprep.subr.mxu0 0.0
        %3840 = vmatpush1.msra.mxu0 0.0
        %3841 = vmatprep.subr.mxu0 0.0
        %3842 = vmatpush1.msra.mxu0 0.0
        %3843 = vmatprep.mubr.f32.mxu0 0.0
        %v3844 = vand.u32 %v992, 4294901760
        %v3845 = vsub.f32 %v992, %v3844
        %3846 = vmatmul.mubr.f32.gmra.mrb[0].mxu0 %v3845
        %v3847 = vpop.f32.mrb[0].mxu0
        %v3848 = vadd.f32 %v3557, %v3847
        %v3849 = vpop.f32.mrb[0].mxu0
        %v3850 = vadd.f32 %v3559, %v3849
        %3851 = vmatprep.mubr.f32.mxu0 0.0
        %v3852 = vand.u32 %v995, 4294901760
        %v3853 = vsub.f32 %v995, %v3852
        %3854 = vmatmul.mubr.f32.gmra.mrb[0].mxu0 %v3853
        %v3855 = vpop.f32.mrb[0].mxu0
        %v3856 = vadd.f32 %v3564, %v3855
        %v3857 = vpop.f32.mrb[0].mxu0
        %v3858 = vadd.f32 %v3566, %v3857
        %3859 = vmatprep.mubr.f32.mxu0 0.0
        %v3860 = vand.u32 %v998, 4294901760
        %v3861 = vsub.f32 %v998, %v3860
        %3862 = vmatmul.mubr.f32.gmra.mrb[0].mxu0 %v3861
        %v3863 = vpop.f32.mrb[0].mxu0
        %v3864 = vadd.f32 %v3571, %v3863
        %v3865 = vpop.f32.mrb[0].mxu0
        %v3866 = vadd.f32 %v3573, %v3865
        %3867 = vmatprep.mubr.f32.mxu0 0.0
        %v3868 = vand.u32 %v1001, 4294901760
        %v3869 = vsub.f32 %v1001, %v3868
        %3870 = vmatmul.mubr.f32.gmra.mrb[0].mxu0 %v3869
        %v3871 = vpop.f32.mrb[0].mxu0
        %v3872 = vadd.f32 %v3578, %v3871
        %v3873 = vpop.f32.mrb[0].mxu0
        %v3874 = vadd.f32 %v3580, %v3873
        %3875 = vmatprep.mubr.f32.mxu0 0.0
        %v3876 = vand.u32 %v1004, 4294901760
        %v3877 = vsub.f32 %v1004, %v3876
        %3878 = vmatmul.mubr.f32.gmra.mrb[0].mxu0 %v3877
        %v3879 = vpop.f32.mrb[0].mxu0
        %v3880 = vadd.f32 %v3585, %v3879
        %v3881 = vpop.f32.mrb[0].mxu0
        %v3882 = vadd.f32 %v3587, %v3881
        %3883 = vmatprep.mubr.f32.mxu0 0.0
        %v3884 = vand.u32 %v1007, 4294901760
        %v3885 = vsub.f32 %v1007, %v3884
        %3886 = vmatmul.mubr.f32.gmra.mrb[0].mxu0 %v3885
        %v3887 = vpop.f32.mrb[0].mxu0
        %v3888 = vadd.f32 %v3592, %v3887
        %v3889 = vpop.f32.mrb[0].mxu0
        %v3890 = vadd.f32 %v3594, %v3889
        %3891 = vmatprep.mubr.f32.mxu0 0.0
        %v3892 = vand.u32 %v1010, 4294901760
        %v3893 = vsub.f32 %v1010, %v3892
        %3894 = vmatmul.mubr.f32.gmra.mrb[0].mxu0 %v3893
        %v3895 = vpop.f32.mrb[0].mxu0
        %v3896 = vadd.f32 %v3599, %v3895
        %v3897 = vpop.f32.mrb[0].mxu0
        %v3898 = vadd.f32 %v3601, %v3897
        %3899 = vmatprep.mubr.f32.mxu0 0.0
        %v3900 = vand.u32 %v1013, 4294901760
        %v3901 = vsub.f32 %v1013, %v3900
        %3902 = vmatmul.mubr.f32.gmra.mrb[0].mxu0 %v3901
        %v3903 = vpop.f32.mrb[0].mxu0
        %v3904 = vadd.f32 %v3606, %v3903
        %v3905 = vpop.f32.mrb[0].mxu0
        %v3906 = vadd.f32 %v3608, %v3905
        %3907 = vmatprep.mubr.f32.mxu0 0.0
        %v3908 = vand.u32 %v1016, 4294901760
        %v3909 = vsub.f32 %v1016, %v3908
        %3910 = vmatmul.mubr.f32.gmra.mrb[0].mxu0 %v3909
        %v3911 = vpop.f32.mrb[0].mxu0
        %v3912 = vadd.f32 %v3613, %v3911
        %v3913 = vpop.f32.mrb[0].mxu0
        %v3914 = vadd.f32 %v3615, %v3913
        %3915 = vmatprep.mubr.f32.mxu0 0.0
        %v3916 = vand.u32 %v1019, 4294901760
        %v3917 = vsub.f32 %v1019, %v3916
        %3918 = vmatmul.mubr.f32.gmra.mrb[0].mxu0 %v3917
        %v3919 = vpop.f32.mrb[0].mxu0
        %v3920 = vadd.f32 %v3620, %v3919
        %v3921 = vpop.f32.mrb[0].mxu0
        %v3922 = vadd.f32 %v3622, %v3921
        %3923 = vmatprep.mubr.f32.mxu0 0.0
        %v3924 = vand.u32 %v1022, 4294901760
        %v3925 = vsub.f32 %v1022, %v3924
        %3926 = vmatmul.mubr.f32.gmra.mrb[0].mxu0 %v3925
        %v3927 = vpop.f32.mrb[0].mxu0
        %v3928 = vadd.f32 %v3627, %v3927
        %v3929 = vpop.f32.mrb[0].mxu0
        %v3930 = vadd.f32 %v3629, %v3929
        %3931 = vmatprep.mubr.f32.mxu0 0.0
        %v3932 = vand.u32 %v1025, 4294901760
        %v3933 = vsub.f32 %v1025, %v3932
        %3934 = vmatmul.mubr.f32.gmra.mrb[0].mxu0 %v3933
        %v3935 = vpop.f32.mrb[0].mxu0
        %v3936 = vadd.f32 %v3634, %v3935
        %v3937 = vpop.f32.mrb[0].mxu0
        %v3938 = vadd.f32 %v3636, %v3937
        %3939 = vmatprep.mubr.f32.mxu0 0.0
        %v3940 = vand.u32 %v1028, 4294901760
        %v3941 = vsub.f32 %v1028, %v3940
        %3942 = vmatmul.mubr.f32.gmra.mrb[0].mxu0 %v3941
        %v3943 = vpop.f32.mrb[0].mxu0
        %v3944 = vadd.f32 %v3641, %v3943
        %v3945 = vpop.f32.mrb[0].mxu0
        %v3946 = vadd.f32 %v3643, %v3945
        %3947 = vmatprep.mubr.f32.mxu0 0.0
        %v3948 = vand.u32 %v1031, 4294901760
        %v3949 = vsub.f32 %v1031, %v3948
        %3950 = vmatmul.mubr.f32.gmra.mrb[0].mxu0 %v3949
        %v3951 = vpop.f32.mrb[0].mxu0
        %v3952 = vadd.f32 %v3648, %v3951
        %v3953 = vpop.f32.mrb[0].mxu0
        %v3954 = vadd.f32 %v3650, %v3953
        %3955 = vmatprep.mubr.f32.mxu0 0.0
        %v3956 = vand.u32 %v1034, 4294901760
        %v3957 = vsub.f32 %v1034, %v3956
        %3958 = vmatmul.mubr.f32.gmra.mrb[0].mxu0 %v3957
        %v3959 = vpop.f32.mrb[0].mxu0
        %v3960 = vadd.f32 %v3655, %v3959
        %v3961 = vpop.f32.mrb[0].mxu0
        %v3962 = vadd.f32 %v3657, %v3961
        %3963 = vmatprep.mubr.f32.mxu0 0.0
        %v3964 = vand.u32 %v1037, 4294901760
        %v3965 = vsub.f32 %v1037, %v3964
        %3966 = vmatmul.mubr.f32.gmra.mrb[0].mxu0 %v3965
        %v3967 = vpop.f32.mrb[0].mxu0
        %v3968 = vadd.f32 %v3662, %v3967
        %v3969 = vpop.f32.mrb[0].mxu0
        %v3970 = vadd.f32 %v3664, %v3969
        %3971 = vmatprep.mubr.f32.mxu0 0.0
        %v3972 = vand.u32 %v1040, 4294901760
        %v3973 = vsub.f32 %v1040, %v3972
        %3974 = vmatmul.mubr.f32.gmra.mrb[0].mxu0 %v3973
        %v3975 = vpop.f32.mrb[0].mxu0
        %v3976 = vadd.f32 %v3669, %v3975
        %v3977 = vpop.f32.mrb[0].mxu0
        %v3978 = vadd.f32 %v3671, %v3977
        %3979 = vmatprep.mubr.f32.mxu0 0.0
        %v3980 = vand.u32 %v1043, 4294901760
        %v3981 = vsub.f32 %v1043, %v3980
        %3982 = vmatmul.mubr.f32.gmra.mrb[0].mxu0 %v3981
        %v3983 = vpop.f32.mrb[0].mxu0
        %v3984 = vadd.f32 %v3676, %v3983
        %v3985 = vpop.f32.mrb[0].mxu0
        %v3986 = vadd.f32 %v3678, %v3985
        %3987 = vmatprep.mubr.f32.mxu0 0.0
        %v3988 = vand.u32 %v1046, 4294901760
        %v3989 = vsub.f32 %v1046, %v3988
        %3990 = vmatmul.mubr.f32.gmra.mrb[0].mxu0 %v3989
        %v3991 = vpop.f32.mrb[0].mxu0
        %v3992 = vadd.f32 %v3683, %v3991
        %v3993 = vpop.f32.mrb[0].mxu0
        %v3994 = vadd.f32 %v3685, %v3993
        %3995 = vmatprep.mubr.f32.mxu0 0.0
        %v3996 = vand.u32 %v1049, 4294901760
        %v3997 = vsub.f32 %v1049, %v3996
        %3998 = vmatmul.mubr.f32.gmra.mrb[0].mxu0 %v3997
        %v3999 = vpop.f32.mrb[0].mxu0
        %v4000 = vadd.f32 %v3690, %v3999
        %v4001 = vpop.f32.mrb[0].mxu0
        %v4002 = vadd.f32 %v3692, %v4001
        %4003 = vmatprep.mubr.f32.mxu0 0.0
        %v4004 = vand.u32 %v1052, 4294901760
        %v4005 = vsub.f32 %v1052, %v4004
        %4006 = vmatmul.mubr.f32.gmra.mrb[0].mxu0 %v4005
        %v4007 = vpop.f32.mrb[0].mxu0
        %v4008 = vadd.f32 %v3697, %v4007
        %v4009 = vpop.f32.mrb[0].mxu0
        %v4010 = vadd.f32 %v3699, %v4009
        %4011 = vmatprep.mubr.f32.mxu0 0.0
        %v4012 = vand.u32 %v1055, 4294901760
        %v4013 = vsub.f32 %v1055, %v4012
        %4014 = vmatmul.mubr.f32.gmra.mrb[0].mxu0 %v4013
        %v4015 = vpop.f32.mrb[0].mxu0
        %v4016 = vadd.f32 %v3704, %v4015
        %v4017 = vpop.f32.mrb[0].mxu0
        %v4018 = vadd.f32 %v3706, %v4017
        %4019 = vmatprep.mubr.f32.mxu0 0.0
        %v4020 = vand.u32 %v1058, 4294901760
        %v4021 = vsub.f32 %v1058, %v4020
        %4022 = vmatmul.mubr.f32.gmra.mrb[0].mxu0 %v4021
        %v4023 = vpop.f32.mrb[0].mxu0
        %v4024 = vadd.f32 %v3711, %v4023
        %v4025 = vpop.f32.mrb[0].mxu0
        %v4026 = vadd.f32 %v3713, %v4025
        %4027 = vmatprep.mubr.f32.mxu0 0.0
        %v4028 = vand.u32 %v1061, 4294901760
        %v4029 = vsub.f32 %v1061, %v4028
        %4030 = vmatmul.mubr.f32.gmra.mrb[0].mxu0 %v4029
        %v4031 = vpop.f32.mrb[0].mxu0
        %v4032 = vadd.f32 %v3718, %v4031
        %v4033 = vpop.f32.mrb[0].mxu0
        %v4034 = vadd.f32 %v3720, %v4033
        %4035 = vmatprep.mubr.f32.mxu0 0.0
        %v4036 = vand.u32 %v1064, 4294901760
        %v4037 = vsub.f32 %v1064, %v4036
        %4038 = vmatmul.mubr.f32.gmra.mrb[0].mxu0 %v4037
        %v4039 = vpop.f32.mrb[0].mxu0
        %v4040 = vadd.f32 %v3725, %v4039
        %v4041 = vpop.f32.mrb[0].mxu0
        %v4042 = vadd.f32 %v3727, %v4041
        %4043 = vmatprep.mubr.f32.mxu0 0.0
        %v4044 = vand.u32 %v1067, 4294901760
        %v4045 = vsub.f32 %v1067, %v4044
        %4046 = vmatmul.mubr.f32.gmra.mrb[0].mxu0 %v4045
        %v4047 = vpop.f32.mrb[0].mxu0
        %v4048 = vadd.f32 %v3732, %v4047
        %v4049 = vpop.f32.mrb[0].mxu0
        %v4050 = vadd.f32 %v3734, %v4049
        %4051 = vmatprep.mubr.f32.mxu0 0.0
        %v4052 = vand.u32 %v1070, 4294901760
        %v4053 = vsub.f32 %v1070, %v4052
        %4054 = vmatmul.mubr.f32.gmra.mrb[0].mxu0 %v4053
        %v4055 = vpop.f32.mrb[0].mxu0
        %v4056 = vadd.f32 %v3739, %v4055
        %v4057 = vpop.f32.mrb[0].mxu0
        %v4058 = vadd.f32 %v3741, %v4057
        %4059 = vdwg.mxu0
        %v4060 = vand.u32 %v768, 4294901760
        %4061 = vmatprep.subr.mxu0 %v4060
        %v4062 = vand.u32 %v767, 4294901760
        %4063 = vmatpush1.msra.mxu0 %v4062
        %v4064 = vand.u32 %v772, 4294901760
        %4065 = vmatprep.subr.mxu0 %v4064
        %v4066 = vand.u32 %v771, 4294901760
        %4067 = vmatpush1.msra.mxu0 %v4066
        %v4068 = vand.u32 %v776, 4294901760
        %4069 = vmatprep.subr.mxu0 %v4068
        %v4070 = vand.u32 %v775, 4294901760
        %4071 = vmatpush1.msra.mxu0 %v4070
        %v4072 = vand.u32 %v780, 4294901760
        %4073 = vmatprep.subr.mxu0 %v4072
        %v4074 = vand.u32 %v779, 4294901760
        %4075 = vmatpush1.msra.mxu0 %v4074
        %v4076 = vand.u32 %v784, 4294901760
        %4077 = vmatprep.subr.mxu0 %v4076
        %v4078 = vand.u32 %v783, 4294901760
        %4079 = vmatpush1.msra.mxu0 %v4078
        %v4080 = vand.u32 %v788, 4294901760
        %4081 = vmatprep.subr.mxu0 %v4080
        %v4082 = vand.u32 %v787, 4294901760
        %4083 = vmatpush1.msra.mxu0 %v4082
        %v4084 = vand.u32 %v792, 4294901760
        %4085 = vmatprep.subr.mxu0 %v4084
        %v4086 = vand.u32 %v791, 4294901760
        %4087 = vmatpush1.msra.mxu0 %v4086
        %v4088 = vand.u32 %v796, 4294901760
        %4089 = vmatprep.subr.mxu0 %v4088
        %v4090 = vand.u32 %v795, 4294901760
        %4091 = vmatpush1.msra.mxu0 %v4090
        %v4092 = vand.u32 %v800, 4294901760
        %4093 = vmatprep.subr.mxu0 %v4092
        %v4094 = vand.u32 %v799, 4294901760
        %4095 = vmatpush1.msra.mxu0 %v4094
        %4096 = vmatprep.subr.mxu0 0.0
        %4097 = vmatpush1.msra.mxu0 0.0
        %4098 = vmatprep.subr.mxu0 0.0
        %4099 = vmatpush1.msra.mxu0 0.0
        %4100 = vmatprep.subr.mxu0 0.0
        %4101 = vmatpush1.msra.mxu0 0.0
        %4102 = vmatprep.subr.mxu0 0.0
        %4103 = vmatpush1.msra.mxu0 0.0
        %4104 = vmatprep.subr.mxu0 0.0
        %4105 = vmatpush1.msra.mxu0 0.0
        %4106 = vmatprep.subr.mxu0 0.0
        %4107 = vmatpush1.msra.mxu0 0.0
        %4108 = vmatprep.subr.mxu0 0.0
        %4109 = vmatpush1.msra.mxu0 0.0
        %4110 = vmatprep.subr.mxu0 0.0
        %4111 = vmatpush1.msra.mxu0 0.0
        %4112 = vmatprep.subr.mxu0 0.0
        %4113 = vmatpush1.msra.mxu0 0.0
        %4114 = vmatprep.subr.mxu0 0.0
        %4115 = vmatpush1.msra.mxu0 0.0
        %4116 = vmatprep.subr.mxu0 0.0
        %4117 = vmatpush1.msra.mxu0 0.0
        %4118 = vmatprep.subr.mxu0 0.0
        %4119 = vmatpush1.msra.mxu0 0.0
        %4120 = vmatprep.subr.mxu0 0.0
        %4121 = vmatpush1.msra.mxu0 0.0
        %4122 = vmatprep.subr.mxu0 0.0
        %4123 = vmatpush1.msra.mxu0 0.0
        %4124 = vmatprep.subr.mxu0 0.0
        %4125 = vmatpush1.msra.mxu0 0.0
        %4126 = vmatprep.subr.mxu0 0.0
        %4127 = vmatpush1.msra.mxu0 0.0
        %4128 = vmatprep.subr.mxu0 0.0
        %4129 = vmatpush1.msra.mxu0 0.0
        %4130 = vmatprep.subr.mxu0 0.0
        %4131 = vmatpush1.msra.mxu0 0.0
        %4132 = vmatprep.subr.mxu0 0.0
        %4133 = vmatpush1.msra.mxu0 0.0
        %4134 = vmatprep.subr.mxu0 0.0
        %4135 = vmatpush1.msra.mxu0 0.0
        %4136 = vmatprep.subr.mxu0 0.0
        %4137 = vmatpush1.msra.mxu0 0.0
        %4138 = vmatprep.subr.mxu0 0.0
        %4139 = vmatpush1.msra.mxu0 0.0
        %4140 = vmatprep.subr.mxu0 0.0
        %4141 = vmatpush1.msra.mxu0 0.0
        %4142 = vmatprep.mubr.f32.mxu0 0.0
        %v4143 = vand.u32 %v992, 4294901760
        %v4144 = vsub.f32 %v992, %v4143
        %v4145 = vand.u32 %v4144, 4294901760
        %4146 = vmatmul.mubr.f32.gmra.mrb[0].mxu0 %v4145
        %v4147 = vpop.f32.mrb[0].mxu0
        %v4148 = vadd.f32 %v3848, %v4147
        %v4149 = vpop.f32.mrb[0].mxu0
        %v4150 = vadd.f32 %v3850, %v4149
        %4151 = vmatprep.mubr.f32.mxu0 0.0
        %v4152 = vand.u32 %v995, 4294901760
        %v4153 = vsub.f32 %v995, %v4152
        %v4154 = vand.u32 %v4153, 4294901760
        %4155 = vmatmul.mubr.f32.gmra.mrb[0].mxu0 %v4154
        %v4156 = vpop.f32.mrb[0].mxu0
        %v4157 = vadd.f32 %v3856, %v4156
        %v4158 = vpop.f32.mrb[0].mxu0
        %v4159 = vadd.f32 %v3858, %v4158
        %4160 = vmatprep.mubr.f32.mxu0 0.0
        %v4161 = vand.u32 %v998, 4294901760
        %v4162 = vsub.f32 %v998, %v4161
        %v4163 = vand.u32 %v4162, 4294901760
        %4164 = vmatmul.mubr.f32.gmra.mrb[0].mxu0 %v4163
        %v4165 = vpop.f32.mrb[0].mxu0
        %v4166 = vadd.f32 %v3864, %v4165
        %v4167 = vpop.f32.mrb[0].mxu0
        %v4168 = vadd.f32 %v3866, %v4167
        %4169 = vmatprep.mubr.f32.mxu0 0.0
        %v4170 = vand.u32 %v1001, 4294901760
        %v4171 = vsub.f32 %v1001, %v4170
        %v4172 = vand.u32 %v4171, 4294901760
        %4173 = vmatmul.mubr.f32.gmra.mrb[0].mxu0 %v4172
        %v4174 = vpop.f32.mrb[0].mxu0
        %v4175 = vadd.f32 %v3872, %v4174
        %v4176 = vpop.f32.mrb[0].mxu0
        %v4177 = vadd.f32 %v3874, %v4176
        %4178 = vmatprep.mubr.f32.mxu0 0.0
        %v4179 = vand.u32 %v1004, 4294901760
        %v4180 = vsub.f32 %v1004, %v4179
        %v4181 = vand.u32 %v4180, 4294901760
        %4182 = vmatmul.mubr.f32.gmra.mrb[0].mxu0 %v4181
        %v4183 = vpop.f32.mrb[0].mxu0
        %v4184 = vadd.f32 %v3880, %v4183
        %v4185 = vpop.f32.mrb[0].mxu0
        %v4186 = vadd.f32 %v3882, %v4185
        %4187 = vmatprep.mubr.f32.mxu0 0.0
        %v4188 = vand.u32 %v1007, 4294901760
        %v4189 = vsub.f32 %v1007, %v4188
        %v4190 = vand.u32 %v4189, 4294901760
        %4191 = vmatmul.mubr.f32.gmra.mrb[0].mxu0 %v4190
        %v4192 = vpop.f32.mrb[0].mxu0
        %v4193 = vadd.f32 %v3888, %v4192
        %v4194 = vpop.f32.mrb[0].mxu0
        %v4195 = vadd.f32 %v3890, %v4194
        %4196 = vmatprep.mubr.f32.mxu0 0.0
        %v4197 = vand.u32 %v1010, 4294901760
        %v4198 = vsub.f32 %v1010, %v4197
        %v4199 = vand.u32 %v4198, 4294901760
        %4200 = vmatmul.mubr.f32.gmra.mrb[0].mxu0 %v4199
        %v4201 = vpop.f32.mrb[0].mxu0
        %v4202 = vadd.f32 %v3896, %v4201
        %v4203 = vpop.f32.mrb[0].mxu0
        %v4204 = vadd.f32 %v3898, %v4203
        %4205 = vmatprep.mubr.f32.mxu0 0.0
        %v4206 = vand.u32 %v1013, 4294901760
        %v4207 = vsub.f32 %v1013, %v4206
        %v4208 = vand.u32 %v4207, 4294901760
        %4209 = vmatmul.mubr.f32.gmra.mrb[0].mxu0 %v4208
        %v4210 = vpop.f32.mrb[0].mxu0
        %v4211 = vadd.f32 %v3904, %v4210
        %v4212 = vpop.f32.mrb[0].mxu0
        %v4213 = vadd.f32 %v3906, %v4212
        %4214 = vmatprep.mubr.f32.mxu0 0.0
        %v4215 = vand.u32 %v1016, 4294901760
        %v4216 = vsub.f32 %v1016, %v4215
        %v4217 = vand.u32 %v4216, 4294901760
        %4218 = vmatmul.mubr.f32.gmra.mrb[0].mxu0 %v4217
        %v4219 = vpop.f32.mrb[0].mxu0
        %v4220 = vadd.f32 %v3912, %v4219
        %v4221 = vpop.f32.mrb[0].mxu0
        %v4222 = vadd.f32 %v3914, %v4221
        %4223 = vmatprep.mubr.f32.mxu0 0.0
        %v4224 = vand.u32 %v1019, 4294901760
        %v4225 = vsub.f32 %v1019, %v4224
        %v4226 = vand.u32 %v4225, 4294901760
        %4227 = vmatmul.mubr.f32.gmra.mrb[0].mxu0 %v4226
        %v4228 = vpop.f32.mrb[0].mxu0
        %v4229 = vadd.f32 %v3920, %v4228
        %v4230 = vpop.f32.mrb[0].mxu0
        %v4231 = vadd.f32 %v3922, %v4230
        %4232 = vmatprep.mubr.f32.mxu0 0.0
        %v4233 = vand.u32 %v1022, 4294901760
        %v4234 = vsub.f32 %v1022, %v4233
        %v4235 = vand.u32 %v4234, 4294901760
        %4236 = vmatmul.mubr.f32.gmra.mrb[0].mxu0 %v4235
        %v4237 = vpop.f32.mrb[0].mxu0
        %v4238 = vadd.f32 %v3928, %v4237
        %v4239 = vpop.f32.mrb[0].mxu0
        %v4240 = vadd.f32 %v3930, %v4239
        %4241 = vmatprep.mubr.f32.mxu0 0.0
        %v4242 = vand.u32 %v1025, 4294901760
        %v4243 = vsub.f32 %v1025, %v4242
        %v4244 = vand.u32 %v4243, 4294901760
        %4245 = vmatmul.mubr.f32.gmra.mrb[0].mxu0 %v4244
        %v4246 = vpop.f32.mrb[0].mxu0
        %v4247 = vadd.f32 %v3936, %v4246
        %v4248 = vpop.f32.mrb[0].mxu0
        %v4249 = vadd.f32 %v3938, %v4248
        %4250 = vmatprep.mubr.f32.mxu0 0.0
        %v4251 = vand.u32 %v1028, 4294901760
        %v4252 = vsub.f32 %v1028, %v4251
        %v4253 = vand.u32 %v4252, 4294901760
        %4254 = vmatmul.mubr.f32.gmra.mrb[0].mxu0 %v4253
        %v4255 = vpop.f32.mrb[0].mxu0
        %v4256 = vadd.f32 %v3944, %v4255
        %v4257 = vpop.f32.mrb[0].mxu0
        %v4258 = vadd.f32 %v3946, %v4257
        %4259 = vmatprep.mubr.f32.mxu0 0.0
        %v4260 = vand.u32 %v1031, 4294901760
        %v4261 = vsub.f32 %v1031, %v4260
        %v4262 = vand.u32 %v4261, 4294901760
        %4263 = vmatmul.mubr.f32.gmra.mrb[0].mxu0 %v4262
        %v4264 = vpop.f32.mrb[0].mxu0
        %v4265 = vadd.f32 %v3952, %v4264
        %v4266 = vpop.f32.mrb[0].mxu0
        %v4267 = vadd.f32 %v3954, %v4266
        %4268 = vmatprep.mubr.f32.mxu0 0.0
        %v4269 = vand.u32 %v1034, 4294901760
        %v4270 = vsub.f32 %v1034, %v4269
        %v4271 = vand.u32 %v4270, 4294901760
        %4272 = vmatmul.mubr.f32.gmra.mrb[0].mxu0 %v4271
        %v4273 = vpop.f32.mrb[0].mxu0
        %v4274 = vadd.f32 %v3960, %v4273
        %v4275 = vpop.f32.mrb[0].mxu0
        %v4276 = vadd.f32 %v3962, %v4275
        %4277 = vmatprep.mubr.f32.mxu0 0.0
        %v4278 = vand.u32 %v1037, 4294901760
        %v4279 = vsub.f32 %v1037, %v4278
        %v4280 = vand.u32 %v4279, 4294901760
        %4281 = vmatmul.mubr.f32.gmra.mrb[0].mxu0 %v4280
        %v4282 = vpop.f32.mrb[0].mxu0
        %v4283 = vadd.f32 %v3968, %v4282
        %v4284 = vpop.f32.mrb[0].mxu0
        %v4285 = vadd.f32 %v3970, %v4284
        %4286 = vmatprep.mubr.f32.mxu0 0.0
        %v4287 = vand.u32 %v1040, 4294901760
        %v4288 = vsub.f32 %v1040, %v4287
        %v4289 = vand.u32 %v4288, 4294901760
        %4290 = vmatmul.mubr.f32.gmra.mrb[0].mxu0 %v4289
        %v4291 = vpop.f32.mrb[0].mxu0
        %v4292 = vadd.f32 %v3976, %v4291
        %v4293 = vpop.f32.mrb[0].mxu0
        %v4294 = vadd.f32 %v3978, %v4293
        %4295 = vmatprep.mubr.f32.mxu0 0.0
        %v4296 = vand.u32 %v1043, 4294901760
        %v4297 = vsub.f32 %v1043, %v4296
        %v4298 = vand.u32 %v4297, 4294901760
        %4299 = vmatmul.mubr.f32.gmra.mrb[0].mxu0 %v4298
        %v4300 = vpop.f32.mrb[0].mxu0
        %v4301 = vadd.f32 %v3984, %v4300
        %v4302 = vpop.f32.mrb[0].mxu0
        %v4303 = vadd.f32 %v3986, %v4302
        %4304 = vmatprep.mubr.f32.mxu0 0.0
        %v4305 = vand.u32 %v1046, 4294901760
        %v4306 = vsub.f32 %v1046, %v4305
        %v4307 = vand.u32 %v4306, 4294901760
        %4308 = vmatmul.mubr.f32.gmra.mrb[0].mxu0 %v4307
        %v4309 = vpop.f32.mrb[0].mxu0
        %v4310 = vadd.f32 %v3992, %v4309
        %v4311 = vpop.f32.mrb[0].mxu0
        %v4312 = vadd.f32 %v3994, %v4311
        %4313 = vmatprep.mubr.f32.mxu0 0.0
        %v4314 = vand.u32 %v1049, 4294901760
        %v4315 = vsub.f32 %v1049, %v4314
        %v4316 = vand.u32 %v4315, 4294901760
        %4317 = vmatmul.mubr.f32.gmra.mrb[0].mxu0 %v4316
        %v4318 = vpop.f32.mrb[0].mxu0
        %v4319 = vadd.f32 %v4000, %v4318
        %v4320 = vpop.f32.mrb[0].mxu0
        %v4321 = vadd.f32 %v4002, %v4320
        %4322 = vmatprep.mubr.f32.mxu0 0.0
        %v4323 = vand.u32 %v1052, 4294901760
        %v4324 = vsub.f32 %v1052, %v4323
        %v4325 = vand.u32 %v4324, 4294901760
        %4326 = vmatmul.mubr.f32.gmra.mrb[0].mxu0 %v4325
        %v4327 = vpop.f32.mrb[0].mxu0
        %v4328 = vadd.f32 %v4008, %v4327
        %v4329 = vpop.f32.mrb[0].mxu0
        %v4330 = vadd.f32 %v4010, %v4329
        %4331 = vmatprep.mubr.f32.mxu0 0.0
        %v4332 = vand.u32 %v1055, 4294901760
        %v4333 = vsub.f32 %v1055, %v4332
        %v4334 = vand.u32 %v4333, 4294901760
        %4335 = vmatmul.mubr.f32.gmra.mrb[0].mxu0 %v4334
        %v4336 = vpop.f32.mrb[0].mxu0
        %v4337 = vadd.f32 %v4016, %v4336
        %v4338 = vpop.f32.mrb[0].mxu0
        %v4339 = vadd.f32 %v4018, %v4338
        %4340 = vmatprep.mubr.f32.mxu0 0.0
        %v4341 = vand.u32 %v1058, 4294901760
        %v4342 = vsub.f32 %v1058, %v4341
        %v4343 = vand.u32 %v4342, 4294901760
        %4344 = vmatmul.mubr.f32.gmra.mrb[0].mxu0 %v4343
        %v4345 = vpop.f32.mrb[0].mxu0
        %v4346 = vadd.f32 %v4024, %v4345
        %v4347 = vpop.f32.mrb[0].mxu0
        %v4348 = vadd.f32 %v4026, %v4347
        %4349 = vmatprep.mubr.f32.mxu0 0.0
        %v4350 = vand.u32 %v1061, 4294901760
        %v4351 = vsub.f32 %v1061, %v4350
        %v4352 = vand.u32 %v4351, 4294901760
        %4353 = vmatmul.mubr.f32.gmra.mrb[0].mxu0 %v4352
        %v4354 = vpop.f32.mrb[0].mxu0
        %v4355 = vadd.f32 %v4032, %v4354
        %v4356 = vpop.f32.mrb[0].mxu0
        %v4357 = vadd.f32 %v4034, %v4356
        %4358 = vmatprep.mubr.f32.mxu0 0.0
        %v4359 = vand.u32 %v1064, 4294901760
        %v4360 = vsub.f32 %v1064, %v4359
        %v4361 = vand.u32 %v4360, 4294901760
        %4362 = vmatmul.mubr.f32.gmra.mrb[0].mxu0 %v4361
        %v4363 = vpop.f32.mrb[0].mxu0
        %v4364 = vadd.f32 %v4040, %v4363
        %v4365 = vpop.f32.mrb[0].mxu0
        %v4366 = vadd.f32 %v4042, %v4365
        %4367 = vmatprep.mubr.f32.mxu0 0.0
        %v4368 = vand.u32 %v1067, 4294901760
        %v4369 = vsub.f32 %v1067, %v4368
        %v4370 = vand.u32 %v4369, 4294901760
        %4371 = vmatmul.mubr.f32.gmra.mrb[0].mxu0 %v4370
        %v4372 = vpop.f32.mrb[0].mxu0
        %v4373 = vadd.f32 %v4048, %v4372
        %v4374 = vpop.f32.mrb[0].mxu0
        %v4375 = vadd.f32 %v4050, %v4374
        %4376 = vmatprep.mubr.f32.mxu0 0.0
        %v4377 = vand.u32 %v1070, 4294901760
        %v4378 = vsub.f32 %v1070, %v4377
        %v4379 = vand.u32 %v4378, 4294901760
        %4380 = vmatmul.mubr.f32.gmra.mrb[0].mxu0 %v4379
        %v4381 = vpop.f32.mrb[0].mxu0
        %v4382 = vadd.f32 %v4056, %v4381
        %v4383 = vpop.f32.mrb[0].mxu0
        %v4384 = vadd.f32 %v4058, %v4383
        %4385 = vdwg.mxu0
        %v4386 = vand.u32 %v768, 4294901760
        %v4387 = vsub.f32 %v768, %v4386
        %v4388 = vand.u32 %v4387, 4294901760
        %4389 = vmatprep.subr.mxu0 %v4388
        %v4390 = vand.u32 %v767, 4294901760
        %v4391 = vsub.f32 %v767, %v4390
        %v4392 = vand.u32 %v4391, 4294901760
        %4393 = vmatpush1.msra.mxu0 %v4392
        %v4394 = vand.u32 %v772, 4294901760
        %v4395 = vsub.f32 %v772, %v4394
        %v4396 = vand.u32 %v4395, 4294901760
        %4397 = vmatprep.subr.mxu0 %v4396
        %v4398 = vand.u32 %v771, 4294901760
        %v4399 = vsub.f32 %v771, %v4398
        %v4400 = vand.u32 %v4399, 4294901760
        %4401 = vmatpush1.msra.mxu0 %v4400
        %v4402 = vand.u32 %v776, 4294901760
        %v4403 = vsub.f32 %v776, %v4402
        %v4404 = vand.u32 %v4403, 4294901760
        %4405 = vmatprep.subr.mxu0 %v4404
        %v4406 = vand.u32 %v775, 4294901760
        %v4407 = vsub.f32 %v775, %v4406
        %v4408 = vand.u32 %v4407, 4294901760
        %4409 = vmatpush1.msra.mxu0 %v4408
        %v4410 = vand.u32 %v780, 4294901760
        %v4411 = vsub.f32 %v780, %v4410
        %v4412 = vand.u32 %v4411, 4294901760
        %4413 = vmatprep.subr.mxu0 %v4412
        %v4414 = vand.u32 %v779, 4294901760
        %v4415 = vsub.f32 %v779, %v4414
        %v4416 = vand.u32 %v4415, 4294901760
        %4417 = vmatpush1.msra.mxu0 %v4416
        %v4418 = vand.u32 %v784, 4294901760
        %v4419 = vsub.f32 %v784, %v4418
        %v4420 = vand.u32 %v4419, 4294901760
        %4421 = vmatprep.subr.mxu0 %v4420
        %v4422 = vand.u32 %v783, 4294901760
        %v4423 = vsub.f32 %v783, %v4422
        %v4424 = vand.u32 %v4423, 4294901760
        %4425 = vmatpush1.msra.mxu0 %v4424
        %v4426 = vand.u32 %v788, 4294901760
        %v4427 = vsub.f32 %v788, %v4426
        %v4428 = vand.u32 %v4427, 4294901760
        %4429 = vmatprep.subr.mxu0 %v4428
        %v4430 = vand.u32 %v787, 4294901760
        %v4431 = vsub.f32 %v787, %v4430
        %v4432 = vand.u32 %v4431, 4294901760
        %4433 = vmatpush1.msra.mxu0 %v4432
        %v4434 = vand.u32 %v792, 4294901760
        %v4435 = vsub.f32 %v792, %v4434
        %v4436 = vand.u32 %v4435, 4294901760
        %4437 = vmatprep.subr.mxu0 %v4436
        %v4438 = vand.u32 %v791, 4294901760
        %v4439 = vsub.f32 %v791, %v4438
        %v4440 = vand.u32 %v4439, 4294901760
        %4441 = vmatpush1.msra.mxu0 %v4440
        %v4442 = vand.u32 %v796, 4294901760
        %v4443 = vsub.f32 %v796, %v4442
        %v4444 = vand.u32 %v4443, 4294901760
        %4445 = vmatprep.subr.mxu0 %v4444
        %v4446 = vand.u32 %v795, 4294901760
        %v4447 = vsub.f32 %v795, %v4446
        %v4448 = vand.u32 %v4447, 4294901760
        %4449 = vmatpush1.msra.mxu0 %v4448
        %v4450 = vand.u32 %v800, 4294901760
        %v4451 = vsub.f32 %v800, %v4450
        %v4452 = vand.u32 %v4451, 4294901760
        %4453 = vmatprep.subr.mxu0 %v4452
        %v4454 = vand.u32 %v799, 4294901760
        %v4455 = vsub.f32 %v799, %v4454
        %v4456 = vand.u32 %v4455, 4294901760
        %4457 = vmatpush1.msra.mxu0 %v4456
        %4458 = vmatprep.subr.mxu0 0.0
        %4459 = vmatpush1.msra.mxu0 0.0
        %4460 = vmatprep.subr.mxu0 0.0
        %4461 = vmatpush1.msra.mxu0 0.0
        %4462 = vmatprep.subr.mxu0 0.0
        %4463 = vmatpush1.msra.mxu0 0.0
        %4464 = vmatprep.subr.mxu0 0.0
        %4465 = vmatpush1.msra.mxu0 0.0
        %4466 = vmatprep.subr.mxu0 0.0
        %4467 = vmatpush1.msra.mxu0 0.0
        %4468 = vmatprep.subr.mxu0 0.0
        %4469 = vmatpush1.msra.mxu0 0.0
        %4470 = vmatprep.subr.mxu0 0.0
        %4471 = vmatpush1.msra.mxu0 0.0
        %4472 = vmatprep.subr.mxu0 0.0
        %4473 = vmatpush1.msra.mxu0 0.0
        %4474 = vmatprep.subr.mxu0 0.0
        %4475 = vmatpush1.msra.mxu0 0.0
        %4476 = vmatprep.subr.mxu0 0.0
        %4477 = vmatpush1.msra.mxu0 0.0
        %4478 = vmatprep.subr.mxu0 0.0
        %4479 = vmatpush1.msra.mxu0 0.0
        %4480 = vmatprep.subr.mxu0 0.0
        %4481 = vmatpush1.msra.mxu0 0.0
        %4482 = vmatprep.subr.mxu0 0.0
        %4483 = vmatpush1.msra.mxu0 0.0
        %4484 = vmatprep.subr.mxu0 0.0
        %4485 = vmatpush1.msra.mxu0 0.0
        %4486 = vmatprep.subr.mxu0 0.0
        %4487 = vmatpush1.msra.mxu0 0.0
        %4488 = vmatprep.subr.mxu0 0.0
        %4489 = vmatpush1.msra.mxu0 0.0
        %4490 = vmatprep.subr.mxu0 0.0
        %4491 = vmatpush1.msra.mxu0 0.0
        %4492 = vmatprep.subr.mxu0 0.0
        %4493 = vmatpush1.msra.mxu0 0.0
        %4494 = vmatprep.subr.mxu0 0.0
        %4495 = vmatpush1.msra.mxu0 0.0
        %4496 = vmatprep.subr.mxu0 0.0
        %4497 = vmatpush1.msra.mxu0 0.0
        %4498 = vmatprep.subr.mxu0 0.0
        %4499 = vmatpush1.msra.mxu0 0.0
        %4500 = vmatprep.subr.mxu0 0.0
        %4501 = vmatpush1.msra.mxu0 0.0
        %4502 = vmatprep.subr.mxu0 0.0
        %4503 = vmatpush1.msra.mxu0 0.0
        %4504 = vmatprep.mubr.f32.mxu0 0.0
        %v4505 = vand.u32 %v992, 4294901760
        %4506 = vmatmul.mubr.f32.gmra.mrb[0].mxu0 %v4505
        %v4507 = vpop.f32.mrb[0].mxu0
        %v4508 = vadd.f32 %v4148, %v4507
        %v4509 = vpop.f32.mrb[0].mxu0
        %v4510 = vadd.f32 %v4150, %v4509
        %4511 = vmatprep.mubr.f32.mxu0 0.0
        %v4512 = vand.u32 %v995, 4294901760
        %4513 = vmatmul.mubr.f32.gmra.mrb[0].mxu0 %v4512
        %v4514 = vpop.f32.mrb[0].mxu0
        %v4515 = vadd.f32 %v4157, %v4514
        %v4516 = vpop.f32.mrb[0].mxu0
        %v4517 = vadd.f32 %v4159, %v4516
        %4518 = vmatprep.mubr.f32.mxu0 0.0
        %v4519 = vand.u32 %v998, 4294901760
        %4520 = vmatmul.mubr.f32.gmra.mrb[0].mxu0 %v4519
        %v4521 = vpop.f32.mrb[0].mxu0
        %v4522 = vadd.f32 %v4166, %v4521
        %v4523 = vpop.f32.mrb[0].mxu0
        %v4524 = vadd.f32 %v4168, %v4523
        %4525 = vmatprep.mubr.f32.mxu0 0.0
        %v4526 = vand.u32 %v1001, 4294901760
        %4527 = vmatmul.mubr.f32.gmra.mrb[0].mxu0 %v4526
        %v4528 = vpop.f32.mrb[0].mxu0
        %v4529 = vadd.f32 %v4175, %v4528
        %v4530 = vpop.f32.mrb[0].mxu0
        %v4531 = vadd.f32 %v4177, %v4530
        %4532 = vmatprep.mubr.f32.mxu0 0.0
        %v4533 = vand.u32 %v1004, 4294901760
        %4534 = vmatmul.mubr.f32.gmra.mrb[0].mxu0 %v4533
        %v4535 = vpop.f32.mrb[0].mxu0
        %v4536 = vadd.f32 %v4184, %v4535
        %v4537 = vpop.f32.mrb[0].mxu0
        %v4538 = vadd.f32 %v4186, %v4537
        %4539 = vmatprep.mubr.f32.mxu0 0.0
        %v4540 = vand.u32 %v1007, 4294901760
        %4541 = vmatmul.mubr.f32.gmra.mrb[0].mxu0 %v4540
        %v4542 = vpop.f32.mrb[0].mxu0
        %v4543 = vadd.f32 %v4193, %v4542
        %v4544 = vpop.f32.mrb[0].mxu0
        %v4545 = vadd.f32 %v4195, %v4544
        %4546 = vmatprep.mubr.f32.mxu0 0.0
        %v4547 = vand.u32 %v1010, 4294901760
        %4548 = vmatmul.mubr.f32.gmra.mrb[0].mxu0 %v4547
        %v4549 = vpop.f32.mrb[0].mxu0
        %v4550 = vadd.f32 %v4202, %v4549
        %v4551 = vpop.f32.mrb[0].mxu0
        %v4552 = vadd.f32 %v4204, %v4551
        %4553 = vmatprep.mubr.f32.mxu0 0.0
        %v4554 = vand.u32 %v1013, 4294901760
        %4555 = vmatmul.mubr.f32.gmra.mrb[0].mxu0 %v4554
        %v4556 = vpop.f32.mrb[0].mxu0
        %v4557 = vadd.f32 %v4211, %v4556
        %v4558 = vpop.f32.mrb[0].mxu0
        %v4559 = vadd.f32 %v4213, %v4558
        %4560 = vmatprep.mubr.f32.mxu0 0.0
        %v4561 = vand.u32 %v1016, 4294901760
        %4562 = vmatmul.mubr.f32.gmra.mrb[0].mxu0 %v4561
        %v4563 = vpop.f32.mrb[0].mxu0
        %v4564 = vadd.f32 %v4220, %v4563
        %v4565 = vpop.f32.mrb[0].mxu0
        %v4566 = vadd.f32 %v4222, %v4565
        %4567 = vmatprep.mubr.f32.mxu0 0.0
        %v4568 = vand.u32 %v1019, 4294901760
        %4569 = vmatmul.mubr.f32.gmra.mrb[0].mxu0 %v4568
        %v4570 = vpop.f32.mrb[0].mxu0
        %v4571 = vadd.f32 %v4229, %v4570
        %v4572 = vpop.f32.mrb[0].mxu0
        %v4573 = vadd.f32 %v4231, %v4572
        %4574 = vmatprep.mubr.f32.mxu0 0.0
        %v4575 = vand.u32 %v1022, 4294901760
        %4576 = vmatmul.mubr.f32.gmra.mrb[0].mxu0 %v4575
        %v4577 = vpop.f32.mrb[0].mxu0
        %v4578 = vadd.f32 %v4238, %v4577
        %v4579 = vpop.f32.mrb[0].mxu0
        %v4580 = vadd.f32 %v4240, %v4579
        %4581 = vmatprep.mubr.f32.mxu0 0.0
        %v4582 = vand.u32 %v1025, 4294901760
        %4583 = vmatmul.mubr.f32.gmra.mrb[0].mxu0 %v4582
        %v4584 = vpop.f32.mrb[0].mxu0
        %v4585 = vadd.f32 %v4247, %v4584
        %v4586 = vpop.f32.mrb[0].mxu0
        %v4587 = vadd.f32 %v4249, %v4586
        %4588 = vmatprep.mubr.f32.mxu0 0.0
        %v4589 = vand.u32 %v1028, 4294901760
        %4590 = vmatmul.mubr.f32.gmra.mrb[0].mxu0 %v4589
        %v4591 = vpop.f32.mrb[0].mxu0
        %v4592 = vadd.f32 %v4256, %v4591
        %v4593 = vpop.f32.mrb[0].mxu0
        %v4594 = vadd.f32 %v4258, %v4593
        %4595 = vmatprep.mubr.f32.mxu0 0.0
        %v4596 = vand.u32 %v1031, 4294901760
        %4597 = vmatmul.mubr.f32.gmra.mrb[0].mxu0 %v4596
        %v4598 = vpop.f32.mrb[0].mxu0
        %v4599 = vadd.f32 %v4265, %v4598
        %v4600 = vpop.f32.mrb[0].mxu0
        %v4601 = vadd.f32 %v4267, %v4600
        %4602 = vmatprep.mubr.f32.mxu0 0.0
        %v4603 = vand.u32 %v1034, 4294901760
        %4604 = vmatmul.mubr.f32.gmra.mrb[0].mxu0 %v4603
        %v4605 = vpop.f32.mrb[0].mxu0
        %v4606 = vadd.f32 %v4274, %v4605
        %v4607 = vpop.f32.mrb[0].mxu0
        %v4608 = vadd.f32 %v4276, %v4607
        %4609 = vmatprep.mubr.f32.mxu0 0.0
        %v4610 = vand.u32 %v1037, 4294901760
        %4611 = vmatmul.mubr.f32.gmra.mrb[0].mxu0 %v4610
        %v4612 = vpop.f32.mrb[0].mxu0
        %v4613 = vadd.f32 %v4283, %v4612
        %v4614 = vpop.f32.mrb[0].mxu0
        %v4615 = vadd.f32 %v4285, %v4614
        %4616 = vmatprep.mubr.f32.mxu0 0.0
        %v4617 = vand.u32 %v1040, 4294901760
        %4618 = vmatmul.mubr.f32.gmra.mrb[0].mxu0 %v4617
        %v4619 = vpop.f32.mrb[0].mxu0
        %v4620 = vadd.f32 %v4292, %v4619
        %v4621 = vpop.f32.mrb[0].mxu0
        %v4622 = vadd.f32 %v4294, %v4621
        %4623 = vmatprep.mubr.f32.mxu0 0.0
        %v4624 = vand.u32 %v1043, 4294901760
        %4625 = vmatmul.mubr.f32.gmra.mrb[0].mxu0 %v4624
        %v4626 = vpop.f32.mrb[0].mxu0
        %v4627 = vadd.f32 %v4301, %v4626
        %v4628 = vpop.f32.mrb[0].mxu0
        %v4629 = vadd.f32 %v4303, %v4628
        %4630 = vmatprep.mubr.f32.mxu0 0.0
        %v4631 = vand.u32 %v1046, 4294901760
        %4632 = vmatmul.mubr.f32.gmra.mrb[0].mxu0 %v4631
        %v4633 = vpop.f32.mrb[0].mxu0
        %v4634 = vadd.f32 %v4310, %v4633
        %v4635 = vpop.f32.mrb[0].mxu0
        %v4636 = vadd.f32 %v4312, %v4635
        %4637 = vmatprep.mubr.f32.mxu0 0.0
        %v4638 = vand.u32 %v1049, 4294901760
        %4639 = vmatmul.mubr.f32.gmra.mrb[0].mxu0 %v4638
        %v4640 = vpop.f32.mrb[0].mxu0
        %v4641 = vadd.f32 %v4319, %v4640
        %v4642 = vpop.f32.mrb[0].mxu0
        %v4643 = vadd.f32 %v4321, %v4642
        %4644 = vmatprep.mubr.f32.mxu0 0.0
        %v4645 = vand.u32 %v1052, 4294901760
        %4646 = vmatmul.mubr.f32.gmra.mrb[0].mxu0 %v4645
        %v4647 = vpop.f32.mrb[0].mxu0
        %v4648 = vadd.f32 %v4328, %v4647
        %v4649 = vpop.f32.mrb[0].mxu0
        %v4650 = vadd.f32 %v4330, %v4649
        %4651 = vmatprep.mubr.f32.mxu0 0.0
        %v4652 = vand.u32 %v1055, 4294901760
        %4653 = vmatmul.mubr.f32.gmra.mrb[0].mxu0 %v4652
        %v4654 = vpop.f32.mrb[0].mxu0
        %v4655 = vadd.f32 %v4337, %v4654
        %v4656 = vpop.f32.mrb[0].mxu0
        %v4657 = vadd.f32 %v4339, %v4656
        %4658 = vmatprep.mubr.f32.mxu0 0.0
        %v4659 = vand.u32 %v1058, 4294901760
        %4660 = vmatmul.mubr.f32.gmra.mrb[0].mxu0 %v4659
        %v4661 = vpop.f32.mrb[0].mxu0
        %v4662 = vadd.f32 %v4346, %v4661
        %v4663 = vpop.f32.mrb[0].mxu0
        %v4664 = vadd.f32 %v4348, %v4663
        %4665 = vmatprep.mubr.f32.mxu0 0.0
        %v4666 = vand.u32 %v1061, 4294901760
        %4667 = vmatmul.mubr.f32.gmra.mrb[0].mxu0 %v4666
        %v4668 = vpop.f32.mrb[0].mxu0
        %v4669 = vadd.f32 %v4355, %v4668
        %v4670 = vpop.f32.mrb[0].mxu0
        %v4671 = vadd.f32 %v4357, %v4670
        %4672 = vmatprep.mubr.f32.mxu0 0.0
        %v4673 = vand.u32 %v1064, 4294901760
        %4674 = vmatmul.mubr.f32.gmra.mrb[0].mxu0 %v4673
        %v4675 = vpop.f32.mrb[0].mxu0
        %v4676 = vadd.f32 %v4364, %v4675
        %v4677 = vpop.f32.mrb[0].mxu0
        %v4678 = vadd.f32 %v4366, %v4677
        %4679 = vmatprep.mubr.f32.mxu0 0.0
        %v4680 = vand.u32 %v1067, 4294901760
        %4681 = vmatmul.mubr.f32.gmra.mrb[0].mxu0 %v4680
        %v4682 = vpop.f32.mrb[0].mxu0
        %v4683 = vadd.f32 %v4373, %v4682
        %v4684 = vpop.f32.mrb[0].mxu0
        %v4685 = vadd.f32 %v4375, %v4684
        %4686 = vmatprep.mubr.f32.mxu0 0.0
        %v4687 = vand.u32 %v1070, 4294901760
        %4688 = vmatmul.mubr.f32.gmra.mrb[0].mxu0 %v4687
        %v4689 = vpop.f32.mrb[0].mxu0
        %v4690 = vadd.f32 %v4382, %v4689
        %v4691 = vpop.f32.mrb[0].mxu0
        %v4692 = vadd.f32 %v4384, %v4691
        %4693 = vdwg.mxu0
        %v4694 = vand.u32 %v768, 4294901760
        %4695 = vmatprep.subr.mxu0 %v4694
        %v4696 = vand.u32 %v767, 4294901760
        %4697 = vmatpush1.msra.mxu0 %v4696
        %v4698 = vand.u32 %v772, 4294901760
        %4699 = vmatprep.subr.mxu0 %v4698
        %v4700 = vand.u32 %v771, 4294901760
        %4701 = vmatpush1.msra.mxu0 %v4700
        %v4702 = vand.u32 %v776, 4294901760
        %4703 = vmatprep.subr.mxu0 %v4702
        %v4704 = vand.u32 %v775, 4294901760
        %4705 = vmatpush1.msra.mxu0 %v4704
        %v4706 = vand.u32 %v780, 4294901760
        %4707 = vmatprep.subr.mxu0 %v4706
        %v4708 = vand.u32 %v779, 4294901760
        %4709 = vmatpush1.msra.mxu0 %v4708
        %v4710 = vand.u32 %v784, 4294901760
        %4711 = vmatprep.subr.mxu0 %v4710
        %v4712 = vand.u32 %v783, 4294901760
        %4713 = vmatpush1.msra.mxu0 %v4712
        %v4714 = vand.u32 %v788, 4294901760
        %4715 = vmatprep.subr.mxu0 %v4714
        %v4716 = vand.u32 %v787, 4294901760
        %4717 = vmatpush1.msra.mxu0 %v4716
        %v4718 = vand.u32 %v792, 4294901760
        %4719 = vmatprep.subr.mxu0 %v4718
        %v4720 = vand.u32 %v791, 4294901760
        %4721 = vmatpush1.msra.mxu0 %v4720
        %v4722 = vand.u32 %v796, 4294901760
        %4723 = vmatprep.subr.mxu0 %v4722
        %v4724 = vand.u32 %v795, 4294901760
        %4725 = vmatpush1.msra.mxu0 %v4724
        %v4726 = vand.u32 %v800, 4294901760
        %4727 = vmatprep.subr.mxu0 %v4726
        %v4728 = vand.u32 %v799, 4294901760
        %4729 = vmatpush1.msra.mxu0 %v4728
        %4730 = vmatprep.subr.mxu0 0.0
        %4731 = vmatpush1.msra.mxu0 0.0
        %4732 = vmatprep.subr.mxu0 0.0
        %4733 = vmatpush1.msra.mxu0 0.0
        %4734 = vmatprep.subr.mxu0 0.0
        %4735 = vmatpush1.msra.mxu0 0.0
        %4736 = vmatprep.subr.mxu0 0.0
        %4737 = vmatpush1.msra.mxu0 0.0
        %4738 = vmatprep.subr.mxu0 0.0
        %4739 = vmatpush1.msra.mxu0 0.0
        %4740 = vmatprep.subr.mxu0 0.0
        %4741 = vmatpush1.msra.mxu0 0.0
        %4742 = vmatprep.subr.mxu0 0.0
        %4743 = vmatpush1.msra.mxu0 0.0
        %4744 = vmatprep.subr.mxu0 0.0
        %4745 = vmatpush1.msra.mxu0 0.0
        %4746 = vmatprep.subr.mxu0 0.0
        %4747 = vmatpush1.msra.mxu0 0.0
        %4748 = vmatprep.subr.mxu0 0.0
        %4749 = vmatpush1.msra.mxu0 0.0
        %4750 = vmatprep.subr.mxu0 0.0
        %4751 = vmatpush1.msra.mxu0 0.0
        %4752 = vmatprep.subr.mxu0 0.0
        %4753 = vmatpush1.msra.mxu0 0.0
        %4754 = vmatprep.subr.mxu0 0.0
        %4755 = vmatpush1.msra.mxu0 0.0
        %4756 = vmatprep.subr.mxu0 0.0
        %4757 = vmatpush1.msra.mxu0 0.0
        %4758 = vmatprep.subr.mxu0 0.0
        %4759 = vmatpush1.msra.mxu0 0.0
        %4760 = vmatprep.subr.mxu0 0.0
        %4761 = vmatpush1.msra.mxu0 0.0
        %4762 = vmatprep.subr.mxu0 0.0
        %4763 = vmatpush1.msra.mxu0 0.0
        %4764 = vmatprep.subr.mxu0 0.0
        %4765 = vmatpush1.msra.mxu0 0.0
        %4766 = vmatprep.subr.mxu0 0.0
        %4767 = vmatpush1.msra.mxu0 0.0
        %4768 = vmatprep.subr.mxu0 0.0
        %4769 = vmatpush1.msra.mxu0 0.0
        %4770 = vmatprep.subr.mxu0 0.0
        %4771 = vmatpush1.msra.mxu0 0.0
        %4772 = vmatprep.subr.mxu0 0.0
        %4773 = vmatpush1.msra.mxu0 0.0
        %4774 = vmatprep.subr.mxu0 0.0
        %4775 = vmatpush1.msra.mxu0 0.0
        %4776 = vmatprep.mubr.f32.mxu0 0.0
        %v4777 = vand.u32 %v992, 4294901760
        %4778 = vmatmul.mubr.f32.gmra.mrb[0].mxu0 %v4777
        %v4779 = vpop.f32.mrb[0].mxu0
        %v4780 = vadd.f32 %v4508, %v4779
        %v4781 = vpop.f32.mrb[0].mxu0
        %v4782 = vadd.f32 %v4510, %v4781
        %4783 = vmatprep.mubr.f32.mxu0 0.0
        %v4784 = vand.u32 %v995, 4294901760
        %4785 = vmatmul.mubr.f32.gmra.mrb[0].mxu0 %v4784
        %v4786 = vpop.f32.mrb[0].mxu0
        %v4787 = vadd.f32 %v4515, %v4786
        %v4788 = vpop.f32.mrb[0].mxu0
        %v4789 = vadd.f32 %v4517, %v4788
        %4790 = vmatprep.mubr.f32.mxu0 0.0
        %v4791 = vand.u32 %v998, 4294901760
        %4792 = vmatmul.mubr.f32.gmra.mrb[0].mxu0 %v4791
        %v4793 = vpop.f32.mrb[0].mxu0
        %v4794 = vadd.f32 %v4522, %v4793
        %v4795 = vpop.f32.mrb[0].mxu0
        %v4796 = vadd.f32 %v4524, %v4795
        %4797 = vmatprep.mubr.f32.mxu0 0.0
        %v4798 = vand.u32 %v1001, 4294901760
        %4799 = vmatmul.mubr.f32.gmra.mrb[0].mxu0 %v4798
        %v4800 = vpop.f32.mrb[0].mxu0
        %v4801 = vadd.f32 %v4529, %v4800
        %v4802 = vpop.f32.mrb[0].mxu0
        %v4803 = vadd.f32 %v4531, %v4802
        %4804 = vmatprep.mubr.f32.mxu0 0.0
        %v4805 = vand.u32 %v1004, 4294901760
        %4806 = vmatmul.mubr.f32.gmra.mrb[0].mxu0 %v4805
        %v4807 = vpop.f32.mrb[0].mxu0
        %v4808 = vadd.f32 %v4536, %v4807
        %v4809 = vpop.f32.mrb[0].mxu0
        %v4810 = vadd.f32 %v4538, %v4809
        %4811 = vmatprep.mubr.f32.mxu0 0.0
        %v4812 = vand.u32 %v1007, 4294901760
        %4813 = vmatmul.mubr.f32.gmra.mrb[0].mxu0 %v4812
        %v4814 = vpop.f32.mrb[0].mxu0
        %v4815 = vadd.f32 %v4543, %v4814
        %v4816 = vpop.f32.mrb[0].mxu0
        %v4817 = vadd.f32 %v4545, %v4816
        %4818 = vmatprep.mubr.f32.mxu0 0.0
        %v4819 = vand.u32 %v1010, 4294901760
        %4820 = vmatmul.mubr.f32.gmra.mrb[0].mxu0 %v4819
        %v4821 = vpop.f32.mrb[0].mxu0
        %v4822 = vadd.f32 %v4550, %v4821
        %v4823 = vpop.f32.mrb[0].mxu0
        %v4824 = vadd.f32 %v4552, %v4823
        %4825 = vmatprep.mubr.f32.mxu0 0.0
        %v4826 = vand.u32 %v1013, 4294901760
        %4827 = vmatmul.mubr.f32.gmra.mrb[0].mxu0 %v4826
        %v4828 = vpop.f32.mrb[0].mxu0
        %v4829 = vadd.f32 %v4557, %v4828
        %v4830 = vpop.f32.mrb[0].mxu0
        %v4831 = vadd.f32 %v4559, %v4830
        %4832 = vmatprep.mubr.f32.mxu0 0.0
        %v4833 = vand.u32 %v1016, 4294901760
        %4834 = vmatmul.mubr.f32.gmra.mrb[0].mxu0 %v4833
        %v4835 = vpop.f32.mrb[0].mxu0
        %v4836 = vadd.f32 %v4564, %v4835
        %v4837 = vpop.f32.mrb[0].mxu0
        %v4838 = vadd.f32 %v4566, %v4837
        %4839 = vmatprep.mubr.f32.mxu0 0.0
        %v4840 = vand.u32 %v1019, 4294901760
        %4841 = vmatmul.mubr.f32.gmra.mrb[0].mxu0 %v4840
        %v4842 = vpop.f32.mrb[0].mxu0
        %v4843 = vadd.f32 %v4571, %v4842
        %v4844 = vpop.f32.mrb[0].mxu0
        %v4845 = vadd.f32 %v4573, %v4844
        %4846 = vmatprep.mubr.f32.mxu0 0.0
        %v4847 = vand.u32 %v1022, 4294901760
        %4848 = vmatmul.mubr.f32.gmra.mrb[0].mxu0 %v4847
        %v4849 = vpop.f32.mrb[0].mxu0
        %v4850 = vadd.f32 %v4578, %v4849
        %v4851 = vpop.f32.mrb[0].mxu0
        %v4852 = vadd.f32 %v4580, %v4851
        %4853 = vmatprep.mubr.f32.mxu0 0.0
        %v4854 = vand.u32 %v1025, 4294901760
        %4855 = vmatmul.mubr.f32.gmra.mrb[0].mxu0 %v4854
        %v4856 = vpop.f32.mrb[0].mxu0
        %v4857 = vadd.f32 %v4585, %v4856
        %v4858 = vpop.f32.mrb[0].mxu0
        %v4859 = vadd.f32 %v4587, %v4858
        %4860 = vmatprep.mubr.f32.mxu0 0.0
        %v4861 = vand.u32 %v1028, 4294901760
        %4862 = vmatmul.mubr.f32.gmra.mrb[0].mxu0 %v4861
        %v4863 = vpop.f32.mrb[0].mxu0
        %v4864 = vadd.f32 %v4592, %v4863
        %v4865 = vpop.f32.mrb[0].mxu0
        %v4866 = vadd.f32 %v4594, %v4865
        %4867 = vmatprep.mubr.f32.mxu0 0.0
        %v4868 = vand.u32 %v1031, 4294901760
        %4869 = vmatmul.mubr.f32.gmra.mrb[0].mxu0 %v4868
        %v4870 = vpop.f32.mrb[0].mxu0
        %v4871 = vadd.f32 %v4599, %v4870
        %v4872 = vpop.f32.mrb[0].mxu0
        %v4873 = vadd.f32 %v4601, %v4872
        %4874 = vmatprep.mubr.f32.mxu0 0.0
        %v4875 = vand.u32 %v1034, 4294901760
        %4876 = vmatmul.mubr.f32.gmra.mrb[0].mxu0 %v4875
        %v4877 = vpop.f32.mrb[0].mxu0
        %v4878 = vadd.f32 %v4606, %v4877
        %v4879 = vpop.f32.mrb[0].mxu0
        %v4880 = vadd.f32 %v4608, %v4879
        %4881 = vmatprep.mubr.f32.mxu0 0.0
        %v4882 = vand.u32 %v1037, 4294901760
        %4883 = vmatmul.mubr.f32.gmra.mrb[0].mxu0 %v4882
        %v4884 = vpop.f32.mrb[0].mxu0
        %v4885 = vadd.f32 %v4613, %v4884
        %v4886 = vpop.f32.mrb[0].mxu0
        %v4887 = vadd.f32 %v4615, %v4886
        %4888 = vmatprep.mubr.f32.mxu0 0.0
        %v4889 = vand.u32 %v1040, 4294901760
        %4890 = vmatmul.mubr.f32.gmra.mrb[0].mxu0 %v4889
        %v4891 = vpop.f32.mrb[0].mxu0
        %v4892 = vadd.f32 %v4620, %v4891
        %v4893 = vpop.f32.mrb[0].mxu0
        %v4894 = vadd.f32 %v4622, %v4893
        %4895 = vmatprep.mubr.f32.mxu0 0.0
        %v4896 = vand.u32 %v1043, 4294901760
        %4897 = vmatmul.mubr.f32.gmra.mrb[0].mxu0 %v4896
        %v4898 = vpop.f32.mrb[0].mxu0
        %v4899 = vadd.f32 %v4627, %v4898
        %v4900 = vpop.f32.mrb[0].mxu0
        %v4901 = vadd.f32 %v4629, %v4900
        %4902 = vmatprep.mubr.f32.mxu0 0.0
        %v4903 = vand.u32 %v1046, 4294901760
        %4904 = vmatmul.mubr.f32.gmra.mrb[0].mxu0 %v4903
        %v4905 = vpop.f32.mrb[0].mxu0
        %v4906 = vadd.f32 %v4634, %v4905
        %v4907 = vpop.f32.mrb[0].mxu0
        %v4908 = vadd.f32 %v4636, %v4907
        %4909 = vmatprep.mubr.f32.mxu0 0.0
        %v4910 = vand.u32 %v1049, 4294901760
        %4911 = vmatmul.mubr.f32.gmra.mrb[0].mxu0 %v4910
        %v4912 = vpop.f32.mrb[0].mxu0
        %v4913 = vadd.f32 %v4641, %v4912
        %v4914 = vpop.f32.mrb[0].mxu0
        %v4915 = vadd.f32 %v4643, %v4914
        %4916 = vmatprep.mubr.f32.mxu0 0.0
        %v4917 = vand.u32 %v1052, 4294901760
        %4918 = vmatmul.mubr.f32.gmra.mrb[0].mxu0 %v4917
        %v4919 = vpop.f32.mrb[0].mxu0
        %v4920 = vadd.f32 %v4648, %v4919
        %v4921 = vpop.f32.mrb[0].mxu0
        %v4922 = vadd.f32 %v4650, %v4921
        %4923 = vmatprep.mubr.f32.mxu0 0.0
        %v4924 = vand.u32 %v1055, 4294901760
        %4925 = vmatmul.mubr.f32.gmra.mrb[0].mxu0 %v4924
        %v4926 = vpop.f32.mrb[0].mxu0
        %v4927 = vadd.f32 %v4655, %v4926
        %v4928 = vpop.f32.mrb[0].mxu0
        %v4929 = vadd.f32 %v4657, %v4928
        %4930 = vmatprep.mubr.f32.mxu0 0.0
        %v4931 = vand.u32 %v1058, 4294901760
        %4932 = vmatmul.mubr.f32.gmra.mrb[0].mxu0 %v4931
        %v4933 = vpop.f32.mrb[0].mxu0
        %v4934 = vadd.f32 %v4662, %v4933
        %v4935 = vpop.f32.mrb[0].mxu0
        %v4936 = vadd.f32 %v4664, %v4935
        %4937 = vmatprep.mubr.f32.mxu0 0.0
        %v4938 = vand.u32 %v1061, 4294901760
        %4939 = vmatmul.mubr.f32.gmra.mrb[0].mxu0 %v4938
        %v4940 = vpop.f32.mrb[0].mxu0
        %v4941 = vadd.f32 %v4669, %v4940
        %v4942 = vpop.f32.mrb[0].mxu0
        %v4943 = vadd.f32 %v4671, %v4942
        %4944 = vmatprep.mubr.f32.mxu0 0.0
        %v4945 = vand.u32 %v1064, 4294901760
        %4946 = vmatmul.mubr.f32.gmra.mrb[0].mxu0 %v4945
        %v4947 = vpop.f32.mrb[0].mxu0
        %v4948 = vadd.f32 %v4676, %v4947
        %v4949 = vpop.f32.mrb[0].mxu0
        %v4950 = vadd.f32 %v4678, %v4949
        %4951 = vmatprep.mubr.f32.mxu0 0.0
        %v4952 = vand.u32 %v1067, 4294901760
        %4953 = vmatmul.mubr.f32.gmra.mrb[0].mxu0 %v4952
        %v4954 = vpop.f32.mrb[0].mxu0
        %v4955 = vadd.f32 %v4683, %v4954
        %v4956 = vpop.f32.mrb[0].mxu0
        %v4957 = vadd.f32 %v4685, %v4956
        %4958 = vmatprep.mubr.f32.mxu0 0.0
        %v4959 = vand.u32 %v1070, 4294901760
        %4960 = vmatmul.mubr.f32.gmra.mrb[0].mxu0 %v4959
        %v4961 = vpop.f32.mrb[0].mxu0
        %v4962 = vadd.f32 %v4690, %v4961
        %v4963 = vpop.f32.mrb[0].mxu0
        %v4964 = vadd.f32 %v4692, %v4963
        %4965 = vdwg.mxu0
        %v4966 = vmul.f32 %v2833, %v2833
        %v4967 = vmul.f32 %v2835, %v2835
        %v4968 = vmul.f32 %v4780, %v4780
        %v4969 = vmul.f32 %v4782, %v4782
        %v4970 = vmul.f32 %v2840, %v2840
        %v4971 = vmul.f32 %v2842, %v2842
        %v4972 = vmul.f32 %v4787, %v4787
        %v4973 = vmul.f32 %v4789, %v4789
        %v4974 = vmul.f32 %v2847, %v2847
        %v4975 = vmul.f32 %v2849, %v2849
        %v4976 = vmul.f32 %v4794, %v4794
        %v4977 = vmul.f32 %v4796, %v4796
        %v4978 = vmul.f32 %v2854, %v2854
        %v4979 = vmul.f32 %v2856, %v2856
        %v4980 = vmul.f32 %v4801, %v4801
        %v4981 = vmul.f32 %v4803, %v4803
        %v4982 = vmul.f32 %v2861, %v2861
        %v4983 = vmul.f32 %v2863, %v2863
        %v4984 = vmul.f32 %v4808, %v4808
        %v4985 = vmul.f32 %v4810, %v4810
        %v4986 = vmul.f32 %v2868, %v2868
        %v4987 = vmul.f32 %v2870, %v2870
        %v4988 = vmul.f32 %v4815, %v4815
        %v4989 = vmul.f32 %v4817, %v4817
        %v4990 = vmul.f32 %v2875, %v2875
        %v4991 = vmul.f32 %v2877, %v2877
        %v4992 = vmul.f32 %v4822, %v4822
        %v4993 = vmul.f32 %v4824, %v4824
        %v4994 = vmul.f32 %v2882, %v2882
        %v4995 = vmul.f32 %v2884, %v2884
        %v4996 = vmul.f32 %v4829, %v4829
        %v4997 = vmul.f32 %v4831, %v4831
        %v4998 = vmul.f32 %v2889, %v2889
        %v4999 = vmul.f32 %v2891, %v2891
        %v5000 = vmul.f32 %v4836, %v4836
        %v5001 = vmul.f32 %v4838, %v4838
        %v5002 = vmul.f32 %v2896, %v2896
        %v5003 = vmul.f32 %v2898, %v2898
        %v5004 = vmul.f32 %v4843, %v4843
        %v5005 = vmul.f32 %v4845, %v4845
        %v5006 = vmul.f32 %v2903, %v2903
        %v5007 = vmul.f32 %v2905, %v2905
        %v5008 = vmul.f32 %v4850, %v4850
        %v5009 = vmul.f32 %v4852, %v4852
        %v5010 = vmul.f32 %v2910, %v2910
        %v5011 = vmul.f32 %v2912, %v2912
        %v5012 = vmul.f32 %v4857, %v4857
        %v5013 = vmul.f32 %v4859, %v4859
        %v5014 = vmul.f32 %v2917, %v2917
        %v5015 = vmul.f32 %v2919, %v2919
        %v5016 = vmul.f32 %v4864, %v4864
        %v5017 = vmul.f32 %v4866, %v4866
        %v5018 = vmul.f32 %v2924, %v2924
        %v5019 = vmul.f32 %v2926, %v2926
        %v5020 = vmul.f32 %v4871, %v4871
        %v5021 = vmul.f32 %v4873, %v4873
        %v5022 = vmul.f32 %v2931, %v2931
        %v5023 = vmul.f32 %v2933, %v2933
        %v5024 = vmul.f32 %v4878, %v4878
        %v5025 = vmul.f32 %v4880, %v4880
        %v5026 = vmul.f32 %v2938, %v2938
        %v5027 = vmul.f32 %v2940, %v2940
        %v5028 = vmul.f32 %v4885, %v4885
        %v5029 = vmul.f32 %v4887, %v4887
        %v5030 = vmul.f32 %v2945, %v2945
        %v5031 = vmul.f32 %v2947, %v2947
        %v5032 = vmul.f32 %v4892, %v4892
        %v5033 = vmul.f32 %v4894, %v4894
        %v5034 = vmul.f32 %v2952, %v2952
        %v5035 = vmul.f32 %v2954, %v2954
        %v5036 = vmul.f32 %v4899, %v4899
        %v5037 = vmul.f32 %v4901, %v4901
        %v5038 = vmul.f32 %v2959, %v2959
        %v5039 = vmul.f32 %v2961, %v2961
        %v5040 = vmul.f32 %v4906, %v4906
        %v5041 = vmul.f32 %v4908, %v4908
        %v5042 = vmul.f32 %v2966, %v2966
        %v5043 = vmul.f32 %v2968, %v2968
        %v5044 = vmul.f32 %v4913, %v4913
        %v5045 = vmul.f32 %v4915, %v4915
        %v5046 = vmul.f32 %v2973, %v2973
        %v5047 = vmul.f32 %v2975, %v2975
        %v5048 = vmul.f32 %v4920, %v4920
        %v5049 = vmul.f32 %v4922, %v4922
        %v5050 = vmul.f32 %v2980, %v2980
        %v5051 = vmul.f32 %v2982, %v2982
        %v5052 = vmul.f32 %v4927, %v4927
        %v5053 = vmul.f32 %v4929, %v4929
        %v5054 = vmul.f32 %v2987, %v2987
        %v5055 = vmul.f32 %v2989, %v2989
        %v5056 = vmul.f32 %v4934, %v4934
        %v5057 = vmul.f32 %v4936, %v4936
        %v5058 = vmul.f32 %v2994, %v2994
        %v5059 = vmul.f32 %v2996, %v2996
        %v5060 = vmul.f32 %v4941, %v4941
        %v5061 = vmul.f32 %v4943, %v4943
        %v5062 = vmul.f32 %v3001, %v3001
        %v5063 = vmul.f32 %v3003, %v3003
        %v5064 = vmul.f32 %v4948, %v4948
        %v5065 = vmul.f32 %v4950, %v4950
        %v5066 = vmul.f32 %v3008, %v3008
        %v5067 = vmul.f32 %v3010, %v3010
        %v5068 = vmul.f32 %v4955, %v4955
        %v5069 = vmul.f32 %v4957, %v4957
        %v5070 = vmul.f32 %v3015, %v3015
        %v5071 = vmul.f32 %v3017, %v3017
        %v5072 = vmul.f32 %v4962, %v4962
        %v5073 = vmul.f32 %v4964, %v4964
        %v5074 = vld [vmem:[%s3] sm:$0xff]
        %v5075 = vld [vmem:[%s3 + $0x8] sm:$0xff]
        %v5076 = vld [vmem:[%s3 + $0x10] sm:$0xff]
        %v5077 = vld [vmem:[%s3 + $0x18] sm:$0xff]
        %v5078 = vld [vmem:[%s3 + $0x20] sm:$0xff]
        %v5079 = vld [vmem:[%s3 + $0x28] sm:$0xff]
        %v5080 = vld [vmem:[%s3 + $0x30] sm:$0xff]
        %v5081 = vld [vmem:[%s3 + $0x38] sm:$0xff]
        %v5082 = vld [vmem:[%s3 + $0x40] sm:$0xff]
        %v5083 = vld [vmem:[%s3 + $0x48] sm:$0xff]
        %v5084 = vld [vmem:[%s3 + $0x50] sm:$0xff]
        %v5085 = vld [vmem:[%s3 + $0x58] sm:$0xff]
        %v5086 = vld [vmem:[%s3 + $0x60] sm:$0xff]
        %v5087 = vld [vmem:[%s3 + $0x68] sm:$0xff]
        %v5088 = vld [vmem:[%s3 + $0x70] sm:$0xff]
        %v5089 = vld [vmem:[%s3 + $0x78] sm:$0xff]
        %v5090 = vld [vmem:[%s3 + $0x80] sm:$0xff]
        %v5091 = vld [vmem:[%s3 + $0x88] sm:$0xff]
        %v5092 = vld [vmem:[%s4] sm:$0xff]
        %v5093 = vld [vmem:[%s4 + $0x8] sm:$0xff]
        %v5094 = vld [vmem:[%s4 + $0x10] sm:$0xff]
        %v5095 = vld [vmem:[%s4 + $0x18] sm:$0xff]
        %v5096 = vld [vmem:[%s4 + $0x20] sm:$0xff]
        %v5097 = vld [vmem:[%s4 + $0x28] sm:$0xff]
        %v5098 = vld [vmem:[%s4 + $0x30] sm:$0xff]
        %v5099 = vld [vmem:[%s4 + $0x38] sm:$0xff]
        %v5100 = vld [vmem:[%s4 + $0x40] sm:$0xff]
        %v5102 = vsel %vm990, %v5092, 0
        %v5105 = vsel %vm990, %v5093, 0
        %v5108 = vsel %vm990, %v5094, 0
        %v5111 = vsel %vm990, %v5095, 0
        %v5114 = vsel %vm990, %v5096, 0
        %v5117 = vsel %vm990, %v5097, 0
        %v5120 = vsel %vm990, %v5098, 0
        %v5123 = vsel %vm990, %v5099, 0
        %v5126 = vsel %vm990, %v5100, 0
        %v5128 = vand.u32 %v766, 4294901760
        %5129 = vmatprep.subr.mxu0 %v5128
        %v5130 = vand.u32 %v765, 4294901760
        %5131 = vmatpush1.msra.mxu0 %v5130
        %v5132 = vand.u32 %v770, 4294901760
        %5133 = vmatprep.subr.mxu0 %v5132
        %v5134 = vand.u32 %v769, 4294901760
        %5135 = vmatpush1.msra.mxu0 %v5134
        %v5136 = vand.u32 %v774, 4294901760
        %5137 = vmatprep.subr.mxu0 %v5136
        %v5138 = vand.u32 %v773, 4294901760
        %5139 = vmatpush1.msra.mxu0 %v5138
        %v5140 = vand.u32 %v778, 4294901760
        %5141 = vmatprep.subr.mxu0 %v5140
        %v5142 = vand.u32 %v777, 4294901760
        %5143 = vmatpush1.msra.mxu0 %v5142
        %v5144 = vand.u32 %v782, 4294901760
        %5145 = vmatprep.subr.mxu0 %v5144
        %v5146 = vand.u32 %v781, 4294901760
        %5147 = vmatpush1.msra.mxu0 %v5146
        %v5148 = vand.u32 %v786, 4294901760
        %5149 = vmatprep.subr.mxu0 %v5148
        %v5150 = vand.u32 %v785, 4294901760
        %5151 = vmatpush1.msra.mxu0 %v5150
        %v5152 = vand.u32 %v790, 4294901760
        %5153 = vmatprep.subr.mxu0 %v5152
        %v5154 = vand.u32 %v789, 4294901760
        %5155 = vmatpush1.msra.mxu0 %v5154
        %v5156 = vand.u32 %v794, 4294901760
        %5157 = vmatprep.subr.mxu0 %v5156
        %v5158 = vand.u32 %v793, 4294901760
        %5159 = vmatpush1.msra.mxu0 %v5158
        %v5160 = vand.u32 %v798, 4294901760
        %5161 = vmatprep.subr.mxu0 %v5160
        %v5162 = vand.u32 %v797, 4294901760
        %5163 = vmatpush1.msra.mxu0 %v5162
        %5164 = vmatprep.subr.mxu0 0.0
        %5165 = vmatpush1.msra.mxu0 0.0
        %5166 = vmatprep.subr.mxu0 0.0
        %5167 = vmatpush1.msra.mxu0 0.0
        %5168 = vmatprep.subr.mxu0 0.0
        %5169 = vmatpush1.msra.mxu0 0.0
        %5170 = vmatprep.subr.mxu0 0.0
        %5171 = vmatpush1.msra.mxu0 0.0
        %5172 = vmatprep.subr.mxu0 0.0
        %5173 = vmatpush1.msra.mxu0 0.0
        %5174 = vmatprep.subr.mxu0 0.0
        %5175 = vmatpush1.msra.mxu0 0.0
        %5176 = vmatprep.subr.mxu0 0.0
        %5177 = vmatpush1.msra.mxu0 0.0
        %5178 = vmatprep.subr.mxu0 0.0
        %5179 = vmatpush1.msra.mxu0 0.0
        %5180 = vmatprep.subr.mxu0 0.0
        %5181 = vmatpush1.msra.mxu0 0.0
        %5182 = vmatprep.subr.mxu0 0.0
        %5183 = vmatpush1.msra.mxu0 0.0
        %5184 = vmatprep.subr.mxu0 0.0
        %5185 = vmatpush1.msra.mxu0 0.0
        %5186 = vmatprep.subr.mxu0 0.0
        %5187 = vmatpush1.msra.mxu0 0.0
        %5188 = vmatprep.subr.mxu0 0.0
        %5189 = vmatpush1.msra.mxu0 0.0
        %5190 = vmatprep.subr.mxu0 0.0
        %5191 = vmatpush1.msra.mxu0 0.0
        %5192 = vmatprep.subr.mxu0 0.0
        %5193 = vmatpush1.msra.mxu0 0.0
        %5194 = vmatprep.subr.mxu0 0.0
        %5195 = vmatpush1.msra.mxu0 0.0
        %5196 = vmatprep.subr.mxu0 0.0
        %5197 = vmatpush1.msra.mxu0 0.0
        %5198 = vmatprep.subr.mxu0 0.0
        %5199 = vmatpush1.msra.mxu0 0.0
        %5200 = vmatprep.subr.mxu0 0.0
        %5201 = vmatpush1.msra.mxu0 0.0
        %5202 = vmatprep.subr.mxu0 0.0
        %5203 = vmatpush1.msra.mxu0 0.0
        %5204 = vmatprep.subr.mxu0 0.0
        %5205 = vmatpush1.msra.mxu0 0.0
        %5206 = vmatprep.subr.mxu0 0.0
        %5207 = vmatpush1.msra.mxu0 0.0
        %5208 = vmatprep.subr.mxu0 0.0
        %5209 = vmatpush1.msra.mxu0 0.0
        %5210 = vmatprep.mubr.f32.mxu0 0.0
        %v5211 = vand.u32 %v5102, 4294901760
        %v5212 = vsub.f32 %v5102, %v5211
        %v5213 = vand.u32 %v5212, 4294901760
        %v5214 = vsub.f32 %v5212, %v5213
        %v5215 = vand.u32 %v5214, 4294901760
        %5216 = vmatmul.mubr.f32.gmra.mrb[0].mxu0 %v5215
        %v5217 = vpop.f32.mrb[0].mxu0
        %v5218 = vadd.f32 0.0, %v5217
        %v5219 = vpop.f32.mrb[0].mxu0
        %v5220 = vadd.f32 0.0, %v5219
        %5221 = vmatprep.mubr.f32.mxu0 0.0
        %v5222 = vand.u32 %v5105, 4294901760
        %v5223 = vsub.f32 %v5105, %v5222
        %v5224 = vand.u32 %v5223, 4294901760
        %v5225 = vsub.f32 %v5223, %v5224
        %v5226 = vand.u32 %v5225, 4294901760
        %5227 = vmatmul.mubr.f32.gmra.mrb[0].mxu0 %v5226
        %v5228 = vpop.f32.mrb[0].mxu0
        %v5229 = vadd.f32 0.0, %v5228
        %v5230 = vpop.f32.mrb[0].mxu0
        %v5231 = vadd.f32 0.0, %v5230
        %5232 = vmatprep.mubr.f32.mxu0 0.0
        %v5233 = vand.u32 %v5108, 4294901760
        %v5234 = vsub.f32 %v5108, %v5233
        %v5235 = vand.u32 %v5234, 4294901760
        %v5236 = vsub.f32 %v5234, %v5235
        %v5237 = vand.u32 %v5236, 4294901760
        %5238 = vmatmul.mubr.f32.gmra.mrb[0].mxu0 %v5237
        %v5239 = vpop.f32.mrb[0].mxu0
        %v5240 = vadd.f32 0.0, %v5239
        %v5241 = vpop.f32.mrb[0].mxu0
        %v5242 = vadd.f32 0.0, %v5241
        %5243 = vmatprep.mubr.f32.mxu0 0.0
        %v5244 = vand.u32 %v5111, 4294901760
        %v5245 = vsub.f32 %v5111, %v5244
        %v5246 = vand.u32 %v5245, 4294901760
        %v5247 = vsub.f32 %v5245, %v5246
        %v5248 = vand.u32 %v5247, 4294901760
        %5249 = vmatmul.mubr.f32.gmra.mrb[0].mxu0 %v5248
        %v5250 = vpop.f32.mrb[0].mxu0
        %v5251 = vadd.f32 0.0, %v5250
        %v5252 = vpop.f32.mrb[0].mxu0
        %v5253 = vadd.f32 0.0, %v5252
        %5254 = vmatprep.mubr.f32.mxu0 0.0
        %v5255 = vand.u32 %v5114, 4294901760
        %v5256 = vsub.f32 %v5114, %v5255
        %v5257 = vand.u32 %v5256, 4294901760
        %v5258 = vsub.f32 %v5256, %v5257
        %v5259 = vand.u32 %v5258, 4294901760
        %5260 = vmatmul.mubr.f32.gmra.mrb[0].mxu0 %v5259
        %v5261 = vpop.f32.mrb[0].mxu0
        %v5262 = vadd.f32 0.0, %v5261
        %v5263 = vpop.f32.mrb[0].mxu0
        %v5264 = vadd.f32 0.0, %v5263
        %5265 = vmatprep.mubr.f32.mxu0 0.0
        %v5266 = vand.u32 %v5117, 4294901760
        %v5267 = vsub.f32 %v5117, %v5266
        %v5268 = vand.u32 %v5267, 4294901760
        %v5269 = vsub.f32 %v5267, %v5268
        %v5270 = vand.u32 %v5269, 4294901760
        %5271 = vmatmul.mubr.f32.gmra.mrb[0].mxu0 %v5270
        %v5272 = vpop.f32.mrb[0].mxu0
        %v5273 = vadd.f32 0.0, %v5272
        %v5274 = vpop.f32.mrb[0].mxu0
        %v5275 = vadd.f32 0.0, %v5274
        %5276 = vmatprep.mubr.f32.mxu0 0.0
        %v5277 = vand.u32 %v5120, 4294901760
        %v5278 = vsub.f32 %v5120, %v5277
        %v5279 = vand.u32 %v5278, 4294901760
        %v5280 = vsub.f32 %v5278, %v5279
        %v5281 = vand.u32 %v5280, 4294901760
        %5282 = vmatmul.mubr.f32.gmra.mrb[0].mxu0 %v5281
        %v5283 = vpop.f32.mrb[0].mxu0
        %v5284 = vadd.f32 0.0, %v5283
        %v5285 = vpop.f32.mrb[0].mxu0
        %v5286 = vadd.f32 0.0, %v5285
        %5287 = vmatprep.mubr.f32.mxu0 0.0
        %v5288 = vand.u32 %v5123, 4294901760
        %v5289 = vsub.f32 %v5123, %v5288
        %v5290 = vand.u32 %v5289, 4294901760
        %v5291 = vsub.f32 %v5289, %v5290
        %v5292 = vand.u32 %v5291, 4294901760
        %5293 = vmatmul.mubr.f32.gmra.mrb[0].mxu0 %v5292
        %v5294 = vpop.f32.mrb[0].mxu0
        %v5295 = vadd.f32 0.0, %v5294
        %v5296 = vpop.f32.mrb[0].mxu0
        %v5297 = vadd.f32 0.0, %v5296
        %5298 = vmatprep.mubr.f32.mxu0 0.0
        %v5299 = vand.u32 %v5126, 4294901760
        %v5300 = vsub.f32 %v5126, %v5299
        %v5301 = vand.u32 %v5300, 4294901760
        %v5302 = vsub.f32 %v5300, %v5301
        %v5303 = vand.u32 %v5302, 4294901760
        %5304 = vmatmul.mubr.f32.gmra.mrb[0].mxu0 %v5303
        %v5305 = vpop.f32.mrb[0].mxu0
        %v5306 = vadd.f32 0.0, %v5305
        %v5307 = vpop.f32.mrb[0].mxu0
        %v5308 = vadd.f32 0.0, %v5307
        %5309 = vdwg.mxu0
        %v5310 = vand.u32 %v766, 4294901760
        %v5311 = vsub.f32 %v766, %v5310
        %v5312 = vand.u32 %v5311, 4294901760
        %v5313 = vsub.f32 %v5311, %v5312
        %v5314 = vand.u32 %v5313, 4294901760
        %5315 = vmatprep.subr.mxu0 %v5314
        %v5316 = vand.u32 %v765, 4294901760
        %v5317 = vsub.f32 %v765, %v5316
        %v5318 = vand.u32 %v5317, 4294901760
        %v5319 = vsub.f32 %v5317, %v5318
        %v5320 = vand.u32 %v5319, 4294901760
        %5321 = vmatpush1.msra.mxu0 %v5320
        %v5322 = vand.u32 %v770, 4294901760
        %v5323 = vsub.f32 %v770, %v5322
        %v5324 = vand.u32 %v5323, 4294901760
        %v5325 = vsub.f32 %v5323, %v5324
        %v5326 = vand.u32 %v5325, 4294901760
        %5327 = vmatprep.subr.mxu0 %v5326
        %v5328 = vand.u32 %v769, 4294901760
        %v5329 = vsub.f32 %v769, %v5328
        %v5330 = vand.u32 %v5329, 4294901760
        %v5331 = vsub.f32 %v5329, %v5330
        %v5332 = vand.u32 %v5331, 4294901760
        %5333 = vmatpush1.msra.mxu0 %v5332
        %v5334 = vand.u32 %v774, 4294901760
        %v5335 = vsub.f32 %v774, %v5334
        %v5336 = vand.u32 %v5335, 4294901760
        %v5337 = vsub.f32 %v5335, %v5336
        %v5338 = vand.u32 %v5337, 4294901760
        %5339 = vmatprep.subr.mxu0 %v5338
        %v5340 = vand.u32 %v773, 4294901760
        %v5341 = vsub.f32 %v773, %v5340
        %v5342 = vand.u32 %v5341, 4294901760
        %v5343 = vsub.f32 %v5341, %v5342
        %v5344 = vand.u32 %v5343, 4294901760
        %5345 = vmatpush1.msra.mxu0 %v5344
        %v5346 = vand.u32 %v778, 4294901760
        %v5347 = vsub.f32 %v778, %v5346
        %v5348 = vand.u32 %v5347, 4294901760
        %v5349 = vsub.f32 %v5347, %v5348
        %v5350 = vand.u32 %v5349, 4294901760
        %5351 = vmatprep.subr.mxu0 %v5350
        %v5352 = vand.u32 %v777, 4294901760
        %v5353 = vsub.f32 %v777, %v5352
        %v5354 = vand.u32 %v5353, 4294901760
        %v5355 = vsub.f32 %v5353, %v5354
        %v5356 = vand.u32 %v5355, 4294901760
        %5357 = vmatpush1.msra.mxu0 %v5356
        %v5358 = vand.u32 %v782, 4294901760
        %v5359 = vsub.f32 %v782, %v5358
        %v5360 = vand.u32 %v5359, 4294901760
        %v5361 = vsub.f32 %v5359, %v5360
        %v5362 = vand.u32 %v5361, 4294901760
        %5363 = vmatprep.subr.mxu0 %v5362
        %v5364 = vand.u32 %v781, 4294901760
        %v5365 = vsub.f32 %v781, %v5364
        %v5366 = vand.u32 %v5365, 4294901760
        %v5367 = vsub.f32 %v5365, %v5366
        %v5368 = vand.u32 %v5367, 4294901760
        %5369 = vmatpush1.msra.mxu0 %v5368
        %v5370 = vand.u32 %v786, 4294901760
        %v5371 = vsub.f32 %v786, %v5370
        %v5372 = vand.u32 %v5371, 4294901760
        %v5373 = vsub.f32 %v5371, %v5372
        %v5374 = vand.u32 %v5373, 4294901760
        %5375 = vmatprep.subr.mxu0 %v5374
        %v5376 = vand.u32 %v785, 4294901760
        %v5377 = vsub.f32 %v785, %v5376
        %v5378 = vand.u32 %v5377, 4294901760
        %v5379 = vsub.f32 %v5377, %v5378
        %v5380 = vand.u32 %v5379, 4294901760
        %5381 = vmatpush1.msra.mxu0 %v5380
        %v5382 = vand.u32 %v790, 4294901760
        %v5383 = vsub.f32 %v790, %v5382
        %v5384 = vand.u32 %v5383, 4294901760
        %v5385 = vsub.f32 %v5383, %v5384
        %v5386 = vand.u32 %v5385, 4294901760
        %5387 = vmatprep.subr.mxu0 %v5386
        %v5388 = vand.u32 %v789, 4294901760
        %v5389 = vsub.f32 %v789, %v5388
        %v5390 = vand.u32 %v5389, 4294901760
        %v5391 = vsub.f32 %v5389, %v5390
        %v5392 = vand.u32 %v5391, 4294901760
        %5393 = vmatpush1.msra.mxu0 %v5392
        %v5394 = vand.u32 %v794, 4294901760
        %v5395 = vsub.f32 %v794, %v5394
        %v5396 = vand.u32 %v5395, 4294901760
        %v5397 = vsub.f32 %v5395, %v5396
        %v5398 = vand.u32 %v5397, 4294901760
        %5399 = vmatprep.subr.mxu0 %v5398
        %v5400 = vand.u32 %v793, 4294901760
        %v5401 = vsub.f32 %v793, %v5400
        %v5402 = vand.u32 %v5401, 4294901760
        %v5403 = vsub.f32 %v5401, %v5402
        %v5404 = vand.u32 %v5403, 4294901760
        %5405 = vmatpush1.msra.mxu0 %v5404
        %v5406 = vand.u32 %v798, 4294901760
        %v5407 = vsub.f32 %v798, %v5406
        %v5408 = vand.u32 %v5407, 4294901760
        %v5409 = vsub.f32 %v5407, %v5408
        %v5410 = vand.u32 %v5409, 4294901760
        %5411 = vmatprep.subr.mxu0 %v5410
        %v5412 = vand.u32 %v797, 4294901760
        %v5413 = vsub.f32 %v797, %v5412
        %v5414 = vand.u32 %v5413, 4294901760
        %v5415 = vsub.f32 %v5413, %v5414
        %v5416 = vand.u32 %v5415, 4294901760
        %5417 = vmatpush1.msra.mxu0 %v5416
        %5418 = vmatprep.subr.mxu0 0.0
        %5419 = vmatpush1.msra.mxu0 0.0
        %5420 = vmatprep.subr.mxu0 0.0
        %5421 = vmatpush1.msra.mxu0 0.0
        %5422 = vmatprep.subr.mxu0 0.0
        %5423 = vmatpush1.msra.mxu0 0.0
        %5424 = vmatprep.subr.mxu0 0.0
        %5425 = vmatpush1.msra.mxu0 0.0
        %5426 = vmatprep.subr.mxu0 0.0
        %5427 = vmatpush1.msra.mxu0 0.0
        %5428 = vmatprep.subr.mxu0 0.0
        %5429 = vmatpush1.msra.mxu0 0.0
        %5430 = vmatprep.subr.mxu0 0.0
        %5431 = vmatpush1.msra.mxu0 0.0
        %5432 = vmatprep.subr.mxu0 0.0
        %5433 = vmatpush1.msra.mxu0 0.0
        %5434 = vmatprep.subr.mxu0 0.0
        %5435 = vmatpush1.msra.mxu0 0.0
        %5436 = vmatprep.subr.mxu0 0.0
        %5437 = vmatpush1.msra.mxu0 0.0
        %5438 = vmatprep.subr.mxu0 0.0
        %5439 = vmatpush1.msra.mxu0 0.0
        %5440 = vmatprep.subr.mxu0 0.0
        %5441 = vmatpush1.msra.mxu0 0.0
        %5442 = vmatprep.subr.mxu0 0.0
        %5443 = vmatpush1.msra.mxu0 0.0
        %5444 = vmatprep.subr.mxu0 0.0
        %5445 = vmatpush1.msra.mxu0 0.0
        %5446 = vmatprep.subr.mxu0 0.0
        %5447 = vmatpush1.msra.mxu0 0.0
        %5448 = vmatprep.subr.mxu0 0.0
        %5449 = vmatpush1.msra.mxu0 0.0
        %5450 = vmatprep.subr.mxu0 0.0
        %5451 = vmatpush1.msra.mxu0 0.0
        %5452 = vmatprep.subr.mxu0 0.0
        %5453 = vmatpush1.msra.mxu0 0.0
        %5454 = vmatprep.subr.mxu0 0.0
        %5455 = vmatpush1.msra.mxu0 0.0
        %5456 = vmatprep.subr.mxu0 0.0
        %5457 = vmatpush1.msra.mxu0 0.0
        %5458 = vmatprep.subr.mxu0 0.0
        %5459 = vmatpush1.msra.mxu0 0.0
        %5460 = vmatprep.subr.mxu0 0.0
        %5461 = vmatpush1.msra.mxu0 0.0
        %5462 = vmatprep.subr.mxu0 0.0
        %5463 = vmatpush1.msra.mxu0 0.0
        %5464 = vmatprep.mubr.f32.mxu0 0.0
        %v5465 = vand.u32 %v5102, 4294901760
        %5466 = vmatmul.mubr.f32.gmra.mrb[0].mxu0 %v5465
        %v5467 = vpop.f32.mrb[0].mxu0
        %v5468 = vadd.f32 %v5218, %v5467
        %v5469 = vpop.f32.mrb[0].mxu0
        %v5470 = vadd.f32 %v5220, %v5469
        %5471 = vmatprep.mubr.f32.mxu0 0.0
        %v5472 = vand.u32 %v5105, 4294901760
        %5473 = vmatmul.mubr.f32.gmra.mrb[0].mxu0 %v5472
        %v5474 = vpop.f32.mrb[0].mxu0
        %v5475 = vadd.f32 %v5229, %v5474
        %v5476 = vpop.f32.mrb[0].mxu0
        %v5477 = vadd.f32 %v5231, %v5476
        %5478 = vmatprep.mubr.f32.mxu0 0.0
        %v5479 = vand.u32 %v5108, 4294901760
        %5480 = vmatmul.mubr.f32.gmra.mrb[0].mxu0 %v5479
        %v5481 = vpop.f32.mrb[0].mxu0
        %v5482 = vadd.f32 %v5240, %v5481
        %v5483 = vpop.f32.mrb[0].mxu0
        %v5484 = vadd.f32 %v5242, %v5483
        %5485 = vmatprep.mubr.f32.mxu0 0.0
        %v5486 = vand.u32 %v5111, 4294901760
        %5487 = vmatmul.mubr.f32.gmra.mrb[0].mxu0 %v5486
        %v5488 = vpop.f32.mrb[0].mxu0
        %v5489 = vadd.f32 %v5251, %v5488
        %v5490 = vpop.f32.mrb[0].mxu0
        %v5491 = vadd.f32 %v5253, %v5490
        %5492 = vmatprep.mubr.f32.mxu0 0.0
        %v5493 = vand.u32 %v5114, 4294901760
        %5494 = vmatmul.mubr.f32.gmra.mrb[0].mxu0 %v5493
        %v5495 = vpop.f32.mrb[0].mxu0
        %v5496 = vadd.f32 %v5262, %v5495
        %v5497 = vpop.f32.mrb[0].mxu0
        %v5498 = vadd.f32 %v5264, %v5497
        %5499 = vmatprep.mubr.f32.mxu0 0.0
        %v5500 = vand.u32 %v5117, 4294901760
        %5501 = vmatmul.mubr.f32.gmra.mrb[0].mxu0 %v5500
        %v5502 = vpop.f32.mrb[0].mxu0
        %v5503 = vadd.f32 %v5273, %v5502
        %v5504 = vpop.f32.mrb[0].mxu0
        %v5505 = vadd.f32 %v5275, %v5504
        %5506 = vmatprep.mubr.f32.mxu0 0.0
        %v5507 = vand.u32 %v5120, 4294901760
        %5508 = vmatmul.mubr.f32.gmra.mrb[0].mxu0 %v5507
        %v5509 = vpop.f32.mrb[0].mxu0
        %v5510 = vadd.f32 %v5284, %v5509
        %v5511 = vpop.f32.mrb[0].mxu0
        %v5512 = vadd.f32 %v5286, %v5511
        %5513 = vmatprep.mubr.f32.mxu0 0.0
        %v5514 = vand.u32 %v5123, 4294901760
        %5515 = vmatmul.mubr.f32.gmra.mrb[0].mxu0 %v5514
        %v5516 = vpop.f32.mrb[0].mxu0
        %v5517 = vadd.f32 %v5295, %v5516
        %v5518 = vpop.f32.mrb[0].mxu0
        %v5519 = vadd.f32 %v5297, %v5518
        %5520 = vmatprep.mubr.f32.mxu0 0.0
        %v5521 = vand.u32 %v5126, 4294901760
        %5522 = vmatmul.mubr.f32.gmra.mrb[0].mxu0 %v5521
        %v5523 = vpop.f32.mrb[0].mxu0
        %v5524 = vadd.f32 %v5306, %v5523
        %v5525 = vpop.f32.mrb[0].mxu0
        %v5526 = vadd.f32 %v5308, %v5525
        %5527 = vdwg.mxu0
        %v5528 = vand.u32 %v766, 4294901760
        %v5529 = vsub.f32 %v766, %v5528
        %5530 = vmatprep.subr.mxu0 %v5529
        %v5531 = vand.u32 %v765, 4294901760
        %v5532 = vsub.f32 %v765, %v5531
        %5533 = vmatpush1.msra.mxu0 %v5532
        %v5534 = vand.u32 %v770, 4294901760
        %v5535 = vsub.f32 %v770, %v5534
        %5536 = vmatprep.subr.mxu0 %v5535
        %v5537 = vand.u32 %v769, 4294901760
        %v5538 = vsub.f32 %v769, %v5537
        %5539 = vmatpush1.msra.mxu0 %v5538
        %v5540 = vand.u32 %v774, 4294901760
        %v5541 = vsub.f32 %v774, %v5540
        %5542 = vmatprep.subr.mxu0 %v5541
        %v5543 = vand.u32 %v773, 4294901760
        %v5544 = vsub.f32 %v773, %v5543
        %5545 = vmatpush1.msra.mxu0 %v5544
        %v5546 = vand.u32 %v778, 4294901760
        %v5547 = vsub.f32 %v778, %v5546
        %5548 = vmatprep.subr.mxu0 %v5547
        %v5549 = vand.u32 %v777, 4294901760
        %v5550 = vsub.f32 %v777, %v5549
        %5551 = vmatpush1.msra.mxu0 %v5550
        %v5552 = vand.u32 %v782, 4294901760
        %v5553 = vsub.f32 %v782, %v5552
        %5554 = vmatprep.subr.mxu0 %v5553
        %v5555 = vand.u32 %v781, 4294901760
        %v5556 = vsub.f32 %v781, %v5555
        %5557 = vmatpush1.msra.mxu0 %v5556
        %v5558 = vand.u32 %v786, 4294901760
        %v5559 = vsub.f32 %v786, %v5558
        %5560 = vmatprep.subr.mxu0 %v5559
        %v5561 = vand.u32 %v785, 4294901760
        %v5562 = vsub.f32 %v785, %v5561
        %5563 = vmatpush1.msra.mxu0 %v5562
        %v5564 = vand.u32 %v790, 4294901760
        %v5565 = vsub.f32 %v790, %v5564
        %5566 = vmatprep.subr.mxu0 %v5565
        %v5567 = vand.u32 %v789, 4294901760
        %v5568 = vsub.f32 %v789, %v5567
        %5569 = vmatpush1.msra.mxu0 %v5568
        %v5570 = vand.u32 %v794, 4294901760
        %v5571 = vsub.f32 %v794, %v5570
        %5572 = vmatprep.subr.mxu0 %v5571
        %v5573 = vand.u32 %v793, 4294901760
        %v5574 = vsub.f32 %v793, %v5573
        %5575 = vmatpush1.msra.mxu0 %v5574
        %v5576 = vand.u32 %v798, 4294901760
        %v5577 = vsub.f32 %v798, %v5576
        %5578 = vmatprep.subr.mxu0 %v5577
        %v5579 = vand.u32 %v797, 4294901760
        %v5580 = vsub.f32 %v797, %v5579
        %5581 = vmatpush1.msra.mxu0 %v5580
        %5582 = vmatprep.subr.mxu0 0.0
        %5583 = vmatpush1.msra.mxu0 0.0
        %5584 = vmatprep.subr.mxu0 0.0
        %5585 = vmatpush1.msra.mxu0 0.0
        %5586 = vmatprep.subr.mxu0 0.0
        %5587 = vmatpush1.msra.mxu0 0.0
        %5588 = vmatprep.subr.mxu0 0.0
        %5589 = vmatpush1.msra.mxu0 0.0
        %5590 = vmatprep.subr.mxu0 0.0
        %5591 = vmatpush1.msra.mxu0 0.0
        %5592 = vmatprep.subr.mxu0 0.0
        %5593 = vmatpush1.msra.mxu0 0.0
        %5594 = vmatprep.subr.mxu0 0.0
        %5595 = vmatpush1.msra.mxu0 0.0
        %5596 = vmatprep.subr.mxu0 0.0
        %5597 = vmatpush1.msra.mxu0 0.0
        %5598 = vmatprep.subr.mxu0 0.0
        %5599 = vmatpush1.msra.mxu0 0.0
        %5600 = vmatprep.subr.mxu0 0.0
        %5601 = vmatpush1.msra.mxu0 0.0
        %5602 = vmatprep.subr.mxu0 0.0
        %5603 = vmatpush1.msra.mxu0 0.0
        %5604 = vmatprep.subr.mxu0 0.0
        %5605 = vmatpush1.msra.mxu0 0.0
        %5606 = vmatprep.subr.mxu0 0.0
        %5607 = vmatpush1.msra.mxu0 0.0
        %5608 = vmatprep.subr.mxu0 0.0
        %5609 = vmatpush1.msra.mxu0 0.0
        %5610 = vmatprep.subr.mxu0 0.0
        %5611 = vmatpush1.msra.mxu0 0.0
        %5612 = vmatprep.subr.mxu0 0.0
        %5613 = vmatpush1.msra.mxu0 0.0
        %5614 = vmatprep.subr.mxu0 0.0
        %5615 = vmatpush1.msra.mxu0 0.0
        %5616 = vmatprep.subr.mxu0 0.0
        %5617 = vmatpush1.msra.mxu0 0.0
        %5618 = vmatprep.subr.mxu0 0.0
        %5619 = vmatpush1.msra.mxu0 0.0
        %5620 = vmatprep.subr.mxu0 0.0
        %5621 = vmatpush1.msra.mxu0 0.0
        %5622 = vmatprep.subr.mxu0 0.0
        %5623 = vmatpush1.msra.mxu0 0.0
        %5624 = vmatprep.subr.mxu0 0.0
        %5625 = vmatpush1.msra.mxu0 0.0
        %5626 = vmatprep.subr.mxu0 0.0
        %5627 = vmatpush1.msra.mxu0 0.0
        %5628 = vmatprep.mubr.f32.mxu0 0.0
        %v5629 = vand.u32 %v5102, 4294901760
        %v5630 = vsub.f32 %v5102, %v5629
        %5631 = vmatmul.mubr.f32.gmra.mrb[0].mxu0 %v5630
        %v5632 = vpop.f32.mrb[0].mxu0
        %v5633 = vadd.f32 %v5468, %v5632
        %v5634 = vpop.f32.mrb[0].mxu0
        %v5635 = vadd.f32 %v5470, %v5634
        %5636 = vmatprep.mubr.f32.mxu0 0.0
        %v5637 = vand.u32 %v5105, 4294901760
        %v5638 = vsub.f32 %v5105, %v5637
        %5639 = vmatmul.mubr.f32.gmra.mrb[0].mxu0 %v5638
        %v5640 = vpop.f32.mrb[0].mxu0
        %v5641 = vadd.f32 %v5475, %v5640
        %v5642 = vpop.f32.mrb[0].mxu0
        %v5643 = vadd.f32 %v5477, %v5642
        %5644 = vmatprep.mubr.f32.mxu0 0.0
        %v5645 = vand.u32 %v5108, 4294901760
        %v5646 = vsub.f32 %v5108, %v5645
        %5647 = vmatmul.mubr.f32.gmra.mrb[0].mxu0 %v5646
        %v5648 = vpop.f32.mrb[0].mxu0
        %v5649 = vadd.f32 %v5482, %v5648
        %v5650 = vpop.f32.mrb[0].mxu0
        %v5651 = vadd.f32 %v5484, %v5650
        %5652 = vmatprep.mubr.f32.mxu0 0.0
        %v5653 = vand.u32 %v5111, 4294901760
        %v5654 = vsub.f32 %v5111, %v5653
        %5655 = vmatmul.mubr.f32.gmra.mrb[0].mxu0 %v5654
        %v5656 = vpop.f32.mrb[0].mxu0
        %v5657 = vadd.f32 %v5489, %v5656
        %v5658 = vpop.f32.mrb[0].mxu0
        %v5659 = vadd.f32 %v5491, %v5658
        %5660 = vmatprep.mubr.f32.mxu0 0.0
        %v5661 = vand.u32 %v5114, 4294901760
        %v5662 = vsub.f32 %v5114, %v5661
        %5663 = vmatmul.mubr.f32.gmra.mrb[0].mxu0 %v5662
        %v5664 = vpop.f32.mrb[0].mxu0
        %v5665 = vadd.f32 %v5496, %v5664
        %v5666 = vpop.f32.mrb[0].mxu0
        %v5667 = vadd.f32 %v5498, %v5666
        %5668 = vmatprep.mubr.f32.mxu0 0.0
        %v5669 = vand.u32 %v5117, 4294901760
        %v5670 = vsub.f32 %v5117, %v5669
        %5671 = vmatmul.mubr.f32.gmra.mrb[0].mxu0 %v5670
        %v5672 = vpop.f32.mrb[0].mxu0
        %v5673 = vadd.f32 %v5503, %v5672
        %v5674 = vpop.f32.mrb[0].mxu0
        %v5675 = vadd.f32 %v5505, %v5674
        %5676 = vmatprep.mubr.f32.mxu0 0.0
        %v5677 = vand.u32 %v5120, 4294901760
        %v5678 = vsub.f32 %v5120, %v5677
        %5679 = vmatmul.mubr.f32.gmra.mrb[0].mxu0 %v5678
        %v5680 = vpop.f32.mrb[0].mxu0
        %v5681 = vadd.f32 %v5510, %v5680
        %v5682 = vpop.f32.mrb[0].mxu0
        %v5683 = vadd.f32 %v5512, %v5682
        %5684 = vmatprep.mubr.f32.mxu0 0.0
        %v5685 = vand.u32 %v5123, 4294901760
        %v5686 = vsub.f32 %v5123, %v5685
        %5687 = vmatmul.mubr.f32.gmra.mrb[0].mxu0 %v5686
        %v5688 = vpop.f32.mrb[0].mxu0
        %v5689 = vadd.f32 %v5517, %v5688
        %v5690 = vpop.f32.mrb[0].mxu0
        %v5691 = vadd.f32 %v5519, %v5690
        %5692 = vmatprep.mubr.f32.mxu0 0.0
        %v5693 = vand.u32 %v5126, 4294901760
        %v5694 = vsub.f32 %v5126, %v5693
        %5695 = vmatmul.mubr.f32.gmra.mrb[0].mxu0 %v5694
        %v5696 = vpop.f32.mrb[0].mxu0
        %v5697 = vadd.f32 %v5524, %v5696
        %v5698 = vpop.f32.mrb[0].mxu0
        %v5699 = vadd.f32 %v5526, %v5698
        %5700 = vdwg.mxu0
        %v5701 = vand.u32 %v766, 4294901760
        %5702 = vmatprep.subr.mxu0 %v5701
        %v5703 = vand.u32 %v765, 4294901760
        %5704 = vmatpush1.msra.mxu0 %v5703
        %v5705 = vand.u32 %v770, 4294901760
        %5706 = vmatprep.subr.mxu0 %v5705
        %v5707 = vand.u32 %v769, 4294901760
        %5708 = vmatpush1.msra.mxu0 %v5707
        %v5709 = vand.u32 %v774, 4294901760
        %5710 = vmatprep.subr.mxu0 %v5709
        %v5711 = vand.u32 %v773, 4294901760
        %5712 = vmatpush1.msra.mxu0 %v5711
        %v5713 = vand.u32 %v778, 4294901760
        %5714 = vmatprep.subr.mxu0 %v5713
        %v5715 = vand.u32 %v777, 4294901760
        %5716 = vmatpush1.msra.mxu0 %v5715
        %v5717 = vand.u32 %v782, 4294901760
        %5718 = vmatprep.subr.mxu0 %v5717
        %v5719 = vand.u32 %v781, 4294901760
        %5720 = vmatpush1.msra.mxu0 %v5719
        %v5721 = vand.u32 %v786, 4294901760
        %5722 = vmatprep.subr.mxu0 %v5721
        %v5723 = vand.u32 %v785, 4294901760
        %5724 = vmatpush1.msra.mxu0 %v5723
        %v5725 = vand.u32 %v790, 4294901760
        %5726 = vmatprep.subr.mxu0 %v5725
        %v5727 = vand.u32 %v789, 4294901760
        %5728 = vmatpush1.msra.mxu0 %v5727
        %v5729 = vand.u32 %v794, 4294901760
        %5730 = vmatprep.subr.mxu0 %v5729
        %v5731 = vand.u32 %v793, 4294901760
        %5732 = vmatpush1.msra.mxu0 %v5731
        %v5733 = vand.u32 %v798, 4294901760
        %5734 = vmatprep.subr.mxu0 %v5733
        %v5735 = vand.u32 %v797, 4294901760
        %5736 = vmatpush1.msra.mxu0 %v5735
        %5737 = vmatprep.subr.mxu0 0.0
        %5738 = vmatpush1.msra.mxu0 0.0
        %5739 = vmatprep.subr.mxu0 0.0
        %5740 = vmatpush1.msra.mxu0 0.0
        %5741 = vmatprep.subr.mxu0 0.0
        %5742 = vmatpush1.msra.mxu0 0.0
        %5743 = vmatprep.subr.mxu0 0.0
        %5744 = vmatpush1.msra.mxu0 0.0
        %5745 = vmatprep.subr.mxu0 0.0
        %5746 = vmatpush1.msra.mxu0 0.0
        %5747 = vmatprep.subr.mxu0 0.0
        %5748 = vmatpush1.msra.mxu0 0.0
        %5749 = vmatprep.subr.mxu0 0.0
        %5750 = vmatpush1.msra.mxu0 0.0
        %5751 = vmatprep.subr.mxu0 0.0
        %5752 = vmatpush1.msra.mxu0 0.0
        %5753 = vmatprep.subr.mxu0 0.0
        %5754 = vmatpush1.msra.mxu0 0.0
        %5755 = vmatprep.subr.mxu0 0.0
        %5756 = vmatpush1.msra.mxu0 0.0
        %5757 = vmatprep.subr.mxu0 0.0
        %5758 = vmatpush1.msra.mxu0 0.0
        %5759 = vmatprep.subr.mxu0 0.0
        %5760 = vmatpush1.msra.mxu0 0.0
        %5761 = vmatprep.subr.mxu0 0.0
        %5762 = vmatpush1.msra.mxu0 0.0
        %5763 = vmatprep.subr.mxu0 0.0
        %5764 = vmatpush1.msra.mxu0 0.0
        %5765 = vmatprep.subr.mxu0 0.0
        %5766 = vmatpush1.msra.mxu0 0.0
        %5767 = vmatprep.subr.mxu0 0.0
        %5768 = vmatpush1.msra.mxu0 0.0
        %5769 = vmatprep.subr.mxu0 0.0
        %5770 = vmatpush1.msra.mxu0 0.0
        %5771 = vmatprep.subr.mxu0 0.0
        %5772 = vmatpush1.msra.mxu0 0.0
        %5773 = vmatprep.subr.mxu0 0.0
        %5774 = vmatpush1.msra.mxu0 0.0
        %5775 = vmatprep.subr.mxu0 0.0
        %5776 = vmatpush1.msra.mxu0 0.0
        %5777 = vmatprep.subr.mxu0 0.0
        %5778 = vmatpush1.msra.mxu0 0.0
        %5779 = vmatprep.subr.mxu0 0.0
        %5780 = vmatpush1.msra.mxu0 0.0
        %5781 = vmatprep.subr.mxu0 0.0
        %5782 = vmatpush1.msra.mxu0 0.0
        %5783 = vmatprep.mubr.f32.mxu0 0.0
        %v5784 = vand.u32 %v5102, 4294901760
        %v5785 = vsub.f32 %v5102, %v5784
        %v5786 = vand.u32 %v5785, 4294901760
        %5787 = vmatmul.mubr.f32.gmra.mrb[0].mxu0 %v5786
        %v5788 = vpop.f32.mrb[0].mxu0
        %v5789 = vadd.f32 %v5633, %v5788
        %v5790 = vpop.f32.mrb[0].mxu0
        %v5791 = vadd.f32 %v5635, %v5790
        %5792 = vmatprep.mubr.f32.mxu0 0.0
        %v5793 = vand.u32 %v5105, 4294901760
        %v5794 = vsub.f32 %v5105, %v5793
        %v5795 = vand.u32 %v5794, 4294901760
        %5796 = vmatmul.mubr.f32.gmra.mrb[0].mxu0 %v5795
        %v5797 = vpop.f32.mrb[0].mxu0
        %v5798 = vadd.f32 %v5641, %v5797
        %v5799 = vpop.f32.mrb[0].mxu0
        %v5800 = vadd.f32 %v5643, %v5799
        %5801 = vmatprep.mubr.f32.mxu0 0.0
        %v5802 = vand.u32 %v5108, 4294901760
        %v5803 = vsub.f32 %v5108, %v5802
        %v5804 = vand.u32 %v5803, 4294901760
        %5805 = vmatmul.mubr.f32.gmra.mrb[0].mxu0 %v5804
        %v5806 = vpop.f32.mrb[0].mxu0
        %v5807 = vadd.f32 %v5649, %v5806
        %v5808 = vpop.f32.mrb[0].mxu0
        %v5809 = vadd.f32 %v5651, %v5808
        %5810 = vmatprep.mubr.f32.mxu0 0.0
        %v5811 = vand.u32 %v5111, 4294901760
        %v5812 = vsub.f32 %v5111, %v5811
        %v5813 = vand.u32 %v5812, 4294901760
        %5814 = vmatmul.mubr.f32.gmra.mrb[0].mxu0 %v5813
        %v5815 = vpop.f32.mrb[0].mxu0
        %v5816 = vadd.f32 %v5657, %v5815
        %v5817 = vpop.f32.mrb[0].mxu0
        %v5818 = vadd.f32 %v5659, %v5817
        %5819 = vmatprep.mubr.f32.mxu0 0.0
        %v5820 = vand.u32 %v5114, 4294901760
        %v5821 = vsub.f32 %v5114, %v5820
        %v5822 = vand.u32 %v5821, 4294901760
        %5823 = vmatmul.mubr.f32.gmra.mrb[0].mxu0 %v5822
        %v5824 = vpop.f32.mrb[0].mxu0
        %v5825 = vadd.f32 %v5665, %v5824
        %v5826 = vpop.f32.mrb[0].mxu0
        %v5827 = vadd.f32 %v5667, %v5826
        %5828 = vmatprep.mubr.f32.mxu0 0.0
        %v5829 = vand.u32 %v5117, 4294901760
        %v5830 = vsub.f32 %v5117, %v5829
        %v5831 = vand.u32 %v5830, 4294901760
        %5832 = vmatmul.mubr.f32.gmra.mrb[0].mxu0 %v5831
        %v5833 = vpop.f32.mrb[0].mxu0
        %v5834 = vadd.f32 %v5673, %v5833
        %v5835 = vpop.f32.mrb[0].mxu0
        %v5836 = vadd.f32 %v5675, %v5835
        %5837 = vmatprep.mubr.f32.mxu0 0.0
        %v5838 = vand.u32 %v5120, 4294901760
        %v5839 = vsub.f32 %v5120, %v5838
        %v5840 = vand.u32 %v5839, 4294901760
        %5841 = vmatmul.mubr.f32.gmra.mrb[0].mxu0 %v5840
        %v5842 = vpop.f32.mrb[0].mxu0
        %v5843 = vadd.f32 %v5681, %v5842
        %v5844 = vpop.f32.mrb[0].mxu0
        %v5845 = vadd.f32 %v5683, %v5844
        %5846 = vmatprep.mubr.f32.mxu0 0.0
        %v5847 = vand.u32 %v5123, 4294901760
        %v5848 = vsub.f32 %v5123, %v5847
        %v5849 = vand.u32 %v5848, 4294901760
        %5850 = vmatmul.mubr.f32.gmra.mrb[0].mxu0 %v5849
        %v5851 = vpop.f32.mrb[0].mxu0
        %v5852 = vadd.f32 %v5689, %v5851
        %v5853 = vpop.f32.mrb[0].mxu0
        %v5854 = vadd.f32 %v5691, %v5853
        %5855 = vmatprep.mubr.f32.mxu0 0.0
        %v5856 = vand.u32 %v5126, 4294901760
        %v5857 = vsub.f32 %v5126, %v5856
        %v5858 = vand.u32 %v5857, 4294901760
        %5859 = vmatmul.mubr.f32.gmra.mrb[0].mxu0 %v5858
        %v5860 = vpop.f32.mrb[0].mxu0
        %v5861 = vadd.f32 %v5697, %v5860
        %v5862 = vpop.f32.mrb[0].mxu0
        %v5863 = vadd.f32 %v5699, %v5862
        %5864 = vdwg.mxu0
        %v5865 = vand.u32 %v766, 4294901760
        %v5866 = vsub.f32 %v766, %v5865
        %v5867 = vand.u32 %v5866, 4294901760
        %5868 = vmatprep.subr.mxu0 %v5867
        %v5869 = vand.u32 %v765, 4294901760
        %v5870 = vsub.f32 %v765, %v5869
        %v5871 = vand.u32 %v5870, 4294901760
        %5872 = vmatpush1.msra.mxu0 %v5871
        %v5873 = vand.u32 %v770, 4294901760
        %v5874 = vsub.f32 %v770, %v5873
        %v5875 = vand.u32 %v5874, 4294901760
        %5876 = vmatprep.subr.mxu0 %v5875
        %v5877 = vand.u32 %v769, 4294901760
        %v5878 = vsub.f32 %v769, %v5877
        %v5879 = vand.u32 %v5878, 4294901760
        %5880 = vmatpush1.msra.mxu0 %v5879
        %v5881 = vand.u32 %v774, 4294901760
        %v5882 = vsub.f32 %v774, %v5881
        %v5883 = vand.u32 %v5882, 4294901760
        %5884 = vmatprep.subr.mxu0 %v5883
        %v5885 = vand.u32 %v773, 4294901760
        %v5886 = vsub.f32 %v773, %v5885
        %v5887 = vand.u32 %v5886, 4294901760
        %5888 = vmatpush1.msra.mxu0 %v5887
        %v5889 = vand.u32 %v778, 4294901760
        %v5890 = vsub.f32 %v778, %v5889
        %v5891 = vand.u32 %v5890, 4294901760
        %5892 = vmatprep.subr.mxu0 %v5891
        %v5893 = vand.u32 %v777, 4294901760
        %v5894 = vsub.f32 %v777, %v5893
        %v5895 = vand.u32 %v5894, 4294901760
        %5896 = vmatpush1.msra.mxu0 %v5895
        %v5897 = vand.u32 %v782, 4294901760
        %v5898 = vsub.f32 %v782, %v5897
        %v5899 = vand.u32 %v5898, 4294901760
        %5900 = vmatprep.subr.mxu0 %v5899
        %v5901 = vand.u32 %v781, 4294901760
        %v5902 = vsub.f32 %v781, %v5901
        %v5903 = vand.u32 %v5902, 4294901760
        %5904 = vmatpush1.msra.mxu0 %v5903
        %v5905 = vand.u32 %v786, 4294901760
        %v5906 = vsub.f32 %v786, %v5905
        %v5907 = vand.u32 %v5906, 4294901760
        %5908 = vmatprep.subr.mxu0 %v5907
        %v5909 = vand.u32 %v785, 4294901760
        %v5910 = vsub.f32 %v785, %v5909
        %v5911 = vand.u32 %v5910, 4294901760
        %5912 = vmatpush1.msra.mxu0 %v5911
        %v5913 = vand.u32 %v790, 4294901760
        %v5914 = vsub.f32 %v790, %v5913
        %v5915 = vand.u32 %v5914, 4294901760
        %5916 = vmatprep.subr.mxu0 %v5915
        %v5917 = vand.u32 %v789, 4294901760
        %v5918 = vsub.f32 %v789, %v5917
        %v5919 = vand.u32 %v5918, 4294901760
        %5920 = vmatpush1.msra.mxu0 %v5919
        %v5921 = vand.u32 %v794, 4294901760
        %v5922 = vsub.f32 %v794, %v5921
        %v5923 = vand.u32 %v5922, 4294901760
        %5924 = vmatprep.subr.mxu0 %v5923
        %v5925 = vand.u32 %v793, 4294901760
        %v5926 = vsub.f32 %v793, %v5925
        %v5927 = vand.u32 %v5926, 4294901760
        %5928 = vmatpush1.msra.mxu0 %v5927
        %v5929 = vand.u32 %v798, 4294901760
        %v5930 = vsub.f32 %v798, %v5929
        %v5931 = vand.u32 %v5930, 4294901760
        %5932 = vmatprep.subr.mxu0 %v5931
        %v5933 = vand.u32 %v797, 4294901760
        %v5934 = vsub.f32 %v797, %v5933
        %v5935 = vand.u32 %v5934, 4294901760
        %5936 = vmatpush1.msra.mxu0 %v5935
        %5937 = vmatprep.subr.mxu0 0.0
        %5938 = vmatpush1.msra.mxu0 0.0
        %5939 = vmatprep.subr.mxu0 0.0
        %5940 = vmatpush1.msra.mxu0 0.0
        %5941 = vmatprep.subr.mxu0 0.0
        %5942 = vmatpush1.msra.mxu0 0.0
        %5943 = vmatprep.subr.mxu0 0.0
        %5944 = vmatpush1.msra.mxu0 0.0
        %5945 = vmatprep.subr.mxu0 0.0
        %5946 = vmatpush1.msra.mxu0 0.0
        %5947 = vmatprep.subr.mxu0 0.0
        %5948 = vmatpush1.msra.mxu0 0.0
        %5949 = vmatprep.subr.mxu0 0.0
        %5950 = vmatpush1.msra.mxu0 0.0
        %5951 = vmatprep.subr.mxu0 0.0
        %5952 = vmatpush1.msra.mxu0 0.0
        %5953 = vmatprep.subr.mxu0 0.0
        %5954 = vmatpush1.msra.mxu0 0.0
        %5955 = vmatprep.subr.mxu0 0.0
        %5956 = vmatpush1.msra.mxu0 0.0
        %5957 = vmatprep.subr.mxu0 0.0
        %5958 = vmatpush1.msra.mxu0 0.0
        %5959 = vmatprep.subr.mxu0 0.0
        %5960 = vmatpush1.msra.mxu0 0.0
        %5961 = vmatprep.subr.mxu0 0.0
        %5962 = vmatpush1.msra.mxu0 0.0
        %5963 = vmatprep.subr.mxu0 0.0
        %5964 = vmatpush1.msra.mxu0 0.0
        %5965 = vmatprep.subr.mxu0 0.0
        %5966 = vmatpush1.msra.mxu0 0.0
        %5967 = vmatprep.subr.mxu0 0.0
        %5968 = vmatpush1.msra.mxu0 0.0
        %5969 = vmatprep.subr.mxu0 0.0
        %5970 = vmatpush1.msra.mxu0 0.0
        %5971 = vmatprep.subr.mxu0 0.0
        %5972 = vmatpush1.msra.mxu0 0.0
        %5973 = vmatprep.subr.mxu0 0.0
        %5974 = vmatpush1.msra.mxu0 0.0
        %5975 = vmatprep.subr.mxu0 0.0
        %5976 = vmatpush1.msra.mxu0 0.0
        %5977 = vmatprep.subr.mxu0 0.0
        %5978 = vmatpush1.msra.mxu0 0.0
        %5979 = vmatprep.subr.mxu0 0.0
        %5980 = vmatpush1.msra.mxu0 0.0
        %5981 = vmatprep.subr.mxu0 0.0
        %5982 = vmatpush1.msra.mxu0 0.0
        %5983 = vmatprep.mubr.f32.mxu0 0.0
        %v5984 = vand.u32 %v5102, 4294901760
        %5985 = vmatmul.mubr.f32.gmra.mrb[0].mxu0 %v5984
        %v5986 = vpop.f32.mrb[0].mxu0
        %v5987 = vadd.f32 %v5789, %v5986
        %v5988 = vpop.f32.mrb[0].mxu0
        %v5989 = vadd.f32 %v5791, %v5988
        %5990 = vmatprep.mubr.f32.mxu0 0.0
        %v5991 = vand.u32 %v5105, 4294901760
        %5992 = vmatmul.mubr.f32.gmra.mrb[0].mxu0 %v5991
        %v5993 = vpop.f32.mrb[0].mxu0
        %v5994 = vadd.f32 %v5798, %v5993
        %v5995 = vpop.f32.mrb[0].mxu0
        %v5996 = vadd.f32 %v5800, %v5995
        %5997 = vmatprep.mubr.f32.mxu0 0.0
        %v5998 = vand.u32 %v5108, 4294901760
        %5999 = vmatmul.mubr.f32.gmra.mrb[0].mxu0 %v5998
        %v6000 = vpop.f32.mrb[0].mxu0
        %v6001 = vadd.f32 %v5807, %v6000
        %v6002 = vpop.f32.mrb[0].mxu0
        %v6003 = vadd.f32 %v5809, %v6002
        %6004 = vmatprep.mubr.f32.mxu0 0.0
        %v6005 = vand.u32 %v5111, 4294901760
        %6006 = vmatmul.mubr.f32.gmra.mrb[0].mxu0 %v6005
        %v6007 = vpop.f32.mrb[0].mxu0
        %v6008 = vadd.f32 %v5816, %v6007
        %v6009 = vpop.f32.mrb[0].mxu0
        %v6010 = vadd.f32 %v5818, %v6009
        %6011 = vmatprep.mubr.f32.mxu0 0.0
        %v6012 = vand.u32 %v5114, 4294901760
        %6013 = vmatmul.mubr.f32.gmra.mrb[0].mxu0 %v6012
        %v6014 = vpop.f32.mrb[0].mxu0
        %v6015 = vadd.f32 %v5825, %v6014
        %v6016 = vpop.f32.mrb[0].mxu0
        %v6017 = vadd.f32 %v5827, %v6016
        %6018 = vmatprep.mubr.f32.mxu0 0.0
        %v6019 = vand.u32 %v5117, 4294901760
        %6020 = vmatmul.mubr.f32.gmra.mrb[0].mxu0 %v6019
        %v6021 = vpop.f32.mrb[0].mxu0
        %v6022 = vadd.f32 %v5834, %v6021
        %v6023 = vpop.f32.mrb[0].mxu0
        %v6024 = vadd.f32 %v5836, %v6023
        %6025 = vmatprep.mubr.f32.mxu0 0.0
        %v6026 = vand.u32 %v5120, 4294901760
        %6027 = vmatmul.mubr.f32.gmra.mrb[0].mxu0 %v6026
        %v6028 = vpop.f32.mrb[0].mxu0
        %v6029 = vadd.f32 %v5843, %v6028
        %v6030 = vpop.f32.mrb[0].mxu0
        %v6031 = vadd.f32 %v5845, %v6030
        %6032 = vmatprep.mubr.f32.mxu0 0.0
        %v6033 = vand.u32 %v5123, 4294901760
        %6034 = vmatmul.mubr.f32.gmra.mrb[0].mxu0 %v6033
        %v6035 = vpop.f32.mrb[0].mxu0
        %v6036 = vadd.f32 %v5852, %v6035
        %v6037 = vpop.f32.mrb[0].mxu0
        %v6038 = vadd.f32 %v5854, %v6037
        %6039 = vmatprep.mubr.f32.mxu0 0.0
        %v6040 = vand.u32 %v5126, 4294901760
        %6041 = vmatmul.mubr.f32.gmra.mrb[0].mxu0 %v6040
        %v6042 = vpop.f32.mrb[0].mxu0
        %v6043 = vadd.f32 %v5861, %v6042
        %v6044 = vpop.f32.mrb[0].mxu0
        %v6045 = vadd.f32 %v5863, %v6044
        %6046 = vdwg.mxu0
        %v6047 = vand.u32 %v766, 4294901760
        %6048 = vmatprep.subr.mxu0 %v6047
        %v6049 = vand.u32 %v765, 4294901760
        %6050 = vmatpush1.msra.mxu0 %v6049
        %v6051 = vand.u32 %v770, 4294901760
        %6052 = vmatprep.subr.mxu0 %v6051
        %v6053 = vand.u32 %v769, 4294901760
        %6054 = vmatpush1.msra.mxu0 %v6053
        %v6055 = vand.u32 %v774, 4294901760
        %6056 = vmatprep.subr.mxu0 %v6055
        %v6057 = vand.u32 %v773, 4294901760
        %6058 = vmatpush1.msra.mxu0 %v6057
        %v6059 = vand.u32 %v778, 4294901760
        %6060 = vmatprep.subr.mxu0 %v6059
        %v6061 = vand.u32 %v777, 4294901760
        %6062 = vmatpush1.msra.mxu0 %v6061
        %v6063 = vand.u32 %v782, 4294901760
        %6064 = vmatprep.subr.mxu0 %v6063
        %v6065 = vand.u32 %v781, 4294901760
        %6066 = vmatpush1.msra.mxu0 %v6065
        %v6067 = vand.u32 %v786, 4294901760
        %6068 = vmatprep.subr.mxu0 %v6067
        %v6069 = vand.u32 %v785, 4294901760
        %6070 = vmatpush1.msra.mxu0 %v6069
        %v6071 = vand.u32 %v790, 4294901760
        %6072 = vmatprep.subr.mxu0 %v6071
        %v6073 = vand.u32 %v789, 4294901760
        %6074 = vmatpush1.msra.mxu0 %v6073
        %v6075 = vand.u32 %v794, 4294901760
        %6076 = vmatprep.subr.mxu0 %v6075
        %v6077 = vand.u32 %v793, 4294901760
        %6078 = vmatpush1.msra.mxu0 %v6077
        %v6079 = vand.u32 %v798, 4294901760
        %6080 = vmatprep.subr.mxu0 %v6079
        %v6081 = vand.u32 %v797, 4294901760
        %6082 = vmatpush1.msra.mxu0 %v6081
        %6083 = vmatprep.subr.mxu0 0.0
        %6084 = vmatpush1.msra.mxu0 0.0
        %6085 = vmatprep.subr.mxu0 0.0
        %6086 = vmatpush1.msra.mxu0 0.0
        %6087 = vmatprep.subr.mxu0 0.0
        %6088 = vmatpush1.msra.mxu0 0.0
        %6089 = vmatprep.subr.mxu0 0.0
        %6090 = vmatpush1.msra.mxu0 0.0
        %6091 = vmatprep.subr.mxu0 0.0
        %6092 = vmatpush1.msra.mxu0 0.0
        %6093 = vmatprep.subr.mxu0 0.0
        %6094 = vmatpush1.msra.mxu0 0.0
        %6095 = vmatprep.subr.mxu0 0.0
        %6096 = vmatpush1.msra.mxu0 0.0
        %6097 = vmatprep.subr.mxu0 0.0
        %6098 = vmatpush1.msra.mxu0 0.0
        %6099 = vmatprep.subr.mxu0 0.0
        %6100 = vmatpush1.msra.mxu0 0.0
        %6101 = vmatprep.subr.mxu0 0.0
        %6102 = vmatpush1.msra.mxu0 0.0
        %6103 = vmatprep.subr.mxu0 0.0
        %6104 = vmatpush1.msra.mxu0 0.0
        %6105 = vmatprep.subr.mxu0 0.0
        %6106 = vmatpush1.msra.mxu0 0.0
        %6107 = vmatprep.subr.mxu0 0.0
        %6108 = vmatpush1.msra.mxu0 0.0
        %6109 = vmatprep.subr.mxu0 0.0
        %6110 = vmatpush1.msra.mxu0 0.0
        %6111 = vmatprep.subr.mxu0 0.0
        %6112 = vmatpush1.msra.mxu0 0.0
        %6113 = vmatprep.subr.mxu0 0.0
        %6114 = vmatpush1.msra.mxu0 0.0
        %6115 = vmatprep.subr.mxu0 0.0
        %6116 = vmatpush1.msra.mxu0 0.0
        %6117 = vmatprep.subr.mxu0 0.0
        %6118 = vmatpush1.msra.mxu0 0.0
        %6119 = vmatprep.subr.mxu0 0.0
        %6120 = vmatpush1.msra.mxu0 0.0
        %6121 = vmatprep.subr.mxu0 0.0
        %6122 = vmatpush1.msra.mxu0 0.0
        %6123 = vmatprep.subr.mxu0 0.0
        %6124 = vmatpush1.msra.mxu0 0.0
        %6125 = vmatprep.subr.mxu0 0.0
        %6126 = vmatpush1.msra.mxu0 0.0
        %6127 = vmatprep.subr.mxu0 0.0
        %6128 = vmatpush1.msra.mxu0 0.0
        %6129 = vmatprep.mubr.f32.mxu0 0.0
        %v6130 = vand.u32 %v5102, 4294901760
        %6131 = vmatmul.mubr.f32.gmra.mrb[0].mxu0 %v6130
        %v6132 = vpop.f32.mrb[0].mxu0
        %v6133 = vadd.f32 %v5987, %v6132
        %v6134 = vpop.f32.mrb[0].mxu0
        %v6135 = vadd.f32 %v5989, %v6134
        %6136 = vmatprep.mubr.f32.mxu0 0.0
        %v6137 = vand.u32 %v5105, 4294901760
        %6138 = vmatmul.mubr.f32.gmra.mrb[0].mxu0 %v6137
        %v6139 = vpop.f32.mrb[0].mxu0
        %v6140 = vadd.f32 %v5994, %v6139
        %v6141 = vpop.f32.mrb[0].mxu0
        %v6142 = vadd.f32 %v5996, %v6141
        %6143 = vmatprep.mubr.f32.mxu0 0.0
        %v6144 = vand.u32 %v5108, 4294901760
        %6145 = vmatmul.mubr.f32.gmra.mrb[0].mxu0 %v6144
        %v6146 = vpop.f32.mrb[0].mxu0
        %v6147 = vadd.f32 %v6001, %v6146
        %v6148 = vpop.f32.mrb[0].mxu0
        %v6149 = vadd.f32 %v6003, %v6148
        %6150 = vmatprep.mubr.f32.mxu0 0.0
        %v6151 = vand.u32 %v5111, 4294901760
        %6152 = vmatmul.mubr.f32.gmra.mrb[0].mxu0 %v6151
        %v6153 = vpop.f32.mrb[0].mxu0
        %v6154 = vadd.f32 %v6008, %v6153
        %v6155 = vpop.f32.mrb[0].mxu0
        %v6156 = vadd.f32 %v6010, %v6155
        %6157 = vmatprep.mubr.f32.mxu0 0.0
        %v6158 = vand.u32 %v5114, 4294901760
        %6159 = vmatmul.mubr.f32.gmra.mrb[0].mxu0 %v6158
        %v6160 = vpop.f32.mrb[0].mxu0
        %v6161 = vadd.f32 %v6015, %v6160
        %v6162 = vpop.f32.mrb[0].mxu0
        %v6163 = vadd.f32 %v6017, %v6162
        %6164 = vmatprep.mubr.f32.mxu0 0.0
        %v6165 = vand.u32 %v5117, 4294901760
        %6166 = vmatmul.mubr.f32.gmra.mrb[0].mxu0 %v6165
        %v6167 = vpop.f32.mrb[0].mxu0
        %v6168 = vadd.f32 %v6022, %v6167
        %v6169 = vpop.f32.mrb[0].mxu0
        %v6170 = vadd.f32 %v6024, %v6169
        %6171 = vmatprep.mubr.f32.mxu0 0.0
        %v6172 = vand.u32 %v5120, 4294901760
        %6173 = vmatmul.mubr.f32.gmra.mrb[0].mxu0 %v6172
        %v6174 = vpop.f32.mrb[0].mxu0
        %v6175 = vadd.f32 %v6029, %v6174
        %v6176 = vpop.f32.mrb[0].mxu0
        %v6177 = vadd.f32 %v6031, %v6176
        %6178 = vmatprep.mubr.f32.mxu0 0.0
        %v6179 = vand.u32 %v5123, 4294901760
        %6180 = vmatmul.mubr.f32.gmra.mrb[0].mxu0 %v6179
        %v6181 = vpop.f32.mrb[0].mxu0
        %v6182 = vadd.f32 %v6036, %v6181
        %v6183 = vpop.f32.mrb[0].mxu0
        %v6184 = vadd.f32 %v6038, %v6183
        %6185 = vmatprep.mubr.f32.mxu0 0.0
        %v6186 = vand.u32 %v5126, 4294901760
        %6187 = vmatmul.mubr.f32.gmra.mrb[0].mxu0 %v6186
        %v6188 = vpop.f32.mrb[0].mxu0
        %v6189 = vadd.f32 %v6043, %v6188
        %v6190 = vpop.f32.mrb[0].mxu0
        %v6191 = vadd.f32 %v6045, %v6190
        %6192 = vdwg.mxu0
        %v6193 = vand.u32 %v768, 4294901760
        %6194 = vmatprep.subr.mxu0 %v6193
        %v6195 = vand.u32 %v767, 4294901760
        %6196 = vmatpush1.msra.mxu0 %v6195
        %v6197 = vand.u32 %v772, 4294901760
        %6198 = vmatprep.subr.mxu0 %v6197
        %v6199 = vand.u32 %v771, 4294901760
        %6200 = vmatpush1.msra.mxu0 %v6199
        %v6201 = vand.u32 %v776, 4294901760
        %6202 = vmatprep.subr.mxu0 %v6201
        %v6203 = vand.u32 %v775, 4294901760
        %6204 = vmatpush1.msra.mxu0 %v6203
        %v6205 = vand.u32 %v780, 4294901760
        %6206 = vmatprep.subr.mxu0 %v6205
        %v6207 = vand.u32 %v779, 4294901760
        %6208 = vmatpush1.msra.mxu0 %v6207
        %v6209 = vand.u32 %v784, 4294901760
        %6210 = vmatprep.subr.mxu0 %v6209
        %v6211 = vand.u32 %v783, 4294901760
        %6212 = vmatpush1.msra.mxu0 %v6211
        %v6213 = vand.u32 %v788, 4294901760
        %6214 = vmatprep.subr.mxu0 %v6213
        %v6215 = vand.u32 %v787, 4294901760
        %6216 = vmatpush1.msra.mxu0 %v6215
        %v6217 = vand.u32 %v792, 4294901760
        %6218 = vmatprep.subr.mxu0 %v6217
        %v6219 = vand.u32 %v791, 4294901760
        %6220 = vmatpush1.msra.mxu0 %v6219
        %v6221 = vand.u32 %v796, 4294901760
        %6222 = vmatprep.subr.mxu0 %v6221
        %v6223 = vand.u32 %v795, 4294901760
        %6224 = vmatpush1.msra.mxu0 %v6223
        %v6225 = vand.u32 %v800, 4294901760
        %6226 = vmatprep.subr.mxu0 %v6225
        %v6227 = vand.u32 %v799, 4294901760
        %6228 = vmatpush1.msra.mxu0 %v6227
        %6229 = vmatprep.subr.mxu0 0.0
        %6230 = vmatpush1.msra.mxu0 0.0
        %6231 = vmatprep.subr.mxu0 0.0
        %6232 = vmatpush1.msra.mxu0 0.0
        %6233 = vmatprep.subr.mxu0 0.0
        %6234 = vmatpush1.msra.mxu0 0.0
        %6235 = vmatprep.subr.mxu0 0.0
        %6236 = vmatpush1.msra.mxu0 0.0
        %6237 = vmatprep.subr.mxu0 0.0
        %6238 = vmatpush1.msra.mxu0 0.0
        %6239 = vmatprep.subr.mxu0 0.0
        %6240 = vmatpush1.msra.mxu0 0.0
        %6241 = vmatprep.subr.mxu0 0.0
        %6242 = vmatpush1.msra.mxu0 0.0
        %6243 = vmatprep.subr.mxu0 0.0
        %6244 = vmatpush1.msra.mxu0 0.0
        %6245 = vmatprep.subr.mxu0 0.0
        %6246 = vmatpush1.msra.mxu0 0.0
        %6247 = vmatprep.subr.mxu0 0.0
        %6248 = vmatpush1.msra.mxu0 0.0
        %6249 = vmatprep.subr.mxu0 0.0
        %6250 = vmatpush1.msra.mxu0 0.0
        %6251 = vmatprep.subr.mxu0 0.0
        %6252 = vmatpush1.msra.mxu0 0.0
        %6253 = vmatprep.subr.mxu0 0.0
        %6254 = vmatpush1.msra.mxu0 0.0
        %6255 = vmatprep.subr.mxu0 0.0
        %6256 = vmatpush1.msra.mxu0 0.0
        %6257 = vmatprep.subr.mxu0 0.0
        %6258 = vmatpush1.msra.mxu0 0.0
        %6259 = vmatprep.subr.mxu0 0.0
        %6260 = vmatpush1.msra.mxu0 0.0
        %6261 = vmatprep.subr.mxu0 0.0
        %6262 = vmatpush1.msra.mxu0 0.0
        %6263 = vmatprep.subr.mxu0 0.0
        %6264 = vmatpush1.msra.mxu0 0.0
        %6265 = vmatprep.subr.mxu0 0.0
        %6266 = vmatpush1.msra.mxu0 0.0
        %6267 = vmatprep.subr.mxu0 0.0
        %6268 = vmatpush1.msra.mxu0 0.0
        %6269 = vmatprep.subr.mxu0 0.0
        %6270 = vmatpush1.msra.mxu0 0.0
        %6271 = vmatprep.subr.mxu0 0.0
        %6272 = vmatpush1.msra.mxu0 0.0
        %6273 = vmatprep.subr.mxu0 0.0
        %6274 = vmatpush1.msra.mxu0 0.0
        %6275 = vmatprep.mubr.f32.mxu0 0.0
        %v6276 = vand.u32 %v5102, 4294901760
        %v6277 = vsub.f32 %v5102, %v6276
        %v6278 = vand.u32 %v6277, 4294901760
        %v6279 = vsub.f32 %v6277, %v6278
        %v6280 = vand.u32 %v6279, 4294901760
        %6281 = vmatmul.mubr.f32.gmra.mrb[0].mxu0 %v6280
        %v6282 = vpop.f32.mrb[0].mxu0
        %v6283 = vadd.f32 0.0, %v6282
        %v6284 = vpop.f32.mrb[0].mxu0
        %v6285 = vadd.f32 0.0, %v6284
        %6286 = vmatprep.mubr.f32.mxu0 0.0
        %v6287 = vand.u32 %v5105, 4294901760
        %v6288 = vsub.f32 %v5105, %v6287
        %v6289 = vand.u32 %v6288, 4294901760
        %v6290 = vsub.f32 %v6288, %v6289
        %v6291 = vand.u32 %v6290, 4294901760
        %6292 = vmatmul.mubr.f32.gmra.mrb[0].mxu0 %v6291
        %v6293 = vpop.f32.mrb[0].mxu0
        %v6294 = vadd.f32 0.0, %v6293
        %v6295 = vpop.f32.mrb[0].mxu0
        %v6296 = vadd.f32 0.0, %v6295
        %6297 = vmatprep.mubr.f32.mxu0 0.0
        %v6298 = vand.u32 %v5108, 4294901760
        %v6299 = vsub.f32 %v5108, %v6298
        %v6300 = vand.u32 %v6299, 4294901760
        %v6301 = vsub.f32 %v6299, %v6300
        %v6302 = vand.u32 %v6301, 4294901760
        %6303 = vmatmul.mubr.f32.gmra.mrb[0].mxu0 %v6302
        %v6304 = vpop.f32.mrb[0].mxu0
        %v6305 = vadd.f32 0.0, %v6304
        %v6306 = vpop.f32.mrb[0].mxu0
        %v6307 = vadd.f32 0.0, %v6306
        %6308 = vmatprep.mubr.f32.mxu0 0.0
        %v6309 = vand.u32 %v5111, 4294901760
        %v6310 = vsub.f32 %v5111, %v6309
        %v6311 = vand.u32 %v6310, 4294901760
        %v6312 = vsub.f32 %v6310, %v6311
        %v6313 = vand.u32 %v6312, 4294901760
        %6314 = vmatmul.mubr.f32.gmra.mrb[0].mxu0 %v6313
        %v6315 = vpop.f32.mrb[0].mxu0
        %v6316 = vadd.f32 0.0, %v6315
        %v6317 = vpop.f32.mrb[0].mxu0
        %v6318 = vadd.f32 0.0, %v6317
        %6319 = vmatprep.mubr.f32.mxu0 0.0
        %v6320 = vand.u32 %v5114, 4294901760
        %v6321 = vsub.f32 %v5114, %v6320
        %v6322 = vand.u32 %v6321, 4294901760
        %v6323 = vsub.f32 %v6321, %v6322
        %v6324 = vand.u32 %v6323, 4294901760
        %6325 = vmatmul.mubr.f32.gmra.mrb[0].mxu0 %v6324
        %v6326 = vpop.f32.mrb[0].mxu0
        %v6327 = vadd.f32 0.0, %v6326
        %v6328 = vpop.f32.mrb[0].mxu0
        %v6329 = vadd.f32 0.0, %v6328
        %6330 = vmatprep.mubr.f32.mxu0 0.0
        %v6331 = vand.u32 %v5117, 4294901760
        %v6332 = vsub.f32 %v5117, %v6331
        %v6333 = vand.u32 %v6332, 4294901760
        %v6334 = vsub.f32 %v6332, %v6333
        %v6335 = vand.u32 %v6334, 4294901760
        %6336 = vmatmul.mubr.f32.gmra.mrb[0].mxu0 %v6335
        %v6337 = vpop.f32.mrb[0].mxu0
        %v6338 = vadd.f32 0.0, %v6337
        %v6339 = vpop.f32.mrb[0].mxu0
        %v6340 = vadd.f32 0.0, %v6339
        %6341 = vmatprep.mubr.f32.mxu0 0.0
        %v6342 = vand.u32 %v5120, 4294901760
        %v6343 = vsub.f32 %v5120, %v6342
        %v6344 = vand.u32 %v6343, 4294901760
        %v6345 = vsub.f32 %v6343, %v6344
        %v6346 = vand.u32 %v6345, 4294901760
        %6347 = vmatmul.mubr.f32.gmra.mrb[0].mxu0 %v6346
        %v6348 = vpop.f32.mrb[0].mxu0
        %v6349 = vadd.f32 0.0, %v6348
        %v6350 = vpop.f32.mrb[0].mxu0
        %v6351 = vadd.f32 0.0, %v6350
        %6352 = vmatprep.mubr.f32.mxu0 0.0
        %v6353 = vand.u32 %v5123, 4294901760
        %v6354 = vsub.f32 %v5123, %v6353
        %v6355 = vand.u32 %v6354, 4294901760
        %v6356 = vsub.f32 %v6354, %v6355
        %v6357 = vand.u32 %v6356, 4294901760
        %6358 = vmatmul.mubr.f32.gmra.mrb[0].mxu0 %v6357
        %v6359 = vpop.f32.mrb[0].mxu0
        %v6360 = vadd.f32 0.0, %v6359
        %v6361 = vpop.f32.mrb[0].mxu0
        %v6362 = vadd.f32 0.0, %v6361
        %6363 = vmatprep.mubr.f32.mxu0 0.0
        %v6364 = vand.u32 %v5126, 4294901760
        %v6365 = vsub.f32 %v5126, %v6364
        %v6366 = vand.u32 %v6365, 4294901760
        %v6367 = vsub.f32 %v6365, %v6366
        %v6368 = vand.u32 %v6367, 4294901760
        %6369 = vmatmul.mubr.f32.gmra.mrb[0].mxu0 %v6368
        %v6370 = vpop.f32.mrb[0].mxu0
        %v6371 = vadd.f32 0.0, %v6370
        %v6372 = vpop.f32.mrb[0].mxu0
        %v6373 = vadd.f32 0.0, %v6372
        %6374 = vdwg.mxu0
        %v6375 = vand.u32 %v768, 4294901760
        %v6376 = vsub.f32 %v768, %v6375
        %v6377 = vand.u32 %v6376, 4294901760
        %v6378 = vsub.f32 %v6376, %v6377
        %v6379 = vand.u32 %v6378, 4294901760
        %6380 = vmatprep.subr.mxu0 %v6379
        %v6381 = vand.u32 %v767, 4294901760
        %v6382 = vsub.f32 %v767, %v6381
        %v6383 = vand.u32 %v6382, 4294901760
        %v6384 = vsub.f32 %v6382, %v6383
        %v6385 = vand.u32 %v6384, 4294901760
        %6386 = vmatpush1.msra.mxu0 %v6385
        %v6387 = vand.u32 %v772, 4294901760
        %v6388 = vsub.f32 %v772, %v6387
        %v6389 = vand.u32 %v6388, 4294901760
        %v6390 = vsub.f32 %v6388, %v6389
        %v6391 = vand.u32 %v6390, 4294901760
        %6392 = vmatprep.subr.mxu0 %v6391
        %v6393 = vand.u32 %v771, 4294901760
        %v6394 = vsub.f32 %v771, %v6393
        %v6395 = vand.u32 %v6394, 4294901760
        %v6396 = vsub.f32 %v6394, %v6395
        %v6397 = vand.u32 %v6396, 4294901760
        %6398 = vmatpush1.msra.mxu0 %v6397
        %v6399 = vand.u32 %v776, 4294901760
        %v6400 = vsub.f32 %v776, %v6399
        %v6401 = vand.u32 %v6400, 4294901760
        %v6402 = vsub.f32 %v6400, %v6401
        %v6403 = vand.u32 %v6402, 4294901760
        %6404 = vmatprep.subr.mxu0 %v6403
        %v6405 = vand.u32 %v775, 4294901760
        %v6406 = vsub.f32 %v775, %v6405
        %v6407 = vand.u32 %v6406, 4294901760
        %v6408 = vsub.f32 %v6406, %v6407
        %v6409 = vand.u32 %v6408, 4294901760
        %6410 = vmatpush1.msra.mxu0 %v6409
        %v6411 = vand.u32 %v780, 4294901760
        %v6412 = vsub.f32 %v780, %v6411
        %v6413 = vand.u32 %v6412, 4294901760
        %v6414 = vsub.f32 %v6412, %v6413
        %v6415 = vand.u32 %v6414, 4294901760
        %6416 = vmatprep.subr.mxu0 %v6415
        %v6417 = vand.u32 %v779, 4294901760
        %v6418 = vsub.f32 %v779, %v6417
        %v6419 = vand.u32 %v6418, 4294901760
        %v6420 = vsub.f32 %v6418, %v6419
        %v6421 = vand.u32 %v6420, 4294901760
        %6422 = vmatpush1.msra.mxu0 %v6421
        %v6423 = vand.u32 %v784, 4294901760
        %v6424 = vsub.f32 %v784, %v6423
        %v6425 = vand.u32 %v6424, 4294901760
        %v6426 = vsub.f32 %v6424, %v6425
        %v6427 = vand.u32 %v6426, 4294901760
        %6428 = vmatprep.subr.mxu0 %v6427
        %v6429 = vand.u32 %v783, 4294901760
        %v6430 = vsub.f32 %v783, %v6429
        %v6431 = vand.u32 %v6430, 4294901760
        %v6432 = vsub.f32 %v6430, %v6431
        %v6433 = vand.u32 %v6432, 4294901760
        %6434 = vmatpush1.msra.mxu0 %v6433
        %v6435 = vand.u32 %v788, 4294901760
        %v6436 = vsub.f32 %v788, %v6435
        %v6437 = vand.u32 %v6436, 4294901760
        %v6438 = vsub.f32 %v6436, %v6437
        %v6439 = vand.u32 %v6438, 4294901760
        %6440 = vmatprep.subr.mxu0 %v6439
        %v6441 = vand.u32 %v787, 4294901760
        %v6442 = vsub.f32 %v787, %v6441
        %v6443 = vand.u32 %v6442, 4294901760
        %v6444 = vsub.f32 %v6442, %v6443
        %v6445 = vand.u32 %v6444, 4294901760
        %6446 = vmatpush1.msra.mxu0 %v6445
        %v6447 = vand.u32 %v792, 4294901760
        %v6448 = vsub.f32 %v792, %v6447
        %v6449 = vand.u32 %v6448, 4294901760
        %v6450 = vsub.f32 %v6448, %v6449
        %v6451 = vand.u32 %v6450, 4294901760
        %6452 = vmatprep.subr.mxu0 %v6451
        %v6453 = vand.u32 %v791, 4294901760
        %v6454 = vsub.f32 %v791, %v6453
        %v6455 = vand.u32 %v6454, 4294901760
        %v6456 = vsub.f32 %v6454, %v6455
        %v6457 = vand.u32 %v6456, 4294901760
        %6458 = vmatpush1.msra.mxu0 %v6457
        %v6459 = vand.u32 %v796, 4294901760
        %v6460 = vsub.f32 %v796, %v6459
        %v6461 = vand.u32 %v6460, 4294901760
        %v6462 = vsub.f32 %v6460, %v6461
        %v6463 = vand.u32 %v6462, 4294901760
        %6464 = vmatprep.subr.mxu0 %v6463
        %v6465 = vand.u32 %v795, 4294901760
        %v6466 = vsub.f32 %v795, %v6465
        %v6467 = vand.u32 %v6466, 4294901760
        %v6468 = vsub.f32 %v6466, %v6467
        %v6469 = vand.u32 %v6468, 4294901760
        %6470 = vmatpush1.msra.mxu0 %v6469
        %v6471 = vand.u32 %v800, 4294901760
        %v6472 = vsub.f32 %v800, %v6471
        %v6473 = vand.u32 %v6472, 4294901760
        %v6474 = vsub.f32 %v6472, %v6473
        %v6475 = vand.u32 %v6474, 4294901760
        %6476 = vmatprep.subr.mxu0 %v6475
        %v6477 = vand.u32 %v799, 4294901760
        %v6478 = vsub.f32 %v799, %v6477
        %v6479 = vand.u32 %v6478, 4294901760
        %v6480 = vsub.f32 %v6478, %v6479
        %v6481 = vand.u32 %v6480, 4294901760
        %6482 = vmatpush1.msra.mxu0 %v6481
        %6483 = vmatprep.subr.mxu0 0.0
        %6484 = vmatpush1.msra.mxu0 0.0
        %6485 = vmatprep.subr.mxu0 0.0
        %6486 = vmatpush1.msra.mxu0 0.0
        %6487 = vmatprep.subr.mxu0 0.0
        %6488 = vmatpush1.msra.mxu0 0.0
        %6489 = vmatprep.subr.mxu0 0.0
        %6490 = vmatpush1.msra.mxu0 0.0
        %6491 = vmatprep.subr.mxu0 0.0
        %6492 = vmatpush1.msra.mxu0 0.0
        %6493 = vmatprep.subr.mxu0 0.0
        %6494 = vmatpush1.msra.mxu0 0.0
        %6495 = vmatprep.subr.mxu0 0.0
        %6496 = vmatpush1.msra.mxu0 0.0
        %6497 = vmatprep.subr.mxu0 0.0
        %6498 = vmatpush1.msra.mxu0 0.0
        %6499 = vmatprep.subr.mxu0 0.0
        %6500 = vmatpush1.msra.mxu0 0.0
        %6501 = vmatprep.subr.mxu0 0.0
        %6502 = vmatpush1.msra.mxu0 0.0
        %6503 = vmatprep.subr.mxu0 0.0
        %6504 = vmatpush1.msra.mxu0 0.0
        %6505 = vmatprep.subr.mxu0 0.0
        %6506 = vmatpush1.msra.mxu0 0.0
        %6507 = vmatprep.subr.mxu0 0.0
        %6508 = vmatpush1.msra.mxu0 0.0
        %6509 = vmatprep.subr.mxu0 0.0
        %6510 = vmatpush1.msra.mxu0 0.0
        %6511 = vmatprep.subr.mxu0 0.0
        %6512 = vmatpush1.msra.mxu0 0.0
        %6513 = vmatprep.subr.mxu0 0.0
        %6514 = vmatpush1.msra.mxu0 0.0
        %6515 = vmatprep.subr.mxu0 0.0
        %6516 = vmatpush1.msra.mxu0 0.0
        %6517 = vmatprep.subr.mxu0 0.0
        %6518 = vmatpush1.msra.mxu0 0.0
        %6519 = vmatprep.subr.mxu0 0.0
        %6520 = vmatpush1.msra.mxu0 0.0
        %6521 = vmatprep.subr.mxu0 0.0
        %6522 = vmatpush1.msra.mxu0 0.0
        %6523 = vmatprep.subr.mxu0 0.0
        %6524 = vmatpush1.msra.mxu0 0.0
        %6525 = vmatprep.subr.mxu0 0.0
        %6526 = vmatpush1.msra.mxu0 0.0
        %6527 = vmatprep.subr.mxu0 0.0
        %6528 = vmatpush1.msra.mxu0 0.0
        %6529 = vmatprep.mubr.f32.mxu0 0.0
        %v6530 = vand.u32 %v5102, 4294901760
        %6531 = vmatmul.mubr.f32.gmra.mrb[0].mxu0 %v6530
        %v6532 = vpop.f32.mrb[0].mxu0
        %v6533 = vadd.f32 %v6283, %v6532
        %v6534 = vpop.f32.mrb[0].mxu0
        %v6535 = vadd.f32 %v6285, %v6534
        %6536 = vmatprep.mubr.f32.mxu0 0.0
        %v6537 = vand.u32 %v5105, 4294901760
        %6538 = vmatmul.mubr.f32.gmra.mrb[0].mxu0 %v6537
        %v6539 = vpop.f32.mrb[0].mxu0
        %v6540 = vadd.f32 %v6294, %v6539
        %v6541 = vpop.f32.mrb[0].mxu0
        %v6542 = vadd.f32 %v6296, %v6541
        %6543 = vmatprep.mubr.f32.mxu0 0.0
        %v6544 = vand.u32 %v5108, 4294901760
        %6545 = vmatmul.mubr.f32.gmra.mrb[0].mxu0 %v6544
        %v6546 = vpop.f32.mrb[0].mxu0
        %v6547 = vadd.f32 %v6305, %v6546
        %v6548 = vpop.f32.mrb[0].mxu0
        %v6549 = vadd.f32 %v6307, %v6548
        %6550 = vmatprep.mubr.f32.mxu0 0.0
        %v6551 = vand.u32 %v5111, 4294901760
        %6552 = vmatmul.mubr.f32.gmra.mrb[0].mxu0 %v6551
        %v6553 = vpop.f32.mrb[0].mxu0
        %v6554 = vadd.f32 %v6316, %v6553
        %v6555 = vpop.f32.mrb[0].mxu0
        %v6556 = vadd.f32 %v6318, %v6555
        %6557 = vmatprep.mubr.f32.mxu0 0.0
        %v6558 = vand.u32 %v5114, 4294901760
        %6559 = vmatmul.mubr.f32.gmra.mrb[0].mxu0 %v6558
        %v6560 = vpop.f32.mrb[0].mxu0
        %v6561 = vadd.f32 %v6327, %v6560
        %v6562 = vpop.f32.mrb[0].mxu0
        %v6563 = vadd.f32 %v6329, %v6562
        %6564 = vmatprep.mubr.f32.mxu0 0.0
        %v6565 = vand.u32 %v5117, 4294901760
        %6566 = vmatmul.mubr.f32.gmra.mrb[0].mxu0 %v6565
        %v6567 = vpop.f32.mrb[0].mxu0
        %v6568 = vadd.f32 %v6338, %v6567
        %v6569 = vpop.f32.mrb[0].mxu0
        %v6570 = vadd.f32 %v6340, %v6569
        %6571 = vmatprep.mubr.f32.mxu0 0.0
        %v6572 = vand.u32 %v5120, 4294901760
        %6573 = vmatmul.mubr.f32.gmra.mrb[0].mxu0 %v6572
        %v6574 = vpop.f32.mrb[0].mxu0
        %v6575 = vadd.f32 %v6349, %v6574
        %v6576 = vpop.f32.mrb[0].mxu0
        %v6577 = vadd.f32 %v6351, %v6576
        %6578 = vmatprep.mubr.f32.mxu0 0.0
        %v6579 = vand.u32 %v5123, 4294901760
        %6580 = vmatmul.mubr.f32.gmra.mrb[0].mxu0 %v6579
        %v6581 = vpop.f32.mrb[0].mxu0
        %v6582 = vadd.f32 %v6360, %v6581
        %v6583 = vpop.f32.mrb[0].mxu0
        %v6584 = vadd.f32 %v6362, %v6583
        %6585 = vmatprep.mubr.f32.mxu0 0.0
        %v6586 = vand.u32 %v5126, 4294901760
        %6587 = vmatmul.mubr.f32.gmra.mrb[0].mxu0 %v6586
        %v6588 = vpop.f32.mrb[0].mxu0
        %v6589 = vadd.f32 %v6371, %v6588
        %v6590 = vpop.f32.mrb[0].mxu0
        %v6591 = vadd.f32 %v6373, %v6590
        %6592 = vdwg.mxu0
        %v6593 = vand.u32 %v768, 4294901760
        %v6594 = vsub.f32 %v768, %v6593
        %6595 = vmatprep.subr.mxu0 %v6594
        %v6596 = vand.u32 %v767, 4294901760
        %v6597 = vsub.f32 %v767, %v6596
        %6598 = vmatpush1.msra.mxu0 %v6597
        %v6599 = vand.u32 %v772, 4294901760
        %v6600 = vsub.f32 %v772, %v6599
        %6601 = vmatprep.subr.mxu0 %v6600
        %v6602 = vand.u32 %v771, 4294901760
        %v6603 = vsub.f32 %v771, %v6602
        %6604 = vmatpush1.msra.mxu0 %v6603
        %v6605 = vand.u32 %v776, 4294901760
        %v6606 = vsub.f32 %v776, %v6605
        %6607 = vmatprep.subr.mxu0 %v6606
        %v6608 = vand.u32 %v775, 4294901760
        %v6609 = vsub.f32 %v775, %v6608
        %6610 = vmatpush1.msra.mxu0 %v6609
        %v6611 = vand.u32 %v780, 4294901760
        %v6612 = vsub.f32 %v780, %v6611
        %6613 = vmatprep.subr.mxu0 %v6612
        %v6614 = vand.u32 %v779, 4294901760
        %v6615 = vsub.f32 %v779, %v6614
        %6616 = vmatpush1.msra.mxu0 %v6615
        %v6617 = vand.u32 %v784, 4294901760
        %v6618 = vsub.f32 %v784, %v6617
        %6619 = vmatprep.subr.mxu0 %v6618
        %v6620 = vand.u32 %v783, 4294901760
        %v6621 = vsub.f32 %v783, %v6620
        %6622 = vmatpush1.msra.mxu0 %v6621
        %v6623 = vand.u32 %v788, 4294901760
        %v6624 = vsub.f32 %v788, %v6623
        %6625 = vmatprep.subr.mxu0 %v6624
        %v6626 = vand.u32 %v787, 4294901760
        %v6627 = vsub.f32 %v787, %v6626
        %6628 = vmatpush1.msra.mxu0 %v6627
        %v6629 = vand.u32 %v792, 4294901760
        %v6630 = vsub.f32 %v792, %v6629
        %6631 = vmatprep.subr.mxu0 %v6630
        %v6632 = vand.u32 %v791, 4294901760
        %v6633 = vsub.f32 %v791, %v6632
        %6634 = vmatpush1.msra.mxu0 %v6633
        %v6635 = vand.u32 %v796, 4294901760
        %v6636 = vsub.f32 %v796, %v6635
        %6637 = vmatprep.subr.mxu0 %v6636
        %v6638 = vand.u32 %v795, 4294901760
        %v6639 = vsub.f32 %v795, %v6638
        %6640 = vmatpush1.msra.mxu0 %v6639
        %v6641 = vand.u32 %v800, 4294901760
        %v6642 = vsub.f32 %v800, %v6641
        %6643 = vmatprep.subr.mxu0 %v6642
        %v6644 = vand.u32 %v799, 4294901760
        %v6645 = vsub.f32 %v799, %v6644
        %6646 = vmatpush1.msra.mxu0 %v6645
        %6647 = vmatprep.subr.mxu0 0.0
        %6648 = vmatpush1.msra.mxu0 0.0
        %6649 = vmatprep.subr.mxu0 0.0
        %6650 = vmatpush1.msra.mxu0 0.0
        %6651 = vmatprep.subr.mxu0 0.0
        %6652 = vmatpush1.msra.mxu0 0.0
        %6653 = vmatprep.subr.mxu0 0.0
        %6654 = vmatpush1.msra.mxu0 0.0
        %6655 = vmatprep.subr.mxu0 0.0
        %6656 = vmatpush1.msra.mxu0 0.0
        %6657 = vmatprep.subr.mxu0 0.0
        %6658 = vmatpush1.msra.mxu0 0.0
        %6659 = vmatprep.subr.mxu0 0.0
        %6660 = vmatpush1.msra.mxu0 0.0
        %6661 = vmatprep.subr.mxu0 0.0
        %6662 = vmatpush1.msra.mxu0 0.0
        %6663 = vmatprep.subr.mxu0 0.0
        %6664 = vmatpush1.msra.mxu0 0.0
        %6665 = vmatprep.subr.mxu0 0.0
        %6666 = vmatpush1.msra.mxu0 0.0
        %6667 = vmatprep.subr.mxu0 0.0
        %6668 = vmatpush1.msra.mxu0 0.0
        %6669 = vmatprep.subr.mxu0 0.0
        %6670 = vmatpush1.msra.mxu0 0.0
        %6671 = vmatprep.subr.mxu0 0.0
        %6672 = vmatpush1.msra.mxu0 0.0
        %6673 = vmatprep.subr.mxu0 0.0
        %6674 = vmatpush1.msra.mxu0 0.0
        %6675 = vmatprep.subr.mxu0 0.0
        %6676 = vmatpush1.msra.mxu0 0.0
        %6677 = vmatprep.subr.mxu0 0.0
        %6678 = vmatpush1.msra.mxu0 0.0
        %6679 = vmatprep.subr.mxu0 0.0
        %6680 = vmatpush1.msra.mxu0 0.0
        %6681 = vmatprep.subr.mxu0 0.0
        %6682 = vmatpush1.msra.mxu0 0.0
        %6683 = vmatprep.subr.mxu0 0.0
        %6684 = vmatpush1.msra.mxu0 0.0
        %6685 = vmatprep.subr.mxu0 0.0
        %6686 = vmatpush1.msra.mxu0 0.0
        %6687 = vmatprep.subr.mxu0 0.0
        %6688 = vmatpush1.msra.mxu0 0.0
        %6689 = vmatprep.subr.mxu0 0.0
        %6690 = vmatpush1.msra.mxu0 0.0
        %6691 = vmatprep.subr.mxu0 0.0
        %6692 = vmatpush1.msra.mxu0 0.0
        %6693 = vmatprep.mubr.f32.mxu0 0.0
        %v6694 = vand.u32 %v5102, 4294901760
        %v6695 = vsub.f32 %v5102, %v6694
        %6696 = vmatmul.mubr.f32.gmra.mrb[0].mxu0 %v6695
        %v6697 = vpop.f32.mrb[0].mxu0
        %v6698 = vadd.f32 %v6533, %v6697
        %v6699 = vpop.f32.mrb[0].mxu0
        %v6700 = vadd.f32 %v6535, %v6699
        %6701 = vmatprep.mubr.f32.mxu0 0.0
        %v6702 = vand.u32 %v5105, 4294901760
        %v6703 = vsub.f32 %v5105, %v6702
        %6704 = vmatmul.mubr.f32.gmra.mrb[0].mxu0 %v6703
        %v6705 = vpop.f32.mrb[0].mxu0
        %v6706 = vadd.f32 %v6540, %v6705
        %v6707 = vpop.f32.mrb[0].mxu0
        %v6708 = vadd.f32 %v6542, %v6707
        %6709 = vmatprep.mubr.f32.mxu0 0.0
        %v6710 = vand.u32 %v5108, 4294901760
        %v6711 = vsub.f32 %v5108, %v6710
        %6712 = vmatmul.mubr.f32.gmra.mrb[0].mxu0 %v6711
        %v6713 = vpop.f32.mrb[0].mxu0
        %v6714 = vadd.f32 %v6547, %v6713
        %v6715 = vpop.f32.mrb[0].mxu0
        %v6716 = vadd.f32 %v6549, %v6715
        %6717 = vmatprep.mubr.f32.mxu0 0.0
        %v6718 = vand.u32 %v5111, 4294901760
        %v6719 = vsub.f32 %v5111, %v6718
        %6720 = vmatmul.mubr.f32.gmra.mrb[0].mxu0 %v6719
        %v6721 = vpop.f32.mrb[0].mxu0
        %v6722 = vadd.f32 %v6554, %v6721
        %v6723 = vpop.f32.mrb[0].mxu0
        %v6724 = vadd.f32 %v6556, %v6723
        %6725 = vmatprep.mubr.f32.mxu0 0.0
        %v6726 = vand.u32 %v5114, 4294901760
        %v6727 = vsub.f32 %v5114, %v6726
        %6728 = vmatmul.mubr.f32.gmra.mrb[0].mxu0 %v6727
        %v6729 = vpop.f32.mrb[0].mxu0
        %v6730 = vadd.f32 %v6561, %v6729
        %v6731 = vpop.f32.mrb[0].mxu0
        %v6732 = vadd.f32 %v6563, %v6731
        %6733 = vmatprep.mubr.f32.mxu0 0.0
        %v6734 = vand.u32 %v5117, 4294901760
        %v6735 = vsub.f32 %v5117, %v6734
        %6736 = vmatmul.mubr.f32.gmra.mrb[0].mxu0 %v6735
        %v6737 = vpop.f32.mrb[0].mxu0
        %v6738 = vadd.f32 %v6568, %v6737
        %v6739 = vpop.f32.mrb[0].mxu0
        %v6740 = vadd.f32 %v6570, %v6739
        %6741 = vmatprep.mubr.f32.mxu0 0.0
        %v6742 = vand.u32 %v5120, 4294901760
        %v6743 = vsub.f32 %v5120, %v6742
        %6744 = vmatmul.mubr.f32.gmra.mrb[0].mxu0 %v6743
        %v6745 = vpop.f32.mrb[0].mxu0
        %v6746 = vadd.f32 %v6575, %v6745
        %v6747 = vpop.f32.mrb[0].mxu0
        %v6748 = vadd.f32 %v6577, %v6747
        %6749 = vmatprep.mubr.f32.mxu0 0.0
        %v6750 = vand.u32 %v5123, 4294901760
        %v6751 = vsub.f32 %v5123, %v6750
        %6752 = vmatmul.mubr.f32.gmra.mrb[0].mxu0 %v6751
        %v6753 = vpop.f32.mrb[0].mxu0
        %v6754 = vadd.f32 %v6582, %v6753
        %v6755 = vpop.f32.mrb[0].mxu0
        %v6756 = vadd.f32 %v6584, %v6755
        %6757 = vmatprep.mubr.f32.mxu0 0.0
        %v6758 = vand.u32 %v5126, 4294901760
        %v6759 = vsub.f32 %v5126, %v6758
        %6760 = vmatmul.mubr.f32.gmra.mrb[0].mxu0 %v6759
        %v6761 = vpop.f32.mrb[0].mxu0
        %v6762 = vadd.f32 %v6589, %v6761
        %v6763 = vpop.f32.mrb[0].mxu0
        %v6764 = vadd.f32 %v6591, %v6763
        %6765 = vdwg.mxu0
        %v6766 = vand.u32 %v768, 4294901760
        %6767 = vmatprep.subr.mxu0 %v6766
        %v6768 = vand.u32 %v767, 4294901760
        %6769 = vmatpush1.msra.mxu0 %v6768
        %v6770 = vand.u32 %v772, 4294901760
        %6771 = vmatprep.subr.mxu0 %v6770
        %v6772 = vand.u32 %v771, 4294901760
        %6773 = vmatpush1.msra.mxu0 %v6772
        %v6774 = vand.u32 %v776, 4294901760
        %6775 = vmatprep.subr.mxu0 %v6774
        %v6776 = vand.u32 %v775, 4294901760
        %6777 = vmatpush1.msra.mxu0 %v6776
        %v6778 = vand.u32 %v780, 4294901760
        %6779 = vmatprep.subr.mxu0 %v6778
        %v6780 = vand.u32 %v779, 4294901760
        %6781 = vmatpush1.msra.mxu0 %v6780
        %v6782 = vand.u32 %v784, 4294901760
        %6783 = vmatprep.subr.mxu0 %v6782
        %v6784 = vand.u32 %v783, 4294901760
        %6785 = vmatpush1.msra.mxu0 %v6784
        %v6786 = vand.u32 %v788, 4294901760
        %6787 = vmatprep.subr.mxu0 %v6786
        %v6788 = vand.u32 %v787, 4294901760
        %6789 = vmatpush1.msra.mxu0 %v6788
        %v6790 = vand.u32 %v792, 4294901760
        %6791 = vmatprep.subr.mxu0 %v6790
        %v6792 = vand.u32 %v791, 4294901760
        %6793 = vmatpush1.msra.mxu0 %v6792
        %v6794 = vand.u32 %v796, 4294901760
        %6795 = vmatprep.subr.mxu0 %v6794
        %v6796 = vand.u32 %v795, 4294901760
        %6797 = vmatpush1.msra.mxu0 %v6796
        %v6798 = vand.u32 %v800, 4294901760
        %6799 = vmatprep.subr.mxu0 %v6798
        %v6800 = vand.u32 %v799, 4294901760
        %6801 = vmatpush1.msra.mxu0 %v6800
        %6802 = vmatprep.subr.mxu0 0.0
        %6803 = vmatpush1.msra.mxu0 0.0
        %6804 = vmatprep.subr.mxu0 0.0
        %6805 = vmatpush1.msra.mxu0 0.0
        %6806 = vmatprep.subr.mxu0 0.0
        %6807 = vmatpush1.msra.mxu0 0.0
        %6808 = vmatprep.subr.mxu0 0.0
        %6809 = vmatpush1.msra.mxu0 0.0
        %6810 = vmatprep.subr.mxu0 0.0
        %6811 = vmatpush1.msra.mxu0 0.0
        %6812 = vmatprep.subr.mxu0 0.0
        %6813 = vmatpush1.msra.mxu0 0.0
        %6814 = vmatprep.subr.mxu0 0.0
        %6815 = vmatpush1.msra.mxu0 0.0
        %6816 = vmatprep.subr.mxu0 0.0
        %6817 = vmatpush1.msra.mxu0 0.0
        %6818 = vmatprep.subr.mxu0 0.0
        %6819 = vmatpush1.msra.mxu0 0.0
        %6820 = vmatprep.subr.mxu0 0.0
        %6821 = vmatpush1.msra.mxu0 0.0
        %6822 = vmatprep.subr.mxu0 0.0
        %6823 = vmatpush1.msra.mxu0 0.0
        %6824 = vmatprep.subr.mxu0 0.0
        %6825 = vmatpush1.msra.mxu0 0.0
        %6826 = vmatprep.subr.mxu0 0.0
        %6827 = vmatpush1.msra.mxu0 0.0
        %6828 = vmatprep.subr.mxu0 0.0
        %6829 = vmatpush1.msra.mxu0 0.0
        %6830 = vmatprep.subr.mxu0 0.0
        %6831 = vmatpush1.msra.mxu0 0.0
        %6832 = vmatprep.subr.mxu0 0.0
        %6833 = vmatpush1.msra.mxu0 0.0
        %6834 = vmatprep.subr.mxu0 0.0
        %6835 = vmatpush1.msra.mxu0 0.0
        %6836 = vmatprep.subr.mxu0 0.0
        %6837 = vmatpush1.msra.mxu0 0.0
        %6838 = vmatprep.subr.mxu0 0.0
        %6839 = vmatpush1.msra.mxu0 0.0
        %6840 = vmatprep.subr.mxu0 0.0
        %6841 = vmatpush1.msra.mxu0 0.0
        %6842 = vmatprep.subr.mxu0 0.0
        %6843 = vmatpush1.msra.mxu0 0.0
        %6844 = vmatprep.subr.mxu0 0.0
        %6845 = vmatpush1.msra.mxu0 0.0
        %6846 = vmatprep.subr.mxu0 0.0
        %6847 = vmatpush1.msra.mxu0 0.0
        %6848 = vmatprep.mubr.f32.mxu0 0.0
        %v6849 = vand.u32 %v5102, 4294901760
        %v6850 = vsub.f32 %v5102, %v6849
        %v6851 = vand.u32 %v6850, 4294901760
        %6852 = vmatmul.mubr.f32.gmra.mrb[0].mxu0 %v6851
        %v6853 = vpop.f32.mrb[0].mxu0
        %v6854 = vadd.f32 %v6698, %v6853
        %v6855 = vpop.f32.mrb[0].mxu0
        %v6856 = vadd.f32 %v6700, %v6855
        %6857 = vmatprep.mubr.f32.mxu0 0.0
        %v6858 = vand.u32 %v5105, 4294901760
        %v6859 = vsub.f32 %v5105, %v6858
        %v6860 = vand.u32 %v6859, 4294901760
        %6861 = vmatmul.mubr.f32.gmra.mrb[0].mxu0 %v6860
        %v6862 = vpop.f32.mrb[0].mxu0
        %v6863 = vadd.f32 %v6706, %v6862
        %v6864 = vpop.f32.mrb[0].mxu0
        %v6865 = vadd.f32 %v6708, %v6864
        %6866 = vmatprep.mubr.f32.mxu0 0.0
        %v6867 = vand.u32 %v5108, 4294901760
        %v6868 = vsub.f32 %v5108, %v6867
        %v6869 = vand.u32 %v6868, 4294901760
        %6870 = vmatmul.mubr.f32.gmra.mrb[0].mxu0 %v6869
        %v6871 = vpop.f32.mrb[0].mxu0
        %v6872 = vadd.f32 %v6714, %v6871
        %v6873 = vpop.f32.mrb[0].mxu0
        %v6874 = vadd.f32 %v6716, %v6873
        %6875 = vmatprep.mubr.f32.mxu0 0.0
        %v6876 = vand.u32 %v5111, 4294901760
        %v6877 = vsub.f32 %v5111, %v6876
        %v6878 = vand.u32 %v6877, 4294901760
        %6879 = vmatmul.mubr.f32.gmra.mrb[0].mxu0 %v6878
        %v6880 = vpop.f32.mrb[0].mxu0
        %v6881 = vadd.f32 %v6722, %v6880
        %v6882 = vpop.f32.mrb[0].mxu0
        %v6883 = vadd.f32 %v6724, %v6882
        %6884 = vmatprep.mubr.f32.mxu0 0.0
        %v6885 = vand.u32 %v5114, 4294901760
        %v6886 = vsub.f32 %v5114, %v6885
        %v6887 = vand.u32 %v6886, 4294901760
        %6888 = vmatmul.mubr.f32.gmra.mrb[0].mxu0 %v6887
        %v6889 = vpop.f32.mrb[0].mxu0
        %v6890 = vadd.f32 %v6730, %v6889
        %v6891 = vpop.f32.mrb[0].mxu0
        %v6892 = vadd.f32 %v6732, %v6891
        %6893 = vmatprep.mubr.f32.mxu0 0.0
        %v6894 = vand.u32 %v5117, 4294901760
        %v6895 = vsub.f32 %v5117, %v6894
        %v6896 = vand.u32 %v6895, 4294901760
        %6897 = vmatmul.mubr.f32.gmra.mrb[0].mxu0 %v6896
        %v6898 = vpop.f32.mrb[0].mxu0
        %v6899 = vadd.f32 %v6738, %v6898
        %v6900 = vpop.f32.mrb[0].mxu0
        %v6901 = vadd.f32 %v6740, %v6900
        %6902 = vmatprep.mubr.f32.mxu0 0.0
        %v6903 = vand.u32 %v5120, 4294901760
        %v6904 = vsub.f32 %v5120, %v6903
        %v6905 = vand.u32 %v6904, 4294901760
        %6906 = vmatmul.mubr.f32.gmra.mrb[0].mxu0 %v6905
        %v6907 = vpop.f32.mrb[0].mxu0
        %v6908 = vadd.f32 %v6746, %v6907
        %v6909 = vpop.f32.mrb[0].mxu0
        %v6910 = vadd.f32 %v6748, %v6909
        %6911 = vmatprep.mubr.f32.mxu0 0.0
        %v6912 = vand.u32 %v5123, 4294901760
        %v6913 = vsub.f32 %v5123, %v6912
        %v6914 = vand.u32 %v6913, 4294901760
        %6915 = vmatmul.mubr.f32.gmra.mrb[0].mxu0 %v6914
        %v6916 = vpop.f32.mrb[0].mxu0
        %v6917 = vadd.f32 %v6754, %v6916
        %v6918 = vpop.f32.mrb[0].mxu0
        %v6919 = vadd.f32 %v6756, %v6918
        %6920 = vmatprep.mubr.f32.mxu0 0.0
        %v6921 = vand.u32 %v5126, 4294901760
        %v6922 = vsub.f32 %v5126, %v6921
        %v6923 = vand.u32 %v6922, 4294901760
        %6924 = vmatmul.mubr.f32.gmra.mrb[0].mxu0 %v6923
        %v6925 = vpop.f32.mrb[0].mxu0
        %v6926 = vadd.f32 %v6762, %v6925
        %v6927 = vpop.f32.mrb[0].mxu0
        %v6928 = vadd.f32 %v6764, %v6927
        %6929 = vdwg.mxu0
        %v6930 = vand.u32 %v768, 4294901760
        %v6931 = vsub.f32 %v768, %v6930
        %v6932 = vand.u32 %v6931, 4294901760
        %6933 = vmatprep.subr.mxu0 %v6932
        %v6934 = vand.u32 %v767, 4294901760
        %v6935 = vsub.f32 %v767, %v6934
        %v6936 = vand.u32 %v6935, 4294901760
        %6937 = vmatpush1.msra.mxu0 %v6936
        %v6938 = vand.u32 %v772, 4294901760
        %v6939 = vsub.f32 %v772, %v6938
        %v6940 = vand.u32 %v6939, 4294901760
        %6941 = vmatprep.subr.mxu0 %v6940
        %v6942 = vand.u32 %v771, 4294901760
        %v6943 = vsub.f32 %v771, %v6942
        %v6944 = vand.u32 %v6943, 4294901760
        %6945 = vmatpush1.msra.mxu0 %v6944
        %v6946 = vand.u32 %v776, 4294901760
        %v6947 = vsub.f32 %v776, %v6946
        %v6948 = vand.u32 %v6947, 4294901760
        %6949 = vmatprep.subr.mxu0 %v6948
        %v6950 = vand.u32 %v775, 4294901760
        %v6951 = vsub.f32 %v775, %v6950
        %v6952 = vand.u32 %v6951, 4294901760
        %6953 = vmatpush1.msra.mxu0 %v6952
        %v6954 = vand.u32 %v780, 4294901760
        %v6955 = vsub.f32 %v780, %v6954
        %v6956 = vand.u32 %v6955, 4294901760
        %6957 = vmatprep.subr.mxu0 %v6956
        %v6958 = vand.u32 %v779, 4294901760
        %v6959 = vsub.f32 %v779, %v6958
        %v6960 = vand.u32 %v6959, 4294901760
        %6961 = vmatpush1.msra.mxu0 %v6960
        %v6962 = vand.u32 %v784, 4294901760
        %v6963 = vsub.f32 %v784, %v6962
        %v6964 = vand.u32 %v6963, 4294901760
        %6965 = vmatprep.subr.mxu0 %v6964
        %v6966 = vand.u32 %v783, 4294901760
        %v6967 = vsub.f32 %v783, %v6966
        %v6968 = vand.u32 %v6967, 4294901760
        %6969 = vmatpush1.msra.mxu0 %v6968
        %v6970 = vand.u32 %v788, 4294901760
        %v6971 = vsub.f32 %v788, %v6970
        %v6972 = vand.u32 %v6971, 4294901760
        %6973 = vmatprep.subr.mxu0 %v6972
        %v6974 = vand.u32 %v787, 4294901760
        %v6975 = vsub.f32 %v787, %v6974
        %v6976 = vand.u32 %v6975, 4294901760
        %6977 = vmatpush1.msra.mxu0 %v6976
        %v6978 = vand.u32 %v792, 4294901760
        %v6979 = vsub.f32 %v792, %v6978
        %v6980 = vand.u32 %v6979, 4294901760
        %6981 = vmatprep.subr.mxu0 %v6980
        %v6982 = vand.u32 %v791, 4294901760
        %v6983 = vsub.f32 %v791, %v6982
        %v6984 = vand.u32 %v6983, 4294901760
        %6985 = vmatpush1.msra.mxu0 %v6984
        %v6986 = vand.u32 %v796, 4294901760
        %v6987 = vsub.f32 %v796, %v6986
        %v6988 = vand.u32 %v6987, 4294901760
        %6989 = vmatprep.subr.mxu0 %v6988
        %v6990 = vand.u32 %v795, 4294901760
        %v6991 = vsub.f32 %v795, %v6990
        %v6992 = vand.u32 %v6991, 4294901760
        %6993 = vmatpush1.msra.mxu0 %v6992
        %v6994 = vand.u32 %v800, 4294901760
        %v6995 = vsub.f32 %v800, %v6994
        %v6996 = vand.u32 %v6995, 4294901760
        %6997 = vmatprep.subr.mxu0 %v6996
        %v6998 = vand.u32 %v799, 4294901760
        %v6999 = vsub.f32 %v799, %v6998
        %v7000 = vand.u32 %v6999, 4294901760
        %7001 = vmatpush1.msra.mxu0 %v7000
        %7002 = vmatprep.subr.mxu0 0.0
        %7003 = vmatpush1.msra.mxu0 0.0
        %7004 = vmatprep.subr.mxu0 0.0
        %7005 = vmatpush1.msra.mxu0 0.0
        %7006 = vmatprep.subr.mxu0 0.0
        %7007 = vmatpush1.msra.mxu0 0.0
        %7008 = vmatprep.subr.mxu0 0.0
        %7009 = vmatpush1.msra.mxu0 0.0
        %7010 = vmatprep.subr.mxu0 0.0
        %7011 = vmatpush1.msra.mxu0 0.0
        %7012 = vmatprep.subr.mxu0 0.0
        %7013 = vmatpush1.msra.mxu0 0.0
        %7014 = vmatprep.subr.mxu0 0.0
        %7015 = vmatpush1.msra.mxu0 0.0
        %7016 = vmatprep.subr.mxu0 0.0
        %7017 = vmatpush1.msra.mxu0 0.0
        %7018 = vmatprep.subr.mxu0 0.0
        %7019 = vmatpush1.msra.mxu0 0.0
        %7020 = vmatprep.subr.mxu0 0.0
        %7021 = vmatpush1.msra.mxu0 0.0
        %7022 = vmatprep.subr.mxu0 0.0
        %7023 = vmatpush1.msra.mxu0 0.0
        %7024 = vmatprep.subr.mxu0 0.0
        %7025 = vmatpush1.msra.mxu0 0.0
        %7026 = vmatprep.subr.mxu0 0.0
        %7027 = vmatpush1.msra.mxu0 0.0
        %7028 = vmatprep.subr.mxu0 0.0
        %7029 = vmatpush1.msra.mxu0 0.0
        %7030 = vmatprep.subr.mxu0 0.0
        %7031 = vmatpush1.msra.mxu0 0.0
        %7032 = vmatprep.subr.mxu0 0.0
        %7033 = vmatpush1.msra.mxu0 0.0
        %7034 = vmatprep.subr.mxu0 0.0
        %7035 = vmatpush1.msra.mxu0 0.0
        %7036 = vmatprep.subr.mxu0 0.0
        %7037 = vmatpush1.msra.mxu0 0.0
        %7038 = vmatprep.subr.mxu0 0.0
        %7039 = vmatpush1.msra.mxu0 0.0
        %7040 = vmatprep.subr.mxu0 0.0
        %7041 = vmatpush1.msra.mxu0 0.0
        %7042 = vmatprep.subr.mxu0 0.0
        %7043 = vmatpush1.msra.mxu0 0.0
        %7044 = vmatprep.subr.mxu0 0.0
        %7045 = vmatpush1.msra.mxu0 0.0
        %7046 = vmatprep.subr.mxu0 0.0
        %7047 = vmatpush1.msra.mxu0 0.0
        %7048 = vmatprep.mubr.f32.mxu0 0.0
        %v7049 = vand.u32 %v5102, 4294901760
        %7050 = vmatmul.mubr.f32.gmra.mrb[0].mxu0 %v7049
        %v7051 = vpop.f32.mrb[0].mxu0
        %v7052 = vadd.f32 %v6854, %v7051
        %v7053 = vpop.f32.mrb[0].mxu0
        %v7054 = vadd.f32 %v6856, %v7053
        %7055 = vmatprep.mubr.f32.mxu0 0.0
        %v7056 = vand.u32 %v5105, 4294901760
        %7057 = vmatmul.mubr.f32.gmra.mrb[0].mxu0 %v7056
        %v7058 = vpop.f32.mrb[0].mxu0
        %v7059 = vadd.f32 %v6863, %v7058
        %v7060 = vpop.f32.mrb[0].mxu0
        %v7061 = vadd.f32 %v6865, %v7060
        %7062 = vmatprep.mubr.f32.mxu0 0.0
        %v7063 = vand.u32 %v5108, 4294901760
        %7064 = vmatmul.mubr.f32.gmra.mrb[0].mxu0 %v7063
        %v7065 = vpop.f32.mrb[0].mxu0
        %v7066 = vadd.f32 %v6872, %v7065
        %v7067 = vpop.f32.mrb[0].mxu0
        %v7068 = vadd.f32 %v6874, %v7067
        %7069 = vmatprep.mubr.f32.mxu0 0.0
        %v7070 = vand.u32 %v5111, 4294901760
        %7071 = vmatmul.mubr.f32.gmra.mrb[0].mxu0 %v7070
        %v7072 = vpop.f32.mrb[0].mxu0
        %v7073 = vadd.f32 %v6881, %v7072
        %v7074 = vpop.f32.mrb[0].mxu0
        %v7075 = vadd.f32 %v6883, %v7074
        %7076 = vmatprep.mubr.f32.mxu0 0.0
        %v7077 = vand.u32 %v5114, 4294901760
        %7078 = vmatmul.mubr.f32.gmra.mrb[0].mxu0 %v7077
        %v7079 = vpop.f32.mrb[0].mxu0
        %v7080 = vadd.f32 %v6890, %v7079
        %v7081 = vpop.f32.mrb[0].mxu0
        %v7082 = vadd.f32 %v6892, %v7081
        %7083 = vmatprep.mubr.f32.mxu0 0.0
        %v7084 = vand.u32 %v5117, 4294901760
        %7085 = vmatmul.mubr.f32.gmra.mrb[0].mxu0 %v7084
        %v7086 = vpop.f32.mrb[0].mxu0
        %v7087 = vadd.f32 %v6899, %v7086
        %v7088 = vpop.f32.mrb[0].mxu0
        %v7089 = vadd.f32 %v6901, %v7088
        %7090 = vmatprep.mubr.f32.mxu0 0.0
        %v7091 = vand.u32 %v5120, 4294901760
        %7092 = vmatmul.mubr.f32.gmra.mrb[0].mxu0 %v7091
        %v7093 = vpop.f32.mrb[0].mxu0
        %v7094 = vadd.f32 %v6908, %v7093
        %v7095 = vpop.f32.mrb[0].mxu0
        %v7096 = vadd.f32 %v6910, %v7095
        %7097 = vmatprep.mubr.f32.mxu0 0.0
        %v7098 = vand.u32 %v5123, 4294901760
        %7099 = vmatmul.mubr.f32.gmra.mrb[0].mxu0 %v7098
        %v7100 = vpop.f32.mrb[0].mxu0
        %v7101 = vadd.f32 %v6917, %v7100
        %v7102 = vpop.f32.mrb[0].mxu0
        %v7103 = vadd.f32 %v6919, %v7102
        %7104 = vmatprep.mubr.f32.mxu0 0.0
        %v7105 = vand.u32 %v5126, 4294901760
        %7106 = vmatmul.mubr.f32.gmra.mrb[0].mxu0 %v7105
        %v7107 = vpop.f32.mrb[0].mxu0
        %v7108 = vadd.f32 %v6926, %v7107
        %v7109 = vpop.f32.mrb[0].mxu0
        %v7110 = vadd.f32 %v6928, %v7109
        %7111 = vdwg.mxu0
        %v7112 = vand.u32 %v768, 4294901760
        %7113 = vmatprep.subr.mxu0 %v7112
        %v7114 = vand.u32 %v767, 4294901760
        %7115 = vmatpush1.msra.mxu0 %v7114
        %v7116 = vand.u32 %v772, 4294901760
        %7117 = vmatprep.subr.mxu0 %v7116
        %v7118 = vand.u32 %v771, 4294901760
        %7119 = vmatpush1.msra.mxu0 %v7118
        %v7120 = vand.u32 %v776, 4294901760
        %7121 = vmatprep.subr.mxu0 %v7120
        %v7122 = vand.u32 %v775, 4294901760
        %7123 = vmatpush1.msra.mxu0 %v7122
        %v7124 = vand.u32 %v780, 4294901760
        %7125 = vmatprep.subr.mxu0 %v7124
        %v7126 = vand.u32 %v779, 4294901760
        %7127 = vmatpush1.msra.mxu0 %v7126
        %v7128 = vand.u32 %v784, 4294901760
        %7129 = vmatprep.subr.mxu0 %v7128
        %v7130 = vand.u32 %v783, 4294901760
        %7131 = vmatpush1.msra.mxu0 %v7130
        %v7132 = vand.u32 %v788, 4294901760
        %7133 = vmatprep.subr.mxu0 %v7132
        %v7134 = vand.u32 %v787, 4294901760
        %7135 = vmatpush1.msra.mxu0 %v7134
        %v7136 = vand.u32 %v792, 4294901760
        %7137 = vmatprep.subr.mxu0 %v7136
        %v7138 = vand.u32 %v791, 4294901760
        %7139 = vmatpush1.msra.mxu0 %v7138
        %v7140 = vand.u32 %v796, 4294901760
        %7141 = vmatprep.subr.mxu0 %v7140
        %v7142 = vand.u32 %v795, 4294901760
        %7143 = vmatpush1.msra.mxu0 %v7142
        %v7144 = vand.u32 %v800, 4294901760
        %7145 = vmatprep.subr.mxu0 %v7144
        %v7146 = vand.u32 %v799, 4294901760
        %7147 = vmatpush1.msra.mxu0 %v7146
        %7148 = vmatprep.subr.mxu0 0.0
        %7149 = vmatpush1.msra.mxu0 0.0
        %7150 = vmatprep.subr.mxu0 0.0
        %7151 = vmatpush1.msra.mxu0 0.0
        %7152 = vmatprep.subr.mxu0 0.0
        %7153 = vmatpush1.msra.mxu0 0.0
        %7154 = vmatprep.subr.mxu0 0.0
        %7155 = vmatpush1.msra.mxu0 0.0
        %7156 = vmatprep.subr.mxu0 0.0
        %7157 = vmatpush1.msra.mxu0 0.0
        %7158 = vmatprep.subr.mxu0 0.0
        %7159 = vmatpush1.msra.mxu0 0.0
        %7160 = vmatprep.subr.mxu0 0.0
        %7161 = vmatpush1.msra.mxu0 0.0
        %7162 = vmatprep.subr.mxu0 0.0
        %7163 = vmatpush1.msra.mxu0 0.0
        %7164 = vmatprep.subr.mxu0 0.0
        %7165 = vmatpush1.msra.mxu0 0.0
        %7166 = vmatprep.subr.mxu0 0.0
        %7167 = vmatpush1.msra.mxu0 0.0
        %7168 = vmatprep.subr.mxu0 0.0
        %7169 = vmatpush1.msra.mxu0 0.0
        %7170 = vmatprep.subr.mxu0 0.0
        %7171 = vmatpush1.msra.mxu0 0.0
        %7172 = vmatprep.subr.mxu0 0.0
        %7173 = vmatpush1.msra.mxu0 0.0
        %7174 = vmatprep.subr.mxu0 0.0
        %7175 = vmatpush1.msra.mxu0 0.0
        %7176 = vmatprep.subr.mxu0 0.0
        %7177 = vmatpush1.msra.mxu0 0.0
        %7178 = vmatprep.subr.mxu0 0.0
        %7179 = vmatpush1.msra.mxu0 0.0
        %7180 = vmatprep.subr.mxu0 0.0
        %7181 = vmatpush1.msra.mxu0 0.0
        %7182 = vmatprep.subr.mxu0 0.0
        %7183 = vmatpush1.msra.mxu0 0.0
        %7184 = vmatprep.subr.mxu0 0.0
        %7185 = vmatpush1.msra.mxu0 0.0
        %7186 = vmatprep.subr.mxu0 0.0
        %7187 = vmatpush1.msra.mxu0 0.0
        %7188 = vmatprep.subr.mxu0 0.0
        %7189 = vmatpush1.msra.mxu0 0.0
        %7190 = vmatprep.subr.mxu0 0.0
        %7191 = vmatpush1.msra.mxu0 0.0
        %7192 = vmatprep.subr.mxu0 0.0
        %7193 = vmatpush1.msra.mxu0 0.0
        %7194 = vmatprep.mubr.f32.mxu0 0.0
        %v7195 = vand.u32 %v5102, 4294901760
        %7196 = vmatmul.mubr.f32.gmra.mrb[0].mxu0 %v7195
        %v7197 = vpop.f32.mrb[0].mxu0
        %v7198 = vadd.f32 %v7052, %v7197
        %v7199 = vpop.f32.mrb[0].mxu0
        %v7200 = vadd.f32 %v7054, %v7199
        %7201 = vmatprep.mubr.f32.mxu0 0.0
        %v7202 = vand.u32 %v5105, 4294901760
        %7203 = vmatmul.mubr.f32.gmra.mrb[0].mxu0 %v7202
        %v7204 = vpop.f32.mrb[0].mxu0
        %v7205 = vadd.f32 %v7059, %v7204
        %v7206 = vpop.f32.mrb[0].mxu0
        %v7207 = vadd.f32 %v7061, %v7206
        %7208 = vmatprep.mubr.f32.mxu0 0.0
        %v7209 = vand.u32 %v5108, 4294901760
        %7210 = vmatmul.mubr.f32.gmra.mrb[0].mxu0 %v7209
        %v7211 = vpop.f32.mrb[0].mxu0
        %v7212 = vadd.f32 %v7066, %v7211
        %v7213 = vpop.f32.mrb[0].mxu0
        %v7214 = vadd.f32 %v7068, %v7213
        %7215 = vmatprep.mubr.f32.mxu0 0.0
        %v7216 = vand.u32 %v5111, 4294901760
        %7217 = vmatmul.mubr.f32.gmra.mrb[0].mxu0 %v7216
        %v7218 = vpop.f32.mrb[0].mxu0
        %v7219 = vadd.f32 %v7073, %v7218
        %v7220 = vpop.f32.mrb[0].mxu0
        %v7221 = vadd.f32 %v7075, %v7220
        %7222 = vmatprep.mubr.f32.mxu0 0.0
        %v7223 = vand.u32 %v5114, 4294901760
        %7224 = vmatmul.mubr.f32.gmra.mrb[0].mxu0 %v7223
        %v7225 = vpop.f32.mrb[0].mxu0
        %v7226 = vadd.f32 %v7080, %v7225
        %v7227 = vpop.f32.mrb[0].mxu0
        %v7228 = vadd.f32 %v7082, %v7227
        %7229 = vmatprep.mubr.f32.mxu0 0.0
        %v7230 = vand.u32 %v5117, 4294901760
        %7231 = vmatmul.mubr.f32.gmra.mrb[0].mxu0 %v7230
        %v7232 = vpop.f32.mrb[0].mxu0
        %v7233 = vadd.f32 %v7087, %v7232
        %v7234 = vpop.f32.mrb[0].mxu0
        %v7235 = vadd.f32 %v7089, %v7234
        %7236 = vmatprep.mubr.f32.mxu0 0.0
        %v7237 = vand.u32 %v5120, 4294901760
        %7238 = vmatmul.mubr.f32.gmra.mrb[0].mxu0 %v7237
        %v7239 = vpop.f32.mrb[0].mxu0
        %v7240 = vadd.f32 %v7094, %v7239
        %v7241 = vpop.f32.mrb[0].mxu0
        %v7242 = vadd.f32 %v7096, %v7241
        %7243 = vmatprep.mubr.f32.mxu0 0.0
        %v7244 = vand.u32 %v5123, 4294901760
        %7245 = vmatmul.mubr.f32.gmra.mrb[0].mxu0 %v7244
        %v7246 = vpop.f32.mrb[0].mxu0
        %v7247 = vadd.f32 %v7101, %v7246
        %v7248 = vpop.f32.mrb[0].mxu0
        %v7249 = vadd.f32 %v7103, %v7248
        %7250 = vmatprep.mubr.f32.mxu0 0.0
        %v7251 = vand.u32 %v5126, 4294901760
        %7252 = vmatmul.mubr.f32.gmra.mrb[0].mxu0 %v7251
        %v7253 = vpop.f32.mrb[0].mxu0
        %v7254 = vadd.f32 %v7108, %v7253
        %v7255 = vpop.f32.mrb[0].mxu0
        %v7256 = vadd.f32 %v7110, %v7255
        %7257 = vdwg.mxu0
        %vm7258 = vcmask 719872
        %v7260 = vsel %vm7258, %v5075, 0
        %v7263 = vsel %vm7258, %v5077, 0
        %v7266 = vsel %vm7258, %v5079, 0
        %v7269 = vsel %vm7258, %v5081, 0
        %v7272 = vsel %vm7258, %v5083, 0
        %v7275 = vsel %vm7258, %v5085, 0
        %v7278 = vsel %vm7258, %v5087, 0
        %v7281 = vsel %vm7258, %v5089, 0
        %v7284 = vsel %vm7258, %v5091, 0
        %v7286 = vand.u32 %v4967, 4294901760
        %7287 = vmatprep.subr.mxu0 %v7286
        %v7288 = vand.u32 %v4966, 4294901760
        %7289 = vmatpush1.msra.mxu0 %v7288
        %v7290 = vand.u32 %v4971, 4294901760
        %7291 = vmatprep.subr.mxu0 %v7290
        %v7292 = vand.u32 %v4970, 4294901760
        %7293 = vmatpush1.msra.mxu0 %v7292
        %v7294 = vand.u32 %v4975, 4294901760
        %7295 = vmatprep.subr.mxu0 %v7294
        %v7296 = vand.u32 %v4974, 4294901760
        %7297 = vmatpush1.msra.mxu0 %v7296
        %v7298 = vand.u32 %v4979, 4294901760
        %7299 = vmatprep.subr.mxu0 %v7298
        %v7300 = vand.u32 %v4978, 4294901760
        %7301 = vmatpush1.msra.mxu0 %v7300
        %v7302 = vand.u32 %v4983, 4294901760
        %7303 = vmatprep.subr.mxu0 %v7302
        %v7304 = vand.u32 %v4982, 4294901760
        %7305 = vmatpush1.msra.mxu0 %v7304
        %v7306 = vand.u32 %v4987, 4294901760
        %7307 = vmatprep.subr.mxu0 %v7306
        %v7308 = vand.u32 %v4986, 4294901760
        %7309 = vmatpush1.msra.mxu0 %v7308
        %v7310 = vand.u32 %v4991, 4294901760
        %7311 = vmatprep.subr.mxu0 %v7310
        %v7312 = vand.u32 %v4990, 4294901760
        %7313 = vmatpush1.msra.mxu0 %v7312
        %v7314 = vand.u32 %v4995, 4294901760
        %7315 = vmatprep.subr.mxu0 %v7314
        %v7316 = vand.u32 %v4994, 4294901760
        %7317 = vmatpush1.msra.mxu0 %v7316
        %v7318 = vand.u32 %v4999, 4294901760
        %7319 = vmatprep.subr.mxu0 %v7318
        %v7320 = vand.u32 %v4998, 4294901760
        %7321 = vmatpush1.msra.mxu0 %v7320
        %v7322 = vand.u32 %v5003, 4294901760
        %7323 = vmatprep.subr.mxu0 %v7322
        %v7324 = vand.u32 %v5002, 4294901760
        %7325 = vmatpush1.msra.mxu0 %v7324
        %v7326 = vand.u32 %v5007, 4294901760
        %7327 = vmatprep.subr.mxu0 %v7326
        %v7328 = vand.u32 %v5006, 4294901760
        %7329 = vmatpush1.msra.mxu0 %v7328
        %v7330 = vand.u32 %v5011, 4294901760
        %7331 = vmatprep.subr.mxu0 %v7330
        %v7332 = vand.u32 %v5010, 4294901760
        %7333 = vmatpush1.msra.mxu0 %v7332
        %v7334 = vand.u32 %v5015, 4294901760
        %7335 = vmatprep.subr.mxu0 %v7334
        %v7336 = vand.u32 %v5014, 4294901760
        %7337 = vmatpush1.msra.mxu0 %v7336
        %v7338 = vand.u32 %v5019, 4294901760
        %7339 = vmatprep.subr.mxu0 %v7338
        %v7340 = vand.u32 %v5018, 4294901760
        %7341 = vmatpush1.msra.mxu0 %v7340
        %v7342 = vand.u32 %v5023, 4294901760
        %7343 = vmatprep.subr.mxu0 %v7342
        %v7344 = vand.u32 %v5022, 4294901760
        %7345 = vmatpush1.msra.mxu0 %v7344
        %v7346 = vand.u32 %v5027, 4294901760
        %7347 = vmatprep.subr.mxu0 %v7346
        %v7348 = vand.u32 %v5026, 4294901760
        %7349 = vmatpush1.msra.mxu0 %v7348
        %v7350 = vand.u32 %v5031, 4294901760
        %7351 = vmatprep.subr.mxu0 %v7350
        %v7352 = vand.u32 %v5030, 4294901760
        %7353 = vmatpush1.msra.mxu0 %v7352
        %v7354 = vand.u32 %v5035, 4294901760
        %7355 = vmatprep.subr.mxu0 %v7354
        %v7356 = vand.u32 %v5034, 4294901760
        %7357 = vmatpush1.msra.mxu0 %v7356
        %v7358 = vand.u32 %v5039, 4294901760
        %7359 = vmatprep.subr.mxu0 %v7358
        %v7360 = vand.u32 %v5038, 4294901760
        %7361 = vmatpush1.msra.mxu0 %v7360
        %v7362 = vand.u32 %v5043, 4294901760
        %7363 = vmatprep.subr.mxu0 %v7362
        %v7364 = vand.u32 %v5042, 4294901760
        %7365 = vmatpush1.msra.mxu0 %v7364
        %v7366 = vand.u32 %v5047, 4294901760
        %7367 = vmatprep.subr.mxu0 %v7366
        %v7368 = vand.u32 %v5046, 4294901760
        %7369 = vmatpush1.msra.mxu0 %v7368
        %v7370 = vand.u32 %v5051, 4294901760
        %7371 = vmatprep.subr.mxu0 %v7370
        %v7372 = vand.u32 %v5050, 4294901760
        %7373 = vmatpush1.msra.mxu0 %v7372
        %v7374 = vand.u32 %v5055, 4294901760
        %7375 = vmatprep.subr.mxu0 %v7374
        %v7376 = vand.u32 %v5054, 4294901760
        %7377 = vmatpush1.msra.mxu0 %v7376
        %v7378 = vand.u32 %v5059, 4294901760
        %7379 = vmatprep.subr.mxu0 %v7378
        %v7380 = vand.u32 %v5058, 4294901760
        %7381 = vmatpush1.msra.mxu0 %v7380
        %v7382 = vand.u32 %v5063, 4294901760
        %7383 = vmatprep.subr.mxu0 %v7382
        %v7384 = vand.u32 %v5062, 4294901760
        %7385 = vmatpush1.msra.mxu0 %v7384
        %v7386 = vand.u32 %v5067, 4294901760
        %7387 = vmatprep.subr.mxu0 %v7386
        %v7388 = vand.u32 %v5066, 4294901760
        %7389 = vmatpush1.msra.mxu0 %v7388
        %v7390 = vand.u32 %v5071, 4294901760
        %7391 = vmatprep.subr.mxu0 %v7390
        %v7392 = vand.u32 %v5070, 4294901760
        %7393 = vmatpush1.msra.mxu0 %v7392
        %7394 = vmatprep.subr.mxu0 0.0
        %7395 = vmatpush1.msra.mxu0 0.0
        %7396 = vmatprep.subr.mxu0 0.0
        %7397 = vmatpush1.msra.mxu0 0.0
        %7398 = vmatprep.subr.mxu0 0.0
        %7399 = vmatpush1.msra.mxu0 0.0
        %7400 = vmatprep.subr.mxu0 0.0
        %7401 = vmatpush1.msra.mxu0 0.0
        %7402 = vmatprep.subr.mxu0 0.0
        %7403 = vmatpush1.msra.mxu0 0.0
        %v7404 = vand.u32 %v7260, 4294901760
        %v7405 = vsub.f32 %v7260, %v7404
        %v7406 = vand.u32 %v7405, 4294901760
        %v7407 = vsub.f32 %v7405, %v7406
        %v7408 = vand.u32 %v7407, 4294901760
        %7409 = vmatprep.mubr.f32.mxu0 %v7408
        %v7410 = vand.u32 %v5074, 4294901760
        %v7411 = vsub.f32 %v5074, %v7410
        %v7412 = vand.u32 %v7411, 4294901760
        %v7413 = vsub.f32 %v7411, %v7412
        %v7414 = vand.u32 %v7413, 4294901760
        %7415 = vmatmul.mubr.f32.gmra.mrb[0].mxu0 %v7414
        %v7416 = vpop.f32.mrb[0].mxu0
        %v7417 = vadd.f32 %v6133, %v7416
        %v7418 = vpop.f32.mrb[0].mxu0
        %v7419 = vadd.f32 %v6135, %v7418
        %v7420 = vand.u32 %v7263, 4294901760
        %v7421 = vsub.f32 %v7263, %v7420
        %v7422 = vand.u32 %v7421, 4294901760
        %v7423 = vsub.f32 %v7421, %v7422
        %v7424 = vand.u32 %v7423, 4294901760
        %7425 = vmatprep.mubr.f32.mxu0 %v7424
        %v7426 = vand.u32 %v5076, 4294901760
        %v7427 = vsub.f32 %v5076, %v7426
        %v7428 = vand.u32 %v7427, 4294901760
        %v7429 = vsub.f32 %v7427, %v7428
        %v7430 = vand.u32 %v7429, 4294901760
        %7431 = vmatmul.mubr.f32.gmra.mrb[0].mxu0 %v7430
        %v7432 = vpop.f32.mrb[0].mxu0
        %v7433 = vadd.f32 %v6140, %v7432
        %v7434 = vpop.f32.mrb[0].mxu0
        %v7435 = vadd.f32 %v6142, %v7434
        %v7436 = vand.u32 %v7266, 4294901760
        %v7437 = vsub.f32 %v7266, %v7436
        %v7438 = vand.u32 %v7437, 4294901760
        %v7439 = vsub.f32 %v7437, %v7438
        %v7440 = vand.u32 %v7439, 4294901760
        %7441 = vmatprep.mubr.f32.mxu0 %v7440
        %v7442 = vand.u32 %v5078, 4294901760
        %v7443 = vsub.f32 %v5078, %v7442
        %v7444 = vand.u32 %v7443, 4294901760
        %v7445 = vsub.f32 %v7443, %v7444
        %v7446 = vand.u32 %v7445, 4294901760
        %7447 = vmatmul.mubr.f32.gmra.mrb[0].mxu0 %v7446
        %v7448 = vpop.f32.mrb[0].mxu0
        %v7449 = vadd.f32 %v6147, %v7448
        %v7450 = vpop.f32.mrb[0].mxu0
        %v7451 = vadd.f32 %v6149, %v7450
        %v7452 = vand.u32 %v7269, 4294901760
        %v7453 = vsub.f32 %v7269, %v7452
        %v7454 = vand.u32 %v7453, 4294901760
        %v7455 = vsub.f32 %v7453, %v7454
        %v7456 = vand.u32 %v7455, 4294901760
        %7457 = vmatprep.mubr.f32.mxu0 %v7456
        %v7458 = vand.u32 %v5080, 4294901760
        %v7459 = vsub.f32 %v5080, %v7458
        %v7460 = vand.u32 %v7459, 4294901760
        %v7461 = vsub.f32 %v7459, %v7460
        %v7462 = vand.u32 %v7461, 4294901760
        %7463 = vmatmul.mubr.f32.gmra.mrb[0].mxu0 %v7462
        %v7464 = vpop.f32.mrb[0].mxu0
        %v7465 = vadd.f32 %v6154, %v7464
        %v7466 = vpop.f32.mrb[0].mxu0
        %v7467 = vadd.f32 %v6156, %v7466
        %v7468 = vand.u32 %v7272, 4294901760
        %v7469 = vsub.f32 %v7272, %v7468
        %v7470 = vand.u32 %v7469, 4294901760
        %v7471 = vsub.f32 %v7469, %v7470
        %v7472 = vand.u32 %v7471, 4294901760
        %7473 = vmatprep.mubr.f32.mxu0 %v7472
        %v7474 = vand.u32 %v5082, 4294901760
        %v7475 = vsub.f32 %v5082, %v7474
        %v7476 = vand.u32 %v7475, 4294901760
        %v7477 = vsub.f32 %v7475, %v7476
        %v7478 = vand.u32 %v7477, 4294901760
        %7479 = vmatmul.mubr.f32.gmra.mrb[0].mxu0 %v7478
        %v7480 = vpop.f32.mrb[0].mxu0
        %v7481 = vadd.f32 %v6161, %v7480
        %v7482 = vpop.f32.mrb[0].mxu0
        %v7483 = vadd.f32 %v6163, %v7482
        %v7484 = vand.u32 %v7275, 4294901760
        %v7485 = vsub.f32 %v7275, %v7484
        %v7486 = vand.u32 %v7485, 4294901760
        %v7487 = vsub.f32 %v7485, %v7486
        %v7488 = vand.u32 %v7487, 4294901760
        %7489 = vmatprep.mubr.f32.mxu0 %v7488
        %v7490 = vand.u32 %v5084, 4294901760
        %v7491 = vsub.f32 %v5084, %v7490
        %v7492 = vand.u32 %v7491, 4294901760
        %v7493 = vsub.f32 %v7491, %v7492
        %v7494 = vand.u32 %v7493, 4294901760
        %7495 = vmatmul.mubr.f32.gmra.mrb[0].mxu0 %v7494
        %v7496 = vpop.f32.mrb[0].mxu0
        %v7497 = vadd.f32 %v6168, %v7496
        %v7498 = vpop.f32.mrb[0].mxu0
        %v7499 = vadd.f32 %v6170, %v7498
        %v7500 = vand.u32 %v7278, 4294901760
        %v7501 = vsub.f32 %v7278, %v7500
        %v7502 = vand.u32 %v7501, 4294901760
        %v7503 = vsub.f32 %v7501, %v7502
        %v7504 = vand.u32 %v7503, 4294901760
        %7505 = vmatprep.mubr.f32.mxu0 %v7504
        %v7506 = vand.u32 %v5086, 4294901760
        %v7507 = vsub.f32 %v5086, %v7506
        %v7508 = vand.u32 %v7507, 4294901760
        %v7509 = vsub.f32 %v7507, %v7508
        %v7510 = vand.u32 %v7509, 4294901760
        %7511 = vmatmul.mubr.f32.gmra.mrb[0].mxu0 %v7510
        %v7512 = vpop.f32.mrb[0].mxu0
        %v7513 = vadd.f32 %v6175, %v7512
        %v7514 = vpop.f32.mrb[0].mxu0
        %v7515 = vadd.f32 %v6177, %v7514
        %v7516 = vand.u32 %v7281, 4294901760
        %v7517 = vsub.f32 %v7281, %v7516
        %v7518 = vand.u32 %v7517, 4294901760
        %v7519 = vsub.f32 %v7517, %v7518
        %v7520 = vand.u32 %v7519, 4294901760
        %7521 = vmatprep.mubr.f32.mxu0 %v7520
        %v7522 = vand.u32 %v5088, 4294901760
        %v7523 = vsub.f32 %v5088, %v7522
        %v7524 = vand.u32 %v7523, 4294901760
        %v7525 = vsub.f32 %v7523, %v7524
        %v7526 = vand.u32 %v7525, 4294901760
        %7527 = vmatmul.mubr.f32.gmra.mrb[0].mxu0 %v7526
        %v7528 = vpop.f32.mrb[0].mxu0
        %v7529 = vadd.f32 %v6182, %v7528
        %v7530 = vpop.f32.mrb[0].mxu0
        %v7531 = vadd.f32 %v6184, %v7530
        %v7532 = vand.u32 %v7284, 4294901760
        %v7533 = vsub.f32 %v7284, %v7532
        %v7534 = vand.u32 %v7533, 4294901760
        %v7535 = vsub.f32 %v7533, %v7534
        %v7536 = vand.u32 %v7535, 4294901760
        %7537 = vmatprep.mubr.f32.mxu0 %v7536
        %v7538 = vand.u32 %v5090, 4294901760
        %v7539 = vsub.f32 %v5090, %v7538
        %v7540 = vand.u32 %v7539, 4294901760
        %v7541 = vsub.f32 %v7539, %v7540
        %v7542 = vand.u32 %v7541, 4294901760
        %7543 = vmatmul.mubr.f32.gmra.mrb[0].mxu0 %v7542
        %v7544 = vpop.f32.mrb[0].mxu0
        %v7545 = vadd.f32 %v6189, %v7544
        %v7546 = vpop.f32.mrb[0].mxu0
        %v7547 = vadd.f32 %v6191, %v7546
        %7548 = vdwg.mxu0
        %v7549 = vand.u32 %v4967, 4294901760
        %v7550 = vsub.f32 %v4967, %v7549
        %v7551 = vand.u32 %v7550, 4294901760
        %v7552 = vsub.f32 %v7550, %v7551
        %v7553 = vand.u32 %v7552, 4294901760
        %7554 = vmatprep.subr.mxu0 %v7553
        %v7555 = vand.u32 %v4966, 4294901760
        %v7556 = vsub.f32 %v4966, %v7555
        %v7557 = vand.u32 %v7556, 4294901760
        %v7558 = vsub.f32 %v7556, %v7557
        %v7559 = vand.u32 %v7558, 4294901760
        %7560 = vmatpush1.msra.mxu0 %v7559
        %v7561 = vand.u32 %v4971, 4294901760
        %v7562 = vsub.f32 %v4971, %v7561
        %v7563 = vand.u32 %v7562, 4294901760
        %v7564 = vsub.f32 %v7562, %v7563
        %v7565 = vand.u32 %v7564, 4294901760
        %7566 = vmatprep.subr.mxu0 %v7565
        %v7567 = vand.u32 %v4970, 4294901760
        %v7568 = vsub.f32 %v4970, %v7567
        %v7569 = vand.u32 %v7568, 4294901760
        %v7570 = vsub.f32 %v7568, %v7569
        %v7571 = vand.u32 %v7570, 4294901760
        %7572 = vmatpush1.msra.mxu0 %v7571
        %v7573 = vand.u32 %v4975, 4294901760
        %v7574 = vsub.f32 %v4975, %v7573
        %v7575 = vand.u32 %v7574, 4294901760
        %v7576 = vsub.f32 %v7574, %v7575
        %v7577 = vand.u32 %v7576, 4294901760
        %7578 = vmatprep.subr.mxu0 %v7577
        %v7579 = vand.u32 %v4974, 4294901760
        %v7580 = vsub.f32 %v4974, %v7579
        %v7581 = vand.u32 %v7580, 4294901760
        %v7582 = vsub.f32 %v7580, %v7581
        %v7583 = vand.u32 %v7582, 4294901760
        %7584 = vmatpush1.msra.mxu0 %v7583
        %v7585 = vand.u32 %v4979, 4294901760
        %v7586 = vsub.f32 %v4979, %v7585
        %v7587 = vand.u32 %v7586, 4294901760
        %v7588 = vsub.f32 %v7586, %v7587
        %v7589 = vand.u32 %v7588, 4294901760
        %7590 = vmatprep.subr.mxu0 %v7589
        %v7591 = vand.u32 %v4978, 4294901760
        %v7592 = vsub.f32 %v4978, %v7591
        %v7593 = vand.u32 %v7592, 4294901760
        %v7594 = vsub.f32 %v7592, %v7593
        %v7595 = vand.u32 %v7594, 4294901760
        %7596 = vmatpush1.msra.mxu0 %v7595
        %v7597 = vand.u32 %v4983, 4294901760
        %v7598 = vsub.f32 %v4983, %v7597
        %v7599 = vand.u32 %v7598, 4294901760
        %v7600 = vsub.f32 %v7598, %v7599
        %v7601 = vand.u32 %v7600, 4294901760
        %7602 = vmatprep.subr.mxu0 %v7601
        %v7603 = vand.u32 %v4982, 4294901760
        %v7604 = vsub.f32 %v4982, %v7603
        %v7605 = vand.u32 %v7604, 4294901760
        %v7606 = vsub.f32 %v7604, %v7605
        %v7607 = vand.u32 %v7606, 4294901760
        %7608 = vmatpush1.msra.mxu0 %v7607
        %v7609 = vand.u32 %v4987, 4294901760
        %v7610 = vsub.f32 %v4987, %v7609
        %v7611 = vand.u32 %v7610, 4294901760
        %v7612 = vsub.f32 %v7610, %v7611
        %v7613 = vand.u32 %v7612, 4294901760
        %7614 = vmatprep.subr.mxu0 %v7613
        %v7615 = vand.u32 %v4986, 4294901760
        %v7616 = vsub.f32 %v4986, %v7615
        %v7617 = vand.u32 %v7616, 4294901760
        %v7618 = vsub.f32 %v7616, %v7617
        %v7619 = vand.u32 %v7618, 4294901760
        %7620 = vmatpush1.msra.mxu0 %v7619
        %v7621 = vand.u32 %v4991, 4294901760
        %v7622 = vsub.f32 %v4991, %v7621
        %v7623 = vand.u32 %v7622, 4294901760
        %v7624 = vsub.f32 %v7622, %v7623
        %v7625 = vand.u32 %v7624, 4294901760
        %7626 = vmatprep.subr.mxu0 %v7625
        %v7627 = vand.u32 %v4990, 4294901760
        %v7628 = vsub.f32 %v4990, %v7627
        %v7629 = vand.u32 %v7628, 4294901760
        %v7630 = vsub.f32 %v7628, %v7629
        %v7631 = vand.u32 %v7630, 4294901760
        %7632 = vmatpush1.msra.mxu0 %v7631
        %v7633 = vand.u32 %v4995, 4294901760
        %v7634 = vsub.f32 %v4995, %v7633
        %v7635 = vand.u32 %v7634, 4294901760
        %v7636 = vsub.f32 %v7634, %v7635
        %v7637 = vand.u32 %v7636, 4294901760
        %7638 = vmatprep.subr.mxu0 %v7637
        %v7639 = vand.u32 %v4994, 4294901760
        %v7640 = vsub.f32 %v4994, %v7639
        %v7641 = vand.u32 %v7640, 4294901760
        %v7642 = vsub.f32 %v7640, %v7641
        %v7643 = vand.u32 %v7642, 4294901760
        %7644 = vmatpush1.msra.mxu0 %v7643
        %v7645 = vand.u32 %v4999, 4294901760
        %v7646 = vsub.f32 %v4999, %v7645
        %v7647 = vand.u32 %v7646, 4294901760
        %v7648 = vsub.f32 %v7646, %v7647
        %v7649 = vand.u32 %v7648, 4294901760
        %7650 = vmatprep.subr.mxu0 %v7649
        %v7651 = vand.u32 %v4998, 4294901760
        %v7652 = vsub.f32 %v4998, %v7651
        %v7653 = vand.u32 %v7652, 4294901760
        %v7654 = vsub.f32 %v7652, %v7653
        %v7655 = vand.u32 %v7654, 4294901760
        %7656 = vmatpush1.msra.mxu0 %v7655
        %v7657 = vand.u32 %v5003, 4294901760
        %v7658 = vsub.f32 %v5003, %v7657
        %v7659 = vand.u32 %v7658, 4294901760
        %v7660 = vsub.f32 %v7658, %v7659
        %v7661 = vand.u32 %v7660, 4294901760
        %7662 = vmatprep.subr.mxu0 %v7661
        %v7663 = vand.u32 %v5002, 4294901760
        %v7664 = vsub.f32 %v5002, %v7663
        %v7665 = vand.u32 %v7664, 4294901760
        %v7666 = vsub.f32 %v7664, %v7665
        %v7667 = vand.u32 %v7666, 4294901760
        %7668 = vmatpush1.msra.mxu0 %v7667
        %v7669 = vand.u32 %v5007, 4294901760
        %v7670 = vsub.f32 %v5007, %v7669
        %v7671 = vand.u32 %v7670, 4294901760
        %v7672 = vsub.f32 %v7670, %v7671
        %v7673 = vand.u32 %v7672, 4294901760
        %7674 = vmatprep.subr.mxu0 %v7673
        %v7675 = vand.u32 %v5006, 4294901760
        %v7676 = vsub.f32 %v5006, %v7675
        %v7677 = vand.u32 %v7676, 4294901760
        %v7678 = vsub.f32 %v7676, %v7677
        %v7679 = vand.u32 %v7678, 4294901760
        %7680 = vmatpush1.msra.mxu0 %v7679
        %v7681 = vand.u32 %v5011, 4294901760
        %v7682 = vsub.f32 %v5011, %v7681
        %v7683 = vand.u32 %v7682, 4294901760
        %v7684 = vsub.f32 %v7682, %v7683
        %v7685 = vand.u32 %v7684, 4294901760
        %7686 = vmatprep.subr.mxu0 %v7685
        %v7687 = vand.u32 %v5010, 4294901760
        %v7688 = vsub.f32 %v5010, %v7687
        %v7689 = vand.u32 %v7688, 4294901760
        %v7690 = vsub.f32 %v7688, %v7689
        %v7691 = vand.u32 %v7690, 4294901760
        %7692 = vmatpush1.msra.mxu0 %v7691
        %v7693 = vand.u32 %v5015, 4294901760
        %v7694 = vsub.f32 %v5015, %v7693
        %v7695 = vand.u32 %v7694, 4294901760
        %v7696 = vsub.f32 %v7694, %v7695
        %v7697 = vand.u32 %v7696, 4294901760
        %7698 = vmatprep.subr.mxu0 %v7697
        %v7699 = vand.u32 %v5014, 4294901760
        %v7700 = vsub.f32 %v5014, %v7699
        %v7701 = vand.u32 %v7700, 4294901760
        %v7702 = vsub.f32 %v7700, %v7701
        %v7703 = vand.u32 %v7702, 4294901760
        %7704 = vmatpush1.msra.mxu0 %v7703
        %v7705 = vand.u32 %v5019, 4294901760
        %v7706 = vsub.f32 %v5019, %v7705
        %v7707 = vand.u32 %v7706, 4294901760
        %v7708 = vsub.f32 %v7706, %v7707
        %v7709 = vand.u32 %v7708, 4294901760
        %7710 = vmatprep.subr.mxu0 %v7709
        %v7711 = vand.u32 %v5018, 4294901760
        %v7712 = vsub.f32 %v5018, %v7711
        %v7713 = vand.u32 %v7712, 4294901760
        %v7714 = vsub.f32 %v7712, %v7713
        %v7715 = vand.u32 %v7714, 4294901760
        %7716 = vmatpush1.msra.mxu0 %v7715
        %v7717 = vand.u32 %v5023, 4294901760
        %v7718 = vsub.f32 %v5023, %v7717
        %v7719 = vand.u32 %v7718, 4294901760
        %v7720 = vsub.f32 %v7718, %v7719
        %v7721 = vand.u32 %v7720, 4294901760
        %7722 = vmatprep.subr.mxu0 %v7721
        %v7723 = vand.u32 %v5022, 4294901760
        %v7724 = vsub.f32 %v5022, %v7723
        %v7725 = vand.u32 %v7724, 4294901760
        %v7726 = vsub.f32 %v7724, %v7725
        %v7727 = vand.u32 %v7726, 4294901760
        %7728 = vmatpush1.msra.mxu0 %v7727
        %v7729 = vand.u32 %v5027, 4294901760
        %v7730 = vsub.f32 %v5027, %v7729
        %v7731 = vand.u32 %v7730, 4294901760
        %v7732 = vsub.f32 %v7730, %v7731
        %v7733 = vand.u32 %v7732, 4294901760
        %7734 = vmatprep.subr.mxu0 %v7733
        %v7735 = vand.u32 %v5026, 4294901760
        %v7736 = vsub.f32 %v5026, %v7735
        %v7737 = vand.u32 %v7736, 4294901760
        %v7738 = vsub.f32 %v7736, %v7737
        %v7739 = vand.u32 %v7738, 4294901760
        %7740 = vmatpush1.msra.mxu0 %v7739
        %v7741 = vand.u32 %v5031, 4294901760
        %v7742 = vsub.f32 %v5031, %v7741
        %v7743 = vand.u32 %v7742, 4294901760
        %v7744 = vsub.f32 %v7742, %v7743
        %v7745 = vand.u32 %v7744, 4294901760
        %7746 = vmatprep.subr.mxu0 %v7745
        %v7747 = vand.u32 %v5030, 4294901760
        %v7748 = vsub.f32 %v5030, %v7747
        %v7749 = vand.u32 %v7748, 4294901760
        %v7750 = vsub.f32 %v7748, %v7749
        %v7751 = vand.u32 %v7750, 4294901760
        %7752 = vmatpush1.msra.mxu0 %v7751
        %v7753 = vand.u32 %v5035, 4294901760
        %v7754 = vsub.f32 %v5035, %v7753
        %v7755 = vand.u32 %v7754, 4294901760
        %v7756 = vsub.f32 %v7754, %v7755
        %v7757 = vand.u32 %v7756, 4294901760
        %7758 = vmatprep.subr.mxu0 %v7757
        %v7759 = vand.u32 %v5034, 4294901760
        %v7760 = vsub.f32 %v5034, %v7759
        %v7761 = vand.u32 %v7760, 4294901760
        %v7762 = vsub.f32 %v7760, %v7761
        %v7763 = vand.u32 %v7762, 4294901760
        %7764 = vmatpush1.msra.mxu0 %v7763
        %v7765 = vand.u32 %v5039, 4294901760
        %v7766 = vsub.f32 %v5039, %v7765
        %v7767 = vand.u32 %v7766, 4294901760
        %v7768 = vsub.f32 %v7766, %v7767
        %v7769 = vand.u32 %v7768, 4294901760
        %7770 = vmatprep.subr.mxu0 %v7769
        %v7771 = vand.u32 %v5038, 4294901760
        %v7772 = vsub.f32 %v5038, %v7771
        %v7773 = vand.u32 %v7772, 4294901760
        %v7774 = vsub.f32 %v7772, %v7773
        %v7775 = vand.u32 %v7774, 4294901760
        %7776 = vmatpush1.msra.mxu0 %v7775
        %v7777 = vand.u32 %v5043, 4294901760
        %v7778 = vsub.f32 %v5043, %v7777
        %v7779 = vand.u32 %v7778, 4294901760
        %v7780 = vsub.f32 %v7778, %v7779
        %v7781 = vand.u32 %v7780, 4294901760
        %7782 = vmatprep.subr.mxu0 %v7781
        %v7783 = vand.u32 %v5042, 4294901760
        %v7784 = vsub.f32 %v5042, %v7783
        %v7785 = vand.u32 %v7784, 4294901760
        %v7786 = vsub.f32 %v7784, %v7785
        %v7787 = vand.u32 %v7786, 4294901760
        %7788 = vmatpush1.msra.mxu0 %v7787
        %v7789 = vand.u32 %v5047, 4294901760
        %v7790 = vsub.f32 %v5047, %v7789
        %v7791 = vand.u32 %v7790, 4294901760
        %v7792 = vsub.f32 %v7790, %v7791
        %v7793 = vand.u32 %v7792, 4294901760
        %7794 = vmatprep.subr.mxu0 %v7793
        %v7795 = vand.u32 %v5046, 4294901760
        %v7796 = vsub.f32 %v5046, %v7795
        %v7797 = vand.u32 %v7796, 4294901760
        %v7798 = vsub.f32 %v7796, %v7797
        %v7799 = vand.u32 %v7798, 4294901760
        %7800 = vmatpush1.msra.mxu0 %v7799
        %v7801 = vand.u32 %v5051, 4294901760
        %v7802 = vsub.f32 %v5051, %v7801
        %v7803 = vand.u32 %v7802, 4294901760
        %v7804 = vsub.f32 %v7802, %v7803
        %v7805 = vand.u32 %v7804, 4294901760
        %7806 = vmatprep.subr.mxu0 %v7805
        %v7807 = vand.u32 %v5050, 4294901760
        %v7808 = vsub.f32 %v5050, %v7807
        %v7809 = vand.u32 %v7808, 4294901760
        %v7810 = vsub.f32 %v7808, %v7809
        %v7811 = vand.u32 %v7810, 4294901760
        %7812 = vmatpush1.msra.mxu0 %v7811
        %v7813 = vand.u32 %v5055, 4294901760
        %v7814 = vsub.f32 %v5055, %v7813
        %v7815 = vand.u32 %v7814, 4294901760
        %v7816 = vsub.f32 %v7814, %v7815
        %v7817 = vand.u32 %v7816, 4294901760
        %7818 = vmatprep.subr.mxu0 %v7817
        %v7819 = vand.u32 %v5054, 4294901760
        %v7820 = vsub.f32 %v5054, %v7819
        %v7821 = vand.u32 %v7820, 4294901760
        %v7822 = vsub.f32 %v7820, %v7821
        %v7823 = vand.u32 %v7822, 4294901760
        %7824 = vmatpush1.msra.mxu0 %v7823
        %v7825 = vand.u32 %v5059, 4294901760
        %v7826 = vsub.f32 %v5059, %v7825
        %v7827 = vand.u32 %v7826, 4294901760
        %v7828 = vsub.f32 %v7826, %v7827
        %v7829 = vand.u32 %v7828, 4294901760
        %7830 = vmatprep.subr.mxu0 %v7829
        %v7831 = vand.u32 %v5058, 4294901760
        %v7832 = vsub.f32 %v5058, %v7831
        %v7833 = vand.u32 %v7832, 4294901760
        %v7834 = vsub.f32 %v7832, %v7833
        %v7835 = vand.u32 %v7834, 4294901760
        %7836 = vmatpush1.msra.mxu0 %v7835
        %v7837 = vand.u32 %v5063, 4294901760
        %v7838 = vsub.f32 %v5063, %v7837
        %v7839 = vand.u32 %v7838, 4294901760
        %v7840 = vsub.f32 %v7838, %v7839
        %v7841 = vand.u32 %v7840, 4294901760
        %7842 = vmatprep.subr.mxu0 %v7841
        %v7843 = vand.u32 %v5062, 4294901760
        %v7844 = vsub.f32 %v5062, %v7843
        %v7845 = vand.u32 %v7844, 4294901760
        %v7846 = vsub.f32 %v7844, %v7845
        %v7847 = vand.u32 %v7846, 4294901760
        %7848 = vmatpush1.msra.mxu0 %v7847
        %v7849 = vand.u32 %v5067, 4294901760
        %v7850 = vsub.f32 %v5067, %v7849
        %v7851 = vand.u32 %v7850, 4294901760
        %v7852 = vsub.f32 %v7850, %v7851
        %v7853 = vand.u32 %v7852, 4294901760
        %7854 = vmatprep.subr.mxu0 %v7853
        %v7855 = vand.u32 %v5066, 4294901760
        %v7856 = vsub.f32 %v5066, %v7855
        %v7857 = vand.u32 %v7856, 4294901760
        %v7858 = vsub.f32 %v7856, %v7857
        %v7859 = vand.u32 %v7858, 4294901760
        %7860 = vmatpush1.msra.mxu0 %v7859
        %v7861 = vand.u32 %v5071, 4294901760
        %v7862 = vsub.f32 %v5071, %v7861
        %v7863 = vand.u32 %v7862, 4294901760
        %v7864 = vsub.f32 %v7862, %v7863
        %v7865 = vand.u32 %v7864, 4294901760
        %7866 = vmatprep.subr.mxu0 %v7865
        %v7867 = vand.u32 %v5070, 4294901760
        %v7868 = vsub.f32 %v5070, %v7867
        %v7869 = vand.u32 %v7868, 4294901760
        %v7870 = vsub.f32 %v7868, %v7869
        %v7871 = vand.u32 %v7870, 4294901760
        %7872 = vmatpush1.msra.mxu0 %v7871
        %7873 = vmatprep.subr.mxu0 0.0
        %7874 = vmatpush1.msra.mxu0 0.0
        %7875 = vmatprep.subr.mxu0 0.0
        %7876 = vmatpush1.msra.mxu0 0.0
        %7877 = vmatprep.subr.mxu0 0.0
        %7878 = vmatpush1.msra.mxu0 0.0
        %7879 = vmatprep.subr.mxu0 0.0
        %7880 = vmatpush1.msra.mxu0 0.0
        %7881 = vmatprep.subr.mxu0 0.0
        %7882 = vmatpush1.msra.mxu0 0.0
        %v7883 = vand.u32 %v7260, 4294901760
        %7884 = vmatprep.mubr.f32.mxu0 %v7883
        %v7885 = vand.u32 %v5074, 4294901760
        %7886 = vmatmul.mubr.f32.gmra.mrb[0].mxu0 %v7885
        %v7887 = vpop.f32.mrb[0].mxu0
        %v7888 = vadd.f32 %v7417, %v7887
        %v7889 = vpop.f32.mrb[0].mxu0
        %v7890 = vadd.f32 %v7419, %v7889
        %v7891 = vand.u32 %v7263, 4294901760
        %7892 = vmatprep.mubr.f32.mxu0 %v7891
        %v7893 = vand.u32 %v5076, 4294901760
        %7894 = vmatmul.mubr.f32.gmra.mrb[0].mxu0 %v7893
        %v7895 = vpop.f32.mrb[0].mxu0
        %v7896 = vadd.f32 %v7433, %v7895
        %v7897 = vpop.f32.mrb[0].mxu0
        %v7898 = vadd.f32 %v7435, %v7897
        %v7899 = vand.u32 %v7266, 4294901760
        %7900 = vmatprep.mubr.f32.mxu0 %v7899
        %v7901 = vand.u32 %v5078, 4294901760
        %7902 = vmatmul.mubr.f32.gmra.mrb[0].mxu0 %v7901
        %v7903 = vpop.f32.mrb[0].mxu0
        %v7904 = vadd.f32 %v7449, %v7903
        %v7905 = vpop.f32.mrb[0].mxu0
        %v7906 = vadd.f32 %v7451, %v7905
        %v7907 = vand.u32 %v7269, 4294901760
        %7908 = vmatprep.mubr.f32.mxu0 %v7907
        %v7909 = vand.u32 %v5080, 4294901760
        %7910 = vmatmul.mubr.f32.gmra.mrb[0].mxu0 %v7909
        %v7911 = vpop.f32.mrb[0].mxu0
        %v7912 = vadd.f32 %v7465, %v7911
        %v7913 = vpop.f32.mrb[0].mxu0
        %v7914 = vadd.f32 %v7467, %v7913
        %v7915 = vand.u32 %v7272, 4294901760
        %7916 = vmatprep.mubr.f32.mxu0 %v7915
        %v7917 = vand.u32 %v5082, 4294901760
        %7918 = vmatmul.mubr.f32.gmra.mrb[0].mxu0 %v7917
        %v7919 = vpop.f32.mrb[0].mxu0
        %v7920 = vadd.f32 %v7481, %v7919
        %v7921 = vpop.f32.mrb[0].mxu0
        %v7922 = vadd.f32 %v7483, %v7921
        %v7923 = vand.u32 %v7275, 4294901760
        %7924 = vmatprep.mubr.f32.mxu0 %v7923
        %v7925 = vand.u32 %v5084, 4294901760
        %7926 = vmatmul.mubr.f32.gmra.mrb[0].mxu0 %v7925
        %v7927 = vpop.f32.mrb[0].mxu0
        %v7928 = vadd.f32 %v7497, %v7927
        %v7929 = vpop.f32.mrb[0].mxu0
        %v7930 = vadd.f32 %v7499, %v7929
        %v7931 = vand.u32 %v7278, 4294901760
        %7932 = vmatprep.mubr.f32.mxu0 %v7931
        %v7933 = vand.u32 %v5086, 4294901760
        %7934 = vmatmul.mubr.f32.gmra.mrb[0].mxu0 %v7933
        %v7935 = vpop.f32.mrb[0].mxu0
        %v7936 = vadd.f32 %v7513, %v7935
        %v7937 = vpop.f32.mrb[0].mxu0
        %v7938 = vadd.f32 %v7515, %v7937
        %v7939 = vand.u32 %v7281, 4294901760
        %7940 = vmatprep.mubr.f32.mxu0 %v7939
        %v7941 = vand.u32 %v5088, 4294901760
        %7942 = vmatmul.mubr.f32.gmra.mrb[0].mxu0 %v7941
        %v7943 = vpop.f32.mrb[0].mxu0
        %v7944 = vadd.f32 %v7529, %v7943
        %v7945 = vpop.f32.mrb[0].mxu0
        %v7946 = vadd.f32 %v7531, %v7945
        %v7947 = vand.u32 %v7284, 4294901760
        %7948 = vmatprep.mubr.f32.mxu0 %v7947
        %v7949 = vand.u32 %v5090, 4294901760
        %7950 = vmatmul.mubr.f32.gmra.mrb[0].mxu0 %v7949
        %v7951 = vpop.f32.mrb[0].mxu0
        %v7952 = vadd.f32 %v7545, %v7951
        %v7953 = vpop.f32.mrb[0].mxu0
        %v7954 = vadd.f32 %v7547, %v7953
        %7955 = vdwg.mxu0
        %v7956 = vand.u32 %v4967, 4294901760
        %v7957 = vsub.f32 %v4967, %v7956
        %7958 = vmatprep.subr.mxu0 %v7957
        %v7959 = vand.u32 %v4966, 4294901760
        %v7960 = vsub.f32 %v4966, %v7959
        %7961 = vmatpush1.msra.mxu0 %v7960
        %v7962 = vand.u32 %v4971, 4294901760
        %v7963 = vsub.f32 %v4971, %v7962
        %7964 = vmatprep.subr.mxu0 %v7963
        %v7965 = vand.u32 %v4970, 4294901760
        %v7966 = vsub.f32 %v4970, %v7965
        %7967 = vmatpush1.msra.mxu0 %v7966
        %v7968 = vand.u32 %v4975, 4294901760
        %v7969 = vsub.f32 %v4975, %v7968
        %7970 = vmatprep.subr.mxu0 %v7969
        %v7971 = vand.u32 %v4974, 4294901760
        %v7972 = vsub.f32 %v4974, %v7971
        %7973 = vmatpush1.msra.mxu0 %v7972
        %v7974 = vand.u32 %v4979, 4294901760
        %v7975 = vsub.f32 %v4979, %v7974
        %7976 = vmatprep.subr.mxu0 %v7975
        %v7977 = vand.u32 %v4978, 4294901760
        %v7978 = vsub.f32 %v4978, %v7977
        %7979 = vmatpush1.msra.mxu0 %v7978
        %v7980 = vand.u32 %v4983, 4294901760
        %v7981 = vsub.f32 %v4983, %v7980
        %7982 = vmatprep.subr.mxu0 %v7981
        %v7983 = vand.u32 %v4982, 4294901760
        %v7984 = vsub.f32 %v4982, %v7983
        %7985 = vmatpush1.msra.mxu0 %v7984
        %v7986 = vand.u32 %v4987, 4294901760
        %v7987 = vsub.f32 %v4987, %v7986
        %7988 = vmatprep.subr.mxu0 %v7987
        %v7989 = vand.u32 %v4986, 4294901760
        %v7990 = vsub.f32 %v4986, %v7989
        %7991 = vmatpush1.msra.mxu0 %v7990
        %v7992 = vand.u32 %v4991, 4294901760
        %v7993 = vsub.f32 %v4991, %v7992
        %7994 = vmatprep.subr.mxu0 %v7993
        %v7995 = vand.u32 %v4990, 4294901760
        %v7996 = vsub.f32 %v4990, %v7995
        %7997 = vmatpush1.msra.mxu0 %v7996
        %v7998 = vand.u32 %v4995, 4294901760
        %v7999 = vsub.f32 %v4995, %v7998
        %8000 = vmatprep.subr.mxu0 %v7999
        %v8001 = vand.u32 %v4994, 4294901760
        %v8002 = vsub.f32 %v4994, %v8001
        %8003 = vmatpush1.msra.mxu0 %v8002
        %v8004 = vand.u32 %v4999, 4294901760
        %v8005 = vsub.f32 %v4999, %v8004
        %8006 = vmatprep.subr.mxu0 %v8005
        %v8007 = vand.u32 %v4998, 4294901760
        %v8008 = vsub.f32 %v4998, %v8007
        %8009 = vmatpush1.msra.mxu0 %v8008
        %v8010 = vand.u32 %v5003, 4294901760
        %v8011 = vsub.f32 %v5003, %v8010
        %8012 = vmatprep.subr.mxu0 %v8011
        %v8013 = vand.u32 %v5002, 4294901760
        %v8014 = vsub.f32 %v5002, %v8013
        %8015 = vmatpush1.msra.mxu0 %v8014
        %v8016 = vand.u32 %v5007, 4294901760
        %v8017 = vsub.f32 %v5007, %v8016
        %8018 = vmatprep.subr.mxu0 %v8017
        %v8019 = vand.u32 %v5006, 4294901760
        %v8020 = vsub.f32 %v5006, %v8019
        %8021 = vmatpush1.msra.mxu0 %v8020
        %v8022 = vand.u32 %v5011, 4294901760
        %v8023 = vsub.f32 %v5011, %v8022
        %8024 = vmatprep.subr.mxu0 %v8023
        %v8025 = vand.u32 %v5010, 4294901760
        %v8026 = vsub.f32 %v5010, %v8025
        %8027 = vmatpush1.msra.mxu0 %v8026
        %v8028 = vand.u32 %v5015, 4294901760
        %v8029 = vsub.f32 %v5015, %v8028
        %8030 = vmatprep.subr.mxu0 %v8029
        %v8031 = vand.u32 %v5014, 4294901760
        %v8032 = vsub.f32 %v5014, %v8031
        %8033 = vmatpush1.msra.mxu0 %v8032
        %v8034 = vand.u32 %v5019, 4294901760
        %v8035 = vsub.f32 %v5019, %v8034
        %8036 = vmatprep.subr.mxu0 %v8035
        %v8037 = vand.u32 %v5018, 4294901760
        %v8038 = vsub.f32 %v5018, %v8037
        %8039 = vmatpush1.msra.mxu0 %v8038
        %v8040 = vand.u32 %v5023, 4294901760
        %v8041 = vsub.f32 %v5023, %v8040
        %8042 = vmatprep.subr.mxu0 %v8041
        %v8043 = vand.u32 %v5022, 4294901760
        %v8044 = vsub.f32 %v5022, %v8043
        %8045 = vmatpush1.msra.mxu0 %v8044
        %v8046 = vand.u32 %v5027, 4294901760
        %v8047 = vsub.f32 %v5027, %v8046
        %8048 = vmatprep.subr.mxu0 %v8047
        %v8049 = vand.u32 %v5026, 4294901760
        %v8050 = vsub.f32 %v5026, %v8049
        %8051 = vmatpush1.msra.mxu0 %v8050
        %v8052 = vand.u32 %v5031, 4294901760
        %v8053 = vsub.f32 %v5031, %v8052
        %8054 = vmatprep.subr.mxu0 %v8053
        %v8055 = vand.u32 %v5030, 4294901760
        %v8056 = vsub.f32 %v5030, %v8055
        %8057 = vmatpush1.msra.mxu0 %v8056
        %v8058 = vand.u32 %v5035, 4294901760
        %v8059 = vsub.f32 %v5035, %v8058
        %8060 = vmatprep.subr.mxu0 %v8059
        %v8061 = vand.u32 %v5034, 4294901760
        %v8062 = vsub.f32 %v5034, %v8061
        %8063 = vmatpush1.msra.mxu0 %v8062
        %v8064 = vand.u32 %v5039, 4294901760
        %v8065 = vsub.f32 %v5039, %v8064
        %8066 = vmatprep.subr.mxu0 %v8065
        %v8067 = vand.u32 %v5038, 4294901760
        %v8068 = vsub.f32 %v5038, %v8067
        %8069 = vmatpush1.msra.mxu0 %v8068
        %v8070 = vand.u32 %v5043, 4294901760
        %v8071 = vsub.f32 %v5043, %v8070
        %8072 = vmatprep.subr.mxu0 %v8071
        %v8073 = vand.u32 %v5042, 4294901760
        %v8074 = vsub.f32 %v5042, %v8073
        %8075 = vmatpush1.msra.mxu0 %v8074
        %v8076 = vand.u32 %v5047, 4294901760
        %v8077 = vsub.f32 %v5047, %v8076
        %8078 = vmatprep.subr.mxu0 %v8077
        %v8079 = vand.u32 %v5046, 4294901760
        %v8080 = vsub.f32 %v5046, %v8079
        %8081 = vmatpush1.msra.mxu0 %v8080
        %v8082 = vand.u32 %v5051, 4294901760
        %v8083 = vsub.f32 %v5051, %v8082
        %8084 = vmatprep.subr.mxu0 %v8083
        %v8085 = vand.u32 %v5050, 4294901760
        %v8086 = vsub.f32 %v5050, %v8085
        %8087 = vmatpush1.msra.mxu0 %v8086
        %v8088 = vand.u32 %v5055, 4294901760
        %v8089 = vsub.f32 %v5055, %v8088
        %8090 = vmatprep.subr.mxu0 %v8089
        %v8091 = vand.u32 %v5054, 4294901760
        %v8092 = vsub.f32 %v5054, %v8091
        %8093 = vmatpush1.msra.mxu0 %v8092
        %v8094 = vand.u32 %v5059, 4294901760
        %v8095 = vsub.f32 %v5059, %v8094
        %8096 = vmatprep.subr.mxu0 %v8095
        %v8097 = vand.u32 %v5058, 4294901760
        %v8098 = vsub.f32 %v5058, %v8097
        %8099 = vmatpush1.msra.mxu0 %v8098
        %v8100 = vand.u32 %v5063, 4294901760
        %v8101 = vsub.f32 %v5063, %v8100
        %8102 = vmatprep.subr.mxu0 %v8101
        %v8103 = vand.u32 %v5062, 4294901760
        %v8104 = vsub.f32 %v5062, %v8103
        %8105 = vmatpush1.msra.mxu0 %v8104
        %v8106 = vand.u32 %v5067, 4294901760
        %v8107 = vsub.f32 %v5067, %v8106
        %8108 = vmatprep.subr.mxu0 %v8107
        %v8109 = vand.u32 %v5066, 4294901760
        %v8110 = vsub.f32 %v5066, %v8109
        %8111 = vmatpush1.msra.mxu0 %v8110
        %v8112 = vand.u32 %v5071, 4294901760
        %v8113 = vsub.f32 %v5071, %v8112
        %8114 = vmatprep.subr.mxu0 %v8113
        %v8115 = vand.u32 %v5070, 4294901760
        %v8116 = vsub.f32 %v5070, %v8115
        %8117 = vmatpush1.msra.mxu0 %v8116
        %8118 = vmatprep.subr.mxu0 0.0
        %8119 = vmatpush1.msra.mxu0 0.0
        %8120 = vmatprep.subr.mxu0 0.0
        %8121 = vmatpush1.msra.mxu0 0.0
        %8122 = vmatprep.subr.mxu0 0.0
        %8123 = vmatpush1.msra.mxu0 0.0
        %8124 = vmatprep.subr.mxu0 0.0
        %8125 = vmatpush1.msra.mxu0 0.0
        %8126 = vmatprep.subr.mxu0 0.0
        %8127 = vmatpush1.msra.mxu0 0.0
        %v8128 = vand.u32 %v7260, 4294901760
        %v8129 = vsub.f32 %v7260, %v8128
        %8130 = vmatprep.mubr.f32.mxu0 %v8129
        %v8131 = vand.u32 %v5074, 4294901760
        %v8132 = vsub.f32 %v5074, %v8131
        %8133 = vmatmul.mubr.f32.gmra.mrb[0].mxu0 %v8132
        %v8134 = vpop.f32.mrb[0].mxu0
        %v8135 = vadd.f32 %v7888, %v8134
        %v8136 = vpop.f32.mrb[0].mxu0
        %v8137 = vadd.f32 %v7890, %v8136
        %v8138 = vand.u32 %v7263, 4294901760
        %v8139 = vsub.f32 %v7263, %v8138
        %8140 = vmatprep.mubr.f32.mxu0 %v8139
        %v8141 = vand.u32 %v5076, 4294901760
        %v8142 = vsub.f32 %v5076, %v8141
        %8143 = vmatmul.mubr.f32.gmra.mrb[0].mxu0 %v8142
        %v8144 = vpop.f32.mrb[0].mxu0
        %v8145 = vadd.f32 %v7896, %v8144
        %v8146 = vpop.f32.mrb[0].mxu0
        %v8147 = vadd.f32 %v7898, %v8146
        %v8148 = vand.u32 %v7266, 4294901760
        %v8149 = vsub.f32 %v7266, %v8148
        %8150 = vmatprep.mubr.f32.mxu0 %v8149
        %v8151 = vand.u32 %v5078, 4294901760
        %v8152 = vsub.f32 %v5078, %v8151
        %8153 = vmatmul.mubr.f32.gmra.mrb[0].mxu0 %v8152
        %v8154 = vpop.f32.mrb[0].mxu0
        %v8155 = vadd.f32 %v7904, %v8154
        %v8156 = vpop.f32.mrb[0].mxu0
        %v8157 = vadd.f32 %v7906, %v8156
        %v8158 = vand.u32 %v7269, 4294901760
        %v8159 = vsub.f32 %v7269, %v8158
        %8160 = vmatprep.mubr.f32.mxu0 %v8159
        %v8161 = vand.u32 %v5080, 4294901760
        %v8162 = vsub.f32 %v5080, %v8161
        %8163 = vmatmul.mubr.f32.gmra.mrb[0].mxu0 %v8162
        %v8164 = vpop.f32.mrb[0].mxu0
        %v8165 = vadd.f32 %v7912, %v8164
        %v8166 = vpop.f32.mrb[0].mxu0
        %v8167 = vadd.f32 %v7914, %v8166
        %v8168 = vand.u32 %v7272, 4294901760
        %v8169 = vsub.f32 %v7272, %v8168
        %8170 = vmatprep.mubr.f32.mxu0 %v8169
        %v8171 = vand.u32 %v5082, 4294901760
        %v8172 = vsub.f32 %v5082, %v8171
        %8173 = vmatmul.mubr.f32.gmra.mrb[0].mxu0 %v8172
        %v8174 = vpop.f32.mrb[0].mxu0
        %v8175 = vadd.f32 %v7920, %v8174
        %v8176 = vpop.f32.mrb[0].mxu0
        %v8177 = vadd.f32 %v7922, %v8176
        %v8178 = vand.u32 %v7275, 4294901760
        %v8179 = vsub.f32 %v7275, %v8178
        %8180 = vmatprep.mubr.f32.mxu0 %v8179
        %v8181 = vand.u32 %v5084, 4294901760
        %v8182 = vsub.f32 %v5084, %v8181
        %8183 = vmatmul.mubr.f32.gmra.mrb[0].mxu0 %v8182
        %v8184 = vpop.f32.mrb[0].mxu0
        %v8185 = vadd.f32 %v7928, %v8184
        %v8186 = vpop.f32.mrb[0].mxu0
        %v8187 = vadd.f32 %v7930, %v8186
        %v8188 = vand.u32 %v7278, 4294901760
        %v8189 = vsub.f32 %v7278, %v8188
        %8190 = vmatprep.mubr.f32.mxu0 %v8189
        %v8191 = vand.u32 %v5086, 4294901760
        %v8192 = vsub.f32 %v5086, %v8191
        %8193 = vmatmul.mubr.f32.gmra.mrb[0].mxu0 %v8192
        %v8194 = vpop.f32.mrb[0].mxu0
        %v8195 = vadd.f32 %v7936, %v8194
        %v8196 = vpop.f32.mrb[0].mxu0
        %v8197 = vadd.f32 %v7938, %v8196
        %v8198 = vand.u32 %v7281, 4294901760
        %v8199 = vsub.f32 %v7281, %v8198
        %8200 = vmatprep.mubr.f32.mxu0 %v8199
        %v8201 = vand.u32 %v5088, 4294901760
        %v8202 = vsub.f32 %v5088, %v8201
        %8203 = vmatmul.mubr.f32.gmra.mrb[0].mxu0 %v8202
        %v8204 = vpop.f32.mrb[0].mxu0
        %v8205 = vadd.f32 %v7944, %v8204
        %v8206 = vpop.f32.mrb[0].mxu0
        %v8207 = vadd.f32 %v7946, %v8206
        %v8208 = vand.u32 %v7284, 4294901760
        %v8209 = vsub.f32 %v7284, %v8208
        %8210 = vmatprep.mubr.f32.mxu0 %v8209
        %v8211 = vand.u32 %v5090, 4294901760
        %v8212 = vsub.f32 %v5090, %v8211
        %8213 = vmatmul.mubr.f32.gmra.mrb[0].mxu0 %v8212
        %v8214 = vpop.f32.mrb[0].mxu0
        %v8215 = vadd.f32 %v7952, %v8214
        %v8216 = vpop.f32.mrb[0].mxu0
        %v8217 = vadd.f32 %v7954, %v8216
        %8218 = vdwg.mxu0
        %v8219 = vand.u32 %v4967, 4294901760
        %8220 = vmatprep.subr.mxu0 %v8219
        %v8221 = vand.u32 %v4966, 4294901760
        %8222 = vmatpush1.msra.mxu0 %v8221
        %v8223 = vand.u32 %v4971, 4294901760
        %8224 = vmatprep.subr.mxu0 %v8223
        %v8225 = vand.u32 %v4970, 4294901760
        %8226 = vmatpush1.msra.mxu0 %v8225
        %v8227 = vand.u32 %v4975, 4294901760
        %8228 = vmatprep.subr.mxu0 %v8227
        %v8229 = vand.u32 %v4974, 4294901760
        %8230 = vmatpush1.msra.mxu0 %v8229
        %v8231 = vand.u32 %v4979, 4294901760
        %8232 = vmatprep.subr.mxu0 %v8231
        %v8233 = vand.u32 %v4978, 4294901760
        %8234 = vmatpush1.msra.mxu0 %v8233
        %v8235 = vand.u32 %v4983, 4294901760
        %8236 = vmatprep.subr.mxu0 %v8235
        %v8237 = vand.u32 %v4982, 4294901760
        %8238 = vmatpush1.msra.mxu0 %v8237
        %v8239 = vand.u32 %v4987, 4294901760
        %8240 = vmatprep.subr.mxu0 %v8239
        %v8241 = vand.u32 %v4986, 4294901760
        %8242 = vmatpush1.msra.mxu0 %v8241
        %v8243 = vand.u32 %v4991, 4294901760
        %8244 = vmatprep.subr.mxu0 %v8243
        %v8245 = vand.u32 %v4990, 4294901760
        %8246 = vmatpush1.msra.mxu0 %v8245
        %v8247 = vand.u32 %v4995, 4294901760
        %8248 = vmatprep.subr.mxu0 %v8247
        %v8249 = vand.u32 %v4994, 4294901760
        %8250 = vmatpush1.msra.mxu0 %v8249
        %v8251 = vand.u32 %v4999, 4294901760
        %8252 = vmatprep.subr.mxu0 %v8251
        %v8253 = vand.u32 %v4998, 4294901760
        %8254 = vmatpush1.msra.mxu0 %v8253
        %v8255 = vand.u32 %v5003, 4294901760
        %8256 = vmatprep.subr.mxu0 %v8255
        %v8257 = vand.u32 %v5002, 4294901760
        %8258 = vmatpush1.msra.mxu0 %v8257
        %v8259 = vand.u32 %v5007, 4294901760
        %8260 = vmatprep.subr.mxu0 %v8259
        %v8261 = vand.u32 %v5006, 4294901760
        %8262 = vmatpush1.msra.mxu0 %v8261
        %v8263 = vand.u32 %v5011, 4294901760
        %8264 = vmatprep.subr.mxu0 %v8263
        %v8265 = vand.u32 %v5010, 4294901760
        %8266 = vmatpush1.msra.mxu0 %v8265
        %v8267 = vand.u32 %v5015, 4294901760
        %8268 = vmatprep.subr.mxu0 %v8267
        %v8269 = vand.u32 %v5014, 4294901760
        %8270 = vmatpush1.msra.mxu0 %v8269
        %v8271 = vand.u32 %v5019, 4294901760
        %8272 = vmatprep.subr.mxu0 %v8271
        %v8273 = vand.u32 %v5018, 4294901760
        %8274 = vmatpush1.msra.mxu0 %v8273
        %v8275 = vand.u32 %v5023, 4294901760
        %8276 = vmatprep.subr.mxu0 %v8275
        %v8277 = vand.u32 %v5022, 4294901760
        %8278 = vmatpush1.msra.mxu0 %v8277
        %v8279 = vand.u32 %v5027, 4294901760
        %8280 = vmatprep.subr.mxu0 %v8279
        %v8281 = vand.u32 %v5026, 4294901760
        %8282 = vmatpush1.msra.mxu0 %v8281
        %v8283 = vand.u32 %v5031, 4294901760
        %8284 = vmatprep.subr.mxu0 %v8283
        %v8285 = vand.u32 %v5030, 4294901760
        %8286 = vmatpush1.msra.mxu0 %v8285
        %v8287 = vand.u32 %v5035, 4294901760
        %8288 = vmatprep.subr.mxu0 %v8287
        %v8289 = vand.u32 %v5034, 4294901760
        %8290 = vmatpush1.msra.mxu0 %v8289
        %v8291 = vand.u32 %v5039, 4294901760
        %8292 = vmatprep.subr.mxu0 %v8291
        %v8293 = vand.u32 %v5038, 4294901760
        %8294 = vmatpush1.msra.mxu0 %v8293
        %v8295 = vand.u32 %v5043, 4294901760
        %8296 = vmatprep.subr.mxu0 %v8295
        %v8297 = vand.u32 %v5042, 4294901760
        %8298 = vmatpush1.msra.mxu0 %v8297
        %v8299 = vand.u32 %v5047, 4294901760
        %8300 = vmatprep.subr.mxu0 %v8299
        %v8301 = vand.u32 %v5046, 4294901760
        %8302 = vmatpush1.msra.mxu0 %v8301
        %v8303 = vand.u32 %v5051, 4294901760
        %8304 = vmatprep.subr.mxu0 %v8303
        %v8305 = vand.u32 %v5050, 4294901760
        %8306 = vmatpush1.msra.mxu0 %v8305
        %v8307 = vand.u32 %v5055, 4294901760
        %8308 = vmatprep.subr.mxu0 %v8307
        %v8309 = vand.u32 %v5054, 4294901760
        %8310 = vmatpush1.msra.mxu0 %v8309
        %v8311 = vand.u32 %v5059, 4294901760
        %8312 = vmatprep.subr.mxu0 %v8311
        %v8313 = vand.u32 %v5058, 4294901760
        %8314 = vmatpush1.msra.mxu0 %v8313
        %v8315 = vand.u32 %v5063, 4294901760
        %8316 = vmatprep.subr.mxu0 %v8315
        %v8317 = vand.u32 %v5062, 4294901760
        %8318 = vmatpush1.msra.mxu0 %v8317
        %v8319 = vand.u32 %v5067, 4294901760
        %8320 = vmatprep.subr.mxu0 %v8319
        %v8321 = vand.u32 %v5066, 4294901760
        %8322 = vmatpush1.msra.mxu0 %v8321
        %v8323 = vand.u32 %v5071, 4294901760
        %8324 = vmatprep.subr.mxu0 %v8323
        %v8325 = vand.u32 %v5070, 4294901760
        %8326 = vmatpush1.msra.mxu0 %v8325
        %8327 = vmatprep.subr.mxu0 0.0
        %8328 = vmatpush1.msra.mxu0 0.0
        %8329 = vmatprep.subr.mxu0 0.0
        %8330 = vmatpush1.msra.mxu0 0.0
        %8331 = vmatprep.subr.mxu0 0.0
        %8332 = vmatpush1.msra.mxu0 0.0
        %8333 = vmatprep.subr.mxu0 0.0
        %8334 = vmatpush1.msra.mxu0 0.0
        %8335 = vmatprep.subr.mxu0 0.0
        %8336 = vmatpush1.msra.mxu0 0.0
        %v8337 = vand.u32 %v7260, 4294901760
        %v8338 = vsub.f32 %v7260, %v8337
        %v8339 = vand.u32 %v8338, 4294901760
        %8340 = vmatprep.mubr.f32.mxu0 %v8339
        %v8341 = vand.u32 %v5074, 4294901760
        %v8342 = vsub.f32 %v5074, %v8341
        %v8343 = vand.u32 %v8342, 4294901760
        %8344 = vmatmul.mubr.f32.gmra.mrb[0].mxu0 %v8343
        %v8345 = vpop.f32.mrb[0].mxu0
        %v8346 = vadd.f32 %v8135, %v8345
        %v8347 = vpop.f32.mrb[0].mxu0
        %v8348 = vadd.f32 %v8137, %v8347
        %v8349 = vand.u32 %v7263, 4294901760
        %v8350 = vsub.f32 %v7263, %v8349
        %v8351 = vand.u32 %v8350, 4294901760
        %8352 = vmatprep.mubr.f32.mxu0 %v8351
        %v8353 = vand.u32 %v5076, 4294901760
        %v8354 = vsub.f32 %v5076, %v8353
        %v8355 = vand.u32 %v8354, 4294901760
        %8356 = vmatmul.mubr.f32.gmra.mrb[0].mxu0 %v8355
        %v8357 = vpop.f32.mrb[0].mxu0
        %v8358 = vadd.f32 %v8145, %v8357
        %v8359 = vpop.f32.mrb[0].mxu0
        %v8360 = vadd.f32 %v8147, %v8359
        %v8361 = vand.u32 %v7266, 4294901760
        %v8362 = vsub.f32 %v7266, %v8361
        %v8363 = vand.u32 %v8362, 4294901760
        %8364 = vmatprep.mubr.f32.mxu0 %v8363
        %v8365 = vand.u32 %v5078, 4294901760
        %v8366 = vsub.f32 %v5078, %v8365
        %v8367 = vand.u32 %v8366, 4294901760
        %8368 = vmatmul.mubr.f32.gmra.mrb[0].mxu0 %v8367
        %v8369 = vpop.f32.mrb[0].mxu0
        %v8370 = vadd.f32 %v8155, %v8369
        %v8371 = vpop.f32.mrb[0].mxu0
        %v8372 = vadd.f32 %v8157, %v8371
        %v8373 = vand.u32 %v7269, 4294901760
        %v8374 = vsub.f32 %v7269, %v8373
        %v8375 = vand.u32 %v8374, 4294901760
        %8376 = vmatprep.mubr.f32.mxu0 %v8375
        %v8377 = vand.u32 %v5080, 4294901760
        %v8378 = vsub.f32 %v5080, %v8377
        %v8379 = vand.u32 %v8378, 4294901760
        %8380 = vmatmul.mubr.f32.gmra.mrb[0].mxu0 %v8379
        %v8381 = vpop.f32.mrb[0].mxu0
        %v8382 = vadd.f32 %v8165, %v8381
        %v8383 = vpop.f32.mrb[0].mxu0
        %v8384 = vadd.f32 %v8167, %v8383
        %v8385 = vand.u32 %v7272, 4294901760
        %v8386 = vsub.f32 %v7272, %v8385
        %v8387 = vand.u32 %v8386, 4294901760
        %8388 = vmatprep.mubr.f32.mxu0 %v8387
        %v8389 = vand.u32 %v5082, 4294901760
        %v8390 = vsub.f32 %v5082, %v8389
        %v8391 = vand.u32 %v8390, 4294901760
        %8392 = vmatmul.mubr.f32.gmra.mrb[0].mxu0 %v8391
        %v8393 = vpop.f32.mrb[0].mxu0
        %v8394 = vadd.f32 %v8175, %v8393
        %v8395 = vpop.f32.mrb[0].mxu0
        %v8396 = vadd.f32 %v8177, %v8395
        %v8397 = vand.u32 %v7275, 4294901760
        %v8398 = vsub.f32 %v7275, %v8397
        %v8399 = vand.u32 %v8398, 4294901760
        %8400 = vmatprep.mubr.f32.mxu0 %v8399
        %v8401 = vand.u32 %v5084, 4294901760
        %v8402 = vsub.f32 %v5084, %v8401
        %v8403 = vand.u32 %v8402, 4294901760
        %8404 = vmatmul.mubr.f32.gmra.mrb[0].mxu0 %v8403
        %v8405 = vpop.f32.mrb[0].mxu0
        %v8406 = vadd.f32 %v8185, %v8405
        %v8407 = vpop.f32.mrb[0].mxu0
        %v8408 = vadd.f32 %v8187, %v8407
        %v8409 = vand.u32 %v7278, 4294901760
        %v8410 = vsub.f32 %v7278, %v8409
        %v8411 = vand.u32 %v8410, 4294901760
        %8412 = vmatprep.mubr.f32.mxu0 %v8411
        %v8413 = vand.u32 %v5086, 4294901760
        %v8414 = vsub.f32 %v5086, %v8413
        %v8415 = vand.u32 %v8414, 4294901760
        %8416 = vmatmul.mubr.f32.gmra.mrb[0].mxu0 %v8415
        %v8417 = vpop.f32.mrb[0].mxu0
        %v8418 = vadd.f32 %v8195, %v8417
        %v8419 = vpop.f32.mrb[0].mxu0
        %v8420 = vadd.f32 %v8197, %v8419
        %v8421 = vand.u32 %v7281, 4294901760
        %v8422 = vsub.f32 %v7281, %v8421
        %v8423 = vand.u32 %v8422, 4294901760
        %8424 = vmatprep.mubr.f32.mxu0 %v8423
        %v8425 = vand.u32 %v5088, 4294901760
        %v8426 = vsub.f32 %v5088, %v8425
        %v8427 = vand.u32 %v8426, 4294901760
        %8428 = vmatmul.mubr.f32.gmra.mrb[0].mxu0 %v8427
        %v8429 = vpop.f32.mrb[0].mxu0
        %v8430 = vadd.f32 %v8205, %v8429
        %v8431 = vpop.f32.mrb[0].mxu0
        %v8432 = vadd.f32 %v8207, %v8431
        %v8433 = vand.u32 %v7284, 4294901760
        %v8434 = vsub.f32 %v7284, %v8433
        %v8435 = vand.u32 %v8434, 4294901760
        %8436 = vmatprep.mubr.f32.mxu0 %v8435
        %v8437 = vand.u32 %v5090, 4294901760
        %v8438 = vsub.f32 %v5090, %v8437
        %v8439 = vand.u32 %v8438, 4294901760
        %8440 = vmatmul.mubr.f32.gmra.mrb[0].mxu0 %v8439
        %v8441 = vpop.f32.mrb[0].mxu0
        %v8442 = vadd.f32 %v8215, %v8441
        %v8443 = vpop.f32.mrb[0].mxu0
        %v8444 = vadd.f32 %v8217, %v8443
        %8445 = vdwg.mxu0
        %v8446 = vand.u32 %v4967, 4294901760
        %v8447 = vsub.f32 %v4967, %v8446
        %v8448 = vand.u32 %v8447, 4294901760
        %8449 = vmatprep.subr.mxu0 %v8448
        %v8450 = vand.u32 %v4966, 4294901760
        %v8451 = vsub.f32 %v4966, %v8450
        %v8452 = vand.u32 %v8451, 4294901760
        %8453 = vmatpush1.msra.mxu0 %v8452
        %v8454 = vand.u32 %v4971, 4294901760
        %v8455 = vsub.f32 %v4971, %v8454
        %v8456 = vand.u32 %v8455, 4294901760
        %8457 = vmatprep.subr.mxu0 %v8456
        %v8458 = vand.u32 %v4970, 4294901760
        %v8459 = vsub.f32 %v4970, %v8458
        %v8460 = vand.u32 %v8459, 4294901760
        %8461 = vmatpush1.msra.mxu0 %v8460
        %v8462 = vand.u32 %v4975, 4294901760
        %v8463 = vsub.f32 %v4975, %v8462
        %v8464 = vand.u32 %v8463, 4294901760
        %8465 = vmatprep.subr.mxu0 %v8464
        %v8466 = vand.u32 %v4974, 4294901760
        %v8467 = vsub.f32 %v4974, %v8466
        %v8468 = vand.u32 %v8467, 4294901760
        %8469 = vmatpush1.msra.mxu0 %v8468
        %v8470 = vand.u32 %v4979, 4294901760
        %v8471 = vsub.f32 %v4979, %v8470
        %v8472 = vand.u32 %v8471, 4294901760
        %8473 = vmatprep.subr.mxu0 %v8472
        %v8474 = vand.u32 %v4978, 4294901760
        %v8475 = vsub.f32 %v4978, %v8474
        %v8476 = vand.u32 %v8475, 4294901760
        %8477 = vmatpush1.msra.mxu0 %v8476
        %v8478 = vand.u32 %v4983, 4294901760
        %v8479 = vsub.f32 %v4983, %v8478
        %v8480 = vand.u32 %v8479, 4294901760
        %8481 = vmatprep.subr.mxu0 %v8480
        %v8482 = vand.u32 %v4982, 4294901760
        %v8483 = vsub.f32 %v4982, %v8482
        %v8484 = vand.u32 %v8483, 4294901760
        %8485 = vmatpush1.msra.mxu0 %v8484
        %v8486 = vand.u32 %v4987, 4294901760
        %v8487 = vsub.f32 %v4987, %v8486
        %v8488 = vand.u32 %v8487, 4294901760
        %8489 = vmatprep.subr.mxu0 %v8488
        %v8490 = vand.u32 %v4986, 4294901760
        %v8491 = vsub.f32 %v4986, %v8490
        %v8492 = vand.u32 %v8491, 4294901760
        %8493 = vmatpush1.msra.mxu0 %v8492
        %v8494 = vand.u32 %v4991, 4294901760
        %v8495 = vsub.f32 %v4991, %v8494
        %v8496 = vand.u32 %v8495, 4294901760
        %8497 = vmatprep.subr.mxu0 %v8496
        %v8498 = vand.u32 %v4990, 4294901760
        %v8499 = vsub.f32 %v4990, %v8498
        %v8500 = vand.u32 %v8499, 4294901760
        %8501 = vmatpush1.msra.mxu0 %v8500
        %v8502 = vand.u32 %v4995, 4294901760
        %v8503 = vsub.f32 %v4995, %v8502
        %v8504 = vand.u32 %v8503, 4294901760
        %8505 = vmatprep.subr.mxu0 %v8504
        %v8506 = vand.u32 %v4994, 4294901760
        %v8507 = vsub.f32 %v4994, %v8506
        %v8508 = vand.u32 %v8507, 4294901760
        %8509 = vmatpush1.msra.mxu0 %v8508
        %v8510 = vand.u32 %v4999, 4294901760
        %v8511 = vsub.f32 %v4999, %v8510
        %v8512 = vand.u32 %v8511, 4294901760
        %8513 = vmatprep.subr.mxu0 %v8512
        %v8514 = vand.u32 %v4998, 4294901760
        %v8515 = vsub.f32 %v4998, %v8514
        %v8516 = vand.u32 %v8515, 4294901760
        %8517 = vmatpush1.msra.mxu0 %v8516
        %v8518 = vand.u32 %v5003, 4294901760
        %v8519 = vsub.f32 %v5003, %v8518
        %v8520 = vand.u32 %v8519, 4294901760
        %8521 = vmatprep.subr.mxu0 %v8520
        %v8522 = vand.u32 %v5002, 4294901760
        %v8523 = vsub.f32 %v5002, %v8522
        %v8524 = vand.u32 %v8523, 4294901760
        %8525 = vmatpush1.msra.mxu0 %v8524
        %v8526 = vand.u32 %v5007, 4294901760
        %v8527 = vsub.f32 %v5007, %v8526
        %v8528 = vand.u32 %v8527, 4294901760
        %8529 = vmatprep.subr.mxu0 %v8528
        %v8530 = vand.u32 %v5006, 4294901760
        %v8531 = vsub.f32 %v5006, %v8530
        %v8532 = vand.u32 %v8531, 4294901760
        %8533 = vmatpush1.msra.mxu0 %v8532
        %v8534 = vand.u32 %v5011, 4294901760
        %v8535 = vsub.f32 %v5011, %v8534
        %v8536 = vand.u32 %v8535, 4294901760
        %8537 = vmatprep.subr.mxu0 %v8536
        %v8538 = vand.u32 %v5010, 4294901760
        %v8539 = vsub.f32 %v5010, %v8538
        %v8540 = vand.u32 %v8539, 4294901760
        %8541 = vmatpush1.msra.mxu0 %v8540
        %v8542 = vand.u32 %v5015, 4294901760
        %v8543 = vsub.f32 %v5015, %v8542
        %v8544 = vand.u32 %v8543, 4294901760
        %8545 = vmatprep.subr.mxu0 %v8544
        %v8546 = vand.u32 %v5014, 4294901760
        %v8547 = vsub.f32 %v5014, %v8546
        %v8548 = vand.u32 %v8547, 4294901760
        %8549 = vmatpush1.msra.mxu0 %v8548
        %v8550 = vand.u32 %v5019, 4294901760
        %v8551 = vsub.f32 %v5019, %v8550
        %v8552 = vand.u32 %v8551, 4294901760
        %8553 = vmatprep.subr.mxu0 %v8552
        %v8554 = vand.u32 %v5018, 4294901760
        %v8555 = vsub.f32 %v5018, %v8554
        %v8556 = vand.u32 %v8555, 4294901760
        %8557 = vmatpush1.msra.mxu0 %v8556
        %v8558 = vand.u32 %v5023, 4294901760
        %v8559 = vsub.f32 %v5023, %v8558
        %v8560 = vand.u32 %v8559, 4294901760
        %8561 = vmatprep.subr.mxu0 %v8560
        %v8562 = vand.u32 %v5022, 4294901760
        %v8563 = vsub.f32 %v5022, %v8562
        %v8564 = vand.u32 %v8563, 4294901760
        %8565 = vmatpush1.msra.mxu0 %v8564
        %v8566 = vand.u32 %v5027, 4294901760
        %v8567 = vsub.f32 %v5027, %v8566
        %v8568 = vand.u32 %v8567, 4294901760
        %8569 = vmatprep.subr.mxu0 %v8568
        %v8570 = vand.u32 %v5026, 4294901760
        %v8571 = vsub.f32 %v5026, %v8570
        %v8572 = vand.u32 %v8571, 4294901760
        %8573 = vmatpush1.msra.mxu0 %v8572
        %v8574 = vand.u32 %v5031, 4294901760
        %v8575 = vsub.f32 %v5031, %v8574
        %v8576 = vand.u32 %v8575, 4294901760
        %8577 = vmatprep.subr.mxu0 %v8576
        %v8578 = vand.u32 %v5030, 4294901760
        %v8579 = vsub.f32 %v5030, %v8578
        %v8580 = vand.u32 %v8579, 4294901760
        %8581 = vmatpush1.msra.mxu0 %v8580
        %v8582 = vand.u32 %v5035, 4294901760
        %v8583 = vsub.f32 %v5035, %v8582
        %v8584 = vand.u32 %v8583, 4294901760
        %8585 = vmatprep.subr.mxu0 %v8584
        %v8586 = vand.u32 %v5034, 4294901760
        %v8587 = vsub.f32 %v5034, %v8586
        %v8588 = vand.u32 %v8587, 4294901760
        %8589 = vmatpush1.msra.mxu0 %v8588
        %v8590 = vand.u32 %v5039, 4294901760
        %v8591 = vsub.f32 %v5039, %v8590
        %v8592 = vand.u32 %v8591, 4294901760
        %8593 = vmatprep.subr.mxu0 %v8592
        %v8594 = vand.u32 %v5038, 4294901760
        %v8595 = vsub.f32 %v5038, %v8594
        %v8596 = vand.u32 %v8595, 4294901760
        %8597 = vmatpush1.msra.mxu0 %v8596
        %v8598 = vand.u32 %v5043, 4294901760
        %v8599 = vsub.f32 %v5043, %v8598
        %v8600 = vand.u32 %v8599, 4294901760
        %8601 = vmatprep.subr.mxu0 %v8600
        %v8602 = vand.u32 %v5042, 4294901760
        %v8603 = vsub.f32 %v5042, %v8602
        %v8604 = vand.u32 %v8603, 4294901760
        %8605 = vmatpush1.msra.mxu0 %v8604
        %v8606 = vand.u32 %v5047, 4294901760
        %v8607 = vsub.f32 %v5047, %v8606
        %v8608 = vand.u32 %v8607, 4294901760
        %8609 = vmatprep.subr.mxu0 %v8608
        %v8610 = vand.u32 %v5046, 4294901760
        %v8611 = vsub.f32 %v5046, %v8610
        %v8612 = vand.u32 %v8611, 4294901760
        %8613 = vmatpush1.msra.mxu0 %v8612
        %v8614 = vand.u32 %v5051, 4294901760
        %v8615 = vsub.f32 %v5051, %v8614
        %v8616 = vand.u32 %v8615, 4294901760
        %8617 = vmatprep.subr.mxu0 %v8616
        %v8618 = vand.u32 %v5050, 4294901760
        %v8619 = vsub.f32 %v5050, %v8618
        %v8620 = vand.u32 %v8619, 4294901760
        %8621 = vmatpush1.msra.mxu0 %v8620
        %v8622 = vand.u32 %v5055, 4294901760
        %v8623 = vsub.f32 %v5055, %v8622
        %v8624 = vand.u32 %v8623, 4294901760
        %8625 = vmatprep.subr.mxu0 %v8624
        %v8626 = vand.u32 %v5054, 4294901760
        %v8627 = vsub.f32 %v5054, %v8626
        %v8628 = vand.u32 %v8627, 4294901760
        %8629 = vmatpush1.msra.mxu0 %v8628
        %v8630 = vand.u32 %v5059, 4294901760
        %v8631 = vsub.f32 %v5059, %v8630
        %v8632 = vand.u32 %v8631, 4294901760
        %8633 = vmatprep.subr.mxu0 %v8632
        %v8634 = vand.u32 %v5058, 4294901760
        %v8635 = vsub.f32 %v5058, %v8634
        %v8636 = vand.u32 %v8635, 4294901760
        %8637 = vmatpush1.msra.mxu0 %v8636
        %v8638 = vand.u32 %v5063, 4294901760
        %v8639 = vsub.f32 %v5063, %v8638
        %v8640 = vand.u32 %v8639, 4294901760
        %8641 = vmatprep.subr.mxu0 %v8640
        %v8642 = vand.u32 %v5062, 4294901760
        %v8643 = vsub.f32 %v5062, %v8642
        %v8644 = vand.u32 %v8643, 4294901760
        %8645 = vmatpush1.msra.mxu0 %v8644
        %v8646 = vand.u32 %v5067, 4294901760
        %v8647 = vsub.f32 %v5067, %v8646
        %v8648 = vand.u32 %v8647, 4294901760
        %8649 = vmatprep.subr.mxu0 %v8648
        %v8650 = vand.u32 %v5066, 4294901760
        %v8651 = vsub.f32 %v5066, %v8650
        %v8652 = vand.u32 %v8651, 4294901760
        %8653 = vmatpush1.msra.mxu0 %v8652
        %v8654 = vand.u32 %v5071, 4294901760
        %v8655 = vsub.f32 %v5071, %v8654
        %v8656 = vand.u32 %v8655, 4294901760
        %8657 = vmatprep.subr.mxu0 %v8656
        %v8658 = vand.u32 %v5070, 4294901760
        %v8659 = vsub.f32 %v5070, %v8658
        %v8660 = vand.u32 %v8659, 4294901760
        %8661 = vmatpush1.msra.mxu0 %v8660
        %8662 = vmatprep.subr.mxu0 0.0
        %8663 = vmatpush1.msra.mxu0 0.0
        %8664 = vmatprep.subr.mxu0 0.0
        %8665 = vmatpush1.msra.mxu0 0.0
        %8666 = vmatprep.subr.mxu0 0.0
        %8667 = vmatpush1.msra.mxu0 0.0
        %8668 = vmatprep.subr.mxu0 0.0
        %8669 = vmatpush1.msra.mxu0 0.0
        %8670 = vmatprep.subr.mxu0 0.0
        %8671 = vmatpush1.msra.mxu0 0.0
        %v8672 = vand.u32 %v7260, 4294901760
        %8673 = vmatprep.mubr.f32.mxu0 %v8672
        %v8674 = vand.u32 %v5074, 4294901760
        %8675 = vmatmul.mubr.f32.gmra.mrb[0].mxu0 %v8674
        %v8676 = vpop.f32.mrb[0].mxu0
        %v8677 = vadd.f32 %v8346, %v8676
        %v8678 = vpop.f32.mrb[0].mxu0
        %v8679 = vadd.f32 %v8348, %v8678
        %v8680 = vand.u32 %v7263, 4294901760
        %8681 = vmatprep.mubr.f32.mxu0 %v8680
        %v8682 = vand.u32 %v5076, 4294901760
        %8683 = vmatmul.mubr.f32.gmra.mrb[0].mxu0 %v8682
        %v8684 = vpop.f32.mrb[0].mxu0
        %v8685 = vadd.f32 %v8358, %v8684
        %v8686 = vpop.f32.mrb[0].mxu0
        %v8687 = vadd.f32 %v8360, %v8686
        %v8688 = vand.u32 %v7266, 4294901760
        %8689 = vmatprep.mubr.f32.mxu0 %v8688
        %v8690 = vand.u32 %v5078, 4294901760
        %8691 = vmatmul.mubr.f32.gmra.mrb[0].mxu0 %v8690
        %v8692 = vpop.f32.mrb[0].mxu0
        %v8693 = vadd.f32 %v8370, %v8692
        %v8694 = vpop.f32.mrb[0].mxu0
        %v8695 = vadd.f32 %v8372, %v8694
        %v8696 = vand.u32 %v7269, 4294901760
        %8697 = vmatprep.mubr.f32.mxu0 %v8696
        %v8698 = vand.u32 %v5080, 4294901760
        %8699 = vmatmul.mubr.f32.gmra.mrb[0].mxu0 %v8698
        %v8700 = vpop.f32.mrb[0].mxu0
        %v8701 = vadd.f32 %v8382, %v8700
        %v8702 = vpop.f32.mrb[0].mxu0
        %v8703 = vadd.f32 %v8384, %v8702
        %v8704 = vand.u32 %v7272, 4294901760
        %8705 = vmatprep.mubr.f32.mxu0 %v8704
        %v8706 = vand.u32 %v5082, 4294901760
        %8707 = vmatmul.mubr.f32.gmra.mrb[0].mxu0 %v8706
        %v8708 = vpop.f32.mrb[0].mxu0
        %v8709 = vadd.f32 %v8394, %v8708
        %v8710 = vpop.f32.mrb[0].mxu0
        %v8711 = vadd.f32 %v8396, %v8710
        %v8712 = vand.u32 %v7275, 4294901760
        %8713 = vmatprep.mubr.f32.mxu0 %v8712
        %v8714 = vand.u32 %v5084, 4294901760
        %8715 = vmatmul.mubr.f32.gmra.mrb[0].mxu0 %v8714
        %v8716 = vpop.f32.mrb[0].mxu0
        %v8717 = vadd.f32 %v8406, %v8716
        %v8718 = vpop.f32.mrb[0].mxu0
        %v8719 = vadd.f32 %v8408, %v8718
        %v8720 = vand.u32 %v7278, 4294901760
        %8721 = vmatprep.mubr.f32.mxu0 %v8720
        %v8722 = vand.u32 %v5086, 4294901760
        %8723 = vmatmul.mubr.f32.gmra.mrb[0].mxu0 %v8722
        %v8724 = vpop.f32.mrb[0].mxu0
        %v8725 = vadd.f32 %v8418, %v8724
        %v8726 = vpop.f32.mrb[0].mxu0
        %v8727 = vadd.f32 %v8420, %v8726
        %v8728 = vand.u32 %v7281, 4294901760
        %8729 = vmatprep.mubr.f32.mxu0 %v8728
        %v8730 = vand.u32 %v5088, 4294901760
        %8731 = vmatmul.mubr.f32.gmra.mrb[0].mxu0 %v8730
        %v8732 = vpop.f32.mrb[0].mxu0
        %v8733 = vadd.f32 %v8430, %v8732
        %v8734 = vpop.f32.mrb[0].mxu0
        %v8735 = vadd.f32 %v8432, %v8734
        %v8736 = vand.u32 %v7284, 4294901760
        %8737 = vmatprep.mubr.f32.mxu0 %v8736
        %v8738 = vand.u32 %v5090, 4294901760
        %8739 = vmatmul.mubr.f32.gmra.mrb[0].mxu0 %v8738
        %v8740 = vpop.f32.mrb[0].mxu0
        %v8741 = vadd.f32 %v8442, %v8740
        %v8742 = vpop.f32.mrb[0].mxu0
        %v8743 = vadd.f32 %v8444, %v8742
        %8744 = vdwg.mxu0
        %v8745 = vand.u32 %v4967, 4294901760
        %8746 = vmatprep.subr.mxu0 %v8745
        %v8747 = vand.u32 %v4966, 4294901760
        %8748 = vmatpush1.msra.mxu0 %v8747
        %v8749 = vand.u32 %v4971, 4294901760
        %8750 = vmatprep.subr.mxu0 %v8749
        %v8751 = vand.u32 %v4970, 4294901760
        %8752 = vmatpush1.msra.mxu0 %v8751
        %v8753 = vand.u32 %v4975, 4294901760
        %8754 = vmatprep.subr.mxu0 %v8753
        %v8755 = vand.u32 %v4974, 4294901760
        %8756 = vmatpush1.msra.mxu0 %v8755
        %v8757 = vand.u32 %v4979, 4294901760
        %8758 = vmatprep.subr.mxu0 %v8757
        %v8759 = vand.u32 %v4978, 4294901760
        %8760 = vmatpush1.msra.mxu0 %v8759
        %v8761 = vand.u32 %v4983, 4294901760
        %8762 = vmatprep.subr.mxu0 %v8761
        %v8763 = vand.u32 %v4982, 4294901760
        %8764 = vmatpush1.msra.mxu0 %v8763
        %v8765 = vand.u32 %v4987, 4294901760
        %8766 = vmatprep.subr.mxu0 %v8765
        %v8767 = vand.u32 %v4986, 4294901760
        %8768 = vmatpush1.msra.mxu0 %v8767
        %v8769 = vand.u32 %v4991, 4294901760
        %8770 = vmatprep.subr.mxu0 %v8769
        %v8771 = vand.u32 %v4990, 4294901760
        %8772 = vmatpush1.msra.mxu0 %v8771
        %v8773 = vand.u32 %v4995, 4294901760
        %8774 = vmatprep.subr.mxu0 %v8773
        %v8775 = vand.u32 %v4994, 4294901760
        %8776 = vmatpush1.msra.mxu0 %v8775
        %v8777 = vand.u32 %v4999, 4294901760
        %8778 = vmatprep.subr.mxu0 %v8777
        %v8779 = vand.u32 %v4998, 4294901760
        %8780 = vmatpush1.msra.mxu0 %v8779
        %v8781 = vand.u32 %v5003, 4294901760
        %8782 = vmatprep.subr.mxu0 %v8781
        %v8783 = vand.u32 %v5002, 4294901760
        %8784 = vmatpush1.msra.mxu0 %v8783
        %v8785 = vand.u32 %v5007, 4294901760
        %8786 = vmatprep.subr.mxu0 %v8785
        %v8787 = vand.u32 %v5006, 4294901760
        %8788 = vmatpush1.msra.mxu0 %v8787
        %v8789 = vand.u32 %v5011, 4294901760
        %8790 = vmatprep.subr.mxu0 %v8789
        %v8791 = vand.u32 %v5010, 4294901760
        %8792 = vmatpush1.msra.mxu0 %v8791
        %v8793 = vand.u32 %v5015, 4294901760
        %8794 = vmatprep.subr.mxu0 %v8793
        %v8795 = vand.u32 %v5014, 4294901760
        %8796 = vmatpush1.msra.mxu0 %v8795
        %v8797 = vand.u32 %v5019, 4294901760
        %8798 = vmatprep.subr.mxu0 %v8797
        %v8799 = vand.u32 %v5018, 4294901760
        %8800 = vmatpush1.msra.mxu0 %v8799
        %v8801 = vand.u32 %v5023, 4294901760
        %8802 = vmatprep.subr.mxu0 %v8801
        %v8803 = vand.u32 %v5022, 4294901760
        %8804 = vmatpush1.msra.mxu0 %v8803
        %v8805 = vand.u32 %v5027, 4294901760
        %8806 = vmatprep.subr.mxu0 %v8805
        %v8807 = vand.u32 %v5026, 4294901760
        %8808 = vmatpush1.msra.mxu0 %v8807
        %v8809 = vand.u32 %v5031, 4294901760
        %8810 = vmatprep.subr.mxu0 %v8809
        %v8811 = vand.u32 %v5030, 4294901760
        %8812 = vmatpush1.msra.mxu0 %v8811
        %v8813 = vand.u32 %v5035, 4294901760
        %8814 = vmatprep.subr.mxu0 %v8813
        %v8815 = vand.u32 %v5034, 4294901760
        %8816 = vmatpush1.msra.mxu0 %v8815
        %v8817 = vand.u32 %v5039, 4294901760
        %8818 = vmatprep.subr.mxu0 %v8817
        %v8819 = vand.u32 %v5038, 4294901760
        %8820 = vmatpush1.msra.mxu0 %v8819
        %v8821 = vand.u32 %v5043, 4294901760
        %8822 = vmatprep.subr.mxu0 %v8821
        %v8823 = vand.u32 %v5042, 4294901760
        %8824 = vmatpush1.msra.mxu0 %v8823
        %v8825 = vand.u32 %v5047, 4294901760
        %8826 = vmatprep.subr.mxu0 %v8825
        %v8827 = vand.u32 %v5046, 4294901760
        %8828 = vmatpush1.msra.mxu0 %v8827
        %v8829 = vand.u32 %v5051, 4294901760
        %8830 = vmatprep.subr.mxu0 %v8829
        %v8831 = vand.u32 %v5050, 4294901760
        %8832 = vmatpush1.msra.mxu0 %v8831
        %v8833 = vand.u32 %v5055, 4294901760
        %8834 = vmatprep.subr.mxu0 %v8833
        %v8835 = vand.u32 %v5054, 4294901760
        %8836 = vmatpush1.msra.mxu0 %v8835
        %v8837 = vand.u32 %v5059, 4294901760
        %8838 = vmatprep.subr.mxu0 %v8837
        %v8839 = vand.u32 %v5058, 4294901760
        %8840 = vmatpush1.msra.mxu0 %v8839
        %v8841 = vand.u32 %v5063, 4294901760
        %8842 = vmatprep.subr.mxu0 %v8841
        %v8843 = vand.u32 %v5062, 4294901760
        %8844 = vmatpush1.msra.mxu0 %v8843
        %v8845 = vand.u32 %v5067, 4294901760
        %8846 = vmatprep.subr.mxu0 %v8845
        %v8847 = vand.u32 %v5066, 4294901760
        %8848 = vmatpush1.msra.mxu0 %v8847
        %v8849 = vand.u32 %v5071, 4294901760
        %8850 = vmatprep.subr.mxu0 %v8849
        %v8851 = vand.u32 %v5070, 4294901760
        %8852 = vmatpush1.msra.mxu0 %v8851
        %8853 = vmatprep.subr.mxu0 0.0
        %8854 = vmatpush1.msra.mxu0 0.0
        %8855 = vmatprep.subr.mxu0 0.0
        %8856 = vmatpush1.msra.mxu0 0.0
        %8857 = vmatprep.subr.mxu0 0.0
        %8858 = vmatpush1.msra.mxu0 0.0
        %8859 = vmatprep.subr.mxu0 0.0
        %8860 = vmatpush1.msra.mxu0 0.0
        %8861 = vmatprep.subr.mxu0 0.0
        %8862 = vmatpush1.msra.mxu0 0.0
        %v8863 = vand.u32 %v7260, 4294901760
        %8864 = vmatprep.mubr.f32.mxu0 %v8863
        %v8865 = vand.u32 %v5074, 4294901760
        %8866 = vmatmul.mubr.f32.gmra.mrb[0].mxu0 %v8865
        %v8867 = vpop.f32.mrb[0].mxu0
        %v8868 = vadd.f32 %v8677, %v8867
        %v8869 = vpop.f32.mrb[0].mxu0
        %v8870 = vadd.f32 %v8679, %v8869
        %v8871 = vand.u32 %v7263, 4294901760
        %8872 = vmatprep.mubr.f32.mxu0 %v8871
        %v8873 = vand.u32 %v5076, 4294901760
        %8874 = vmatmul.mubr.f32.gmra.mrb[0].mxu0 %v8873
        %v8875 = vpop.f32.mrb[0].mxu0
        %v8876 = vadd.f32 %v8685, %v8875
        %v8877 = vpop.f32.mrb[0].mxu0
        %v8878 = vadd.f32 %v8687, %v8877
        %v8879 = vand.u32 %v7266, 4294901760
        %8880 = vmatprep.mubr.f32.mxu0 %v8879
        %v8881 = vand.u32 %v5078, 4294901760
        %8882 = vmatmul.mubr.f32.gmra.mrb[0].mxu0 %v8881
        %v8883 = vpop.f32.mrb[0].mxu0
        %v8884 = vadd.f32 %v8693, %v8883
        %v8885 = vpop.f32.mrb[0].mxu0
        %v8886 = vadd.f32 %v8695, %v8885
        %v8887 = vand.u32 %v7269, 4294901760
        %8888 = vmatprep.mubr.f32.mxu0 %v8887
        %v8889 = vand.u32 %v5080, 4294901760
        %8890 = vmatmul.mubr.f32.gmra.mrb[0].mxu0 %v8889
        %v8891 = vpop.f32.mrb[0].mxu0
        %v8892 = vadd.f32 %v8701, %v8891
        %v8893 = vpop.f32.mrb[0].mxu0
        %v8894 = vadd.f32 %v8703, %v8893
        %v8895 = vand.u32 %v7272, 4294901760
        %8896 = vmatprep.mubr.f32.mxu0 %v8895
        %v8897 = vand.u32 %v5082, 4294901760
        %8898 = vmatmul.mubr.f32.gmra.mrb[0].mxu0 %v8897
        %v8899 = vpop.f32.mrb[0].mxu0
        %v8900 = vadd.f32 %v8709, %v8899
        %v8901 = vpop.f32.mrb[0].mxu0
        %v8902 = vadd.f32 %v8711, %v8901
        %v8903 = vand.u32 %v7275, 4294901760
        %8904 = vmatprep.mubr.f32.mxu0 %v8903
        %v8905 = vand.u32 %v5084, 4294901760
        %8906 = vmatmul.mubr.f32.gmra.mrb[0].mxu0 %v8905
        %v8907 = vpop.f32.mrb[0].mxu0
        %v8908 = vadd.f32 %v8717, %v8907
        %v8909 = vpop.f32.mrb[0].mxu0
        %v8910 = vadd.f32 %v8719, %v8909
        %v8911 = vand.u32 %v7278, 4294901760
        %8912 = vmatprep.mubr.f32.mxu0 %v8911
        %v8913 = vand.u32 %v5086, 4294901760
        %8914 = vmatmul.mubr.f32.gmra.mrb[0].mxu0 %v8913
        %v8915 = vpop.f32.mrb[0].mxu0
        %v8916 = vadd.f32 %v8725, %v8915
        %v8917 = vpop.f32.mrb[0].mxu0
        %v8918 = vadd.f32 %v8727, %v8917
        %v8919 = vand.u32 %v7281, 4294901760
        %8920 = vmatprep.mubr.f32.mxu0 %v8919
        %v8921 = vand.u32 %v5088, 4294901760
        %8922 = vmatmul.mubr.f32.gmra.mrb[0].mxu0 %v8921
        %v8923 = vpop.f32.mrb[0].mxu0
        %v8924 = vadd.f32 %v8733, %v8923
        %v8925 = vpop.f32.mrb[0].mxu0
        %v8926 = vadd.f32 %v8735, %v8925
        %v8927 = vand.u32 %v7284, 4294901760
        %8928 = vmatprep.mubr.f32.mxu0 %v8927
        %v8929 = vand.u32 %v5090, 4294901760
        %8930 = vmatmul.mubr.f32.gmra.mrb[0].mxu0 %v8929
        %v8931 = vpop.f32.mrb[0].mxu0
        %v8932 = vadd.f32 %v8741, %v8931
        %v8933 = vpop.f32.mrb[0].mxu0
        %v8934 = vadd.f32 %v8743, %v8933
        %8935 = vdwg.mxu0
        %v8936 = vand.u32 %v4969, 4294901760
        %8937 = vmatprep.subr.mxu0 %v8936
        %v8938 = vand.u32 %v4968, 4294901760
        %8939 = vmatpush1.msra.mxu0 %v8938
        %v8940 = vand.u32 %v4973, 4294901760
        %8941 = vmatprep.subr.mxu0 %v8940
        %v8942 = vand.u32 %v4972, 4294901760
        %8943 = vmatpush1.msra.mxu0 %v8942
        %v8944 = vand.u32 %v4977, 4294901760
        %8945 = vmatprep.subr.mxu0 %v8944
        %v8946 = vand.u32 %v4976, 4294901760
        %8947 = vmatpush1.msra.mxu0 %v8946
        %v8948 = vand.u32 %v4981, 4294901760
        %8949 = vmatprep.subr.mxu0 %v8948
        %v8950 = vand.u32 %v4980, 4294901760
        %8951 = vmatpush1.msra.mxu0 %v8950
        %v8952 = vand.u32 %v4985, 4294901760
        %8953 = vmatprep.subr.mxu0 %v8952
        %v8954 = vand.u32 %v4984, 4294901760
        %8955 = vmatpush1.msra.mxu0 %v8954
        %v8956 = vand.u32 %v4989, 4294901760
        %8957 = vmatprep.subr.mxu0 %v8956
        %v8958 = vand.u32 %v4988, 4294901760
        %8959 = vmatpush1.msra.mxu0 %v8958
        %v8960 = vand.u32 %v4993, 4294901760
        %8961 = vmatprep.subr.mxu0 %v8960
        %v8962 = vand.u32 %v4992, 4294901760
        %8963 = vmatpush1.msra.mxu0 %v8962
        %v8964 = vand.u32 %v4997, 4294901760
        %8965 = vmatprep.subr.mxu0 %v8964
        %v8966 = vand.u32 %v4996, 4294901760
        %8967 = vmatpush1.msra.mxu0 %v8966
        %v8968 = vand.u32 %v5001, 4294901760
        %8969 = vmatprep.subr.mxu0 %v8968
        %v8970 = vand.u32 %v5000, 4294901760
        %8971 = vmatpush1.msra.mxu0 %v8970
        %v8972 = vand.u32 %v5005, 4294901760
        %8973 = vmatprep.subr.mxu0 %v8972
        %v8974 = vand.u32 %v5004, 4294901760
        %8975 = vmatpush1.msra.mxu0 %v8974
        %v8976 = vand.u32 %v5009, 4294901760
        %8977 = vmatprep.subr.mxu0 %v8976
        %v8978 = vand.u32 %v5008, 4294901760
        %8979 = vmatpush1.msra.mxu0 %v8978
        %v8980 = vand.u32 %v5013, 4294901760
        %8981 = vmatprep.subr.mxu0 %v8980
        %v8982 = vand.u32 %v5012, 4294901760
        %8983 = vmatpush1.msra.mxu0 %v8982
        %v8984 = vand.u32 %v5017, 4294901760
        %8985 = vmatprep.subr.mxu0 %v8984
        %v8986 = vand.u32 %v5016, 4294901760
        %8987 = vmatpush1.msra.mxu0 %v8986
        %v8988 = vand.u32 %v5021, 4294901760
        %8989 = vmatprep.subr.mxu0 %v8988
        %v8990 = vand.u32 %v5020, 4294901760
        %8991 = vmatpush1.msra.mxu0 %v8990
        %v8992 = vand.u32 %v5025, 4294901760
        %8993 = vmatprep.subr.mxu0 %v8992
        %v8994 = vand.u32 %v5024, 4294901760
        %8995 = vmatpush1.msra.mxu0 %v8994
        %v8996 = vand.u32 %v5029, 4294901760
        %8997 = vmatprep.subr.mxu0 %v8996
        %v8998 = vand.u32 %v5028, 4294901760
        %8999 = vmatpush1.msra.mxu0 %v8998
        %v9000 = vand.u32 %v5033, 4294901760
        %9001 = vmatprep.subr.mxu0 %v9000
        %v9002 = vand.u32 %v5032, 4294901760
        %9003 = vmatpush1.msra.mxu0 %v9002
        %v9004 = vand.u32 %v5037, 4294901760
        %9005 = vmatprep.subr.mxu0 %v9004
        %v9006 = vand.u32 %v5036, 4294901760
        %9007 = vmatpush1.msra.mxu0 %v9006
        %v9008 = vand.u32 %v5041, 4294901760
        %9009 = vmatprep.subr.mxu0 %v9008
        %v9010 = vand.u32 %v5040, 4294901760
        %9011 = vmatpush1.msra.mxu0 %v9010
        %v9012 = vand.u32 %v5045, 4294901760
        %9013 = vmatprep.subr.mxu0 %v9012
        %v9014 = vand.u32 %v5044, 4294901760
        %9015 = vmatpush1.msra.mxu0 %v9014
        %v9016 = vand.u32 %v5049, 4294901760
        %9017 = vmatprep.subr.mxu0 %v9016
        %v9018 = vand.u32 %v5048, 4294901760
        %9019 = vmatpush1.msra.mxu0 %v9018
        %v9020 = vand.u32 %v5053, 4294901760
        %9021 = vmatprep.subr.mxu0 %v9020
        %v9022 = vand.u32 %v5052, 4294901760
        %9023 = vmatpush1.msra.mxu0 %v9022
        %v9024 = vand.u32 %v5057, 4294901760
        %9025 = vmatprep.subr.mxu0 %v9024
        %v9026 = vand.u32 %v5056, 4294901760
        %9027 = vmatpush1.msra.mxu0 %v9026
        %v9028 = vand.u32 %v5061, 4294901760
        %9029 = vmatprep.subr.mxu0 %v9028
        %v9030 = vand.u32 %v5060, 4294901760
        %9031 = vmatpush1.msra.mxu0 %v9030
        %v9032 = vand.u32 %v5065, 4294901760
        %9033 = vmatprep.subr.mxu0 %v9032
        %v9034 = vand.u32 %v5064, 4294901760
        %9035 = vmatpush1.msra.mxu0 %v9034
        %v9036 = vand.u32 %v5069, 4294901760
        %9037 = vmatprep.subr.mxu0 %v9036
        %v9038 = vand.u32 %v5068, 4294901760
        %9039 = vmatpush1.msra.mxu0 %v9038
        %v9040 = vand.u32 %v5073, 4294901760
        %9041 = vmatprep.subr.mxu0 %v9040
        %v9042 = vand.u32 %v5072, 4294901760
        %9043 = vmatpush1.msra.mxu0 %v9042
        %9044 = vmatprep.subr.mxu0 0.0
        %9045 = vmatpush1.msra.mxu0 0.0
        %9046 = vmatprep.subr.mxu0 0.0
        %9047 = vmatpush1.msra.mxu0 0.0
        %9048 = vmatprep.subr.mxu0 0.0
        %9049 = vmatpush1.msra.mxu0 0.0
        %9050 = vmatprep.subr.mxu0 0.0
        %9051 = vmatpush1.msra.mxu0 0.0
        %9052 = vmatprep.subr.mxu0 0.0
        %9053 = vmatpush1.msra.mxu0 0.0
        %v9054 = vand.u32 %v7260, 4294901760
        %v9055 = vsub.f32 %v7260, %v9054
        %v9056 = vand.u32 %v9055, 4294901760
        %v9057 = vsub.f32 %v9055, %v9056
        %v9058 = vand.u32 %v9057, 4294901760
        %9059 = vmatprep.mubr.f32.mxu0 %v9058
        %v9060 = vand.u32 %v5074, 4294901760
        %v9061 = vsub.f32 %v5074, %v9060
        %v9062 = vand.u32 %v9061, 4294901760
        %v9063 = vsub.f32 %v9061, %v9062
        %v9064 = vand.u32 %v9063, 4294901760
        %9065 = vmatmul.mubr.f32.gmra.mrb[0].mxu0 %v9064
        %v9066 = vpop.f32.mrb[0].mxu0
        %v9067 = vadd.f32 %v7198, %v9066
        %v9068 = vpop.f32.mrb[0].mxu0
        %v9069 = vadd.f32 %v7200, %v9068
        %v9070 = vand.u32 %v7263, 4294901760
        %v9071 = vsub.f32 %v7263, %v9070
        %v9072 = vand.u32 %v9071, 4294901760
        %v9073 = vsub.f32 %v9071, %v9072
        %v9074 = vand.u32 %v9073, 4294901760
        %9075 = vmatprep.mubr.f32.mxu0 %v9074
        %v9076 = vand.u32 %v5076, 4294901760
        %v9077 = vsub.f32 %v5076, %v9076
        %v9078 = vand.u32 %v9077, 4294901760
        %v9079 = vsub.f32 %v9077, %v9078
        %v9080 = vand.u32 %v9079, 4294901760
        %9081 = vmatmul.mubr.f32.gmra.mrb[0].mxu0 %v9080
        %v9082 = vpop.f32.mrb[0].mxu0
        %v9083 = vadd.f32 %v7205, %v9082
        %v9084 = vpop.f32.mrb[0].mxu0
        %v9085 = vadd.f32 %v7207, %v9084
        %v9086 = vand.u32 %v7266, 4294901760
        %v9087 = vsub.f32 %v7266, %v9086
        %v9088 = vand.u32 %v9087, 4294901760
        %v9089 = vsub.f32 %v9087, %v9088
        %v9090 = vand.u32 %v9089, 4294901760
        %9091 = vmatprep.mubr.f32.mxu0 %v9090
        %v9092 = vand.u32 %v5078, 4294901760
        %v9093 = vsub.f32 %v5078, %v9092
        %v9094 = vand.u32 %v9093, 4294901760
        %v9095 = vsub.f32 %v9093, %v9094
        %v9096 = vand.u32 %v9095, 4294901760
        %9097 = vmatmul.mubr.f32.gmra.mrb[0].mxu0 %v9096
        %v9098 = vpop.f32.mrb[0].mxu0
        %v9099 = vadd.f32 %v7212, %v9098
        %v9100 = vpop.f32.mrb[0].mxu0
        %v9101 = vadd.f32 %v7214, %v9100
        %v9102 = vand.u32 %v7269, 4294901760
        %v9103 = vsub.f32 %v7269, %v9102
        %v9104 = vand.u32 %v9103, 4294901760
        %v9105 = vsub.f32 %v9103, %v9104
        %v9106 = vand.u32 %v9105, 4294901760
        %9107 = vmatprep.mubr.f32.mxu0 %v9106
        %v9108 = vand.u32 %v5080, 4294901760
        %v9109 = vsub.f32 %v5080, %v9108
        %v9110 = vand.u32 %v9109, 4294901760
        %v9111 = vsub.f32 %v9109, %v9110
        %v9112 = vand.u32 %v9111, 4294901760
        %9113 = vmatmul.mubr.f32.gmra.mrb[0].mxu0 %v9112
        %v9114 = vpop.f32.mrb[0].mxu0
        %v9115 = vadd.f32 %v7219, %v9114
        %v9116 = vpop.f32.mrb[0].mxu0
        %v9117 = vadd.f32 %v7221, %v9116
        %v9118 = vand.u32 %v7272, 4294901760
        %v9119 = vsub.f32 %v7272, %v9118
        %v9120 = vand.u32 %v9119, 4294901760
        %v9121 = vsub.f32 %v9119, %v9120
        %v9122 = vand.u32 %v9121, 4294901760
        %9123 = vmatprep.mubr.f32.mxu0 %v9122
        %v9124 = vand.u32 %v5082, 4294901760
        %v9125 = vsub.f32 %v5082, %v9124
        %v9126 = vand.u32 %v9125, 4294901760
        %v9127 = vsub.f32 %v9125, %v9126
        %v9128 = vand.u32 %v9127, 4294901760
        %9129 = vmatmul.mubr.f32.gmra.mrb[0].mxu0 %v9128
        %v9130 = vpop.f32.mrb[0].mxu0
        %v9131 = vadd.f32 %v7226, %v9130
        %v9132 = vpop.f32.mrb[0].mxu0
        %v9133 = vadd.f32 %v7228, %v9132
        %v9134 = vand.u32 %v7275, 4294901760
        %v9135 = vsub.f32 %v7275, %v9134
        %v9136 = vand.u32 %v9135, 4294901760
        %v9137 = vsub.f32 %v9135, %v9136
        %v9138 = vand.u32 %v9137, 4294901760
        %9139 = vmatprep.mubr.f32.mxu0 %v9138
        %v9140 = vand.u32 %v5084, 4294901760
        %v9141 = vsub.f32 %v5084, %v9140
        %v9142 = vand.u32 %v9141, 4294901760
        %v9143 = vsub.f32 %v9141, %v9142
        %v9144 = vand.u32 %v9143, 4294901760
        %9145 = vmatmul.mubr.f32.gmra.mrb[0].mxu0 %v9144
        %v9146 = vpop.f32.mrb[0].mxu0
        %v9147 = vadd.f32 %v7233, %v9146
        %v9148 = vpop.f32.mrb[0].mxu0
        %v9149 = vadd.f32 %v7235, %v9148
        %v9150 = vand.u32 %v7278, 4294901760
        %v9151 = vsub.f32 %v7278, %v9150
        %v9152 = vand.u32 %v9151, 4294901760
        %v9153 = vsub.f32 %v9151, %v9152
        %v9154 = vand.u32 %v9153, 4294901760
        %9155 = vmatprep.mubr.f32.mxu0 %v9154
        %v9156 = vand.u32 %v5086, 4294901760
        %v9157 = vsub.f32 %v5086, %v9156
        %v9158 = vand.u32 %v9157, 4294901760
        %v9159 = vsub.f32 %v9157, %v9158
        %v9160 = vand.u32 %v9159, 4294901760
        %9161 = vmatmul.mubr.f32.gmra.mrb[0].mxu0 %v9160
        %v9162 = vpop.f32.mrb[0].mxu0
        %v9163 = vadd.f32 %v7240, %v9162
        %v9164 = vpop.f32.mrb[0].mxu0
        %v9165 = vadd.f32 %v7242, %v9164
        %v9166 = vand.u32 %v7281, 4294901760
        %v9167 = vsub.f32 %v7281, %v9166
        %v9168 = vand.u32 %v9167, 4294901760
        %v9169 = vsub.f32 %v9167, %v9168
        %v9170 = vand.u32 %v9169, 4294901760
        %9171 = vmatprep.mubr.f32.mxu0 %v9170
        %v9172 = vand.u32 %v5088, 4294901760
        %v9173 = vsub.f32 %v5088, %v9172
        %v9174 = vand.u32 %v9173, 4294901760
        %v9175 = vsub.f32 %v9173, %v9174
        %v9176 = vand.u32 %v9175, 4294901760
        %9177 = vmatmul.mubr.f32.gmra.mrb[0].mxu0 %v9176
        %v9178 = vpop.f32.mrb[0].mxu0
        %v9179 = vadd.f32 %v7247, %v9178
        %v9180 = vpop.f32.mrb[0].mxu0
        %v9181 = vadd.f32 %v7249, %v9180
        %v9182 = vand.u32 %v7284, 4294901760
        %v9183 = vsub.f32 %v7284, %v9182
        %v9184 = vand.u32 %v9183, 4294901760
        %v9185 = vsub.f32 %v9183, %v9184
        %v9186 = vand.u32 %v9185, 4294901760
        %9187 = vmatprep.mubr.f32.mxu0 %v9186
        %v9188 = vand.u32 %v5090, 4294901760
        %v9189 = vsub.f32 %v5090, %v9188
        %v9190 = vand.u32 %v9189, 4294901760
        %v9191 = vsub.f32 %v9189, %v9190
        %v9192 = vand.u32 %v9191, 4294901760
        %9193 = vmatmul.mubr.f32.gmra.mrb[0].mxu0 %v9192
        %v9194 = vpop.f32.mrb[0].mxu0
        %v9195 = vadd.f32 %v7254, %v9194
        %v9196 = vpop.f32.mrb[0].mxu0
        %v9197 = vadd.f32 %v7256, %v9196
        %9198 = vdwg.mxu0
        %v9199 = vand.u32 %v4969, 4294901760
        %v9200 = vsub.f32 %v4969, %v9199
        %v9201 = vand.u32 %v9200, 4294901760
        %v9202 = vsub.f32 %v9200, %v9201
        %v9203 = vand.u32 %v9202, 4294901760
        %9204 = vmatprep.subr.mxu0 %v9203
        %v9205 = vand.u32 %v4968, 4294901760
        %v9206 = vsub.f32 %v4968, %v9205
        %v9207 = vand.u32 %v9206, 4294901760
        %v9208 = vsub.f32 %v9206, %v9207
        %v9209 = vand.u32 %v9208, 4294901760
        %9210 = vmatpush1.msra.mxu0 %v9209
        %v9211 = vand.u32 %v4973, 4294901760
        %v9212 = vsub.f32 %v4973, %v9211
        %v9213 = vand.u32 %v9212, 4294901760
        %v9214 = vsub.f32 %v9212, %v9213
        %v9215 = vand.u32 %v9214, 4294901760
        %9216 = vmatprep.subr.mxu0 %v9215
        %v9217 = vand.u32 %v4972, 4294901760
        %v9218 = vsub.f32 %v4972, %v9217
        %v9219 = vand.u32 %v9218, 4294901760
        %v9220 = vsub.f32 %v9218, %v9219
        %v9221 = vand.u32 %v9220, 4294901760
        %9222 = vmatpush1.msra.mxu0 %v9221
        %v9223 = vand.u32 %v4977, 4294901760
        %v9224 = vsub.f32 %v4977, %v9223
        %v9225 = vand.u32 %v9224, 4294901760
        %v9226 = vsub.f32 %v9224, %v9225
        %v9227 = vand.u32 %v9226, 4294901760
        %9228 = vmatprep.subr.mxu0 %v9227
        %v9229 = vand.u32 %v4976, 4294901760
        %v9230 = vsub.f32 %v4976, %v9229
        %v9231 = vand.u32 %v9230, 4294901760
        %v9232 = vsub.f32 %v9230, %v9231
        %v9233 = vand.u32 %v9232, 4294901760
        %9234 = vmatpush1.msra.mxu0 %v9233
        %v9235 = vand.u32 %v4981, 4294901760
        %v9236 = vsub.f32 %v4981, %v9235
        %v9237 = vand.u32 %v9236, 4294901760
        %v9238 = vsub.f32 %v9236, %v9237
        %v9239 = vand.u32 %v9238, 4294901760
        %9240 = vmatprep.subr.mxu0 %v9239
        %v9241 = vand.u32 %v4980, 4294901760
        %v9242 = vsub.f32 %v4980, %v9241
        %v9243 = vand.u32 %v9242, 4294901760
        %v9244 = vsub.f32 %v9242, %v9243
        %v9245 = vand.u32 %v9244, 4294901760
        %9246 = vmatpush1.msra.mxu0 %v9245
        %v9247 = vand.u32 %v4985, 4294901760
        %v9248 = vsub.f32 %v4985, %v9247
        %v9249 = vand.u32 %v9248, 4294901760
        %v9250 = vsub.f32 %v9248, %v9249
        %v9251 = vand.u32 %v9250, 4294901760
        %9252 = vmatprep.subr.mxu0 %v9251
        %v9253 = vand.u32 %v4984, 4294901760
        %v9254 = vsub.f32 %v4984, %v9253
        %v9255 = vand.u32 %v9254, 4294901760
        %v9256 = vsub.f32 %v9254, %v9255
        %v9257 = vand.u32 %v9256, 4294901760
        %9258 = vmatpush1.msra.mxu0 %v9257
        %v9259 = vand.u32 %v4989, 4294901760
        %v9260 = vsub.f32 %v4989, %v9259
        %v9261 = vand.u32 %v9260, 4294901760
        %v9262 = vsub.f32 %v9260, %v9261
        %v9263 = vand.u32 %v9262, 4294901760
        %9264 = vmatprep.subr.mxu0 %v9263
        %v9265 = vand.u32 %v4988, 4294901760
        %v9266 = vsub.f32 %v4988, %v9265
        %v9267 = vand.u32 %v9266, 4294901760
        %v9268 = vsub.f32 %v9266, %v9267
        %v9269 = vand.u32 %v9268, 4294901760
        %9270 = vmatpush1.msra.mxu0 %v9269
        %v9271 = vand.u32 %v4993, 4294901760
        %v9272 = vsub.f32 %v4993, %v9271
        %v9273 = vand.u32 %v9272, 4294901760
        %v9274 = vsub.f32 %v9272, %v9273
        %v9275 = vand.u32 %v9274, 4294901760
        %9276 = vmatprep.subr.mxu0 %v9275
        %v9277 = vand.u32 %v4992, 4294901760
        %v9278 = vsub.f32 %v4992, %v9277
        %v9279 = vand.u32 %v9278, 4294901760
        %v9280 = vsub.f32 %v9278, %v9279
        %v9281 = vand.u32 %v9280, 4294901760
        %9282 = vmatpush1.msra.mxu0 %v9281
        %v9283 = vand.u32 %v4997, 4294901760
        %v9284 = vsub.f32 %v4997, %v9283
        %v9285 = vand.u32 %v9284, 4294901760
        %v9286 = vsub.f32 %v9284, %v9285
        %v9287 = vand.u32 %v9286, 4294901760
        %9288 = vmatprep.subr.mxu0 %v9287
        %v9289 = vand.u32 %v4996, 4294901760
        %v9290 = vsub.f32 %v4996, %v9289
        %v9291 = vand.u32 %v9290, 4294901760
        %v9292 = vsub.f32 %v9290, %v9291
        %v9293 = vand.u32 %v9292, 4294901760
        %9294 = vmatpush1.msra.mxu0 %v9293
        %v9295 = vand.u32 %v5001, 4294901760
        %v9296 = vsub.f32 %v5001, %v9295
        %v9297 = vand.u32 %v9296, 4294901760
        %v9298 = vsub.f32 %v9296, %v9297
        %v9299 = vand.u32 %v9298, 4294901760
        %9300 = vmatprep.subr.mxu0 %v9299
        %v9301 = vand.u32 %v5000, 4294901760
        %v9302 = vsub.f32 %v5000, %v9301
        %v9303 = vand.u32 %v9302, 4294901760
        %v9304 = vsub.f32 %v9302, %v9303
        %v9305 = vand.u32 %v9304, 4294901760
        %9306 = vmatpush1.msra.mxu0 %v9305
        %v9307 = vand.u32 %v5005, 4294901760
        %v9308 = vsub.f32 %v5005, %v9307
        %v9309 = vand.u32 %v9308, 4294901760
        %v9310 = vsub.f32 %v9308, %v9309
        %v9311 = vand.u32 %v9310, 4294901760
        %9312 = vmatprep.subr.mxu0 %v9311
        %v9313 = vand.u32 %v5004, 4294901760
        %v9314 = vsub.f32 %v5004, %v9313
        %v9315 = vand.u32 %v9314, 4294901760
        %v9316 = vsub.f32 %v9314, %v9315
        %v9317 = vand.u32 %v9316, 4294901760
        %9318 = vmatpush1.msra.mxu0 %v9317
        %v9319 = vand.u32 %v5009, 4294901760
        %v9320 = vsub.f32 %v5009, %v9319
        %v9321 = vand.u32 %v9320, 4294901760
        %v9322 = vsub.f32 %v9320, %v9321
        %v9323 = vand.u32 %v9322, 4294901760
        %9324 = vmatprep.subr.mxu0 %v9323
        %v9325 = vand.u32 %v5008, 4294901760
        %v9326 = vsub.f32 %v5008, %v9325
        %v9327 = vand.u32 %v9326, 4294901760
        %v9328 = vsub.f32 %v9326, %v9327
        %v9329 = vand.u32 %v9328, 4294901760
        %9330 = vmatpush1.msra.mxu0 %v9329
        %v9331 = vand.u32 %v5013, 4294901760
        %v9332 = vsub.f32 %v5013, %v9331
        %v9333 = vand.u32 %v9332, 4294901760
        %v9334 = vsub.f32 %v9332, %v9333
        %v9335 = vand.u32 %v9334, 4294901760
        %9336 = vmatprep.subr.mxu0 %v9335
        %v9337 = vand.u32 %v5012, 4294901760
        %v9338 = vsub.f32 %v5012, %v9337
        %v9339 = vand.u32 %v9338, 4294901760
        %v9340 = vsub.f32 %v9338, %v9339
        %v9341 = vand.u32 %v9340, 4294901760
        %9342 = vmatpush1.msra.mxu0 %v9341
        %v9343 = vand.u32 %v5017, 4294901760
        %v9344 = vsub.f32 %v5017, %v9343
        %v9345 = vand.u32 %v9344, 4294901760
        %v9346 = vsub.f32 %v9344, %v9345
        %v9347 = vand.u32 %v9346, 4294901760
        %9348 = vmatprep.subr.mxu0 %v9347
        %v9349 = vand.u32 %v5016, 4294901760
        %v9350 = vsub.f32 %v5016, %v9349
        %v9351 = vand.u32 %v9350, 4294901760
        %v9352 = vsub.f32 %v9350, %v9351
        %v9353 = vand.u32 %v9352, 4294901760
        %9354 = vmatpush1.msra.mxu0 %v9353
        %v9355 = vand.u32 %v5021, 4294901760
        %v9356 = vsub.f32 %v5021, %v9355
        %v9357 = vand.u32 %v9356, 4294901760
        %v9358 = vsub.f32 %v9356, %v9357
        %v9359 = vand.u32 %v9358, 4294901760
        %9360 = vmatprep.subr.mxu0 %v9359
        %v9361 = vand.u32 %v5020, 4294901760
        %v9362 = vsub.f32 %v5020, %v9361
        %v9363 = vand.u32 %v9362, 4294901760
        %v9364 = vsub.f32 %v9362, %v9363
        %v9365 = vand.u32 %v9364, 4294901760
        %9366 = vmatpush1.msra.mxu0 %v9365
        %v9367 = vand.u32 %v5025, 4294901760
        %v9368 = vsub.f32 %v5025, %v9367
        %v9369 = vand.u32 %v9368, 4294901760
        %v9370 = vsub.f32 %v9368, %v9369
        %v9371 = vand.u32 %v9370, 4294901760
        %9372 = vmatprep.subr.mxu0 %v9371
        %v9373 = vand.u32 %v5024, 4294901760
        %v9374 = vsub.f32 %v5024, %v9373
        %v9375 = vand.u32 %v9374, 4294901760
        %v9376 = vsub.f32 %v9374, %v9375
        %v9377 = vand.u32 %v9376, 4294901760
        %9378 = vmatpush1.msra.mxu0 %v9377
        %v9379 = vand.u32 %v5029, 4294901760
        %v9380 = vsub.f32 %v5029, %v9379
        %v9381 = vand.u32 %v9380, 4294901760
        %v9382 = vsub.f32 %v9380, %v9381
        %v9383 = vand.u32 %v9382, 4294901760
        %9384 = vmatprep.subr.mxu0 %v9383
        %v9385 = vand.u32 %v5028, 4294901760
        %v9386 = vsub.f32 %v5028, %v9385
        %v9387 = vand.u32 %v9386, 4294901760
        %v9388 = vsub.f32 %v9386, %v9387
        %v9389 = vand.u32 %v9388, 4294901760
        %9390 = vmatpush1.msra.mxu0 %v9389
        %v9391 = vand.u32 %v5033, 4294901760
        %v9392 = vsub.f32 %v5033, %v9391
        %v9393 = vand.u32 %v9392, 4294901760
        %v9394 = vsub.f32 %v9392, %v9393
        %v9395 = vand.u32 %v9394, 4294901760
        %9396 = vmatprep.subr.mxu0 %v9395
        %v9397 = vand.u32 %v5032, 4294901760
        %v9398 = vsub.f32 %v5032, %v9397
        %v9399 = vand.u32 %v9398, 4294901760
        %v9400 = vsub.f32 %v9398, %v9399
        %v9401 = vand.u32 %v9400, 4294901760
        %9402 = vmatpush1.msra.mxu0 %v9401
        %v9403 = vand.u32 %v5037, 4294901760
        %v9404 = vsub.f32 %v5037, %v9403
        %v9405 = vand.u32 %v9404, 4294901760
        %v9406 = vsub.f32 %v9404, %v9405
        %v9407 = vand.u32 %v9406, 4294901760
        %9408 = vmatprep.subr.mxu0 %v9407
        %v9409 = vand.u32 %v5036, 4294901760
        %v9410 = vsub.f32 %v5036, %v9409
        %v9411 = vand.u32 %v9410, 4294901760
        %v9412 = vsub.f32 %v9410, %v9411
        %v9413 = vand.u32 %v9412, 4294901760
        %9414 = vmatpush1.msra.mxu0 %v9413
        %v9415 = vand.u32 %v5041, 4294901760
        %v9416 = vsub.f32 %v5041, %v9415
        %v9417 = vand.u32 %v9416, 4294901760
        %v9418 = vsub.f32 %v9416, %v9417
        %v9419 = vand.u32 %v9418, 4294901760
        %9420 = vmatprep.subr.mxu0 %v9419
        %v9421 = vand.u32 %v5040, 4294901760
        %v9422 = vsub.f32 %v5040, %v9421
        %v9423 = vand.u32 %v9422, 4294901760
        %v9424 = vsub.f32 %v9422, %v9423
        %v9425 = vand.u32 %v9424, 4294901760
        %9426 = vmatpush1.msra.mxu0 %v9425
        %v9427 = vand.u32 %v5045, 4294901760
        %v9428 = vsub.f32 %v5045, %v9427
        %v9429 = vand.u32 %v9428, 4294901760
        %v9430 = vsub.f32 %v9428, %v9429
        %v9431 = vand.u32 %v9430, 4294901760
        %9432 = vmatprep.subr.mxu0 %v9431
        %v9433 = vand.u32 %v5044, 4294901760
        %v9434 = vsub.f32 %v5044, %v9433
        %v9435 = vand.u32 %v9434, 4294901760
        %v9436 = vsub.f32 %v9434, %v9435
        %v9437 = vand.u32 %v9436, 4294901760
        %9438 = vmatpush1.msra.mxu0 %v9437
        %v9439 = vand.u32 %v5049, 4294901760
        %v9440 = vsub.f32 %v5049, %v9439
        %v9441 = vand.u32 %v9440, 4294901760
        %v9442 = vsub.f32 %v9440, %v9441
        %v9443 = vand.u32 %v9442, 4294901760
        %9444 = vmatprep.subr.mxu0 %v9443
        %v9445 = vand.u32 %v5048, 4294901760
        %v9446 = vsub.f32 %v5048, %v9445
        %v9447 = vand.u32 %v9446, 4294901760
        %v9448 = vsub.f32 %v9446, %v9447
        %v9449 = vand.u32 %v9448, 4294901760
        %9450 = vmatpush1.msra.mxu0 %v9449
        %v9451 = vand.u32 %v5053, 4294901760
        %v9452 = vsub.f32 %v5053, %v9451
        %v9453 = vand.u32 %v9452, 4294901760
        %v9454 = vsub.f32 %v9452, %v9453
        %v9455 = vand.u32 %v9454, 4294901760
        %9456 = vmatprep.subr.mxu0 %v9455
        %v9457 = vand.u32 %v5052, 4294901760
        %v9458 = vsub.f32 %v5052, %v9457
        %v9459 = vand.u32 %v9458, 4294901760
        %v9460 = vsub.f32 %v9458, %v9459
        %v9461 = vand.u32 %v9460, 4294901760
        %9462 = vmatpush1.msra.mxu0 %v9461
        %v9463 = vand.u32 %v5057, 4294901760
        %v9464 = vsub.f32 %v5057, %v9463
        %v9465 = vand.u32 %v9464, 4294901760
        %v9466 = vsub.f32 %v9464, %v9465
        %v9467 = vand.u32 %v9466, 4294901760
        %9468 = vmatprep.subr.mxu0 %v9467
        %v9469 = vand.u32 %v5056, 4294901760
        %v9470 = vsub.f32 %v5056, %v9469
        %v9471 = vand.u32 %v9470, 4294901760
        %v9472 = vsub.f32 %v9470, %v9471
        %v9473 = vand.u32 %v9472, 4294901760
        %9474 = vmatpush1.msra.mxu0 %v9473
        %v9475 = vand.u32 %v5061, 4294901760
        %v9476 = vsub.f32 %v5061, %v9475
        %v9477 = vand.u32 %v9476, 4294901760
        %v9478 = vsub.f32 %v9476, %v9477
        %v9479 = vand.u32 %v9478, 4294901760
        %9480 = vmatprep.subr.mxu0 %v9479
        %v9481 = vand.u32 %v5060, 4294901760
        %v9482 = vsub.f32 %v5060, %v9481
        %v9483 = vand.u32 %v9482, 4294901760
        %v9484 = vsub.f32 %v9482, %v9483
        %v9485 = vand.u32 %v9484, 4294901760
        %9486 = vmatpush1.msra.mxu0 %v9485
        %v9487 = vand.u32 %v5065, 4294901760
        %v9488 = vsub.f32 %v5065, %v9487
        %v9489 = vand.u32 %v9488, 4294901760
        %v9490 = vsub.f32 %v9488, %v9489
        %v9491 = vand.u32 %v9490, 4294901760
        %9492 = vmatprep.subr.mxu0 %v9491
        %v9493 = vand.u32 %v5064, 4294901760
        %v9494 = vsub.f32 %v5064, %v9493
        %v9495 = vand.u32 %v9494, 4294901760
        %v9496 = vsub.f32 %v9494, %v9495
        %v9497 = vand.u32 %v9496, 4294901760
        %9498 = vmatpush1.msra.mxu0 %v9497
        %v9499 = vand.u32 %v5069, 4294901760
        %v9500 = vsub.f32 %v5069, %v9499
        %v9501 = vand.u32 %v9500, 4294901760
        %v9502 = vsub.f32 %v9500, %v9501
        %v9503 = vand.u32 %v9502, 4294901760
        %9504 = vmatprep.subr.mxu0 %v9503
        %v9505 = vand.u32 %v5068, 4294901760
        %v9506 = vsub.f32 %v5068, %v9505
        %v9507 = vand.u32 %v9506, 4294901760
        %v9508 = vsub.f32 %v9506, %v9507
        %v9509 = vand.u32 %v9508, 4294901760
        %9510 = vmatpush1.msra.mxu0 %v9509
        %v9511 = vand.u32 %v5073, 4294901760
        %v9512 = vsub.f32 %v5073, %v9511
        %v9513 = vand.u32 %v9512, 4294901760
        %v9514 = vsub.f32 %v9512, %v9513
        %v9515 = vand.u32 %v9514, 4294901760
        %9516 = vmatprep.subr.mxu0 %v9515
        %v9517 = vand.u32 %v5072, 4294901760
        %v9518 = vsub.f32 %v5072, %v9517
        %v9519 = vand.u32 %v9518, 4294901760
        %v9520 = vsub.f32 %v9518, %v9519
        %v9521 = vand.u32 %v9520, 4294901760
        %9522 = vmatpush1.msra.mxu0 %v9521
        %9523 = vmatprep.subr.mxu0 0.0
        %9524 = vmatpush1.msra.mxu0 0.0
        %9525 = vmatprep.subr.mxu0 0.0
        %9526 = vmatpush1.msra.mxu0 0.0
        %9527 = vmatprep.subr.mxu0 0.0
        %9528 = vmatpush1.msra.mxu0 0.0
        %9529 = vmatprep.subr.mxu0 0.0
        %9530 = vmatpush1.msra.mxu0 0.0
        %9531 = vmatprep.subr.mxu0 0.0
        %9532 = vmatpush1.msra.mxu0 0.0
        %v9533 = vand.u32 %v7260, 4294901760
        %9534 = vmatprep.mubr.f32.mxu0 %v9533
        %v9535 = vand.u32 %v5074, 4294901760
        %9536 = vmatmul.mubr.f32.gmra.mrb[0].mxu0 %v9535
        %v9537 = vpop.f32.mrb[0].mxu0
        %v9538 = vadd.f32 %v9067, %v9537
        %v9539 = vpop.f32.mrb[0].mxu0
        %v9540 = vadd.f32 %v9069, %v9539
        %v9541 = vand.u32 %v7263, 4294901760
        %9542 = vmatprep.mubr.f32.mxu0 %v9541
        %v9543 = vand.u32 %v5076, 4294901760
        %9544 = vmatmul.mubr.f32.gmra.mrb[0].mxu0 %v9543
        %v9545 = vpop.f32.mrb[0].mxu0
        %v9546 = vadd.f32 %v9083, %v9545
        %v9547 = vpop.f32.mrb[0].mxu0
        %v9548 = vadd.f32 %v9085, %v9547
        %v9549 = vand.u32 %v7266, 4294901760
        %9550 = vmatprep.mubr.f32.mxu0 %v9549
        %v9551 = vand.u32 %v5078, 4294901760
        %9552 = vmatmul.mubr.f32.gmra.mrb[0].mxu0 %v9551
        %v9553 = vpop.f32.mrb[0].mxu0
        %v9554 = vadd.f32 %v9099, %v9553
        %v9555 = vpop.f32.mrb[0].mxu0
        %v9556 = vadd.f32 %v9101, %v9555
        %v9557 = vand.u32 %v7269, 4294901760
        %9558 = vmatprep.mubr.f32.mxu0 %v9557
        %v9559 = vand.u32 %v5080, 4294901760
        %9560 = vmatmul.mubr.f32.gmra.mrb[0].mxu0 %v9559
        %v9561 = vpop.f32.mrb[0].mxu0
        %v9562 = vadd.f32 %v9115, %v9561
        %v9563 = vpop.f32.mrb[0].mxu0
        %v9564 = vadd.f32 %v9117, %v9563
        %v9565 = vand.u32 %v7272, 4294901760
        %9566 = vmatprep.mubr.f32.mxu0 %v9565
        %v9567 = vand.u32 %v5082, 4294901760
        %9568 = vmatmul.mubr.f32.gmra.mrb[0].mxu0 %v9567
        %v9569 = vpop.f32.mrb[0].mxu0
        %v9570 = vadd.f32 %v9131, %v9569
        %v9571 = vpop.f32.mrb[0].mxu0
        %v9572 = vadd.f32 %v9133, %v9571
        %v9573 = vand.u32 %v7275, 4294901760
        %9574 = vmatprep.mubr.f32.mxu0 %v9573
        %v9575 = vand.u32 %v5084, 4294901760
        %9576 = vmatmul.mubr.f32.gmra.mrb[0].mxu0 %v9575
        %v9577 = vpop.f32.mrb[0].mxu0
        %v9578 = vadd.f32 %v9147, %v9577
        %v9579 = vpop.f32.mrb[0].mxu0
        %v9580 = vadd.f32 %v9149, %v9579
        %v9581 = vand.u32 %v7278, 4294901760
        %9582 = vmatprep.mubr.f32.mxu0 %v9581
        %v9583 = vand.u32 %v5086, 4294901760
        %9584 = vmatmul.mubr.f32.gmra.mrb[0].mxu0 %v9583
        %v9585 = vpop.f32.mrb[0].mxu0
        %v9586 = vadd.f32 %v9163, %v9585
        %v9587 = vpop.f32.mrb[0].mxu0
        %v9588 = vadd.f32 %v9165, %v9587
        %v9589 = vand.u32 %v7281, 4294901760
        %9590 = vmatprep.mubr.f32.mxu0 %v9589
        %v9591 = vand.u32 %v5088, 4294901760
        %9592 = vmatmul.mubr.f32.gmra.mrb[0].mxu0 %v9591
        %v9593 = vpop.f32.mrb[0].mxu0
        %v9594 = vadd.f32 %v9179, %v9593
        %v9595 = vpop.f32.mrb[0].mxu0
        %v9596 = vadd.f32 %v9181, %v9595
        %v9597 = vand.u32 %v7284, 4294901760
        %9598 = vmatprep.mubr.f32.mxu0 %v9597
        %v9599 = vand.u32 %v5090, 4294901760
        %9600 = vmatmul.mubr.f32.gmra.mrb[0].mxu0 %v9599
        %v9601 = vpop.f32.mrb[0].mxu0
        %v9602 = vadd.f32 %v9195, %v9601
        %v9603 = vpop.f32.mrb[0].mxu0
        %v9604 = vadd.f32 %v9197, %v9603
        %9605 = vdwg.mxu0
        %v9606 = vand.u32 %v4969, 4294901760
        %v9607 = vsub.f32 %v4969, %v9606
        %9608 = vmatprep.subr.mxu0 %v9607
        %v9609 = vand.u32 %v4968, 4294901760
        %v9610 = vsub.f32 %v4968, %v9609
        %9611 = vmatpush1.msra.mxu0 %v9610
        %v9612 = vand.u32 %v4973, 4294901760
        %v9613 = vsub.f32 %v4973, %v9612
        %9614 = vmatprep.subr.mxu0 %v9613
        %v9615 = vand.u32 %v4972, 4294901760
        %v9616 = vsub.f32 %v4972, %v9615
        %9617 = vmatpush1.msra.mxu0 %v9616
        %v9618 = vand.u32 %v4977, 4294901760
        %v9619 = vsub.f32 %v4977, %v9618
        %9620 = vmatprep.subr.mxu0 %v9619
        %v9621 = vand.u32 %v4976, 4294901760
        %v9622 = vsub.f32 %v4976, %v9621
        %9623 = vmatpush1.msra.mxu0 %v9622
        %v9624 = vand.u32 %v4981, 4294901760
        %v9625 = vsub.f32 %v4981, %v9624
        %9626 = vmatprep.subr.mxu0 %v9625
        %v9627 = vand.u32 %v4980, 4294901760
        %v9628 = vsub.f32 %v4980, %v9627
        %9629 = vmatpush1.msra.mxu0 %v9628
        %v9630 = vand.u32 %v4985, 4294901760
        %v9631 = vsub.f32 %v4985, %v9630
        %9632 = vmatprep.subr.mxu0 %v9631
        %v9633 = vand.u32 %v4984, 4294901760
        %v9634 = vsub.f32 %v4984, %v9633
        %9635 = vmatpush1.msra.mxu0 %v9634
        %v9636 = vand.u32 %v4989, 4294901760
        %v9637 = vsub.f32 %v4989, %v9636
        %9638 = vmatprep.subr.mxu0 %v9637
        %v9639 = vand.u32 %v4988, 4294901760
        %v9640 = vsub.f32 %v4988, %v9639
        %9641 = vmatpush1.msra.mxu0 %v9640
        %v9642 = vand.u32 %v4993, 4294901760
        %v9643 = vsub.f32 %v4993, %v9642
        %9644 = vmatprep.subr.mxu0 %v9643
        %v9645 = vand.u32 %v4992, 4294901760
        %v9646 = vsub.f32 %v4992, %v9645
        %9647 = vmatpush1.msra.mxu0 %v9646
        %v9648 = vand.u32 %v4997, 4294901760
        %v9649 = vsub.f32 %v4997, %v9648
        %9650 = vmatprep.subr.mxu0 %v9649
        %v9651 = vand.u32 %v4996, 4294901760
        %v9652 = vsub.f32 %v4996, %v9651
        %9653 = vmatpush1.msra.mxu0 %v9652
        %v9654 = vand.u32 %v5001, 4294901760
        %v9655 = vsub.f32 %v5001, %v9654
        %9656 = vmatprep.subr.mxu0 %v9655
        %v9657 = vand.u32 %v5000, 4294901760
        %v9658 = vsub.f32 %v5000, %v9657
        %9659 = vmatpush1.msra.mxu0 %v9658
        %v9660 = vand.u32 %v5005, 4294901760
        %v9661 = vsub.f32 %v5005, %v9660
        %9662 = vmatprep.subr.mxu0 %v9661
        %v9663 = vand.u32 %v5004, 4294901760
        %v9664 = vsub.f32 %v5004, %v9663
        %9665 = vmatpush1.msra.mxu0 %v9664
        %v9666 = vand.u32 %v5009, 4294901760
        %v9667 = vsub.f32 %v5009, %v9666
        %9668 = vmatprep.subr.mxu0 %v9667
        %v9669 = vand.u32 %v5008, 4294901760
        %v9670 = vsub.f32 %v5008, %v9669
        %9671 = vmatpush1.msra.mxu0 %v9670
        %v9672 = vand.u32 %v5013, 4294901760
        %v9673 = vsub.f32 %v5013, %v9672
        %9674 = vmatprep.subr.mxu0 %v9673
        %v9675 = vand.u32 %v5012, 4294901760
        %v9676 = vsub.f32 %v5012, %v9675
        %9677 = vmatpush1.msra.mxu0 %v9676
        %v9678 = vand.u32 %v5017, 4294901760
        %v9679 = vsub.f32 %v5017, %v9678
        %9680 = vmatprep.subr.mxu0 %v9679
        %v9681 = vand.u32 %v5016, 4294901760
        %v9682 = vsub.f32 %v5016, %v9681
        %9683 = vmatpush1.msra.mxu0 %v9682
        %v9684 = vand.u32 %v5021, 4294901760
        %v9685 = vsub.f32 %v5021, %v9684
        %9686 = vmatprep.subr.mxu0 %v9685
        %v9687 = vand.u32 %v5020, 4294901760
        %v9688 = vsub.f32 %v5020, %v9687
        %9689 = vmatpush1.msra.mxu0 %v9688
        %v9690 = vand.u32 %v5025, 4294901760
        %v9691 = vsub.f32 %v5025, %v9690
        %9692 = vmatprep.subr.mxu0 %v9691
        %v9693 = vand.u32 %v5024, 4294901760
        %v9694 = vsub.f32 %v5024, %v9693
        %9695 = vmatpush1.msra.mxu0 %v9694
        %v9696 = vand.u32 %v5029, 4294901760
        %v9697 = vsub.f32 %v5029, %v9696
        %9698 = vmatprep.subr.mxu0 %v9697
        %v9699 = vand.u32 %v5028, 4294901760
        %v9700 = vsub.f32 %v5028, %v9699
        %9701 = vmatpush1.msra.mxu0 %v9700
        %v9702 = vand.u32 %v5033, 4294901760
        %v9703 = vsub.f32 %v5033, %v9702
        %9704 = vmatprep.subr.mxu0 %v9703
        %v9705 = vand.u32 %v5032, 4294901760
        %v9706 = vsub.f32 %v5032, %v9705
        %9707 = vmatpush1.msra.mxu0 %v9706
        %v9708 = vand.u32 %v5037, 4294901760
        %v9709 = vsub.f32 %v5037, %v9708
        %9710 = vmatprep.subr.mxu0 %v9709
        %v9711 = vand.u32 %v5036, 4294901760
        %v9712 = vsub.f32 %v5036, %v9711
        %9713 = vmatpush1.msra.mxu0 %v9712
        %v9714 = vand.u32 %v5041, 4294901760
        %v9715 = vsub.f32 %v5041, %v9714
        %9716 = vmatprep.subr.mxu0 %v9715
        %v9717 = vand.u32 %v5040, 4294901760
        %v9718 = vsub.f32 %v5040, %v9717
        %9719 = vmatpush1.msra.mxu0 %v9718
        %v9720 = vand.u32 %v5045, 4294901760
        %v9721 = vsub.f32 %v5045, %v9720
        %9722 = vmatprep.subr.mxu0 %v9721
        %v9723 = vand.u32 %v5044, 4294901760
        %v9724 = vsub.f32 %v5044, %v9723
        %9725 = vmatpush1.msra.mxu0 %v9724
        %v9726 = vand.u32 %v5049, 4294901760
        %v9727 = vsub.f32 %v5049, %v9726
        %9728 = vmatprep.subr.mxu0 %v9727
        %v9729 = vand.u32 %v5048, 4294901760
        %v9730 = vsub.f32 %v5048, %v9729
        %9731 = vmatpush1.msra.mxu0 %v9730
        %v9732 = vand.u32 %v5053, 4294901760
        %v9733 = vsub.f32 %v5053, %v9732
        %9734 = vmatprep.subr.mxu0 %v9733
        %v9735 = vand.u32 %v5052, 4294901760
        %v9736 = vsub.f32 %v5052, %v9735
        %9737 = vmatpush1.msra.mxu0 %v9736
        %v9738 = vand.u32 %v5057, 4294901760
        %v9739 = vsub.f32 %v5057, %v9738
        %9740 = vmatprep.subr.mxu0 %v9739
        %v9741 = vand.u32 %v5056, 4294901760
        %v9742 = vsub.f32 %v5056, %v9741
        %9743 = vmatpush1.msra.mxu0 %v9742
        %v9744 = vand.u32 %v5061, 4294901760
        %v9745 = vsub.f32 %v5061, %v9744
        %9746 = vmatprep.subr.mxu0 %v9745
        %v9747 = vand.u32 %v5060, 4294901760
        %v9748 = vsub.f32 %v5060, %v9747
        %9749 = vmatpush1.msra.mxu0 %v9748
        %v9750 = vand.u32 %v5065, 4294901760
        %v9751 = vsub.f32 %v5065, %v9750
        %9752 = vmatprep.subr.mxu0 %v9751
        %v9753 = vand.u32 %v5064, 4294901760
        %v9754 = vsub.f32 %v5064, %v9753
        %9755 = vmatpush1.msra.mxu0 %v9754
        %v9756 = vand.u32 %v5069, 4294901760
        %v9757 = vsub.f32 %v5069, %v9756
        %9758 = vmatprep.subr.mxu0 %v9757
        %v9759 = vand.u32 %v5068, 4294901760
        %v9760 = vsub.f32 %v5068, %v9759
        %9761 = vmatpush1.msra.mxu0 %v9760
        %v9762 = vand.u32 %v5073, 4294901760
        %v9763 = vsub.f32 %v5073, %v9762
        %9764 = vmatprep.subr.mxu0 %v9763
        %v9765 = vand.u32 %v5072, 4294901760
        %v9766 = vsub.f32 %v5072, %v9765
        %9767 = vmatpush1.msra.mxu0 %v9766
        %9768 = vmatprep.subr.mxu0 0.0
        %9769 = vmatpush1.msra.mxu0 0.0
        %9770 = vmatprep.subr.mxu0 0.0
        %9771 = vmatpush1.msra.mxu0 0.0
        %9772 = vmatprep.subr.mxu0 0.0
        %9773 = vmatpush1.msra.mxu0 0.0
        %9774 = vmatprep.subr.mxu0 0.0
        %9775 = vmatpush1.msra.mxu0 0.0
        %9776 = vmatprep.subr.mxu0 0.0
        %9777 = vmatpush1.msra.mxu0 0.0
        %v9778 = vand.u32 %v7260, 4294901760
        %v9779 = vsub.f32 %v7260, %v9778
        %9780 = vmatprep.mubr.f32.mxu0 %v9779
        %v9781 = vand.u32 %v5074, 4294901760
        %v9782 = vsub.f32 %v5074, %v9781
        %9783 = vmatmul.mubr.f32.gmra.mrb[0].mxu0 %v9782
        %v9784 = vpop.f32.mrb[0].mxu0
        %v9785 = vadd.f32 %v9538, %v9784
        %v9786 = vpop.f32.mrb[0].mxu0
        %v9787 = vadd.f32 %v9540, %v9786
        %v9788 = vand.u32 %v7263, 4294901760
        %v9789 = vsub.f32 %v7263, %v9788
        %9790 = vmatprep.mubr.f32.mxu0 %v9789
        %v9791 = vand.u32 %v5076, 4294901760
        %v9792 = vsub.f32 %v5076, %v9791
        %9793 = vmatmul.mubr.f32.gmra.mrb[0].mxu0 %v9792
        %v9794 = vpop.f32.mrb[0].mxu0
        %v9795 = vadd.f32 %v9546, %v9794
        %v9796 = vpop.f32.mrb[0].mxu0
        %v9797 = vadd.f32 %v9548, %v9796
        %v9798 = vand.u32 %v7266, 4294901760
        %v9799 = vsub.f32 %v7266, %v9798
        %9800 = vmatprep.mubr.f32.mxu0 %v9799
        %v9801 = vand.u32 %v5078, 4294901760
        %v9802 = vsub.f32 %v5078, %v9801
        %9803 = vmatmul.mubr.f32.gmra.mrb[0].mxu0 %v9802
        %v9804 = vpop.f32.mrb[0].mxu0
        %v9805 = vadd.f32 %v9554, %v9804
        %v9806 = vpop.f32.mrb[0].mxu0
        %v9807 = vadd.f32 %v9556, %v9806
        %v9808 = vand.u32 %v7269, 4294901760
        %v9809 = vsub.f32 %v7269, %v9808
        %9810 = vmatprep.mubr.f32.mxu0 %v9809
        %v9811 = vand.u32 %v5080, 4294901760
        %v9812 = vsub.f32 %v5080, %v9811
        %9813 = vmatmul.mubr.f32.gmra.mrb[0].mxu0 %v9812
        %v9814 = vpop.f32.mrb[0].mxu0
        %v9815 = vadd.f32 %v9562, %v9814
        %v9816 = vpop.f32.mrb[0].mxu0
        %v9817 = vadd.f32 %v9564, %v9816
        %v9818 = vand.u32 %v7272, 4294901760
        %v9819 = vsub.f32 %v7272, %v9818
        %9820 = vmatprep.mubr.f32.mxu0 %v9819
        %v9821 = vand.u32 %v5082, 4294901760
        %v9822 = vsub.f32 %v5082, %v9821
        %9823 = vmatmul.mubr.f32.gmra.mrb[0].mxu0 %v9822
        %v9824 = vpop.f32.mrb[0].mxu0
        %v9825 = vadd.f32 %v9570, %v9824
        %v9826 = vpop.f32.mrb[0].mxu0
        %v9827 = vadd.f32 %v9572, %v9826
        %v9828 = vand.u32 %v7275, 4294901760
        %v9829 = vsub.f32 %v7275, %v9828
        %9830 = vmatprep.mubr.f32.mxu0 %v9829
        %v9831 = vand.u32 %v5084, 4294901760
        %v9832 = vsub.f32 %v5084, %v9831
        %9833 = vmatmul.mubr.f32.gmra.mrb[0].mxu0 %v9832
        %v9834 = vpop.f32.mrb[0].mxu0
        %v9835 = vadd.f32 %v9578, %v9834
        %v9836 = vpop.f32.mrb[0].mxu0
        %v9837 = vadd.f32 %v9580, %v9836
        %v9838 = vand.u32 %v7278, 4294901760
        %v9839 = vsub.f32 %v7278, %v9838
        %9840 = vmatprep.mubr.f32.mxu0 %v9839
        %v9841 = vand.u32 %v5086, 4294901760
        %v9842 = vsub.f32 %v5086, %v9841
        %9843 = vmatmul.mubr.f32.gmra.mrb[0].mxu0 %v9842
        %v9844 = vpop.f32.mrb[0].mxu0
        %v9845 = vadd.f32 %v9586, %v9844
        %v9846 = vpop.f32.mrb[0].mxu0
        %v9847 = vadd.f32 %v9588, %v9846
        %v9848 = vand.u32 %v7281, 4294901760
        %v9849 = vsub.f32 %v7281, %v9848
        %9850 = vmatprep.mubr.f32.mxu0 %v9849
        %v9851 = vand.u32 %v5088, 4294901760
        %v9852 = vsub.f32 %v5088, %v9851
        %9853 = vmatmul.mubr.f32.gmra.mrb[0].mxu0 %v9852
        %v9854 = vpop.f32.mrb[0].mxu0
        %v9855 = vadd.f32 %v9594, %v9854
        %v9856 = vpop.f32.mrb[0].mxu0
        %v9857 = vadd.f32 %v9596, %v9856
        %v9858 = vand.u32 %v7284, 4294901760
        %v9859 = vsub.f32 %v7284, %v9858
        %9860 = vmatprep.mubr.f32.mxu0 %v9859
        %v9861 = vand.u32 %v5090, 4294901760
        %v9862 = vsub.f32 %v5090, %v9861
        %9863 = vmatmul.mubr.f32.gmra.mrb[0].mxu0 %v9862
        %v9864 = vpop.f32.mrb[0].mxu0
        %v9865 = vadd.f32 %v9602, %v9864
        %v9866 = vpop.f32.mrb[0].mxu0
        %v9867 = vadd.f32 %v9604, %v9866
        %9868 = vdwg.mxu0
        %v9869 = vand.u32 %v4969, 4294901760
        %9870 = vmatprep.subr.mxu0 %v9869
        %v9871 = vand.u32 %v4968, 4294901760
        %9872 = vmatpush1.msra.mxu0 %v9871
        %v9873 = vand.u32 %v4973, 4294901760
        %9874 = vmatprep.subr.mxu0 %v9873
        %v9875 = vand.u32 %v4972, 4294901760
        %9876 = vmatpush1.msra.mxu0 %v9875
        %v9877 = vand.u32 %v4977, 4294901760
        %9878 = vmatprep.subr.mxu0 %v9877
        %v9879 = vand.u32 %v4976, 4294901760
        %9880 = vmatpush1.msra.mxu0 %v9879
        %v9881 = vand.u32 %v4981, 4294901760
        %9882 = vmatprep.subr.mxu0 %v9881
        %v9883 = vand.u32 %v4980, 4294901760
        %9884 = vmatpush1.msra.mxu0 %v9883
        %v9885 = vand.u32 %v4985, 4294901760
        %9886 = vmatprep.subr.mxu0 %v9885
        %v9887 = vand.u32 %v4984, 4294901760
        %9888 = vmatpush1.msra.mxu0 %v9887
        %v9889 = vand.u32 %v4989, 4294901760
        %9890 = vmatprep.subr.mxu0 %v9889
        %v9891 = vand.u32 %v4988, 4294901760
        %9892 = vmatpush1.msra.mxu0 %v9891
        %v9893 = vand.u32 %v4993, 4294901760
        %9894 = vmatprep.subr.mxu0 %v9893
        %v9895 = vand.u32 %v4992, 4294901760
        %9896 = vmatpush1.msra.mxu0 %v9895
        %v9897 = vand.u32 %v4997, 4294901760
        %9898 = vmatprep.subr.mxu0 %v9897
        %v9899 = vand.u32 %v4996, 4294901760
        %9900 = vmatpush1.msra.mxu0 %v9899
        %v9901 = vand.u32 %v5001, 4294901760
        %9902 = vmatprep.subr.mxu0 %v9901
        %v9903 = vand.u32 %v5000, 4294901760
        %9904 = vmatpush1.msra.mxu0 %v9903
        %v9905 = vand.u32 %v5005, 4294901760
        %9906 = vmatprep.subr.mxu0 %v9905
        %v9907 = vand.u32 %v5004, 4294901760
        %9908 = vmatpush1.msra.mxu0 %v9907
        %v9909 = vand.u32 %v5009, 4294901760
        %9910 = vmatprep.subr.mxu0 %v9909
        %v9911 = vand.u32 %v5008, 4294901760
        %9912 = vmatpush1.msra.mxu0 %v9911
        %v9913 = vand.u32 %v5013, 4294901760
        %9914 = vmatprep.subr.mxu0 %v9913
        %v9915 = vand.u32 %v5012, 4294901760
        %9916 = vmatpush1.msra.mxu0 %v9915
        %v9917 = vand.u32 %v5017, 4294901760
        %9918 = vmatprep.subr.mxu0 %v9917
        %v9919 = vand.u32 %v5016, 4294901760
        %9920 = vmatpush1.msra.mxu0 %v9919
        %v9921 = vand.u32 %v5021, 4294901760
        %9922 = vmatprep.subr.mxu0 %v9921
        %v9923 = vand.u32 %v5020, 4294901760
        %9924 = vmatpush1.msra.mxu0 %v9923
        %v9925 = vand.u32 %v5025, 4294901760
        %9926 = vmatprep.subr.mxu0 %v9925
        %v9927 = vand.u32 %v5024, 4294901760
        %9928 = vmatpush1.msra.mxu0 %v9927
        %v9929 = vand.u32 %v5029, 4294901760
        %9930 = vmatprep.subr.mxu0 %v9929
        %v9931 = vand.u32 %v5028, 4294901760
        %9932 = vmatpush1.msra.mxu0 %v9931
        %v9933 = vand.u32 %v5033, 4294901760
        %9934 = vmatprep.subr.mxu0 %v9933
        %v9935 = vand.u32 %v5032, 4294901760
        %9936 = vmatpush1.msra.mxu0 %v9935
        %v9937 = vand.u32 %v5037, 4294901760
        %9938 = vmatprep.subr.mxu0 %v9937
        %v9939 = vand.u32 %v5036, 4294901760
        %9940 = vmatpush1.msra.mxu0 %v9939
        %v9941 = vand.u32 %v5041, 4294901760
        %9942 = vmatprep.subr.mxu0 %v9941
        %v9943 = vand.u32 %v5040, 4294901760
        %9944 = vmatpush1.msra.mxu0 %v9943
        %v9945 = vand.u32 %v5045, 4294901760
        %9946 = vmatprep.subr.mxu0 %v9945
        %v9947 = vand.u32 %v5044, 4294901760
        %9948 = vmatpush1.msra.mxu0 %v9947
        %v9949 = vand.u32 %v5049, 4294901760
        %9950 = vmatprep.subr.mxu0 %v9949
        %v9951 = vand.u32 %v5048, 4294901760
        %9952 = vmatpush1.msra.mxu0 %v9951
        %v9953 = vand.u32 %v5053, 4294901760
        %9954 = vmatprep.subr.mxu0 %v9953
        %v9955 = vand.u32 %v5052, 4294901760
        %9956 = vmatpush1.msra.mxu0 %v9955
        %v9957 = vand.u32 %v5057, 4294901760
        %9958 = vmatprep.subr.mxu0 %v9957
        %v9959 = vand.u32 %v5056, 4294901760
        %9960 = vmatpush1.msra.mxu0 %v9959
        %v9961 = vand.u32 %v5061, 4294901760
        %9962 = vmatprep.subr.mxu0 %v9961
        %v9963 = vand.u32 %v5060, 4294901760
        %9964 = vmatpush1.msra.mxu0 %v9963
        %v9965 = vand.u32 %v5065, 4294901760
        %9966 = vmatprep.subr.mxu0 %v9965
        %v9967 = vand.u32 %v5064, 4294901760
        %9968 = vmatpush1.msra.mxu0 %v9967
        %v9969 = vand.u32 %v5069, 4294901760
        %9970 = vmatprep.subr.mxu0 %v9969
        %v9971 = vand.u32 %v5068, 4294901760
        %9972 = vmatpush1.msra.mxu0 %v9971
        %v9973 = vand.u32 %v5073, 4294901760
        %9974 = vmatprep.subr.mxu0 %v9973
        %v9975 = vand.u32 %v5072, 4294901760
        %9976 = vmatpush1.msra.mxu0 %v9975
        %9977 = vmatprep.subr.mxu0 0.0
        %9978 = vmatpush1.msra.mxu0 0.0
        %9979 = vmatprep.subr.mxu0 0.0
        %9980 = vmatpush1.msra.mxu0 0.0
        %9981 = vmatprep.subr.mxu0 0.0
        %9982 = vmatpush1.msra.mxu0 0.0
        %9983 = vmatprep.subr.mxu0 0.0
        %9984 = vmatpush1.msra.mxu0 0.0
        %9985 = vmatprep.subr.mxu0 0.0
        %9986 = vmatpush1.msra.mxu0 0.0
        %v9987 = vand.u32 %v7260, 4294901760
        %v9988 = vsub.f32 %v7260, %v9987
        %v9989 = vand.u32 %v9988, 4294901760
        %9990 = vmatprep.mubr.f32.mxu0 %v9989
        %v9991 = vand.u32 %v5074, 4294901760
        %v9992 = vsub.f32 %v5074, %v9991
        %v9993 = vand.u32 %v9992, 4294901760
        %9994 = vmatmul.mubr.f32.gmra.mrb[0].mxu0 %v9993
        %v9995 = vpop.f32.mrb[0].mxu0
        %v9996 = vadd.f32 %v9785, %v9995
        %v9997 = vpop.f32.mrb[0].mxu0
        %v9998 = vadd.f32 %v9787, %v9997
        %v9999 = vand.u32 %v7263, 4294901760
        %v10000 = vsub.f32 %v7263, %v9999
        %v10001 = vand.u32 %v10000, 4294901760
        %10002 = vmatprep.mubr.f32.mxu0 %v10001
        %v10003 = vand.u32 %v5076, 4294901760
        %v10004 = vsub.f32 %v5076, %v10003
        %v10005 = vand.u32 %v10004, 4294901760
        %10006 = vmatmul.mubr.f32.gmra.mrb[0].mxu0 %v10005
        %v10007 = vpop.f32.mrb[0].mxu0
        %v10008 = vadd.f32 %v9795, %v10007
        %v10009 = vpop.f32.mrb[0].mxu0
        %v10010 = vadd.f32 %v9797, %v10009
        %v10011 = vand.u32 %v7266, 4294901760
        %v10012 = vsub.f32 %v7266, %v10011
        %v10013 = vand.u32 %v10012, 4294901760
        %10014 = vmatprep.mubr.f32.mxu0 %v10013
        %v10015 = vand.u32 %v5078, 4294901760
        %v10016 = vsub.f32 %v5078, %v10015
        %v10017 = vand.u32 %v10016, 4294901760
        %10018 = vmatmul.mubr.f32.gmra.mrb[0].mxu0 %v10017
        %v10019 = vpop.f32.mrb[0].mxu0
        %v10020 = vadd.f32 %v9805, %v10019
        %v10021 = vpop.f32.mrb[0].mxu0
        %v10022 = vadd.f32 %v9807, %v10021
        %v10023 = vand.u32 %v7269, 4294901760
        %v10024 = vsub.f32 %v7269, %v10023
        %v10025 = vand.u32 %v10024, 4294901760
        %10026 = vmatprep.mubr.f32.mxu0 %v10025
        %v10027 = vand.u32 %v5080, 4294901760
        %v10028 = vsub.f32 %v5080, %v10027
        %v10029 = vand.u32 %v10028, 4294901760
        %10030 = vmatmul.mubr.f32.gmra.mrb[0].mxu0 %v10029
        %v10031 = vpop.f32.mrb[0].mxu0
        %v10032 = vadd.f32 %v9815, %v10031
        %v10033 = vpop.f32.mrb[0].mxu0
        %v10034 = vadd.f32 %v9817, %v10033
        %v10035 = vand.u32 %v7272, 4294901760
        %v10036 = vsub.f32 %v7272, %v10035
        %v10037 = vand.u32 %v10036, 4294901760
        %10038 = vmatprep.mubr.f32.mxu0 %v10037
        %v10039 = vand.u32 %v5082, 4294901760
        %v10040 = vsub.f32 %v5082, %v10039
        %v10041 = vand.u32 %v10040, 4294901760
        %10042 = vmatmul.mubr.f32.gmra.mrb[0].mxu0 %v10041
        %v10043 = vpop.f32.mrb[0].mxu0
        %v10044 = vadd.f32 %v9825, %v10043
        %v10045 = vpop.f32.mrb[0].mxu0
        %v10046 = vadd.f32 %v9827, %v10045
        %v10047 = vand.u32 %v7275, 4294901760
        %v10048 = vsub.f32 %v7275, %v10047
        %v10049 = vand.u32 %v10048, 4294901760
        %10050 = vmatprep.mubr.f32.mxu0 %v10049
        %v10051 = vand.u32 %v5084, 4294901760
        %v10052 = vsub.f32 %v5084, %v10051
        %v10053 = vand.u32 %v10052, 4294901760
        %10054 = vmatmul.mubr.f32.gmra.mrb[0].mxu0 %v10053
        %v10055 = vpop.f32.mrb[0].mxu0
        %v10056 = vadd.f32 %v9835, %v10055
        %v10057 = vpop.f32.mrb[0].mxu0
        %v10058 = vadd.f32 %v9837, %v10057
        %v10059 = vand.u32 %v7278, 4294901760
        %v10060 = vsub.f32 %v7278, %v10059
        %v10061 = vand.u32 %v10060, 4294901760
        %10062 = vmatprep.mubr.f32.mxu0 %v10061
        %v10063 = vand.u32 %v5086, 4294901760
        %v10064 = vsub.f32 %v5086, %v10063
        %v10065 = vand.u32 %v10064, 4294901760
        %10066 = vmatmul.mubr.f32.gmra.mrb[0].mxu0 %v10065
        %v10067 = vpop.f32.mrb[0].mxu0
        %v10068 = vadd.f32 %v9845, %v10067
        %v10069 = vpop.f32.mrb[0].mxu0
        %v10070 = vadd.f32 %v9847, %v10069
        %v10071 = vand.u32 %v7281, 4294901760
        %v10072 = vsub.f32 %v7281, %v10071
        %v10073 = vand.u32 %v10072, 4294901760
        %10074 = vmatprep.mubr.f32.mxu0 %v10073
        %v10075 = vand.u32 %v5088, 4294901760
        %v10076 = vsub.f32 %v5088, %v10075
        %v10077 = vand.u32 %v10076, 4294901760
        %10078 = vmatmul.mubr.f32.gmra.mrb[0].mxu0 %v10077
        %v10079 = vpop.f32.mrb[0].mxu0
        %v10080 = vadd.f32 %v9855, %v10079
        %v10081 = vpop.f32.mrb[0].mxu0
        %v10082 = vadd.f32 %v9857, %v10081
        %v10083 = vand.u32 %v7284, 4294901760
        %v10084 = vsub.f32 %v7284, %v10083
        %v10085 = vand.u32 %v10084, 4294901760
        %10086 = vmatprep.mubr.f32.mxu0 %v10085
        %v10087 = vand.u32 %v5090, 4294901760
        %v10088 = vsub.f32 %v5090, %v10087
        %v10089 = vand.u32 %v10088, 4294901760
        %10090 = vmatmul.mubr.f32.gmra.mrb[0].mxu0 %v10089
        %v10091 = vpop.f32.mrb[0].mxu0
        %v10092 = vadd.f32 %v9865, %v10091
        %v10093 = vpop.f32.mrb[0].mxu0
        %v10094 = vadd.f32 %v9867, %v10093
        %10095 = vdwg.mxu0
        %v10096 = vand.u32 %v4969, 4294901760
        %v10097 = vsub.f32 %v4969, %v10096
        %v10098 = vand.u32 %v10097, 4294901760
        %10099 = vmatprep.subr.mxu0 %v10098
        %v10100 = vand.u32 %v4968, 4294901760
        %v10101 = vsub.f32 %v4968, %v10100
        %v10102 = vand.u32 %v10101, 4294901760
        %10103 = vmatpush1.msra.mxu0 %v10102
        %v10104 = vand.u32 %v4973, 4294901760
        %v10105 = vsub.f32 %v4973, %v10104
        %v10106 = vand.u32 %v10105, 4294901760
        %10107 = vmatprep.subr.mxu0 %v10106
        %v10108 = vand.u32 %v4972, 4294901760
        %v10109 = vsub.f32 %v4972, %v10108
        %v10110 = vand.u32 %v10109, 4294901760
        %10111 = vmatpush1.msra.mxu0 %v10110
        %v10112 = vand.u32 %v4977, 4294901760
        %v10113 = vsub.f32 %v4977, %v10112
        %v10114 = vand.u32 %v10113, 4294901760
        %10115 = vmatprep.subr.mxu0 %v10114
        %v10116 = vand.u32 %v4976, 4294901760
        %v10117 = vsub.f32 %v4976, %v10116
        %v10118 = vand.u32 %v10117, 4294901760
        %10119 = vmatpush1.msra.mxu0 %v10118
        %v10120 = vand.u32 %v4981, 4294901760
        %v10121 = vsub.f32 %v4981, %v10120
        %v10122 = vand.u32 %v10121, 4294901760
        %10123 = vmatprep.subr.mxu0 %v10122
        %v10124 = vand.u32 %v4980, 4294901760
        %v10125 = vsub.f32 %v4980, %v10124
        %v10126 = vand.u32 %v10125, 4294901760
        %10127 = vmatpush1.msra.mxu0 %v10126
        %v10128 = vand.u32 %v4985, 4294901760
        %v10129 = vsub.f32 %v4985, %v10128
        %v10130 = vand.u32 %v10129, 4294901760
        %10131 = vmatprep.subr.mxu0 %v10130
        %v10132 = vand.u32 %v4984, 4294901760
        %v10133 = vsub.f32 %v4984, %v10132
        %v10134 = vand.u32 %v10133, 4294901760
        %10135 = vmatpush1.msra.mxu0 %v10134
        %v10136 = vand.u32 %v4989, 4294901760
        %v10137 = vsub.f32 %v4989, %v10136
        %v10138 = vand.u32 %v10137, 4294901760
        %10139 = vmatprep.subr.mxu0 %v10138
        %v10140 = vand.u32 %v4988, 4294901760
        %v10141 = vsub.f32 %v4988, %v10140
        %v10142 = vand.u32 %v10141, 4294901760
        %10143 = vmatpush1.msra.mxu0 %v10142
        %v10144 = vand.u32 %v4993, 4294901760
        %v10145 = vsub.f32 %v4993, %v10144
        %v10146 = vand.u32 %v10145, 4294901760
        %10147 = vmatprep.subr.mxu0 %v10146
        %v10148 = vand.u32 %v4992, 4294901760
        %v10149 = vsub.f32 %v4992, %v10148
        %v10150 = vand.u32 %v10149, 4294901760
        %10151 = vmatpush1.msra.mxu0 %v10150
        %v10152 = vand.u32 %v4997, 4294901760
        %v10153 = vsub.f32 %v4997, %v10152
        %v10154 = vand.u32 %v10153, 4294901760
        %10155 = vmatprep.subr.mxu0 %v10154
        %v10156 = vand.u32 %v4996, 4294901760
        %v10157 = vsub.f32 %v4996, %v10156
        %v10158 = vand.u32 %v10157, 4294901760
        %10159 = vmatpush1.msra.mxu0 %v10158
        %v10160 = vand.u32 %v5001, 4294901760
        %v10161 = vsub.f32 %v5001, %v10160
        %v10162 = vand.u32 %v10161, 4294901760
        %10163 = vmatprep.subr.mxu0 %v10162
        %v10164 = vand.u32 %v5000, 4294901760
        %v10165 = vsub.f32 %v5000, %v10164
        %v10166 = vand.u32 %v10165, 4294901760
        %10167 = vmatpush1.msra.mxu0 %v10166
        %v10168 = vand.u32 %v5005, 4294901760
        %v10169 = vsub.f32 %v5005, %v10168
        %v10170 = vand.u32 %v10169, 4294901760
        %10171 = vmatprep.subr.mxu0 %v10170
        %v10172 = vand.u32 %v5004, 4294901760
        %v10173 = vsub.f32 %v5004, %v10172
        %v10174 = vand.u32 %v10173, 4294901760
        %10175 = vmatpush1.msra.mxu0 %v10174
        %v10176 = vand.u32 %v5009, 4294901760
        %v10177 = vsub.f32 %v5009, %v10176
        %v10178 = vand.u32 %v10177, 4294901760
        %10179 = vmatprep.subr.mxu0 %v10178
        %v10180 = vand.u32 %v5008, 4294901760
        %v10181 = vsub.f32 %v5008, %v10180
        %v10182 = vand.u32 %v10181, 4294901760
        %10183 = vmatpush1.msra.mxu0 %v10182
        %v10184 = vand.u32 %v5013, 4294901760
        %v10185 = vsub.f32 %v5013, %v10184
        %v10186 = vand.u32 %v10185, 4294901760
        %10187 = vmatprep.subr.mxu0 %v10186
        %v10188 = vand.u32 %v5012, 4294901760
        %v10189 = vsub.f32 %v5012, %v10188
        %v10190 = vand.u32 %v10189, 4294901760
        %10191 = vmatpush1.msra.mxu0 %v10190
        %v10192 = vand.u32 %v5017, 4294901760
        %v10193 = vsub.f32 %v5017, %v10192
        %v10194 = vand.u32 %v10193, 4294901760
        %10195 = vmatprep.subr.mxu0 %v10194
        %v10196 = vand.u32 %v5016, 4294901760
        %v10197 = vsub.f32 %v5016, %v10196
        %v10198 = vand.u32 %v10197, 4294901760
        %10199 = vmatpush1.msra.mxu0 %v10198
        %v10200 = vand.u32 %v5021, 4294901760
        %v10201 = vsub.f32 %v5021, %v10200
        %v10202 = vand.u32 %v10201, 4294901760
        %10203 = vmatprep.subr.mxu0 %v10202
        %v10204 = vand.u32 %v5020, 4294901760
        %v10205 = vsub.f32 %v5020, %v10204
        %v10206 = vand.u32 %v10205, 4294901760
        %10207 = vmatpush1.msra.mxu0 %v10206
        %v10208 = vand.u32 %v5025, 4294901760
        %v10209 = vsub.f32 %v5025, %v10208
        %v10210 = vand.u32 %v10209, 4294901760
        %10211 = vmatprep.subr.mxu0 %v10210
        %v10212 = vand.u32 %v5024, 4294901760
        %v10213 = vsub.f32 %v5024, %v10212
        %v10214 = vand.u32 %v10213, 4294901760
        %10215 = vmatpush1.msra.mxu0 %v10214
        %v10216 = vand.u32 %v5029, 4294901760
        %v10217 = vsub.f32 %v5029, %v10216
        %v10218 = vand.u32 %v10217, 4294901760
        %10219 = vmatprep.subr.mxu0 %v10218
        %v10220 = vand.u32 %v5028, 4294901760
        %v10221 = vsub.f32 %v5028, %v10220
        %v10222 = vand.u32 %v10221, 4294901760
        %10223 = vmatpush1.msra.mxu0 %v10222
        %v10224 = vand.u32 %v5033, 4294901760
        %v10225 = vsub.f32 %v5033, %v10224
        %v10226 = vand.u32 %v10225, 4294901760
        %10227 = vmatprep.subr.mxu0 %v10226
        %v10228 = vand.u32 %v5032, 4294901760
        %v10229 = vsub.f32 %v5032, %v10228
        %v10230 = vand.u32 %v10229, 4294901760
        %10231 = vmatpush1.msra.mxu0 %v10230
        %v10232 = vand.u32 %v5037, 4294901760
        %v10233 = vsub.f32 %v5037, %v10232
        %v10234 = vand.u32 %v10233, 4294901760
        %10235 = vmatprep.subr.mxu0 %v10234
        %v10236 = vand.u32 %v5036, 4294901760
        %v10237 = vsub.f32 %v5036, %v10236
        %v10238 = vand.u32 %v10237, 4294901760
        %10239 = vmatpush1.msra.mxu0 %v10238
        %v10240 = vand.u32 %v5041, 4294901760
        %v10241 = vsub.f32 %v5041, %v10240
        %v10242 = vand.u32 %v10241, 4294901760
        %10243 = vmatprep.subr.mxu0 %v10242
        %v10244 = vand.u32 %v5040, 4294901760
        %v10245 = vsub.f32 %v5040, %v10244
        %v10246 = vand.u32 %v10245, 4294901760
        %10247 = vmatpush1.msra.mxu0 %v10246
        %v10248 = vand.u32 %v5045, 4294901760
        %v10249 = vsub.f32 %v5045, %v10248
        %v10250 = vand.u32 %v10249, 4294901760
        %10251 = vmatprep.subr.mxu0 %v10250
        %v10252 = vand.u32 %v5044, 4294901760
        %v10253 = vsub.f32 %v5044, %v10252
        %v10254 = vand.u32 %v10253, 4294901760
        %10255 = vmatpush1.msra.mxu0 %v10254
        %v10256 = vand.u32 %v5049, 4294901760
        %v10257 = vsub.f32 %v5049, %v10256
        %v10258 = vand.u32 %v10257, 4294901760
        %10259 = vmatprep.subr.mxu0 %v10258
        %v10260 = vand.u32 %v5048, 4294901760
        %v10261 = vsub.f32 %v5048, %v10260
        %v10262 = vand.u32 %v10261, 4294901760
        %10263 = vmatpush1.msra.mxu0 %v10262
        %v10264 = vand.u32 %v5053, 4294901760
        %v10265 = vsub.f32 %v5053, %v10264
        %v10266 = vand.u32 %v10265, 4294901760
        %10267 = vmatprep.subr.mxu0 %v10266
        %v10268 = vand.u32 %v5052, 4294901760
        %v10269 = vsub.f32 %v5052, %v10268
        %v10270 = vand.u32 %v10269, 4294901760
        %10271 = vmatpush1.msra.mxu0 %v10270
        %v10272 = vand.u32 %v5057, 4294901760
        %v10273 = vsub.f32 %v5057, %v10272
        %v10274 = vand.u32 %v10273, 4294901760
        %10275 = vmatprep.subr.mxu0 %v10274
        %v10276 = vand.u32 %v5056, 4294901760
        %v10277 = vsub.f32 %v5056, %v10276
        %v10278 = vand.u32 %v10277, 4294901760
        %10279 = vmatpush1.msra.mxu0 %v10278
        %v10280 = vand.u32 %v5061, 4294901760
        %v10281 = vsub.f32 %v5061, %v10280
        %v10282 = vand.u32 %v10281, 4294901760
        %10283 = vmatprep.subr.mxu0 %v10282
        %v10284 = vand.u32 %v5060, 4294901760
        %v10285 = vsub.f32 %v5060, %v10284
        %v10286 = vand.u32 %v10285, 4294901760
        %10287 = vmatpush1.msra.mxu0 %v10286
        %v10288 = vand.u32 %v5065, 4294901760
        %v10289 = vsub.f32 %v5065, %v10288
        %v10290 = vand.u32 %v10289, 4294901760
        %10291 = vmatprep.subr.mxu0 %v10290
        %v10292 = vand.u32 %v5064, 4294901760
        %v10293 = vsub.f32 %v5064, %v10292
        %v10294 = vand.u32 %v10293, 4294901760
        %10295 = vmatpush1.msra.mxu0 %v10294
        %v10296 = vand.u32 %v5069, 4294901760
        %v10297 = vsub.f32 %v5069, %v10296
        %v10298 = vand.u32 %v10297, 4294901760
        %10299 = vmatprep.subr.mxu0 %v10298
        %v10300 = vand.u32 %v5068, 4294901760
        %v10301 = vsub.f32 %v5068, %v10300
        %v10302 = vand.u32 %v10301, 4294901760
        %10303 = vmatpush1.msra.mxu0 %v10302
        %v10304 = vand.u32 %v5073, 4294901760
        %v10305 = vsub.f32 %v5073, %v10304
        %v10306 = vand.u32 %v10305, 4294901760
        %10307 = vmatprep.subr.mxu0 %v10306
        %v10308 = vand.u32 %v5072, 4294901760
        %v10309 = vsub.f32 %v5072, %v10308
        %v10310 = vand.u32 %v10309, 4294901760
        %10311 = vmatpush1.msra.mxu0 %v10310
        %10312 = vmatprep.subr.mxu0 0.0
        %10313 = vmatpush1.msra.mxu0 0.0
        %10314 = vmatprep.subr.mxu0 0.0
        %10315 = vmatpush1.msra.mxu0 0.0
        %10316 = vmatprep.subr.mxu0 0.0
        %10317 = vmatpush1.msra.mxu0 0.0
        %10318 = vmatprep.subr.mxu0 0.0
        %10319 = vmatpush1.msra.mxu0 0.0
        %10320 = vmatprep.subr.mxu0 0.0
        %10321 = vmatpush1.msra.mxu0 0.0
        %v10322 = vand.u32 %v7260, 4294901760
        %10323 = vmatprep.mubr.f32.mxu0 %v10322
        %v10324 = vand.u32 %v5074, 4294901760
        %10325 = vmatmul.mubr.f32.gmra.mrb[0].mxu0 %v10324
        %v10326 = vpop.f32.mrb[0].mxu0
        %v10327 = vadd.f32 %v9996, %v10326
        %v10328 = vpop.f32.mrb[0].mxu0
        %v10329 = vadd.f32 %v9998, %v10328
        %v10330 = vand.u32 %v7263, 4294901760
        %10331 = vmatprep.mubr.f32.mxu0 %v10330
        %v10332 = vand.u32 %v5076, 4294901760
        %10333 = vmatmul.mubr.f32.gmra.mrb[0].mxu0 %v10332
        %v10334 = vpop.f32.mrb[0].mxu0
        %v10335 = vadd.f32 %v10008, %v10334
        %v10336 = vpop.f32.mrb[0].mxu0
        %v10337 = vadd.f32 %v10010, %v10336
        %v10338 = vand.u32 %v7266, 4294901760
        %10339 = vmatprep.mubr.f32.mxu0 %v10338
        %v10340 = vand.u32 %v5078, 4294901760
        %10341 = vmatmul.mubr.f32.gmra.mrb[0].mxu0 %v10340
        %v10342 = vpop.f32.mrb[0].mxu0
        %v10343 = vadd.f32 %v10020, %v10342
        %v10344 = vpop.f32.mrb[0].mxu0
        %v10345 = vadd.f32 %v10022, %v10344
        %v10346 = vand.u32 %v7269, 4294901760
        %10347 = vmatprep.mubr.f32.mxu0 %v10346
        %v10348 = vand.u32 %v5080, 4294901760
        %10349 = vmatmul.mubr.f32.gmra.mrb[0].mxu0 %v10348
        %v10350 = vpop.f32.mrb[0].mxu0
        %v10351 = vadd.f32 %v10032, %v10350
        %v10352 = vpop.f32.mrb[0].mxu0
        %v10353 = vadd.f32 %v10034, %v10352
        %v10354 = vand.u32 %v7272, 4294901760
        %10355 = vmatprep.mubr.f32.mxu0 %v10354
        %v10356 = vand.u32 %v5082, 4294901760
        %10357 = vmatmul.mubr.f32.gmra.mrb[0].mxu0 %v10356
        %v10358 = vpop.f32.mrb[0].mxu0
        %v10359 = vadd.f32 %v10044, %v10358
        %v10360 = vpop.f32.mrb[0].mxu0
        %v10361 = vadd.f32 %v10046, %v10360
        %v10362 = vand.u32 %v7275, 4294901760
        %10363 = vmatprep.mubr.f32.mxu0 %v10362
        %v10364 = vand.u32 %v5084, 4294901760
        %10365 = vmatmul.mubr.f32.gmra.mrb[0].mxu0 %v10364
        %v10366 = vpop.f32.mrb[0].mxu0
        %v10367 = vadd.f32 %v10056, %v10366
        %v10368 = vpop.f32.mrb[0].mxu0
        %v10369 = vadd.f32 %v10058, %v10368
        %v10370 = vand.u32 %v7278, 4294901760
        %10371 = vmatprep.mubr.f32.mxu0 %v10370
        %v10372 = vand.u32 %v5086, 4294901760
        %10373 = vmatmul.mubr.f32.gmra.mrb[0].mxu0 %v10372
        %v10374 = vpop.f32.mrb[0].mxu0
        %v10375 = vadd.f32 %v10068, %v10374
        %v10376 = vpop.f32.mrb[0].mxu0
        %v10377 = vadd.f32 %v10070, %v10376
        %v10378 = vand.u32 %v7281, 4294901760
        %10379 = vmatprep.mubr.f32.mxu0 %v10378
        %v10380 = vand.u32 %v5088, 4294901760
        %10381 = vmatmul.mubr.f32.gmra.mrb[0].mxu0 %v10380
        %v10382 = vpop.f32.mrb[0].mxu0
        %v10383 = vadd.f32 %v10080, %v10382
        %v10384 = vpop.f32.mrb[0].mxu0
        %v10385 = vadd.f32 %v10082, %v10384
        %v10386 = vand.u32 %v7284, 4294901760
        %10387 = vmatprep.mubr.f32.mxu0 %v10386
        %v10388 = vand.u32 %v5090, 4294901760
        %10389 = vmatmul.mubr.f32.gmra.mrb[0].mxu0 %v10388
        %v10390 = vpop.f32.mrb[0].mxu0
        %v10391 = vadd.f32 %v10092, %v10390
        %v10392 = vpop.f32.mrb[0].mxu0
        %v10393 = vadd.f32 %v10094, %v10392
        %10394 = vdwg.mxu0
        %v10395 = vand.u32 %v4969, 4294901760
        %10396 = vmatprep.subr.mxu0 %v10395
        %v10397 = vand.u32 %v4968, 4294901760
        %10398 = vmatpush1.msra.mxu0 %v10397
        %v10399 = vand.u32 %v4973, 4294901760
        %10400 = vmatprep.subr.mxu0 %v10399
        %v10401 = vand.u32 %v4972, 4294901760
        %10402 = vmatpush1.msra.mxu0 %v10401
        %v10403 = vand.u32 %v4977, 4294901760
        %10404 = vmatprep.subr.mxu0 %v10403
        %v10405 = vand.u32 %v4976, 4294901760
        %10406 = vmatpush1.msra.mxu0 %v10405
        %v10407 = vand.u32 %v4981, 4294901760
        %10408 = vmatprep.subr.mxu0 %v10407
        %v10409 = vand.u32 %v4980, 4294901760
        %10410 = vmatpush1.msra.mxu0 %v10409
        %v10411 = vand.u32 %v4985, 4294901760
        %10412 = vmatprep.subr.mxu0 %v10411
        %v10413 = vand.u32 %v4984, 4294901760
        %10414 = vmatpush1.msra.mxu0 %v10413
        %v10415 = vand.u32 %v4989, 4294901760
        %10416 = vmatprep.subr.mxu0 %v10415
        %v10417 = vand.u32 %v4988, 4294901760
        %10418 = vmatpush1.msra.mxu0 %v10417
        %v10419 = vand.u32 %v4993, 4294901760
        %10420 = vmatprep.subr.mxu0 %v10419
        %v10421 = vand.u32 %v4992, 4294901760
        %10422 = vmatpush1.msra.mxu0 %v10421
        %v10423 = vand.u32 %v4997, 4294901760
        %10424 = vmatprep.subr.mxu0 %v10423
        %v10425 = vand.u32 %v4996, 4294901760
        %10426 = vmatpush1.msra.mxu0 %v10425
        %v10427 = vand.u32 %v5001, 4294901760
        %10428 = vmatprep.subr.mxu0 %v10427
        %v10429 = vand.u32 %v5000, 4294901760
        %10430 = vmatpush1.msra.mxu0 %v10429
        %v10431 = vand.u32 %v5005, 4294901760
        %10432 = vmatprep.subr.mxu0 %v10431
        %v10433 = vand.u32 %v5004, 4294901760
        %10434 = vmatpush1.msra.mxu0 %v10433
        %v10435 = vand.u32 %v5009, 4294901760
        %10436 = vmatprep.subr.mxu0 %v10435
        %v10437 = vand.u32 %v5008, 4294901760
        %10438 = vmatpush1.msra.mxu0 %v10437
        %v10439 = vand.u32 %v5013, 4294901760
        %10440 = vmatprep.subr.mxu0 %v10439
        %v10441 = vand.u32 %v5012, 4294901760
        %10442 = vmatpush1.msra.mxu0 %v10441
        %v10443 = vand.u32 %v5017, 4294901760
        %10444 = vmatprep.subr.mxu0 %v10443
        %v10445 = vand.u32 %v5016, 4294901760
        %10446 = vmatpush1.msra.mxu0 %v10445
        %v10447 = vand.u32 %v5021, 4294901760
        %10448 = vmatprep.subr.mxu0 %v10447
        %v10449 = vand.u32 %v5020, 4294901760
        %10450 = vmatpush1.msra.mxu0 %v10449
        %v10451 = vand.u32 %v5025, 4294901760
        %10452 = vmatprep.subr.mxu0 %v10451
        %v10453 = vand.u32 %v5024, 4294901760
        %10454 = vmatpush1.msra.mxu0 %v10453
        %v10455 = vand.u32 %v5029, 4294901760
        %10456 = vmatprep.subr.mxu0 %v10455
        %v10457 = vand.u32 %v5028, 4294901760
        %10458 = vmatpush1.msra.mxu0 %v10457
        %v10459 = vand.u32 %v5033, 4294901760
        %10460 = vmatprep.subr.mxu0 %v10459
        %v10461 = vand.u32 %v5032, 4294901760
        %10462 = vmatpush1.msra.mxu0 %v10461
        %v10463 = vand.u32 %v5037, 4294901760
        %10464 = vmatprep.subr.mxu0 %v10463
        %v10465 = vand.u32 %v5036, 4294901760
        %10466 = vmatpush1.msra.mxu0 %v10465
        %v10467 = vand.u32 %v5041, 4294901760
        %10468 = vmatprep.subr.mxu0 %v10467
        %v10469 = vand.u32 %v5040, 4294901760
        %10470 = vmatpush1.msra.mxu0 %v10469
        %v10471 = vand.u32 %v5045, 4294901760
        %10472 = vmatprep.subr.mxu0 %v10471
        %v10473 = vand.u32 %v5044, 4294901760
        %10474 = vmatpush1.msra.mxu0 %v10473
        %v10475 = vand.u32 %v5049, 4294901760
        %10476 = vmatprep.subr.mxu0 %v10475
        %v10477 = vand.u32 %v5048, 4294901760
        %10478 = vmatpush1.msra.mxu0 %v10477
        %v10479 = vand.u32 %v5053, 4294901760
        %10480 = vmatprep.subr.mxu0 %v10479
        %v10481 = vand.u32 %v5052, 4294901760
        %10482 = vmatpush1.msra.mxu0 %v10481
        %v10483 = vand.u32 %v5057, 4294901760
        %10484 = vmatprep.subr.mxu0 %v10483
        %v10485 = vand.u32 %v5056, 4294901760
        %10486 = vmatpush1.msra.mxu0 %v10485
        %v10487 = vand.u32 %v5061, 4294901760
        %10488 = vmatprep.subr.mxu0 %v10487
        %v10489 = vand.u32 %v5060, 4294901760
        %10490 = vmatpush1.msra.mxu0 %v10489
        %v10491 = vand.u32 %v5065, 4294901760
        %10492 = vmatprep.subr.mxu0 %v10491
        %v10493 = vand.u32 %v5064, 4294901760
        %10494 = vmatpush1.msra.mxu0 %v10493
        %v10495 = vand.u32 %v5069, 4294901760
        %10496 = vmatprep.subr.mxu0 %v10495
        %v10497 = vand.u32 %v5068, 4294901760
        %10498 = vmatpush1.msra.mxu0 %v10497
        %v10499 = vand.u32 %v5073, 4294901760
        %10500 = vmatprep.subr.mxu0 %v10499
        %v10501 = vand.u32 %v5072, 4294901760
        %10502 = vmatpush1.msra.mxu0 %v10501
        %10503 = vmatprep.subr.mxu0 0.0
        %10504 = vmatpush1.msra.mxu0 0.0
        %10505 = vmatprep.subr.mxu0 0.0
        %10506 = vmatpush1.msra.mxu0 0.0
        %10507 = vmatprep.subr.mxu0 0.0
        %10508 = vmatpush1.msra.mxu0 0.0
        %10509 = vmatprep.subr.mxu0 0.0
        %10510 = vmatpush1.msra.mxu0 0.0
        %10511 = vmatprep.subr.mxu0 0.0
        %10512 = vmatpush1.msra.mxu0 0.0
        %v10513 = vand.u32 %v7260, 4294901760
        %10514 = vmatprep.mubr.f32.mxu0 %v10513
        %v10515 = vand.u32 %v5074, 4294901760
        %10516 = vmatmul.mubr.f32.gmra.mrb[0].mxu0 %v10515
        %v10517 = vpop.f32.mrb[0].mxu0
        %v10518 = vadd.f32 %v10327, %v10517
        %v10519 = vpop.f32.mrb[0].mxu0
        %v10520 = vadd.f32 %v10329, %v10519
        %v10521 = vand.u32 %v7263, 4294901760
        %10522 = vmatprep.mubr.f32.mxu0 %v10521
        %v10523 = vand.u32 %v5076, 4294901760
        %10524 = vmatmul.mubr.f32.gmra.mrb[0].mxu0 %v10523
        %v10525 = vpop.f32.mrb[0].mxu0
        %v10526 = vadd.f32 %v10335, %v10525
        %v10527 = vpop.f32.mrb[0].mxu0
        %v10528 = vadd.f32 %v10337, %v10527
        %v10529 = vand.u32 %v7266, 4294901760
        %10530 = vmatprep.mubr.f32.mxu0 %v10529
        %v10531 = vand.u32 %v5078, 4294901760
        %10532 = vmatmul.mubr.f32.gmra.mrb[0].mxu0 %v10531
        %v10533 = vpop.f32.mrb[0].mxu0
        %v10534 = vadd.f32 %v10343, %v10533
        %v10535 = vpop.f32.mrb[0].mxu0
        %v10536 = vadd.f32 %v10345, %v10535
        %v10537 = vand.u32 %v7269, 4294901760
        %10538 = vmatprep.mubr.f32.mxu0 %v10537
        %v10539 = vand.u32 %v5080, 4294901760
        %10540 = vmatmul.mubr.f32.gmra.mrb[0].mxu0 %v10539
        %v10541 = vpop.f32.mrb[0].mxu0
        %v10542 = vadd.f32 %v10351, %v10541
        %v10543 = vpop.f32.mrb[0].mxu0
        %v10544 = vadd.f32 %v10353, %v10543
        %v10545 = vand.u32 %v7272, 4294901760
        %10546 = vmatprep.mubr.f32.mxu0 %v10545
        %v10547 = vand.u32 %v5082, 4294901760
        %10548 = vmatmul.mubr.f32.gmra.mrb[0].mxu0 %v10547
        %v10549 = vpop.f32.mrb[0].mxu0
        %v10550 = vadd.f32 %v10359, %v10549
        %v10551 = vpop.f32.mrb[0].mxu0
        %v10552 = vadd.f32 %v10361, %v10551
        %v10553 = vand.u32 %v7275, 4294901760
        %10554 = vmatprep.mubr.f32.mxu0 %v10553
        %v10555 = vand.u32 %v5084, 4294901760
        %10556 = vmatmul.mubr.f32.gmra.mrb[0].mxu0 %v10555
        %v10557 = vpop.f32.mrb[0].mxu0
        %v10558 = vadd.f32 %v10367, %v10557
        %v10559 = vpop.f32.mrb[0].mxu0
        %v10560 = vadd.f32 %v10369, %v10559
        %v10561 = vand.u32 %v7278, 4294901760
        %10562 = vmatprep.mubr.f32.mxu0 %v10561
        %v10563 = vand.u32 %v5086, 4294901760
        %10564 = vmatmul.mubr.f32.gmra.mrb[0].mxu0 %v10563
        %v10565 = vpop.f32.mrb[0].mxu0
        %v10566 = vadd.f32 %v10375, %v10565
        %v10567 = vpop.f32.mrb[0].mxu0
        %v10568 = vadd.f32 %v10377, %v10567
        %v10569 = vand.u32 %v7281, 4294901760
        %10570 = vmatprep.mubr.f32.mxu0 %v10569
        %v10571 = vand.u32 %v5088, 4294901760
        %10572 = vmatmul.mubr.f32.gmra.mrb[0].mxu0 %v10571
        %v10573 = vpop.f32.mrb[0].mxu0
        %v10574 = vadd.f32 %v10383, %v10573
        %v10575 = vpop.f32.mrb[0].mxu0
        %v10576 = vadd.f32 %v10385, %v10575
        %v10577 = vand.u32 %v7284, 4294901760
        %10578 = vmatprep.mubr.f32.mxu0 %v10577
        %v10579 = vand.u32 %v5090, 4294901760
        %10580 = vmatmul.mubr.f32.gmra.mrb[0].mxu0 %v10579
        %v10581 = vpop.f32.mrb[0].mxu0
        %v10582 = vadd.f32 %v10391, %v10581
        %v10583 = vpop.f32.mrb[0].mxu0
        %v10584 = vadd.f32 %v10393, %v10583
        %10585 = vdwg.mxu0
        %v10586 = vld [vmem:[%s5] sm:$0xff]
        %v10587 = vld [vmem:[%s5 + $0x8] sm:$0xff]
        %v10588 = vld [vmem:[%s5 + $0x10] sm:$0xff]
        %v10589 = vld [vmem:[%s5 + $0x18] sm:$0xff]
        %v10590 = vld [vmem:[%s5 + $0x20] sm:$0xff]
        %v10591 = vld [vmem:[%s5 + $0x28] sm:$0xff]
        %v10592 = vld [vmem:[%s5 + $0x30] sm:$0xff]
        %v10593 = vld [vmem:[%s5 + $0x38] sm:$0xff]
        %v10594 = vld [vmem:[%s5 + $0x40] sm:$0xff]
        %10596 = vset.pattern.permute.xlu0 0
        %10597 = vperm.xlu0 %10596, %v10586
        %v10598 = vpop.permute.xlu0 %10597
        %10601 = vset.pattern.permute.xlu0 0
        %10602 = vperm.xlu0 %10601, %v10587
        %v10603 = vpop.permute.xlu0 %10602
        %10606 = vset.pattern.permute.xlu0 0
        %10607 = vperm.xlu0 %10606, %v10588
        %v10608 = vpop.permute.xlu0 %10607
        %10611 = vset.pattern.permute.xlu0 0
        %10612 = vperm.xlu0 %10611, %v10589
        %v10613 = vpop.permute.xlu0 %10612
        %10616 = vset.pattern.permute.xlu0 0
        %10617 = vperm.xlu0 %10616, %v10590
        %v10618 = vpop.permute.xlu0 %10617
        %10621 = vset.pattern.permute.xlu0 0
        %10622 = vperm.xlu0 %10621, %v10591
        %v10623 = vpop.permute.xlu0 %10622
        %10626 = vset.pattern.permute.xlu0 0
        %10627 = vperm.xlu0 %10626, %v10592
        %v10628 = vpop.permute.xlu0 %10627
        %10631 = vset.pattern.permute.xlu0 0
        %10632 = vperm.xlu0 %10631, %v10593
        %v10633 = vpop.permute.xlu0 %10632
        %10636 = vset.pattern.permute.xlu0 0
        %10637 = vperm.xlu0 %10636, %v10594
        %v10638 = vpop.permute.xlu0 %10637
        %v10640 = vadd.f32 %v8868, %v10598
        %v10641 = vadd.f32 %v8870, %v10598
        %v10642 = vadd.f32 %v10518, %v10598
        %v10643 = vadd.f32 %v10520, %v10598
        %v10644 = vadd.f32 %v8876, %v10603
        %v10645 = vadd.f32 %v8878, %v10603
        %v10646 = vadd.f32 %v10526, %v10603
        %v10647 = vadd.f32 %v10528, %v10603
        %v10648 = vadd.f32 %v8884, %v10608
        %v10649 = vadd.f32 %v8886, %v10608
        %v10650 = vadd.f32 %v10534, %v10608
        %v10651 = vadd.f32 %v10536, %v10608
        %v10652 = vadd.f32 %v8892, %v10613
        %v10653 = vadd.f32 %v8894, %v10613
        %v10654 = vadd.f32 %v10542, %v10613
        %v10655 = vadd.f32 %v10544, %v10613
        %v10656 = vadd.f32 %v8900, %v10618
        %v10657 = vadd.f32 %v8902, %v10618
        %v10658 = vadd.f32 %v10550, %v10618
        %v10659 = vadd.f32 %v10552, %v10618
        %v10660 = vadd.f32 %v8908, %v10623
        %v10661 = vadd.f32 %v8910, %v10623
        %v10662 = vadd.f32 %v10558, %v10623
        %v10663 = vadd.f32 %v10560, %v10623
        %v10664 = vadd.f32 %v8916, %v10628
        %v10665 = vadd.f32 %v8918, %v10628
        %v10666 = vadd.f32 %v10566, %v10628
        %v10667 = vadd.f32 %v10568, %v10628
        %v10668 = vadd.f32 %v8924, %v10633
        %v10669 = vadd.f32 %v8926, %v10633
        %v10670 = vadd.f32 %v10574, %v10633
        %v10671 = vadd.f32 %v10576, %v10633
        %v10672 = vadd.f32 %v8932, %v10638
        %v10673 = vadd.f32 %v8934, %v10638
        %v10674 = vadd.f32 %v10582, %v10638
        %v10675 = vadd.f32 %v10584, %v10638
        %10676 = vst [vmem:[%s754] sm:$0xff] %v10640
        %10677 = vst [vmem:[%s754 + $0x8] sm:$0xff] %v10641
        %10678 = vst [vmem:[%s754 + $0x10] sm:$0xff] %v10642
        %10679 = vst [vmem:[%s754 + $0x18] sm:$0xff] %v10643
        %10680 = vst [vmem:[%s754 + $0x20] sm:$0xff] %v10644
        %10681 = vst [vmem:[%s754 + $0x28] sm:$0xff] %v10645
        %10682 = vst [vmem:[%s754 + $0x30] sm:$0xff] %v10646
        %10683 = vst [vmem:[%s754 + $0x38] sm:$0xff] %v10647
        %10684 = vst [vmem:[%s754 + $0x40] sm:$0xff] %v10648
        %10685 = vst [vmem:[%s754 + $0x48] sm:$0xff] %v10649
        %10686 = vst [vmem:[%s754 + $0x50] sm:$0xff] %v10650
        %10687 = vst [vmem:[%s754 + $0x58] sm:$0xff] %v10651
        %10688 = vst [vmem:[%s754 + $0x60] sm:$0xff] %v10652
        %10689 = vst [vmem:[%s754 + $0x68] sm:$0xff] %v10653
        %10690 = vst [vmem:[%s754 + $0x70] sm:$0xff] %v10654
        %10691 = vst [vmem:[%s754 + $0x78] sm:$0xff] %v10655
        %10692 = vst [vmem:[%s754 + $0x80] sm:$0xff] %v10656
        %10693 = vst [vmem:[%s754 + $0x88] sm:$0xff] %v10657
        %10694 = vst [vmem:[%s754 + $0x90] sm:$0xff] %v10658
        %10695 = vst [vmem:[%s754 + $0x98] sm:$0xff] %v10659
        %10696 = vst [vmem:[%s754 + $0xa0] sm:$0xff] %v10660
        %10697 = vst [vmem:[%s754 + $0xa8] sm:$0xff] %v10661
        %10698 = vst [vmem:[%s754 + $0xb0] sm:$0xff] %v10662
        %10699 = vst [vmem:[%s754 + $0xb8] sm:$0xff] %v10663
        %10700 = vst [vmem:[%s754 + $0xc0] sm:$0xff] %v10664
        %10701 = vst [vmem:[%s754 + $0xc8] sm:$0xff] %v10665
        %10702 = vst [vmem:[%s754 + $0xd0] sm:$0xff] %v10666
        %10703 = vst [vmem:[%s754 + $0xd8] sm:$0xff] %v10667
        %10704 = vst [vmem:[%s754 + $0xe0] sm:$0xff] %v10668
        %10705 = vst [vmem:[%s754 + $0xe8] sm:$0xff] %v10669
        %10706 = vst [vmem:[%s754 + $0xf0] sm:$0xff] %v10670
        %10707 = vst [vmem:[%s754 + $0xf8] sm:$0xff] %v10671
        %10708 = vst [vmem:[%s754 + $0x100] sm:$0xff] %v10672
        %10709 = vst [vmem:[%s754 + $0x108] sm:$0xff] %v10673
        %10710 = vst [vmem:[%s754 + $0x110] sm:$0xff] %v10674
        %10711 = vst [vmem:[%s754 + $0x118] sm:$0xff] %v10675
        %s10712 = sand.u32 %s159, 1
        %s10713 = scalar_lea.sflag [#allocation4], %s10712
        %s10714 = sand.u32 %s159, 1
        %s10715 = smul.addr %s10714, 288
        %s10716 = scalar_lea.vmem [#allocation3], %s10715
        // Predicated region
        $region111: #{tpu_custom_call.1} parent=105 // pred_check
          %p10717 = pneg %p169
        $region112: #{tpu_custom_call.1} parent=105 // pred_check_branch
          %10719 = sbr.rel (%p10717) target = $region114
        $region113: #{tpu_custom_call.1} parent=105 // pred_region
          %s10720 = smul.u32 4, %s20
          %s10721 = ssub.s32 5, %s10720
          %p10722 = scmp.lt.s32.totalorder %s10721, 4
          %s10723 = scalar_select %p10722, %s10721, 4
          %s10724 = smul.u32 1152, %s10723
          %s10726 = ssub.s32 4608, %s10724
          %10727 = vsyncadd %s10713, %s10726
          %p10728 = scmp.ne.s32.totalorder 0, %s10724
          %s10729 = smul.addr %s10720, 128
          %s10730 = scalar_lea.hbm %s6, %s10729
          %s10731 = smul.u32 %s10723, 8
          %s10732 = smul.u32 %s10731, 9
          %s10733 = sshll.u32 %s10716, 4
          %s10734 = int_to_ptr.vmem [resolvable:$true] %s10733
          %s10735 = sshll.u32 %s10732, 4
          %10739 = dma.vmem_to_hbm [thread:$0]  (%p10728), %s10734, %s10735, %s10730, %s10713, 512, 640, %s10731
        $region114: #{tpu_custom_call.1} parent=105 // pred_fallthru
          _
      $region106: #{tpu_custom_call.1} parent=5 // pred_fallthru
        _
      %p10740 = scmp.le.s32.totalorder 2, %s15
      // Predicated region
      $region115: #{tpu_custom_call.1} parent=5 // pred_check
        %p10741 = pneg %p10740
      $region116: #{tpu_custom_call.1} parent=5 // pred_check_branch
        %10743 = sbr.rel (%p10741) target = $region118
      $region117: #{tpu_custom_call.1} parent=5 // pred_region
        %s10744 = ssub.s32 %s15, 2
        // Predicated region
        $region119: #{tpu_custom_call.1} parent=117 // pred_check
          %p10745 = pneg %p175
        $region120: #{tpu_custom_call.1} parent=117 // pred_check_branch
          %10747 = sbr.rel (%p10745) target = $region122
        $region121: #{tpu_custom_call.1} parent=117 // pred_region
          %s10748 = sand.u32 %s160, 1
          %s10749 = scalar_lea.sflag [#allocation4], %s10748
          %s10750 = sand.u32 %s160, 1
          %s10751 = smul.addr %s10750, 288
          %s10752 = scalar_lea.vmem [#allocation3], %s10751
          %10753 = dma.done %s10749, 4608
        $region122: #{tpu_custom_call.1} parent=117 // pred_fallthru
          _
      $region118: #{tpu_custom_call.1} parent=5 // pred_fallthru
        _
    $region6: #{tpu_custom_call.1} parent=1 // loop_footer
      %s19 = sadd.s32 1, %s15
    $region7: #{tpu_custom_call.1} parent=1 // loop_footer_branch
      %14 = sbr.rel target = $region3
    $region8: #{tpu_custom_call.1} parent=1 // loop_exit
      _
    %10754 = vsyncpa [#allocation4], 1
    %s10755 = scalar_lea.sflag [#allocation4], 1
    %10756 = vsyncpa %s10755, 1

</llo_original>
